<compile_context>
chip_gen: v7x
topology: tpu7x:2x2x1
jax: 0.10.0
libtpu: 0.0.40
codegen_flags: <defaults>
</compile_context>

<pallas_src>
import jax
import jax.numpy as jnp
from jax.experimental import pallas as pl
from jax.experimental.pallas import tpu as pltpu


def _round_up(x, m):
    return (x + m - 1) // m * m


def _conv_out(s):
    # Conv2d(kernel=3, stride=2, padding=1) output size.
    return (s - 1) // 2 + 1


def _make_encoder_kernel(hp0, wp0, dims, compute_dtype):
    """Builds the fused 3-ConvBlock kernel for one padded image block."""
    c0, c1, c2, c3p = dims
    h0, w0 = hp0 - 2, wp0 - 2
    h1, w1 = _conv_out(h0), _conv_out(w0)
    h2, w2 = _conv_out(h1), _conv_out(w1)
    h3, w3 = _conv_out(h2), _conv_out(w2)

    def conv_block(src_ref, w_ref, b_ref, h_out, w_out, cin, cout):
        """relu(conv3x3_s2(src) + b) over a zero-padded VMEM ref -> (h_out, w_out, cout) f32."""
        acc = jnp.zeros((h_out, w_out, cout), jnp.float32)
        for t in range(9):                                   # statically unrolled taps
            kh, kw = divmod(t, 3)
            # In-VMEM strided tap gather (stride-2 rows/cols, all channels) on a 32-bit ref.
            tap = src_ref[pl.ds(kh, h_out, 2), pl.ds(kw, w_out, 2), :]
            tap = tap.astype(compute_dtype)                  # bf16 operands for the native MXU path
            w_t = jnp.broadcast_to(w_ref[t], (h_out, cin, cout))
            # Batched MXU matmul over output rows, f32 accumulation (no in-kernel reshapes).
            acc = acc + jnp.einsum("hwc,hcd->hwd", tap, w_t,
                                   preferred_element_type=jnp.float32)
        return jnp.maximum(acc + b_ref[...], 0.0)            # bias + ReLU epilogue in f32

    def kernel(x_ref, w1_ref, b1_ref, w2_ref, b2_ref, w3_ref, b3_ref,
               o_ref, x32_ref, a1_ref, a2_ref):
        # Stage the streamed bf16 block once as f32 so every strided tap read hits plain
        # 32-bit VMEM (cheap VPU cast; the HBM stream stays bf16).
        x32_ref[...] = x_ref[...].astype(jnp.float32)

        # ConvBlock 1 -> zero-padded VMEM scratch (never touches HBM).
        a1_ref[...] = jnp.zeros(a1_ref.shape, a1_ref.dtype)
        a1_ref[pl.ds(1, h1), pl.ds(1, w1), :] = conv_block(
            x32_ref, w1_ref, b1_ref, h1, w1, c0, c1)

        # ConvBlock 2 -> zero-padded VMEM scratch.
        a2_ref[...] = jnp.zeros(a2_ref.shape, a2_ref.dtype)
        a2_ref[pl.ds(1, h2), pl.ds(1, w2), :] = conv_block(
            a1_ref, w2_ref, b2_ref, h2, w2, c1, c2)

        # ConvBlock 3 -> lane-dense (128-wide) output slab, single unmasked HBM store.
        y3 = conv_block(a2_ref, w3_ref, b3_ref, h3, w3, c2, c3p)
        o_ref[...] = y3.astype(o_ref.dtype)

    return kernel, (h1, w1, h2, w2, h3, w3)


def encoder_single_forward(x_nchw, params, *, compute_dtype=jnp.bfloat16):
    """EncoderSingle.forward: three fused ConvBlocks (Conv2d 3x3/s2/p1 + ReLU each)."""
    (cw1, cb1), (cw2, cb2), (cw3, cb3) = params
    n, c0, h0, w0 = x_nchw.shape
    c1, c2, c3 = cw1.shape[0], cw2.shape[0], cw3.shape[0]
    c3p = _round_up(c3, 128)                      # pad final channels -> lane-dense store

    # NCHW -> NHWC (channels on lanes), single 1-pixel zero pad, bf16 HBM stream.
    x_nhwc = jnp.transpose(x_nchw, (0, 2, 3, 1))
    xp = jnp.pad(x_nhwc, ((0, 0), (1, 1), (1, 1), (0, 0))).astype(compute_dtype)
    hp0, wp0 = h0 + 2, w0 + 2

    def prep(w_oihw, bias, cout_pad):
        cout, cin = w_oihw.shape[0], w_oihw.shape[1]
        # (Cout, Cin, kh, kw) -> (kh, kw, Cin, Cout) -> (9, Cin, Cout): tap-major, matches kernel loop.
        wt = jnp.transpose(w_oihw, (2, 3, 1, 0)).reshape(9, cin, cout)
        bb = bias.reshape(1, cout).astype(jnp.float32)
        if cout_pad > cout:
            wt = jnp.pad(wt, ((0, 0), (0, 0), (0, cout_pad - cout)))
            bb = jnp.pad(bb, ((0, 0), (0, cout_pad - cout)))
        return wt.astype(compute_dtype), bb

    w1m, b1m = prep(cw1, cb1, c1)
    w2m, b2m = prep(cw2, cb2, c2)
    w3m, b3m = prep(cw3, cb3, c3p)

    kernel, (h1, w1, h2, w2, h3, w3) = _make_encoder_kernel(
        hp0, wp0, (c0, c1, c2, c3p), compute_dtype)

    itemsize = jnp.dtype(compute_dtype).itemsize
    flops = 2 * n * 9 * (h1 * w1 * c0 * c1 + h2 * w2 * c1 * c2 + h3 * w3 * c2 * c3p)
    bytes_accessed = (xp.size * itemsize
                      + (w1m.size + w2m.size + w3m.size) * itemsize
                      + (b1m.size + b2m.size + b3m.size) * 4
                      + n * h3 * w3 * c3p * 4)

    out = pl.pallas_call(
        kernel,
        out_shape=jax.ShapeDtypeStruct((n, h3, w3, c3p), jnp.float32),
        grid_spec=pltpu.PrefetchScalarGridSpec(
            num_scalar_prefetch=0,
            grid=(n,),                              # one image per step; N>=2 feeds both v7x cores
            in_specs=[
                # Streaming padded image block (bf16), one per grid step.
                pl.BlockSpec((None, hp0, wp0, c0), lambda i: (i, 0, 0, 0)),
                # Weights / biases: constant index_maps -> resident in VMEM across the grid.
                pl.BlockSpec((9, c0, c1), lambda i: (0, 0, 0)),
                pl.BlockSpec((1, c1), lambda i: (0, 0)),
                pl.BlockSpec((9, c1, c2), lambda i: (0, 0, 0)),
                pl.BlockSpec((1, c2), lambda i: (0, 0)),
                pl.BlockSpec((9, c2, c3p), lambda i: (0, 0, 0)),
                pl.BlockSpec((1, c3p), lambda i: (0, 0)),
            ],
            out_specs=pl.BlockSpec((None, h3, w3, c3p), lambda i: (i, 0, 0, 0)),
            scratch_shapes=[
                pltpu.VMEM((hp0, wp0, c0), jnp.float32),         # staged padded input (f32)
                pltpu.VMEM((h1 + 2, w1 + 2, c1), jnp.float32),   # padded layer-1 activation
                pltpu.VMEM((h2 + 2, w2 + 2, c2), jnp.float32),   # padded layer-2 activation
            ],
        ),
        compiler_params=pltpu.CompilerParams(
            dimension_semantics=("parallel",),
        ),
        cost_estimate=pl.CostEstimate(flops=flops, transcendentals=0,
                                      bytes_accessed=bytes_accessed),
    )(xp, w1m, b1m, w2m, b2m, w3m, b3m)

    out = out[..., :c3]                             # drop lane-padding channels
    return jnp.transpose(out, (0, 3, 1, 2))         # NHWC -> NCHW, like the PyTorch module


def init_params(key, input_dim, output_dim):
    """Deterministic Conv2d params (fan-in-scaled uniform, like PyTorch's default)."""
    dims = [(input_dim, 64), (64, 64), (64, output_dim)]
    params = []
    for i, (cin, cout) in enumerate(dims):
        kw_, kb_ = jax.random.split(jax.random.fold_in(key, i))
        bound = (cin * 9) ** -0.5
        w = jax.random.uniform(kw_, (cout, cin, 3, 3), jnp.float32, -bound, bound)
        b = jax.random.uniform(kb_, (cout,), jnp.float32, -bound, bound)
        params.append((w, b))
    return params


def _encoder_single_ref(x_nchw, params):
    """Pure-JAX reference (lax conv), same math as the PyTorch forward."""
    y = x_nchw
    for w, b in params:
        y = jax.lax.conv_general_dilated(
            y, w, window_strides=(2, 2), padding=((1, 1), (1, 1)),
            dimension_numbers=("NCHW", "OIHW", "NCHW"))
        y = jnp.maximum(y + b[None, :, None, None], 0.0)
    return y


if __name__ == "__main__":
    # Small shapes consistent with the module: (batch, channels, H, W) images.
    batch, input_dim, hw, output_dim = 2, 4, 16, 32

    key = jax.random.PRNGKey(0)
    kx, kp = jax.random.split(key)
    x = jax.random.normal(kx, (batch, input_dim, hw, hw), dtype=jnp.float32)
    params = init_params(kp, input_dim, output_dim)

    y = encoder_single_forward(x, params)           # bf16 streaming, f32 accumulation
    y = jax.block_until_ready(y)

    y_ref = _encoder_single_ref(x, params)
    assert y.shape == (batch, output_dim, hw // 8, hw // 8), y.shape
    assert jnp.allclose(y, y_ref, atol=5e-2, rtol=5e-2), float(jnp.max(jnp.abs(y - y_ref)))

    print("KERNEL_OK")
</pallas_src>

<mosaic_0001>
module attributes {stable_mosaic.version = 11 : i64} {
  func.func @kernel(%arg0: i32, %arg1: memref<1x18x18x4xbf16, #tpu.memory_space<vmem>>, %arg2: memref<9x4x64xbf16, #tpu.memory_space<vmem>>, %arg3: memref<1x64xf32, #tpu.memory_space<vmem>>, %arg4: memref<9x64x64xbf16, #tpu.memory_space<vmem>>, %arg5: memref<1x64xf32, #tpu.memory_space<vmem>>, %arg6: memref<9x64x128xbf16, #tpu.memory_space<vmem>>, %arg7: memref<1x128xf32, #tpu.memory_space<vmem>>, %arg8: memref<1x2x2x128xf32, #tpu.memory_space<vmem>>, %arg9: memref<18x18x4xf32, #tpu.memory_space<vmem>>, %arg10: memref<10x10x64xf32, #tpu.memory_space<vmem>>, %arg11: memref<6x6x64xf32, #tpu.memory_space<vmem>>) attributes {dimension_semantics = [#tpu.dimension_semantics<parallel>], iteration_bounds = array<i64: 2>, scalar_prefetch = 0 : i64, scratch_operands = 3 : i64, tpu.core_type = #tpu.core_type<tc>, window_params = [{transform_indices = @transform_0, window_bounds = array<i64: 1, 18, 18, 4>}, {pipeline_mode = #tpu.pipeline_mode<synchronous>, transform_indices = @transform_1, window_bounds = array<i64: 9, 4, 64>}, {pipeline_mode = #tpu.pipeline_mode<synchronous>, transform_indices = @transform_2, window_bounds = array<i64: 1, 64>}, {pipeline_mode = #tpu.pipeline_mode<synchronous>, transform_indices = @transform_3, window_bounds = array<i64: 9, 64, 64>}, {pipeline_mode = #tpu.pipeline_mode<synchronous>, transform_indices = @transform_4, window_bounds = array<i64: 1, 64>}, {pipeline_mode = #tpu.pipeline_mode<synchronous>, transform_indices = @transform_5, window_bounds = array<i64: 9, 64, 128>}, {pipeline_mode = #tpu.pipeline_mode<synchronous>, transform_indices = @transform_6, window_bounds = array<i64: 1, 128>}, {transform_indices = @transform_7, window_bounds = array<i64: 1, 2, 2, 128>}]} {
    %c0 = arith.constant 0 : index
    %c0_0 = arith.constant 0 : index
    %c0_1 = arith.constant 0 : index
    %c0_2 = arith.constant 0 : index
    %0 = vector.load %arg1[%c0, %c0_0, %c0_1, %c0_2] : memref<1x18x18x4xbf16, #tpu.memory_space<vmem>>, vector<1x18x18x4xbf16>
    %1 = vector.shape_cast %0 : vector<1x18x18x4xbf16> to vector<18x18x4xbf16>
    %2 = arith.extf %1 : vector<18x18x4xbf16> to vector<18x18x4xf32>
    %c0_3 = arith.constant 0 : index
    %c0_4 = arith.constant 0 : index
    %c0_5 = arith.constant 0 : index
    %3 = vector.load %arg9[%c0_3, %c0_4, %c0_5] : memref<18x18x4xf32, #tpu.memory_space<vmem>>, vector<18x18x4xf32>
    tpu.vector_store %arg9[%c0_3, %c0_4, %c0_5], %2 {strides = array<i32>} : memref<18x18x4xf32, #tpu.memory_space<vmem>>, vector<18x18x4xf32>,
    %cst = arith.constant 0.000000e+00 : f32
    %4 = vector.broadcast %cst : f32 to vector<10x10x64xf32>
    %c0_6 = arith.constant 0 : index
    %c0_7 = arith.constant 0 : index
    %c0_8 = arith.constant 0 : index
    %5 = vector.load %arg10[%c0_6, %c0_7, %c0_8] : memref<10x10x64xf32, #tpu.memory_space<vmem>>, vector<10x10x64xf32>
    tpu.vector_store %arg10[%c0_6, %c0_7, %c0_8], %4 {strides = array<i32>} : memref<10x10x64xf32, #tpu.memory_space<vmem>>, vector<10x10x64xf32>,
    %cst_9 = arith.constant 0.000000e+00 : f32
    %6 = vector.broadcast %cst_9 : f32 to vector<8x8x64xf32>
    %c0_10 = arith.constant 0 : index
    %c0_11 = arith.constant 0 : index
    %c0_12 = arith.constant 0 : index
    %7 = tpu.strided_load %arg9[%c0_10, %c0_11, %c0_12] {strides = array<i32: 2, 2, 1>} : memref<18x18x4xf32, #tpu.memory_space<vmem>>, vector<8x8x4xf32>
    %8 = arith.truncf %7 : vector<8x8x4xf32> to vector<8x8x4xbf16>
    %c0_13 = arith.constant 0 : index
    %c0_14 = arith.constant 0 : index
    %c0_15 = arith.constant 0 : index
    %9 = vector.load %arg2[%c0_13, %c0_14, %c0_15] : memref<9x4x64xbf16, #tpu.memory_space<vmem>>, vector<1x4x64xbf16>
    %10 = vector.shape_cast %9 : vector<1x4x64xbf16> to vector<4x64xbf16>
    %11 = vector.shape_cast %10 : vector<4x64xbf16> to vector<1x4x64xbf16>
    %12 = vector.broadcast %11 : vector<1x4x64xbf16> to vector<8x4x64xbf16>
    "tpu.trace_start"() <{level = 10 : i32, message = "hwc,hcd->hwd"}> : () -> ()
    %cst_16 = arith.constant dense<0.000000e+00> : vector<8x8x64xf32>
    %13 = tpu.matmul %8, %12, %cst_16 {dimension_numbers = #tpu.dot_dimension_numbers<[2], [1], [1], [2], [0, 0, 0, 1, 1, 2], [0], [0]>} : vector<8x8x4xbf16>, vector<8x4x64xbf16>, vector<8x8x64xf32> -> vector<8x8x64xf32>
    "tpu.trace_stop"() : () -> ()
    %14 = arith.addf %6, %13 : vector<8x8x64xf32>
    %c0_17 = arith.constant 0 : index
    %c1 = arith.constant 1 : index
    %c0_18 = arith.constant 0 : index
    %15 = tpu.strided_load %arg9[%c0_17, %c1, %c0_18] {strides = array<i32: 2, 2, 1>} : memref<18x18x4xf32, #tpu.memory_space<vmem>>, vector<8x8x4xf32>
    %16 = arith.truncf %15 : vector<8x8x4xf32> to vector<8x8x4xbf16>
    %c1_19 = arith.constant 1 : index
    %c0_20 = arith.constant 0 : index
    %c0_21 = arith.constant 0 : index
    %17 = vector.load %arg2[%c1_19, %c0_20, %c0_21] : memref<9x4x64xbf16, #tpu.memory_space<vmem>>, vector<1x4x64xbf16>
    %18 = vector.shape_cast %17 : vector<1x4x64xbf16> to vector<4x64xbf16>
    %19 = vector.shape_cast %18 : vector<4x64xbf16> to vector<1x4x64xbf16>
    %20 = vector.broadcast %19 : vector<1x4x64xbf16> to vector<8x4x64xbf16>
    "tpu.trace_start"() <{level = 10 : i32, message = "hwc,hcd->hwd"}> : () -> ()
    %cst_22 = arith.constant dense<0.000000e+00> : vector<8x8x64xf32>
    %21 = tpu.matmul %16, %20, %cst_22 {dimension_numbers = #tpu.dot_dimension_numbers<[2], [1], [1], [2], [0, 0, 0, 1, 1, 2], [0], [0]>} : vector<8x8x4xbf16>, vector<8x4x64xbf16>, vector<8x8x64xf32> -> vector<8x8x64xf32>
    "tpu.trace_stop"() : () -> ()
    %22 = arith.addf %14, %21 : vector<8x8x64xf32>
    %c0_23 = arith.constant 0 : index
    %c2 = arith.constant 2 : index
    %c0_24 = arith.constant 0 : index
    %23 = tpu.strided_load %arg9[%c0_23, %c2, %c0_24] {strides = array<i32: 2, 2, 1>} : memref<18x18x4xf32, #tpu.memory_space<vmem>>, vector<8x8x4xf32>
    %24 = arith.truncf %23 : vector<8x8x4xf32> to vector<8x8x4xbf16>
    %c2_25 = arith.constant 2 : index
    %c0_26 = arith.constant 0 : index
    %c0_27 = arith.constant 0 : index
    %25 = vector.load %arg2[%c2_25, %c0_26, %c0_27] : memref<9x4x64xbf16, #tpu.memory_space<vmem>>, vector<1x4x64xbf16>
    %26 = vector.shape_cast %25 : vector<1x4x64xbf16> to vector<4x64xbf16>
    %27 = vector.shape_cast %26 : vector<4x64xbf16> to vector<1x4x64xbf16>
    %28 = vector.broadcast %27 : vector<1x4x64xbf16> to vector<8x4x64xbf16>
    "tpu.trace_start"() <{level = 10 : i32, message = "hwc,hcd->hwd"}> : () -> ()
    %cst_28 = arith.constant dense<0.000000e+00> : vector<8x8x64xf32>
    %29 = tpu.matmul %24, %28, %cst_28 {dimension_numbers = #tpu.dot_dimension_numbers<[2], [1], [1], [2], [0, 0, 0, 1, 1, 2], [0], [0]>} : vector<8x8x4xbf16>, vector<8x4x64xbf16>, vector<8x8x64xf32> -> vector<8x8x64xf32>
    "tpu.trace_stop"() : () -> ()
    %30 = arith.addf %22, %29 : vector<8x8x64xf32>
    %c1_29 = arith.constant 1 : index
    %c0_30 = arith.constant 0 : index
    %c0_31 = arith.constant 0 : index
    %31 = tpu.strided_load %arg9[%c1_29, %c0_30, %c0_31] {strides = array<i32: 2, 2, 1>} : memref<18x18x4xf32, #tpu.memory_space<vmem>>, vector<8x8x4xf32>
    %32 = arith.truncf %31 : vector<8x8x4xf32> to vector<8x8x4xbf16>
    %c3 = arith.constant 3 : index
    %c0_32 = arith.constant 0 : index
    %c0_33 = arith.constant 0 : index
    %33 = vector.load %arg2[%c3, %c0_32, %c0_33] : memref<9x4x64xbf16, #tpu.memory_space<vmem>>, vector<1x4x64xbf16>
    %34 = vector.shape_cast %33 : vector<1x4x64xbf16> to vector<4x64xbf16>
    %35 = vector.shape_cast %34 : vector<4x64xbf16> to vector<1x4x64xbf16>
    %36 = vector.broadcast %35 : vector<1x4x64xbf16> to vector<8x4x64xbf16>
    "tpu.trace_start"() <{level = 10 : i32, message = "hwc,hcd->hwd"}> : () -> ()
    %cst_34 = arith.constant dense<0.000000e+00> : vector<8x8x64xf32>
    %37 = tpu.matmul %32, %36, %cst_34 {dimension_numbers = #tpu.dot_dimension_numbers<[2], [1], [1], [2], [0, 0, 0, 1, 1, 2], [0], [0]>} : vector<8x8x4xbf16>, vector<8x4x64xbf16>, vector<8x8x64xf32> -> vector<8x8x64xf32>
    "tpu.trace_stop"() : () -> ()
    %38 = arith.addf %30, %37 : vector<8x8x64xf32>
    %c1_35 = arith.constant 1 : index
    %c1_36 = arith.constant 1 : index
    %c0_37 = arith.constant 0 : index
    %39 = tpu.strided_load %arg9[%c1_35, %c1_36, %c0_37] {strides = array<i32: 2, 2, 1>} : memref<18x18x4xf32, #tpu.memory_space<vmem>>, vector<8x8x4xf32>
    %40 = arith.truncf %39 : vector<8x8x4xf32> to vector<8x8x4xbf16>
    %c4 = arith.constant 4 : index
    %c0_38 = arith.constant 0 : index
    %c0_39 = arith.constant 0 : index
    %41 = vector.load %arg2[%c4, %c0_38, %c0_39] : memref<9x4x64xbf16, #tpu.memory_space<vmem>>, vector<1x4x64xbf16>
    %42 = vector.shape_cast %41 : vector<1x4x64xbf16> to vector<4x64xbf16>
    %43 = vector.shape_cast %42 : vector<4x64xbf16> to vector<1x4x64xbf16>
    %44 = vector.broadcast %43 : vector<1x4x64xbf16> to vector<8x4x64xbf16>
    "tpu.trace_start"() <{level = 10 : i32, message = "hwc,hcd->hwd"}> : () -> ()
    %cst_40 = arith.constant dense<0.000000e+00> : vector<8x8x64xf32>
    %45 = tpu.matmul %40, %44, %cst_40 {dimension_numbers = #tpu.dot_dimension_numbers<[2], [1], [1], [2], [0, 0, 0, 1, 1, 2], [0], [0]>} : vector<8x8x4xbf16>, vector<8x4x64xbf16>, vector<8x8x64xf32> -> vector<8x8x64xf32>
    "tpu.trace_stop"() : () -> ()
    %46 = arith.addf %38, %45 : vector<8x8x64xf32>
    %c1_41 = arith.constant 1 : index
    %c2_42 = arith.constant 2 : index
    %c0_43 = arith.constant 0 : index
    %47 = tpu.strided_load %arg9[%c1_41, %c2_42, %c0_43] {strides = array<i32: 2, 2, 1>} : memref<18x18x4xf32, #tpu.memory_space<vmem>>, vector<8x8x4xf32>
    %48 = arith.truncf %47 : vector<8x8x4xf32> to vector<8x8x4xbf16>
    %c5 = arith.constant 5 : index
    %c0_44 = arith.constant 0 : index
    %c0_45 = arith.constant 0 : index
    %49 = vector.load %arg2[%c5, %c0_44, %c0_45] : memref<9x4x64xbf16, #tpu.memory_space<vmem>>, vector<1x4x64xbf16>
    %50 = vector.shape_cast %49 : vector<1x4x64xbf16> to vector<4x64xbf16>
    %51 = vector.shape_cast %50 : vector<4x64xbf16> to vector<1x4x64xbf16>
    %52 = vector.broadcast %51 : vector<1x4x64xbf16> to vector<8x4x64xbf16>
    "tpu.trace_start"() <{level = 10 : i32, message = "hwc,hcd->hwd"}> : () -> ()
    %cst_46 = arith.constant dense<0.000000e+00> : vector<8x8x64xf32>
    %53 = tpu.matmul %48, %52, %cst_46 {dimension_numbers = #tpu.dot_dimension_numbers<[2], [1], [1], [2], [0, 0, 0, 1, 1, 2], [0], [0]>} : vector<8x8x4xbf16>, vector<8x4x64xbf16>, vector<8x8x64xf32> -> vector<8x8x64xf32>
    "tpu.trace_stop"() : () -> ()
    %54 = arith.addf %46, %53 : vector<8x8x64xf32>
    %c2_47 = arith.constant 2 : index
    %c0_48 = arith.constant 0 : index
    %c0_49 = arith.constant 0 : index
    %55 = tpu.strided_load %arg9[%c2_47, %c0_48, %c0_49] {strides = array<i32: 2, 2, 1>} : memref<18x18x4xf32, #tpu.memory_space<vmem>>, vector<8x8x4xf32>
    %56 = arith.truncf %55 : vector<8x8x4xf32> to vector<8x8x4xbf16>
    %c6 = arith.constant 6 : index
    %c0_50 = arith.constant 0 : index
    %c0_51 = arith.constant 0 : index
    %57 = vector.load %arg2[%c6, %c0_50, %c0_51] : memref<9x4x64xbf16, #tpu.memory_space<vmem>>, vector<1x4x64xbf16>
    %58 = vector.shape_cast %57 : vector<1x4x64xbf16> to vector<4x64xbf16>
    %59 = vector.shape_cast %58 : vector<4x64xbf16> to vector<1x4x64xbf16>
    %60 = vector.broadcast %59 : vector<1x4x64xbf16> to vector<8x4x64xbf16>
    "tpu.trace_start"() <{level = 10 : i32, message = "hwc,hcd->hwd"}> : () -> ()
    %cst_52 = arith.constant dense<0.000000e+00> : vector<8x8x64xf32>
    %61 = tpu.matmul %56, %60, %cst_52 {dimension_numbers = #tpu.dot_dimension_numbers<[2], [1], [1], [2], [0, 0, 0, 1, 1, 2], [0], [0]>} : vector<8x8x4xbf16>, vector<8x4x64xbf16>, vector<8x8x64xf32> -> vector<8x8x64xf32>
    "tpu.trace_stop"() : () -> ()
    %62 = arith.addf %54, %61 : vector<8x8x64xf32>
    %c2_53 = arith.constant 2 : index
    %c1_54 = arith.constant 1 : index
    %c0_55 = arith.constant 0 : index
    %63 = tpu.strided_load %arg9[%c2_53, %c1_54, %c0_55] {strides = array<i32: 2, 2, 1>} : memref<18x18x4xf32, #tpu.memory_space<vmem>>, vector<8x8x4xf32>
    %64 = arith.truncf %63 : vector<8x8x4xf32> to vector<8x8x4xbf16>
    %c7 = arith.constant 7 : index
    %c0_56 = arith.constant 0 : index
    %c0_57 = arith.constant 0 : index
    %65 = vector.load %arg2[%c7, %c0_56, %c0_57] : memref<9x4x64xbf16, #tpu.memory_space<vmem>>, vector<1x4x64xbf16>
    %66 = vector.shape_cast %65 : vector<1x4x64xbf16> to vector<4x64xbf16>
    %67 = vector.shape_cast %66 : vector<4x64xbf16> to vector<1x4x64xbf16>
    %68 = vector.broadcast %67 : vector<1x4x64xbf16> to vector<8x4x64xbf16>
    "tpu.trace_start"() <{level = 10 : i32, message = "hwc,hcd->hwd"}> : () -> ()
    %cst_58 = arith.constant dense<0.000000e+00> : vector<8x8x64xf32>
    %69 = tpu.matmul %64, %68, %cst_58 {dimension_numbers = #tpu.dot_dimension_numbers<[2], [1], [1], [2], [0, 0, 0, 1, 1, 2], [0], [0]>} : vector<8x8x4xbf16>, vector<8x4x64xbf16>, vector<8x8x64xf32> -> vector<8x8x64xf32>
    "tpu.trace_stop"() : () -> ()
    %70 = arith.addf %62, %69 : vector<8x8x64xf32>
    %c2_59 = arith.constant 2 : index
    %c2_60 = arith.constant 2 : index
    %c0_61 = arith.constant 0 : index
    %71 = tpu.strided_load %arg9[%c2_59, %c2_60, %c0_61] {strides = array<i32: 2, 2, 1>} : memref<18x18x4xf32, #tpu.memory_space<vmem>>, vector<8x8x4xf32>
    %72 = arith.truncf %71 : vector<8x8x4xf32> to vector<8x8x4xbf16>
    %c8 = arith.constant 8 : index
    %c0_62 = arith.constant 0 : index
    %c0_63 = arith.constant 0 : index
    %73 = vector.load %arg2[%c8, %c0_62, %c0_63] : memref<9x4x64xbf16, #tpu.memory_space<vmem>>, vector<1x4x64xbf16>
    %74 = vector.shape_cast %73 : vector<1x4x64xbf16> to vector<4x64xbf16>
    %75 = vector.shape_cast %74 : vector<4x64xbf16> to vector<1x4x64xbf16>
    %76 = vector.broadcast %75 : vector<1x4x64xbf16> to vector<8x4x64xbf16>
    "tpu.trace_start"() <{level = 10 : i32, message = "hwc,hcd->hwd"}> : () -> ()
    %cst_64 = arith.constant dense<0.000000e+00> : vector<8x8x64xf32>
    %77 = tpu.matmul %72, %76, %cst_64 {dimension_numbers = #tpu.dot_dimension_numbers<[2], [1], [1], [2], [0, 0, 0, 1, 1, 2], [0], [0]>} : vector<8x8x4xbf16>, vector<8x4x64xbf16>, vector<8x8x64xf32> -> vector<8x8x64xf32>
    "tpu.trace_stop"() : () -> ()
    %78 = arith.addf %70, %77 : vector<8x8x64xf32>
    %c0_65 = arith.constant 0 : index
    %c0_66 = arith.constant 0 : index
    %79 = vector.load %arg3[%c0_65, %c0_66] : memref<1x64xf32, #tpu.memory_space<vmem>>, vector<1x64xf32>
    %80 = vector.shape_cast %79 : vector<1x64xf32> to vector<1x1x64xf32>
    %81 = vector.broadcast %80 : vector<1x1x64xf32> to vector<8x8x64xf32>
    %82 = arith.addf %78, %81 : vector<8x8x64xf32>
    %cst_67 = arith.constant 0.000000e+00 : f32
    %83 = vector.broadcast %cst_67 : f32 to vector<8x8x64xf32>
    %84 = arith.maximumf %82, %83 : vector<8x8x64xf32>
    %c1_68 = arith.constant 1 : index
    %c1_69 = arith.constant 1 : index
    %c0_70 = arith.constant 0 : index
    %85 = vector.load %arg10[%c1_68, %c1_69, %c0_70] : memref<10x10x64xf32, #tpu.memory_space<vmem>>, vector<8x8x64xf32>
    tpu.vector_store %arg10[%c1_68, %c1_69, %c0_70], %84 {strides = array<i32>} : memref<10x10x64xf32, #tpu.memory_space<vmem>>, vector<8x8x64xf32>,
    %cst_71 = arith.constant 0.000000e+00 : f32
    %86 = vector.broadcast %cst_71 : f32 to vector<6x6x64xf32>
    %c0_72 = arith.constant 0 : index
    %c0_73 = arith.constant 0 : index
    %c0_74 = arith.constant 0 : index
    %87 = vector.load %arg11[%c0_72, %c0_73, %c0_74] : memref<6x6x64xf32, #tpu.memory_space<vmem>>, vector<6x6x64xf32>
    tpu.vector_store %arg11[%c0_72, %c0_73, %c0_74], %86 {strides = array<i32>} : memref<6x6x64xf32, #tpu.memory_space<vmem>>, vector<6x6x64xf32>,
    %cst_75 = arith.constant 0.000000e+00 : f32
    %88 = vector.broadcast %cst_75 : f32 to vector<4x4x64xf32>
    %c0_76 = arith.constant 0 : index
    %c0_77 = arith.constant 0 : index
    %c0_78 = arith.constant 0 : index
    %89 = tpu.strided_load %arg10[%c0_76, %c0_77, %c0_78] {strides = array<i32: 2, 2, 1>} : memref<10x10x64xf32, #tpu.memory_space<vmem>>, vector<4x4x64xf32>
    %90 = arith.truncf %89 : vector<4x4x64xf32> to vector<4x4x64xbf16>
    %c0_79 = arith.constant 0 : index
    %c0_80 = arith.constant 0 : index
    %c0_81 = arith.constant 0 : index
    %91 = vector.load %arg4[%c0_79, %c0_80, %c0_81] : memref<9x64x64xbf16, #tpu.memory_space<vmem>>, vector<1x64x64xbf16>
    %92 = vector.shape_cast %91 : vector<1x64x64xbf16> to vector<64x64xbf16>
    %93 = vector.shape_cast %92 : vector<64x64xbf16> to vector<1x64x64xbf16>
    %94 = vector.broadcast %93 : vector<1x64x64xbf16> to vector<4x64x64xbf16>
    "tpu.trace_start"() <{level = 10 : i32, message = "hwc,hcd->hwd"}> : () -> ()
    %cst_82 = arith.constant dense<0.000000e+00> : vector<4x4x64xf32>
    %95 = tpu.matmul %90, %94, %cst_82 {dimension_numbers = #tpu.dot_dimension_numbers<[2], [1], [1], [2], [0, 0, 0, 1, 1, 2], [0], [0]>} : vector<4x4x64xbf16>, vector<4x64x64xbf16>, vector<4x4x64xf32> -> vector<4x4x64xf32>
    "tpu.trace_stop"() : () -> ()
    %96 = arith.addf %88, %95 : vector<4x4x64xf32>
    %c0_83 = arith.constant 0 : index
    %c1_84 = arith.constant 1 : index
    %c0_85 = arith.constant 0 : index
    %97 = tpu.strided_load %arg10[%c0_83, %c1_84, %c0_85] {strides = array<i32: 2, 2, 1>} : memref<10x10x64xf32, #tpu.memory_space<vmem>>, vector<4x4x64xf32>
    %98 = arith.truncf %97 : vector<4x4x64xf32> to vector<4x4x64xbf16>
    %c1_86 = arith.constant 1 : index
    %c0_87 = arith.constant 0 : index
    %c0_88 = arith.constant 0 : index
    %99 = vector.load %arg4[%c1_86, %c0_87, %c0_88] : memref<9x64x64xbf16, #tpu.memory_space<vmem>>, vector<1x64x64xbf16>
    %100 = vector.shape_cast %99 : vector<1x64x64xbf16> to vector<64x64xbf16>
    %101 = vector.shape_cast %100 : vector<64x64xbf16> to vector<1x64x64xbf16>
    %102 = vector.broadcast %101 : vector<1x64x64xbf16> to vector<4x64x64xbf16>
    "tpu.trace_start"() <{level = 10 : i32, message = "hwc,hcd->hwd"}> : () -> ()
    %cst_89 = arith.constant dense<0.000000e+00> : vector<4x4x64xf32>
    %103 = tpu.matmul %98, %102, %cst_89 {dimension_numbers = #tpu.dot_dimension_numbers<[2], [1], [1], [2], [0, 0, 0, 1, 1, 2], [0], [0]>} : vector<4x4x64xbf16>, vector<4x64x64xbf16>, vector<4x4x64xf32> -> vector<4x4x64xf32>
    "tpu.trace_stop"() : () -> ()
    %104 = arith.addf %96, %103 : vector<4x4x64xf32>
    %c0_90 = arith.constant 0 : index
    %c2_91 = arith.constant 2 : index
    %c0_92 = arith.constant 0 : index
    %105 = tpu.strided_load %arg10[%c0_90, %c2_91, %c0_92] {strides = array<i32: 2, 2, 1>} : memref<10x10x64xf32, #tpu.memory_space<vmem>>, vector<4x4x64xf32>
    %106 = arith.truncf %105 : vector<4x4x64xf32> to vector<4x4x64xbf16>
    %c2_93 = arith.constant 2 : index
    %c0_94 = arith.constant 0 : index
    %c0_95 = arith.constant 0 : index
    %107 = vector.load %arg4[%c2_93, %c0_94, %c0_95] : memref<9x64x64xbf16, #tpu.memory_space<vmem>>, vector<1x64x64xbf16>
    %108 = vector.shape_cast %107 : vector<1x64x64xbf16> to vector<64x64xbf16>
    %109 = vector.shape_cast %108 : vector<64x64xbf16> to vector<1x64x64xbf16>
    %110 = vector.broadcast %109 : vector<1x64x64xbf16> to vector<4x64x64xbf16>
    "tpu.trace_start"() <{level = 10 : i32, message = "hwc,hcd->hwd"}> : () -> ()
    %cst_96 = arith.constant dense<0.000000e+00> : vector<4x4x64xf32>
    %111 = tpu.matmul %106, %110, %cst_96 {dimension_numbers = #tpu.dot_dimension_numbers<[2], [1], [1], [2], [0, 0, 0, 1, 1, 2], [0], [0]>} : vector<4x4x64xbf16>, vector<4x64x64xbf16>, vector<4x4x64xf32> -> vector<4x4x64xf32>
    "tpu.trace_stop"() : () -> ()
    %112 = arith.addf %104, %111 : vector<4x4x64xf32>
    %c1_97 = arith.constant 1 : index
    %c0_98 = arith.constant 0 : index
    %c0_99 = arith.constant 0 : index
    %113 = tpu.strided_load %arg10[%c1_97, %c0_98, %c0_99] {strides = array<i32: 2, 2, 1>} : memref<10x10x64xf32, #tpu.memory_space<vmem>>, vector<4x4x64xf32>
    %114 = arith.truncf %113 : vector<4x4x64xf32> to vector<4x4x64xbf16>
    %c3_100 = arith.constant 3 : index
    %c0_101 = arith.constant 0 : index
    %c0_102 = arith.constant 0 : index
    %115 = vector.load %arg4[%c3_100, %c0_101, %c0_102] : memref<9x64x64xbf16, #tpu.memory_space<vmem>>, vector<1x64x64xbf16>
    %116 = vector.shape_cast %115 : vector<1x64x64xbf16> to vector<64x64xbf16>
    %117 = vector.shape_cast %116 : vector<64x64xbf16> to vector<1x64x64xbf16>
    %118 = vector.broadcast %117 : vector<1x64x64xbf16> to vector<4x64x64xbf16>
    "tpu.trace_start"() <{level = 10 : i32, message = "hwc,hcd->hwd"}> : () -> ()
    %cst_103 = arith.constant dense<0.000000e+00> : vector<4x4x64xf32>
    %119 = tpu.matmul %114, %118, %cst_103 {dimension_numbers = #tpu.dot_dimension_numbers<[2], [1], [1], [2], [0, 0, 0, 1, 1, 2], [0], [0]>} : vector<4x4x64xbf16>, vector<4x64x64xbf16>, vector<4x4x64xf32> -> vector<4x4x64xf32>
    "tpu.trace_stop"() : () -> ()
    %120 = arith.addf %112, %119 : vector<4x4x64xf32>
    %c1_104 = arith.constant 1 : index
    %c1_105 = arith.constant 1 : index
    %c0_106 = arith.constant 0 : index
    %121 = tpu.strided_load %arg10[%c1_104, %c1_105, %c0_106] {strides = array<i32: 2, 2, 1>} : memref<10x10x64xf32, #tpu.memory_space<vmem>>, vector<4x4x64xf32>
    %122 = arith.truncf %121 : vector<4x4x64xf32> to vector<4x4x64xbf16>
    %c4_107 = arith.constant 4 : index
    %c0_108 = arith.constant 0 : index
    %c0_109 = arith.constant 0 : index
    %123 = vector.load %arg4[%c4_107, %c0_108, %c0_109] : memref<9x64x64xbf16, #tpu.memory_space<vmem>>, vector<1x64x64xbf16>
    %124 = vector.shape_cast %123 : vector<1x64x64xbf16> to vector<64x64xbf16>
    %125 = vector.shape_cast %124 : vector<64x64xbf16> to vector<1x64x64xbf16>
    %126 = vector.broadcast %125 : vector<1x64x64xbf16> to vector<4x64x64xbf16>
    "tpu.trace_start"() <{level = 10 : i32, message = "hwc,hcd->hwd"}> : () -> ()
    %cst_110 = arith.constant dense<0.000000e+00> : vector<4x4x64xf32>
    %127 = tpu.matmul %122, %126, %cst_110 {dimension_numbers = #tpu.dot_dimension_numbers<[2], [1], [1], [2], [0, 0, 0, 1, 1, 2], [0], [0]>} : vector<4x4x64xbf16>, vector<4x64x64xbf16>, vector<4x4x64xf32> -> vector<4x4x64xf32>
    "tpu.trace_stop"() : () -> ()
    %128 = arith.addf %120, %127 : vector<4x4x64xf32>
    %c1_111 = arith.constant 1 : index
    %c2_112 = arith.constant 2 : index
    %c0_113 = arith.constant 0 : index
    %129 = tpu.strided_load %arg10[%c1_111, %c2_112, %c0_113] {strides = array<i32: 2, 2, 1>} : memref<10x10x64xf32, #tpu.memory_space<vmem>>, vector<4x4x64xf32>
    %130 = arith.truncf %129 : vector<4x4x64xf32> to vector<4x4x64xbf16>
    %c5_114 = arith.constant 5 : index
    %c0_115 = arith.constant 0 : index
    %c0_116 = arith.constant 0 : index
    %131 = vector.load %arg4[%c5_114, %c0_115, %c0_116] : memref<9x64x64xbf16, #tpu.memory_space<vmem>>, vector<1x64x64xbf16>
    %132 = vector.shape_cast %131 : vector<1x64x64xbf16> to vector<64x64xbf16>
    %133 = vector.shape_cast %132 : vector<64x64xbf16> to vector<1x64x64xbf16>
    %134 = vector.broadcast %133 : vector<1x64x64xbf16> to vector<4x64x64xbf16>
    "tpu.trace_start"() <{level = 10 : i32, message = "hwc,hcd->hwd"}> : () -> ()
    %cst_117 = arith.constant dense<0.000000e+00> : vector<4x4x64xf32>
    %135 = tpu.matmul %130, %134, %cst_117 {dimension_numbers = #tpu.dot_dimension_numbers<[2], [1], [1], [2], [0, 0, 0, 1, 1, 2], [0], [0]>} : vector<4x4x64xbf16>, vector<4x64x64xbf16>, vector<4x4x64xf32> -> vector<4x4x64xf32>
    "tpu.trace_stop"() : () -> ()
    %136 = arith.addf %128, %135 : vector<4x4x64xf32>
    %c2_118 = arith.constant 2 : index
    %c0_119 = arith.constant 0 : index
    %c0_120 = arith.constant 0 : index
    %137 = tpu.strided_load %arg10[%c2_118, %c0_119, %c0_120] {strides = array<i32: 2, 2, 1>} : memref<10x10x64xf32, #tpu.memory_space<vmem>>, vector<4x4x64xf32>
    %138 = arith.truncf %137 : vector<4x4x64xf32> to vector<4x4x64xbf16>
    %c6_121 = arith.constant 6 : index
    %c0_122 = arith.constant 0 : index
    %c0_123 = arith.constant 0 : index
    %139 = vector.load %arg4[%c6_121, %c0_122, %c0_123] : memref<9x64x64xbf16, #tpu.memory_space<vmem>>, vector<1x64x64xbf16>
    %140 = vector.shape_cast %139 : vector<1x64x64xbf16> to vector<64x64xbf16>
    %141 = vector.shape_cast %140 : vector<64x64xbf16> to vector<1x64x64xbf16>
    %142 = vector.broadcast %141 : vector<1x64x64xbf16> to vector<4x64x64xbf16>
    "tpu.trace_start"() <{level = 10 : i32, message = "hwc,hcd->hwd"}> : () -> ()
    %cst_124 = arith.constant dense<0.000000e+00> : vector<4x4x64xf32>
    %143 = tpu.matmul %138, %142, %cst_124 {dimension_numbers = #tpu.dot_dimension_numbers<[2], [1], [1], [2], [0, 0, 0, 1, 1, 2], [0], [0]>} : vector<4x4x64xbf16>, vector<4x64x64xbf16>, vector<4x4x64xf32> -> vector<4x4x64xf32>
    "tpu.trace_stop"() : () -> ()
    %144 = arith.addf %136, %143 : vector<4x4x64xf32>
    %c2_125 = arith.constant 2 : index
    %c1_126 = arith.constant 1 : index
    %c0_127 = arith.constant 0 : index
    %145 = tpu.strided_load %arg10[%c2_125, %c1_126, %c0_127] {strides = array<i32: 2, 2, 1>} : memref<10x10x64xf32, #tpu.memory_space<vmem>>, vector<4x4x64xf32>
    %146 = arith.truncf %145 : vector<4x4x64xf32> to vector<4x4x64xbf16>
    %c7_128 = arith.constant 7 : index
    %c0_129 = arith.constant 0 : index
    %c0_130 = arith.constant 0 : index
    %147 = vector.load %arg4[%c7_128, %c0_129, %c0_130] : memref<9x64x64xbf16, #tpu.memory_space<vmem>>, vector<1x64x64xbf16>
    %148 = vector.shape_cast %147 : vector<1x64x64xbf16> to vector<64x64xbf16>
    %149 = vector.shape_cast %148 : vector<64x64xbf16> to vector<1x64x64xbf16>
    %150 = vector.broadcast %149 : vector<1x64x64xbf16> to vector<4x64x64xbf16>
    "tpu.trace_start"() <{level = 10 : i32, message = "hwc,hcd->hwd"}> : () -> ()
    %cst_131 = arith.constant dense<0.000000e+00> : vector<4x4x64xf32>
    %151 = tpu.matmul %146, %150, %cst_131 {dimension_numbers = #tpu.dot_dimension_numbers<[2], [1], [1], [2], [0, 0, 0, 1, 1, 2], [0], [0]>} : vector<4x4x64xbf16>, vector<4x64x64xbf16>, vector<4x4x64xf32> -> vector<4x4x64xf32>
    "tpu.trace_stop"() : () -> ()
    %152 = arith.addf %144, %151 : vector<4x4x64xf32>
    %c2_132 = arith.constant 2 : index
    %c2_133 = arith.constant 2 : index
    %c0_134 = arith.constant 0 : index
    %153 = tpu.strided_load %arg10[%c2_132, %c2_133, %c0_134] {strides = array<i32: 2, 2, 1>} : memref<10x10x64xf32, #tpu.memory_space<vmem>>, vector<4x4x64xf32>
    %154 = arith.truncf %153 : vector<4x4x64xf32> to vector<4x4x64xbf16>
    %c8_135 = arith.constant 8 : index
    %c0_136 = arith.constant 0 : index
    %c0_137 = arith.constant 0 : index
    %155 = vector.load %arg4[%c8_135, %c0_136, %c0_137] : memref<9x64x64xbf16, #tpu.memory_space<vmem>>, vector<1x64x64xbf16>
    %156 = vector.shape_cast %155 : vector<1x64x64xbf16> to vector<64x64xbf16>
    %157 = vector.shape_cast %156 : vector<64x64xbf16> to vector<1x64x64xbf16>
    %158 = vector.broadcast %157 : vector<1x64x64xbf16> to vector<4x64x64xbf16>
    "tpu.trace_start"() <{level = 10 : i32, message = "hwc,hcd->hwd"}> : () -> ()
    %cst_138 = arith.constant dense<0.000000e+00> : vector<4x4x64xf32>
    %159 = tpu.matmul %154, %158, %cst_138 {dimension_numbers = #tpu.dot_dimension_numbers<[2], [1], [1], [2], [0, 0, 0, 1, 1, 2], [0], [0]>} : vector<4x4x64xbf16>, vector<4x64x64xbf16>, vector<4x4x64xf32> -> vector<4x4x64xf32>
    "tpu.trace_stop"() : () -> ()
    %160 = arith.addf %152, %159 : vector<4x4x64xf32>
    %c0_139 = arith.constant 0 : index
    %c0_140 = arith.constant 0 : index
    %161 = vector.load %arg5[%c0_139, %c0_140] : memref<1x64xf32, #tpu.memory_space<vmem>>, vector<1x64xf32>
    %162 = vector.shape_cast %161 : vector<1x64xf32> to vector<1x1x64xf32>
    %163 = vector.broadcast %162 : vector<1x1x64xf32> to vector<4x4x64xf32>
    %164 = arith.addf %160, %163 : vector<4x4x64xf32>
    %cst_141 = arith.constant 0.000000e+00 : f32
    %165 = vector.broadcast %cst_141 : f32 to vector<4x4x64xf32>
    %166 = arith.maximumf %164, %165 : vector<4x4x64xf32>
    %c1_142 = arith.constant 1 : index
    %c1_143 = arith.constant 1 : index
    %c0_144 = arith.constant 0 : index
    %167 = vector.load %arg11[%c1_142, %c1_143, %c0_144] : memref<6x6x64xf32, #tpu.memory_space<vmem>>, vector<4x4x64xf32>
    tpu.vector_store %arg11[%c1_142, %c1_143, %c0_144], %166 {strides = array<i32>} : memref<6x6x64xf32, #tpu.memory_space<vmem>>, vector<4x4x64xf32>,
    %cst_145 = arith.constant 0.000000e+00 : f32
    %168 = vector.broadcast %cst_145 : f32 to vector<2x2x128xf32>
    %c0_146 = arith.constant 0 : index
    %c0_147 = arith.constant 0 : index
    %c0_148 = arith.constant 0 : index
    %169 = tpu.strided_load %arg11[%c0_146, %c0_147, %c0_148] {strides = array<i32: 2, 2, 1>} : memref<6x6x64xf32, #tpu.memory_space<vmem>>, vector<2x2x64xf32>
    %170 = arith.truncf %169 : vector<2x2x64xf32> to vector<2x2x64xbf16>
    %c0_149 = arith.constant 0 : index
    %c0_150 = arith.constant 0 : index
    %c0_151 = arith.constant 0 : index
    %171 = vector.load %arg6[%c0_149, %c0_150, %c0_151] : memref<9x64x128xbf16, #tpu.memory_space<vmem>>, vector<1x64x128xbf16>
    %172 = vector.shape_cast %171 : vector<1x64x128xbf16> to vector<64x128xbf16>
    %173 = vector.shape_cast %172 : vector<64x128xbf16> to vector<1x64x128xbf16>
    %174 = vector.broadcast %173 : vector<1x64x128xbf16> to vector<2x64x128xbf16>
    "tpu.trace_start"() <{level = 10 : i32, message = "hwc,hcd->hwd"}> : () -> ()
    %cst_152 = arith.constant dense<0.000000e+00> : vector<2x2x128xf32>
    %175 = tpu.matmul %170, %174, %cst_152 {dimension_numbers = #tpu.dot_dimension_numbers<[2], [1], [1], [2], [0, 0, 0, 1, 1, 2], [0], [0]>} : vector<2x2x64xbf16>, vector<2x64x128xbf16>, vector<2x2x128xf32> -> vector<2x2x128xf32>
    "tpu.trace_stop"() : () -> ()
    %176 = arith.addf %168, %175 : vector<2x2x128xf32>
    %c0_153 = arith.constant 0 : index
    %c1_154 = arith.constant 1 : index
    %c0_155 = arith.constant 0 : index
    %177 = tpu.strided_load %arg11[%c0_153, %c1_154, %c0_155] {strides = array<i32: 2, 2, 1>} : memref<6x6x64xf32, #tpu.memory_space<vmem>>, vector<2x2x64xf32>
    %178 = arith.truncf %177 : vector<2x2x64xf32> to vector<2x2x64xbf16>
    %c1_156 = arith.constant 1 : index
    %c0_157 = arith.constant 0 : index
    %c0_158 = arith.constant 0 : index
    %179 = vector.load %arg6[%c1_156, %c0_157, %c0_158] : memref<9x64x128xbf16, #tpu.memory_space<vmem>>, vector<1x64x128xbf16>
    %180 = vector.shape_cast %179 : vector<1x64x128xbf16> to vector<64x128xbf16>
    %181 = vector.shape_cast %180 : vector<64x128xbf16> to vector<1x64x128xbf16>
    %182 = vector.broadcast %181 : vector<1x64x128xbf16> to vector<2x64x128xbf16>
    "tpu.trace_start"() <{level = 10 : i32, message = "hwc,hcd->hwd"}> : () -> ()
    %cst_159 = arith.constant dense<0.000000e+00> : vector<2x2x128xf32>
    %183 = tpu.matmul %178, %182, %cst_159 {dimension_numbers = #tpu.dot_dimension_numbers<[2], [1], [1], [2], [0, 0, 0, 1, 1, 2], [0], [0]>} : vector<2x2x64xbf16>, vector<2x64x128xbf16>, vector<2x2x128xf32> -> vector<2x2x128xf32>
    "tpu.trace_stop"() : () -> ()
    %184 = arith.addf %176, %183 : vector<2x2x128xf32>
    %c0_160 = arith.constant 0 : index
    %c2_161 = arith.constant 2 : index
    %c0_162 = arith.constant 0 : index
    %185 = tpu.strided_load %arg11[%c0_160, %c2_161, %c0_162] {strides = array<i32: 2, 2, 1>} : memref<6x6x64xf32, #tpu.memory_space<vmem>>, vector<2x2x64xf32>
    %186 = arith.truncf %185 : vector<2x2x64xf32> to vector<2x2x64xbf16>
    %c2_163 = arith.constant 2 : index
    %c0_164 = arith.constant 0 : index
    %c0_165 = arith.constant 0 : index
    %187 = vector.load %arg6[%c2_163, %c0_164, %c0_165] : memref<9x64x128xbf16, #tpu.memory_space<vmem>>, vector<1x64x128xbf16>
    %188 = vector.shape_cast %187 : vector<1x64x128xbf16> to vector<64x128xbf16>
    %189 = vector.shape_cast %188 : vector<64x128xbf16> to vector<1x64x128xbf16>
    %190 = vector.broadcast %189 : vector<1x64x128xbf16> to vector<2x64x128xbf16>
    "tpu.trace_start"() <{level = 10 : i32, message = "hwc,hcd->hwd"}> : () -> ()
    %cst_166 = arith.constant dense<0.000000e+00> : vector<2x2x128xf32>
    %191 = tpu.matmul %186, %190, %cst_166 {dimension_numbers = #tpu.dot_dimension_numbers<[2], [1], [1], [2], [0, 0, 0, 1, 1, 2], [0], [0]>} : vector<2x2x64xbf16>, vector<2x64x128xbf16>, vector<2x2x128xf32> -> vector<2x2x128xf32>
    "tpu.trace_stop"() : () -> ()
    %192 = arith.addf %184, %191 : vector<2x2x128xf32>
    %c1_167 = arith.constant 1 : index
    %c0_168 = arith.constant 0 : index
    %c0_169 = arith.constant 0 : index
    %193 = tpu.strided_load %arg11[%c1_167, %c0_168, %c0_169] {strides = array<i32: 2, 2, 1>} : memref<6x6x64xf32, #tpu.memory_space<vmem>>, vector<2x2x64xf32>
    %194 = arith.truncf %193 : vector<2x2x64xf32> to vector<2x2x64xbf16>
    %c3_170 = arith.constant 3 : index
    %c0_171 = arith.constant 0 : index
    %c0_172 = arith.constant 0 : index
    %195 = vector.load %arg6[%c3_170, %c0_171, %c0_172] : memref<9x64x128xbf16, #tpu.memory_space<vmem>>, vector<1x64x128xbf16>
    %196 = vector.shape_cast %195 : vector<1x64x128xbf16> to vector<64x128xbf16>
    %197 = vector.shape_cast %196 : vector<64x128xbf16> to vector<1x64x128xbf16>
    %198 = vector.broadcast %197 : vector<1x64x128xbf16> to vector<2x64x128xbf16>
    "tpu.trace_start"() <{level = 10 : i32, message = "hwc,hcd->hwd"}> : () -> ()
    %cst_173 = arith.constant dense<0.000000e+00> : vector<2x2x128xf32>
    %199 = tpu.matmul %194, %198, %cst_173 {dimension_numbers = #tpu.dot_dimension_numbers<[2], [1], [1], [2], [0, 0, 0, 1, 1, 2], [0], [0]>} : vector<2x2x64xbf16>, vector<2x64x128xbf16>, vector<2x2x128xf32> -> vector<2x2x128xf32>
    "tpu.trace_stop"() : () -> ()
    %200 = arith.addf %192, %199 : vector<2x2x128xf32>
    %c1_174 = arith.constant 1 : index
    %c1_175 = arith.constant 1 : index
    %c0_176 = arith.constant 0 : index
    %201 = tpu.strided_load %arg11[%c1_174, %c1_175, %c0_176] {strides = array<i32: 2, 2, 1>} : memref<6x6x64xf32, #tpu.memory_space<vmem>>, vector<2x2x64xf32>
    %202 = arith.truncf %201 : vector<2x2x64xf32> to vector<2x2x64xbf16>
    %c4_177 = arith.constant 4 : index
    %c0_178 = arith.constant 0 : index
    %c0_179 = arith.constant 0 : index
    %203 = vector.load %arg6[%c4_177, %c0_178, %c0_179] : memref<9x64x128xbf16, #tpu.memory_space<vmem>>, vector<1x64x128xbf16>
    %204 = vector.shape_cast %203 : vector<1x64x128xbf16> to vector<64x128xbf16>
    %205 = vector.shape_cast %204 : vector<64x128xbf16> to vector<1x64x128xbf16>
    %206 = vector.broadcast %205 : vector<1x64x128xbf16> to vector<2x64x128xbf16>
    "tpu.trace_start"() <{level = 10 : i32, message = "hwc,hcd->hwd"}> : () -> ()
    %cst_180 = arith.constant dense<0.000000e+00> : vector<2x2x128xf32>
    %207 = tpu.matmul %202, %206, %cst_180 {dimension_numbers = #tpu.dot_dimension_numbers<[2], [1], [1], [2], [0, 0, 0, 1, 1, 2], [0], [0]>} : vector<2x2x64xbf16>, vector<2x64x128xbf16>, vector<2x2x128xf32> -> vector<2x2x128xf32>
    "tpu.trace_stop"() : () -> ()
    %208 = arith.addf %200, %207 : vector<2x2x128xf32>
    %c1_181 = arith.constant 1 : index
    %c2_182 = arith.constant 2 : index
    %c0_183 = arith.constant 0 : index
    %209 = tpu.strided_load %arg11[%c1_181, %c2_182, %c0_183] {strides = array<i32: 2, 2, 1>} : memref<6x6x64xf32, #tpu.memory_space<vmem>>, vector<2x2x64xf32>
    %210 = arith.truncf %209 : vector<2x2x64xf32> to vector<2x2x64xbf16>
    %c5_184 = arith.constant 5 : index
    %c0_185 = arith.constant 0 : index
    %c0_186 = arith.constant 0 : index
    %211 = vector.load %arg6[%c5_184, %c0_185, %c0_186] : memref<9x64x128xbf16, #tpu.memory_space<vmem>>, vector<1x64x128xbf16>
    %212 = vector.shape_cast %211 : vector<1x64x128xbf16> to vector<64x128xbf16>
    %213 = vector.shape_cast %212 : vector<64x128xbf16> to vector<1x64x128xbf16>
    %214 = vector.broadcast %213 : vector<1x64x128xbf16> to vector<2x64x128xbf16>
    "tpu.trace_start"() <{level = 10 : i32, message = "hwc,hcd->hwd"}> : () -> ()
    %cst_187 = arith.constant dense<0.000000e+00> : vector<2x2x128xf32>
    %215 = tpu.matmul %210, %214, %cst_187 {dimension_numbers = #tpu.dot_dimension_numbers<[2], [1], [1], [2], [0, 0, 0, 1, 1, 2], [0], [0]>} : vector<2x2x64xbf16>, vector<2x64x128xbf16>, vector<2x2x128xf32> -> vector<2x2x128xf32>
    "tpu.trace_stop"() : () -> ()
    %216 = arith.addf %208, %215 : vector<2x2x128xf32>
    %c2_188 = arith.constant 2 : index
    %c0_189 = arith.constant 0 : index
    %c0_190 = arith.constant 0 : index
    %217 = tpu.strided_load %arg11[%c2_188, %c0_189, %c0_190] {strides = array<i32: 2, 2, 1>} : memref<6x6x64xf32, #tpu.memory_space<vmem>>, vector<2x2x64xf32>
    %218 = arith.truncf %217 : vector<2x2x64xf32> to vector<2x2x64xbf16>
    %c6_191 = arith.constant 6 : index
    %c0_192 = arith.constant 0 : index
    %c0_193 = arith.constant 0 : index
    %219 = vector.load %arg6[%c6_191, %c0_192, %c0_193] : memref<9x64x128xbf16, #tpu.memory_space<vmem>>, vector<1x64x128xbf16>
    %220 = vector.shape_cast %219 : vector<1x64x128xbf16> to vector<64x128xbf16>
    %221 = vector.shape_cast %220 : vector<64x128xbf16> to vector<1x64x128xbf16>
    %222 = vector.broadcast %221 : vector<1x64x128xbf16> to vector<2x64x128xbf16>
    "tpu.trace_start"() <{level = 10 : i32, message = "hwc,hcd->hwd"}> : () -> ()
    %cst_194 = arith.constant dense<0.000000e+00> : vector<2x2x128xf32>
    %223 = tpu.matmul %218, %222, %cst_194 {dimension_numbers = #tpu.dot_dimension_numbers<[2], [1], [1], [2], [0, 0, 0, 1, 1, 2], [0], [0]>} : vector<2x2x64xbf16>, vector<2x64x128xbf16>, vector<2x2x128xf32> -> vector<2x2x128xf32>
    "tpu.trace_stop"() : () -> ()
    %224 = arith.addf %216, %223 : vector<2x2x128xf32>
    %c2_195 = arith.constant 2 : index
    %c1_196 = arith.constant 1 : index
    %c0_197 = arith.constant 0 : index
    %225 = tpu.strided_load %arg11[%c2_195, %c1_196, %c0_197] {strides = array<i32: 2, 2, 1>} : memref<6x6x64xf32, #tpu.memory_space<vmem>>, vector<2x2x64xf32>
    %226 = arith.truncf %225 : vector<2x2x64xf32> to vector<2x2x64xbf16>
    %c7_198 = arith.constant 7 : index
    %c0_199 = arith.constant 0 : index
    %c0_200 = arith.constant 0 : index
    %227 = vector.load %arg6[%c7_198, %c0_199, %c0_200] : memref<9x64x128xbf16, #tpu.memory_space<vmem>>, vector<1x64x128xbf16>
    %228 = vector.shape_cast %227 : vector<1x64x128xbf16> to vector<64x128xbf16>
    %229 = vector.shape_cast %228 : vector<64x128xbf16> to vector<1x64x128xbf16>
    %230 = vector.broadcast %229 : vector<1x64x128xbf16> to vector<2x64x128xbf16>
    "tpu.trace_start"() <{level = 10 : i32, message = "hwc,hcd->hwd"}> : () -> ()
    %cst_201 = arith.constant dense<0.000000e+00> : vector<2x2x128xf32>
    %231 = tpu.matmul %226, %230, %cst_201 {dimension_numbers = #tpu.dot_dimension_numbers<[2], [1], [1], [2], [0, 0, 0, 1, 1, 2], [0], [0]>} : vector<2x2x64xbf16>, vector<2x64x128xbf16>, vector<2x2x128xf32> -> vector<2x2x128xf32>
    "tpu.trace_stop"() : () -> ()
    %232 = arith.addf %224, %231 : vector<2x2x128xf32>
    %c2_202 = arith.constant 2 : index
    %c2_203 = arith.constant 2 : index
    %c0_204 = arith.constant 0 : index
    %233 = tpu.strided_load %arg11[%c2_202, %c2_203, %c0_204] {strides = array<i32: 2, 2, 1>} : memref<6x6x64xf32, #tpu.memory_space<vmem>>, vector<2x2x64xf32>
    %234 = arith.truncf %233 : vector<2x2x64xf32> to vector<2x2x64xbf16>
    %c8_205 = arith.constant 8 : index
    %c0_206 = arith.constant 0 : index
    %c0_207 = arith.constant 0 : index
    %235 = vector.load %arg6[%c8_205, %c0_206, %c0_207] : memref<9x64x128xbf16, #tpu.memory_space<vmem>>, vector<1x64x128xbf16>
    %236 = vector.shape_cast %235 : vector<1x64x128xbf16> to vector<64x128xbf16>
    %237 = vector.shape_cast %236 : vector<64x128xbf16> to vector<1x64x128xbf16>
    %238 = vector.broadcast %237 : vector<1x64x128xbf16> to vector<2x64x128xbf16>
    "tpu.trace_start"() <{level = 10 : i32, message = "hwc,hcd->hwd"}> : () -> ()
    %cst_208 = arith.constant dense<0.000000e+00> : vector<2x2x128xf32>
    %239 = tpu.matmul %234, %238, %cst_208 {dimension_numbers = #tpu.dot_dimension_numbers<[2], [1], [1], [2], [0, 0, 0, 1, 1, 2], [0], [0]>} : vector<2x2x64xbf16>, vector<2x64x128xbf16>, vector<2x2x128xf32> -> vector<2x2x128xf32>
    "tpu.trace_stop"() : () -> ()
    %240 = arith.addf %232, %239 : vector<2x2x128xf32>
    %c0_209 = arith.constant 0 : index
    %c0_210 = arith.constant 0 : index
    %241 = vector.load %arg7[%c0_209, %c0_210] : memref<1x128xf32, #tpu.memory_space<vmem>>, vector<1x128xf32>
    %242 = vector.shape_cast %241 : vector<1x128xf32> to vector<1x1x128xf32>
    %243 = vector.broadcast %242 : vector<1x1x128xf32> to vector<2x2x128xf32>
    %244 = arith.addf %240, %243 : vector<2x2x128xf32>
    %cst_211 = arith.constant 0.000000e+00 : f32
    %245 = vector.broadcast %cst_211 : f32 to vector<2x2x128xf32>
    %246 = arith.maximumf %244, %245 : vector<2x2x128xf32>
    %c0_212 = arith.constant 0 : index
    %c0_213 = arith.constant 0 : index
    %c0_214 = arith.constant 0 : index
    %c0_215 = arith.constant 0 : index
    %247 = vector.load %arg8[%c0_212, %c0_213, %c0_214, %c0_215] : memref<1x2x2x128xf32, #tpu.memory_space<vmem>>, vector<1x2x2x128xf32>
    %248 = vector.shape_cast %247 : vector<1x2x2x128xf32> to vector<2x2x128xf32>
    %249 = vector.shape_cast %246 : vector<2x2x128xf32> to vector<1x2x2x128xf32>
    tpu.vector_store %arg8[%c0_212, %c0_213, %c0_214, %c0_215], %249 {strides = array<i32>} : memref<1x2x2x128xf32, #tpu.memory_space<vmem>>, vector<1x2x2x128xf32>,
    return
  }
  func.func @transform_0(%arg0: i32) -> (i32, i32, i32, i32) {
    %c0_i32 = arith.constant 0 : i32
    %c0_i32_0 = arith.constant 0 : i32
    %c0_i32_1 = arith.constant 0 : i32
    %c0_i32_2 = arith.constant 0 : i32
    return %arg0, %c0_i32, %c0_i32_0, %c0_i32_1 : i32, i32, i32, i32
  }
  func.func @transform_1(%arg0: i32) -> (i32, i32, i32) {
    %c0_i32 = arith.constant 0 : i32
    %c0_i32_0 = arith.constant 0 : i32
    %c0_i32_1 = arith.constant 0 : i32
    %c0_i32_2 = arith.constant 0 : i32
    return %c0_i32, %c0_i32_0, %c0_i32_1 : i32, i32, i32
  }
  func.func @transform_2(%arg0: i32) -> (i32, i32) {
    %c0_i32 = arith.constant 0 : i32
    %c0_i32_0 = arith.constant 0 : i32
    %c0_i32_1 = arith.constant 0 : i32
    return %c0_i32, %c0_i32_0 : i32, i32
  }
  func.func @transform_3(%arg0: i32) -> (i32, i32, i32) {
    %c0_i32 = arith.constant 0 : i32
    %c0_i32_0 = arith.constant 0 : i32
    %c0_i32_1 = arith.constant 0 : i32
    %c0_i32_2 = arith.constant 0 : i32
    return %c0_i32, %c0_i32_0, %c0_i32_1 : i32, i32, i32
  }
  func.func @transform_4(%arg0: i32) -> (i32, i32) {
    %c0_i32 = arith.constant 0 : i32
    %c0_i32_0 = arith.constant 0 : i32
    %c0_i32_1 = arith.constant 0 : i32
    return %c0_i32, %c0_i32_0 : i32, i32
  }
  func.func @transform_5(%arg0: i32) -> (i32, i32, i32) {
    %c0_i32 = arith.constant 0 : i32
    %c0_i32_0 = arith.constant 0 : i32
    %c0_i32_1 = arith.constant 0 : i32
    %c0_i32_2 = arith.constant 0 : i32
    return %c0_i32, %c0_i32_0, %c0_i32_1 : i32, i32, i32
  }
  func.func @transform_6(%arg0: i32) -> (i32, i32) {
    %c0_i32 = arith.constant 0 : i32
    %c0_i32_0 = arith.constant 0 : i32
    %c0_i32_1 = arith.constant 0 : i32
    return %c0_i32, %c0_i32_0 : i32, i32
  }
  func.func @transform_7(%arg0: i32) -> (i32, i32, i32, i32) {
    %c0_i32 = arith.constant 0 : i32
    %c0_i32_0 = arith.constant 0 : i32
    %c0_i32_1 = arith.constant 0 : i32
    %c0_i32_2 = arith.constant 0 : i32
    return %arg0, %c0_i32, %c0_i32_0, %c0_i32_1 : i32, i32, i32, i32
  }
}

</mosaic_0001>

<llo_original>
// kernel: tpu_custom_call.1
$region0: #{tpu_custom_call.1}
  #allocation0 [shape = 'u32[]', space=smem, size = 0x4, offset = 0x4, fixed_abs, tag = 'smem constant byte address 0x4 - core index']
  #allocation1 [shape = 'u32[144,128]{1,0:T(1,128)}', space=vmem, size = 0x12000, scoped, tag = 'internal scratch']
  #allocation2 [shape = 'f32[18,18,4]{2,1,0:T(8,128)}', space=vmem, size = 0x36000, scoped, tag = 'scratch operand']
  #allocation3 [shape = 'f32[10,10,64]{2,1,0:T(8,128)}', space=vmem, size = 0x14000, scoped, tag = 'scratch operand']
  #allocation4 [shape = 'f32[6,6,64]{2,1,0:T(8,128)}', space=vmem, size = 0x6000, scoped, tag = 'scratch operand']
  %s0 = inlined_call_operand.vmem [shape: bf16[2,18,18,4], index: 0, kind: input, shape index: {}]
  %s1 = inlined_call_operand.vmem [shape: bf16[9,4,64], index: 1, kind: input, shape index: {}]
  %s2 = inlined_call_operand.vmem [shape: f32[1,64], index: 2, kind: input, shape index: {}]
  %s3 = inlined_call_operand.vmem [shape: bf16[9,64,64], index: 3, kind: input, shape index: {}]
  %s4 = inlined_call_operand.vmem [shape: f32[1,64], index: 4, kind: input, shape index: {}]
  %s5 = inlined_call_operand.hbm [shape: bf16[9,64,128], index: 5, kind: input, shape index: {}]
  %s6 = inlined_call_operand.vmem [shape: f32[1,128], index: 6, kind: input, shape index: {}]
  %s7 = inlined_call_operand.hbm [shape: f32[2,2,2,128], index: 7, kind: output, shape index: {}]
  %s8 = sld [smem:[#allocation0]]
  $region65: #{tpu_custom_call.1} parent=0
    _
  %s10 = ssub.s32 1, %s8
  %s11 = scalar_select 0, %s10, %s8
  $region1: #{tpu_custom_call.1} parent=0
    #allocation5 [shape = 'u8[147456]{0}', space=vmem, size = 0x24000, scoped, tag = 'input window, operand 5, single buffered']
    #allocation6 [shape = 's32[2]{0}', space=sflag, size = 0x8, scoped, tag = 'scoped memory for tpu_custom_call.1']
    #allocation7 [shape = 's32[2]{0}', space=sflag, size = 0x8, scoped, tag = 'scoped memory for tpu_custom_call.1']
    #allocation8 [shape = 'u8[4096]{0}', space=vmem, size = 0x1000, scoped, tag = 'output window, operand 0']
    %12 = vsyncpa [#allocation6], 0
    %13 = vsyncpa [#allocation7], 0
    %s14 = scalar_lea.sflag [#allocation7], 1
    %15 = vsyncpa %s14, 0
    loop: start=0, step=1, limit=4
    $region2: #{tpu_custom_call.1} parent=1 // loop_pre_header
      _
    $region3: #{tpu_custom_call.1} parent=1 // loop_header
      %s17 = sphi 0, %s21
      %p18 = scmp.ge.s32.totalorder %s17, 4
      %s27 = sphi 0, %s29
      %s30 = sphi 0, %s27
      %s31 = sphi 0, %s30
      %s47 = sphi 0, %s31
      %s51 = sphi 0, %s51
      %s53 = sphi 0, %s51
      %s54 = sphi 0, %s53
      %s68 = sphi 0, %s54
      %s72 = sphi 0, %s72
      %s74 = sphi 0, %s72
      %s75 = sphi 0, %s74
      %s89 = sphi 0, %s75
      %s93 = sphi 0, %s93
      %s95 = sphi 0, %s93
      %s96 = sphi 0, %s95
      %s110 = sphi 0, %s96
      %s114 = sphi 0, %s114
      %s116 = sphi 0, %s114
      %s117 = sphi 0, %s116
      %s131 = sphi 0, %s117
      %s135 = sphi 0, %s135
      %s137 = sphi 0, %s135
      %s138 = sphi 0, %s137
      %s152 = sphi 0, %s138
      %s156 = sphi 0, %s156
      %s158 = sphi 0, %s156
      %s159 = sphi 0, %s158
      %s173 = sphi 0, %s159
      %s179 = sphi 0, %s181
      %s182 = sphi 0, %s179
      %s183 = sphi 0, %s182
      %s199 = sphi 0, %s183
    $region4: #{tpu_custom_call.1} parent=1 // loop_header_branch
      %20 = sbr.rel (%p18) target = $region8
    $region5: #{tpu_custom_call.1} parent=1 // loop_body
      %s22 = ssub.s32 %s17, 1
      %s23 = ssub.s32 %s17, 2
      %s24 = sadd.s32 %s17, 1
      %s25 = ssub.s32 %s17, %s24
      %p26 = scmp.eq.s32.totalorder %s25, 0
      %s28 = sadd.s32 %s27, 1
      %s29 = scalar_select %p26, %s27, %s28
      %p32 = pneg %p26
      %p33 = scmp.eq.s32.totalorder %s17, 1
      %p34 = por %p32, %p33
      %p35 = scmp.ne.s32.totalorder %s27, %s30
      %p36 = scmp.eq.s32.totalorder %s17, 0
      %p37 = por %p35, %p36
      %p38 = scmp.ne.s32.totalorder %s27, %s30
      %p39 = scmp.eq.s32.totalorder %s22, 1
      %p40 = por %p38, %p39
      %p41 = scmp.ne.s32.totalorder %s30, %s31
      %p42 = scmp.eq.s32.totalorder %s22, 0
      %p43 = por %p41, %p42
      %p44 = scmp.ne.s32.totalorder %s30, %s31
      %p45 = scmp.eq.s32.totalorder %s23, 1
      %p46 = por %p44, %p45
      %p48 = scmp.ne.s32.totalorder %s31, %s47
      %p49 = scmp.eq.s32.totalorder %s23, 0
      %p50 = por %p48, %p49
      %s52 = sadd.s32 %s51, 1
      %p55 = scmp.eq.s32.totalorder %s17, 1
      %p56 = scmp.ne.s32.totalorder %s51, %s53
      %p57 = scmp.eq.s32.totalorder %s17, 0
      %p58 = por %p56, %p57
      %p59 = scmp.ne.s32.totalorder %s51, %s53
      %p60 = scmp.eq.s32.totalorder %s22, 1
      %p61 = por %p59, %p60
      %p62 = scmp.ne.s32.totalorder %s53, %s54
      %p63 = scmp.eq.s32.totalorder %s22, 0
      %p64 = por %p62, %p63
      %p65 = scmp.ne.s32.totalorder %s53, %s54
      %p66 = scmp.eq.s32.totalorder %s23, 1
      %p67 = por %p65, %p66
      %p69 = scmp.ne.s32.totalorder %s54, %s68
      %p70 = scmp.eq.s32.totalorder %s23, 0
      %p71 = por %p69, %p70
      %s73 = sadd.s32 %s72, 1
      %p76 = scmp.eq.s32.totalorder %s17, 1
      %p77 = scmp.ne.s32.totalorder %s72, %s74
      %p78 = scmp.eq.s32.totalorder %s17, 0
      %p79 = por %p77, %p78
      %p80 = scmp.ne.s32.totalorder %s72, %s74
      %p81 = scmp.eq.s32.totalorder %s22, 1
      %p82 = por %p80, %p81
      %p83 = scmp.ne.s32.totalorder %s74, %s75
      %p84 = scmp.eq.s32.totalorder %s22, 0
      %p85 = por %p83, %p84
      %p86 = scmp.ne.s32.totalorder %s74, %s75
      %p87 = scmp.eq.s32.totalorder %s23, 1
      %p88 = por %p86, %p87
      %p90 = scmp.ne.s32.totalorder %s75, %s89
      %p91 = scmp.eq.s32.totalorder %s23, 0
      %p92 = por %p90, %p91
      %s94 = sadd.s32 %s93, 1
      %p97 = scmp.eq.s32.totalorder %s17, 1
      %p98 = scmp.ne.s32.totalorder %s93, %s95
      %p99 = scmp.eq.s32.totalorder %s17, 0
      %p100 = por %p98, %p99
      %p101 = scmp.ne.s32.totalorder %s93, %s95
      %p102 = scmp.eq.s32.totalorder %s22, 1
      %p103 = por %p101, %p102
      %p104 = scmp.ne.s32.totalorder %s95, %s96
      %p105 = scmp.eq.s32.totalorder %s22, 0
      %p106 = por %p104, %p105
      %p107 = scmp.ne.s32.totalorder %s95, %s96
      %p108 = scmp.eq.s32.totalorder %s23, 1
      %p109 = por %p107, %p108
      %p111 = scmp.ne.s32.totalorder %s96, %s110
      %p112 = scmp.eq.s32.totalorder %s23, 0
      %p113 = por %p111, %p112
      %s115 = sadd.s32 %s114, 1
      %p118 = scmp.eq.s32.totalorder %s17, 1
      %p119 = scmp.ne.s32.totalorder %s114, %s116
      %p120 = scmp.eq.s32.totalorder %s17, 0
      %p121 = por %p119, %p120
      %p122 = scmp.ne.s32.totalorder %s114, %s116
      %p123 = scmp.eq.s32.totalorder %s22, 1
      %p124 = por %p122, %p123
      %p125 = scmp.ne.s32.totalorder %s116, %s117
      %p126 = scmp.eq.s32.totalorder %s22, 0
      %p127 = por %p125, %p126
      %p128 = scmp.ne.s32.totalorder %s116, %s117
      %p129 = scmp.eq.s32.totalorder %s23, 1
      %p130 = por %p128, %p129
      %p132 = scmp.ne.s32.totalorder %s117, %s131
      %p133 = scmp.eq.s32.totalorder %s23, 0
      %p134 = por %p132, %p133
      %s136 = sadd.s32 %s135, 1
      %p139 = scmp.eq.s32.totalorder %s17, 1
      %p140 = scmp.ne.s32.totalorder %s135, %s137
      %p141 = scmp.eq.s32.totalorder %s17, 0
      %p142 = por %p140, %p141
      %p143 = scmp.ne.s32.totalorder %s135, %s137
      %p144 = scmp.eq.s32.totalorder %s22, 1
      %p145 = por %p143, %p144
      %p146 = scmp.ne.s32.totalorder %s137, %s138
      %p147 = scmp.eq.s32.totalorder %s22, 0
      %p148 = por %p146, %p147
      %p149 = scmp.ne.s32.totalorder %s137, %s138
      %p150 = scmp.eq.s32.totalorder %s23, 1
      %p151 = por %p149, %p150
      %p153 = scmp.ne.s32.totalorder %s138, %s152
      %p154 = scmp.eq.s32.totalorder %s23, 0
      %p155 = por %p153, %p154
      %s157 = sadd.s32 %s156, 1
      %p160 = scmp.eq.s32.totalorder %s17, 1
      %p161 = scmp.ne.s32.totalorder %s156, %s158
      %p162 = scmp.eq.s32.totalorder %s17, 0
      %p163 = por %p161, %p162
      %p164 = scmp.ne.s32.totalorder %s156, %s158
      %p165 = scmp.eq.s32.totalorder %s22, 1
      %p166 = por %p164, %p165
      %p167 = scmp.ne.s32.totalorder %s158, %s159
      %p168 = scmp.eq.s32.totalorder %s22, 0
      %p169 = por %p167, %p168
      %p170 = scmp.ne.s32.totalorder %s158, %s159
      %p171 = scmp.eq.s32.totalorder %s23, 1
      %p172 = por %p170, %p171
      %p174 = scmp.ne.s32.totalorder %s159, %s173
      %p175 = scmp.eq.s32.totalorder %s23, 0
      %p176 = por %p174, %p175
      %s177 = ssub.s32 %s17, %s24
      %p178 = scmp.eq.s32.totalorder %s177, 0
      %s180 = sadd.s32 %s179, 1
      %s181 = scalar_select %p178, %s179, %s180
      %p184 = pneg %p178
      %p185 = scmp.eq.s32.totalorder %s17, 1
      %p186 = por %p184, %p185
      %p187 = scmp.ne.s32.totalorder %s179, %s182
      %p188 = scmp.eq.s32.totalorder %s17, 0
      %p189 = por %p187, %p188
      %p190 = scmp.ne.s32.totalorder %s179, %s182
      %p191 = scmp.eq.s32.totalorder %s22, 1
      %p192 = por %p190, %p191
      %p193 = scmp.ne.s32.totalorder %s182, %s183
      %p194 = scmp.eq.s32.totalorder %s22, 0
      %p195 = por %p193, %p194
      %p196 = scmp.ne.s32.totalorder %s182, %s183
      %p197 = scmp.eq.s32.totalorder %s23, 1
      %p198 = por %p196, %p197
      %p200 = scmp.ne.s32.totalorder %s183, %s199
      %p201 = scmp.eq.s32.totalorder %s23, 0
      %p202 = por %p200, %p201
      %p203 = scmp.le.s32.totalorder 1, %s17
      %p204 = scmp.lt.s32.totalorder %s17, 3
      %p205 = pnand %p203, %p204
      %p206 = pneg %p205
      // Predicated region
      $region9: #{tpu_custom_call.1} parent=5 // pred_check
        _
      $region10: #{tpu_custom_call.1} parent=5 // pred_check_branch
        %208 = sbr.rel (%p205) target = $region12
      $region11: #{tpu_custom_call.1} parent=5 // pred_region
        %s209 = ssub.s32 %s17, 1
        // Predicated region
        $region13: #{tpu_custom_call.1} parent=11 // pred_check
          %p210 = pneg %p64
        $region14: #{tpu_custom_call.1} parent=11 // pred_check_branch
          %212 = sbr.rel (%p210) target = $region16
        $region15: #{tpu_custom_call.1} parent=11 // pred_region
          _
        $region16: #{tpu_custom_call.1} parent=11 // pred_fallthru
          _
        // Predicated region
        $region17: #{tpu_custom_call.1} parent=11 // pred_check
          %p213 = pneg %p85
        $region18: #{tpu_custom_call.1} parent=11 // pred_check_branch
          %215 = sbr.rel (%p213) target = $region20
        $region19: #{tpu_custom_call.1} parent=11 // pred_region
          _
        $region20: #{tpu_custom_call.1} parent=11 // pred_fallthru
          _
        // Predicated region
        $region21: #{tpu_custom_call.1} parent=11 // pred_check
          %p216 = pneg %p106
        $region22: #{tpu_custom_call.1} parent=11 // pred_check_branch
          %218 = sbr.rel (%p216) target = $region24
        $region23: #{tpu_custom_call.1} parent=11 // pred_region
          _
        $region24: #{tpu_custom_call.1} parent=11 // pred_fallthru
          _
        // Predicated region
        $region25: #{tpu_custom_call.1} parent=11 // pred_check
          %p219 = pneg %p127
        $region26: #{tpu_custom_call.1} parent=11 // pred_check_branch
          %221 = sbr.rel (%p219) target = $region28
        $region27: #{tpu_custom_call.1} parent=11 // pred_region
          _
        $region28: #{tpu_custom_call.1} parent=11 // pred_fallthru
          _
        // Predicated region
        $region29: #{tpu_custom_call.1} parent=11 // pred_check
          %p222 = pneg %p148
        $region30: #{tpu_custom_call.1} parent=11 // pred_check_branch
          %224 = sbr.rel (%p222) target = $region32
        $region31: #{tpu_custom_call.1} parent=11 // pred_region
          %s226 = ssub.s32 4608, 4608
          %227 = vsyncadd [#allocation6], %s226
          %s228 = sshll.u32 [#allocation5], 4
          %s229 = int_to_ptr.vmem [resolvable:$true] %s228
          %234 = dma.hbm_to_vmem [thread:$0]  %s5, 4608, %s229, [#allocation6], 64, 64, 4
        $region32: #{tpu_custom_call.1} parent=11 // pred_fallthru
          _
        // Predicated region
        $region33: #{tpu_custom_call.1} parent=11 // pred_check
          %p235 = pneg %p169
        $region34: #{tpu_custom_call.1} parent=11 // pred_check_branch
          %237 = sbr.rel (%p235) target = $region36
        $region35: #{tpu_custom_call.1} parent=11 // pred_region
          _
        $region36: #{tpu_custom_call.1} parent=11 // pred_fallthru
          _
      $region12: #{tpu_custom_call.1} parent=5 // pred_fallthru
        _
      %p238 = scmp.lt.s32.totalorder %s17, 2
      // Predicated region
      $region37: #{tpu_custom_call.1} parent=5 // pred_check
        %p239 = pneg %p238
      $region38: #{tpu_custom_call.1} parent=5 // pred_check_branch
        %241 = sbr.rel (%p239) target = $region40
      $region39: #{tpu_custom_call.1} parent=5 // pred_region
        // Predicated region
        $region41: #{tpu_custom_call.1} parent=39 // pred_check
          %p242 = pneg %p37
        $region42: #{tpu_custom_call.1} parent=39 // pred_check_branch
          %244 = sbr.rel (%p242) target = $region44
        $region43: #{tpu_custom_call.1} parent=39 // pred_region
          %p245 = scmp.lt.s32.totalorder %s17, 1
          %s246 = scalar_select %p245, %s17, 1
          %s247 = smul.addr %s246, 54
          %s248 = smul.addr %s247, 4
          %s249 = scalar_lea.vmem %s0, %s248
        $region44: #{tpu_custom_call.1} parent=39 // pred_fallthru
          _
      $region40: #{tpu_custom_call.1} parent=5 // pred_fallthru
        _
      %p250 = scmp.le.s32.totalorder 1, %s17
      %p251 = scmp.lt.s32.totalorder %s17, 3
      %p252 = pnand %p250, %p251
      %p253 = pneg %p252
      // Predicated region
      $region45: #{tpu_custom_call.1} parent=5 // pred_check
        _
      $region46: #{tpu_custom_call.1} parent=5 // pred_check_branch
        %255 = sbr.rel (%p252) target = $region48
      $region47: #{tpu_custom_call.1} parent=5 // pred_region
        %s256 = ssub.s32 %s17, 1
        // Predicated region
        $region49: #{tpu_custom_call.1} parent=47 // pred_check
          %p257 = pneg %p148
        $region50: #{tpu_custom_call.1} parent=47 // pred_check_branch
          %259 = sbr.rel (%p257) target = $region52
        $region51: #{tpu_custom_call.1} parent=47 // pred_region
          %260 = dma.done [#allocation6], 4608
        $region52: #{tpu_custom_call.1} parent=47 // pred_fallthru
          _
        %p261 = scmp.lt.s32.totalorder %s22, 1
        %s262 = scalar_select %p261, %s22, 1
        %s263 = smul.addr %s262, 54
        %s264 = smul.addr %s263, 4
        %s265 = scalar_lea.vmem %s0, %s264
        %p266 = pneg %p43
        %p267 = pneg %p40
        %p268 = pneg %p64
        %p269 = pneg %p61
        %p270 = pneg %p85
        %p271 = pneg %p82
        %p272 = pneg %p106
        %p273 = pneg %p103
        %p274 = pneg %p127
        %p275 = pneg %p124
        %p276 = pneg %p148
        %p277 = pneg %p145
        %p278 = pneg %p169
        %p279 = pneg %p166
        %p280 = pneg %p195
        %p281 = pneg %p192
        %s282 = sand.u32 %s182, 1
        %s283 = scalar_lea.sflag [#allocation7], %s282
        %s284 = sand.u32 %s182, 1
        %s285 = smul.addr %s284, 4
        %s286 = scalar_lea.vmem [#allocation8], %s285
        %p287 = scmp.lt.s32.totalorder %s22, 1
        %s288 = scalar_select %p287, %s22, 1
        %s289 = smul.addr %s288, 54
        %s290 = smul.addr %s289, 4
        %s291 = scalar_lea.vmem %s0, %s290
        %v293 = vld [vmem:[%s291] sm:$0xf]
        %v294 = vld [vmem:[%s291 + $0x4] sm:$0xf]
        %v295 = vld [vmem:[%s291 + $0x8] sm:$0x1]
        %v296 = vld [vmem:[%s291 + $0xc] sm:$0xf]
        %v297 = vld [vmem:[%s291 + $0x10] sm:$0xf]
        %v298 = vld [vmem:[%s291 + $0x14] sm:$0x1]
        %v299 = vld [vmem:[%s291 + $0x18] sm:$0xf]
        %v300 = vld [vmem:[%s291 + $0x1c] sm:$0xf]
        %v301 = vld [vmem:[%s291 + $0x20] sm:$0x1]
        %v302 = vld [vmem:[%s291 + $0x24] sm:$0xf]
        %v303 = vld [vmem:[%s291 + $0x28] sm:$0xf]
        %v304 = vld [vmem:[%s291 + $0x2c] sm:$0x1]
        %v305 = vld [vmem:[%s291 + $0x30] sm:$0xf]
        %v306 = vld [vmem:[%s291 + $0x34] sm:$0xf]
        %v307 = vld [vmem:[%s291 + $0x38] sm:$0x1]
        %v308 = vld [vmem:[%s291 + $0x3c] sm:$0xf]
        %v309 = vld [vmem:[%s291 + $0x40] sm:$0xf]
        %v310 = vld [vmem:[%s291 + $0x44] sm:$0x1]
        %v311 = vld [vmem:[%s291 + $0x48] sm:$0xf]
        %v312 = vld [vmem:[%s291 + $0x4c] sm:$0xf]
        %v313 = vld [vmem:[%s291 + $0x50] sm:$0x1]
        %v314 = vld [vmem:[%s291 + $0x54] sm:$0xf]
        %v315 = vld [vmem:[%s291 + $0x58] sm:$0xf]
        %v316 = vld [vmem:[%s291 + $0x5c] sm:$0x1]
        %v317 = vld [vmem:[%s291 + $0x60] sm:$0xf]
        %v318 = vld [vmem:[%s291 + $0x64] sm:$0xf]
        %v319 = vld [vmem:[%s291 + $0x68] sm:$0x1]
        %v320 = vld [vmem:[%s291 + $0x6c] sm:$0xf]
        %v321 = vld [vmem:[%s291 + $0x70] sm:$0xf]
        %v322 = vld [vmem:[%s291 + $0x74] sm:$0x1]
        %v323 = vld [vmem:[%s291 + $0x78] sm:$0xf]
        %v324 = vld [vmem:[%s291 + $0x7c] sm:$0xf]
        %v325 = vld [vmem:[%s291 + $0x80] sm:$0x1]
        %v326 = vld [vmem:[%s291 + $0x84] sm:$0xf]
        %v327 = vld [vmem:[%s291 + $0x88] sm:$0xf]
        %v328 = vld [vmem:[%s291 + $0x8c] sm:$0x1]
        %v329 = vld [vmem:[%s291 + $0x90] sm:$0xf]
        %v330 = vld [vmem:[%s291 + $0x94] sm:$0xf]
        %v331 = vld [vmem:[%s291 + $0x98] sm:$0x1]
        %v332 = vld [vmem:[%s291 + $0x9c] sm:$0xf]
        %v333 = vld [vmem:[%s291 + $0xa0] sm:$0xf]
        %v334 = vld [vmem:[%s291 + $0xa4] sm:$0x1]
        %v335 = vld [vmem:[%s291 + $0xa8] sm:$0xf]
        %v336 = vld [vmem:[%s291 + $0xac] sm:$0xf]
        %v337 = vld [vmem:[%s291 + $0xb0] sm:$0x1]
        %v338 = vld [vmem:[%s291 + $0xb4] sm:$0xf]
        %v339 = vld [vmem:[%s291 + $0xb8] sm:$0xf]
        %v340 = vld [vmem:[%s291 + $0xbc] sm:$0x1]
        %v341 = vld [vmem:[%s291 + $0xc0] sm:$0xf]
        %v342 = vld [vmem:[%s291 + $0xc4] sm:$0xf]
        %v343 = vld [vmem:[%s291 + $0xc8] sm:$0x1]
        %v344 = vld [vmem:[%s291 + $0xcc] sm:$0xf]
        %v345 = vld [vmem:[%s291 + $0xd0] sm:$0xf]
        %v346 = vld [vmem:[%s291 + $0xd4] sm:$0x1]
        %v347 = vunpack.c.l.bf16 %v293
        %v348 = vunpack.c.l.bf16 %v294
        %v349 = vunpack.c.l.bf16 %v295
        %v350 = vunpack.c.l.bf16 %v296
        %v351 = vunpack.c.l.bf16 %v297
        %v352 = vunpack.c.l.bf16 %v298
        %v353 = vunpack.c.l.bf16 %v299
        %v354 = vunpack.c.l.bf16 %v300
        %v355 = vunpack.c.l.bf16 %v301
        %v356 = vunpack.c.l.bf16 %v302
        %v357 = vunpack.c.l.bf16 %v303
        %v358 = vunpack.c.l.bf16 %v304
        %v359 = vunpack.c.l.bf16 %v305
        %v360 = vunpack.c.l.bf16 %v306
        %v361 = vunpack.c.l.bf16 %v307
        %v362 = vunpack.c.l.bf16 %v308
        %v363 = vunpack.c.l.bf16 %v309
        %v364 = vunpack.c.l.bf16 %v310
        %v365 = vunpack.c.l.bf16 %v311
        %v366 = vunpack.c.l.bf16 %v312
        %v367 = vunpack.c.l.bf16 %v313
        %v368 = vunpack.c.l.bf16 %v314
        %v369 = vunpack.c.l.bf16 %v315
        %v370 = vunpack.c.l.bf16 %v316
        %v371 = vunpack.c.l.bf16 %v317
        %v372 = vunpack.c.l.bf16 %v318
        %v373 = vunpack.c.l.bf16 %v319
        %v374 = vunpack.c.l.bf16 %v320
        %v375 = vunpack.c.l.bf16 %v321
        %v376 = vunpack.c.l.bf16 %v322
        %v377 = vunpack.c.l.bf16 %v323
        %v378 = vunpack.c.l.bf16 %v324
        %v379 = vunpack.c.l.bf16 %v325
        %v380 = vunpack.c.l.bf16 %v326
        %v381 = vunpack.c.l.bf16 %v327
        %v382 = vunpack.c.l.bf16 %v328
        %v383 = vunpack.c.l.bf16 %v329
        %v384 = vunpack.c.l.bf16 %v330
        %v385 = vunpack.c.l.bf16 %v331
        %v386 = vunpack.c.l.bf16 %v332
        %v387 = vunpack.c.l.bf16 %v333
        %v388 = vunpack.c.l.bf16 %v334
        %v389 = vunpack.c.l.bf16 %v335
        %v390 = vunpack.c.l.bf16 %v336
        %v391 = vunpack.c.l.bf16 %v337
        %v392 = vunpack.c.l.bf16 %v338
        %v393 = vunpack.c.l.bf16 %v339
        %v394 = vunpack.c.l.bf16 %v340
        %v395 = vunpack.c.l.bf16 %v341
        %v396 = vunpack.c.l.bf16 %v342
        %v397 = vunpack.c.l.bf16 %v343
        %v398 = vunpack.c.l.bf16 %v344
        %v399 = vunpack.c.l.bf16 %v345
        %v400 = vunpack.c.l.bf16 %v346
        %vm401 = vcmask 31744
        %402 = vst.msk [vmem:[#allocation2] sm:$0xff] %vm401, %v347
        %403 = vst.msk [vmem:[#allocation2 + $0x8] sm:$0xff] %vm401, %v348
        %vm404 = vcmask 25600
        %405 = vst.msk [vmem:[#allocation2 + $0x10] sm:$0x3] %vm404, %v349
        %406 = vst.msk [vmem:[#allocation2 + $0x18] sm:$0xff] %vm401, %v350
        %407 = vst.msk [vmem:[#allocation2 + $0x20] sm:$0xff] %vm401, %v351
        %408 = vst.msk [vmem:[#allocation2 + $0x28] sm:$0x3] %vm404, %v352
        %409 = vst.msk [vmem:[#allocation2 + $0x30] sm:$0xff] %vm401, %v353
        %410 = vst.msk [vmem:[#allocation2 + $0x38] sm:$0xff] %vm401, %v354
        %411 = vst.msk [vmem:[#allocation2 + $0x40] sm:$0x3] %vm404, %v355
        %412 = vst.msk [vmem:[#allocation2 + $0x48] sm:$0xff] %vm401, %v356
        %413 = vst.msk [vmem:[#allocation2 + $0x50] sm:$0xff] %vm401, %v357
        %414 = vst.msk [vmem:[#allocation2 + $0x58] sm:$0x3] %vm404, %v358
        %415 = vst.msk [vmem:[#allocation2 + $0x60] sm:$0xff] %vm401, %v359
        %416 = vst.msk [vmem:[#allocation2 + $0x68] sm:$0xff] %vm401, %v360
        %417 = vst.msk [vmem:[#allocation2 + $0x70] sm:$0x3] %vm404, %v361
        %418 = vst.msk [vmem:[#allocation2 + $0x78] sm:$0xff] %vm401, %v362
        %419 = vst.msk [vmem:[#allocation2 + $0x80] sm:$0xff] %vm401, %v363
        %420 = vst.msk [vmem:[#allocation2 + $0x88] sm:$0x3] %vm404, %v364
        %421 = vst.msk [vmem:[#allocation2 + $0x90] sm:$0xff] %vm401, %v365
        %422 = vst.msk [vmem:[#allocation2 + $0x98] sm:$0xff] %vm401, %v366
        %423 = vst.msk [vmem:[#allocation2 + $0xa0] sm:$0x3] %vm404, %v367
        %424 = vst.msk [vmem:[#allocation2 + $0xa8] sm:$0xff] %vm401, %v368
        %425 = vst.msk [vmem:[#allocation2 + $0xb0] sm:$0xff] %vm401, %v369
        %426 = vst.msk [vmem:[#allocation2 + $0xb8] sm:$0x3] %vm404, %v370
        %427 = vst.msk [vmem:[#allocation2 + $0xc0] sm:$0xff] %vm401, %v371
        %428 = vst.msk [vmem:[#allocation2 + $0xc8] sm:$0xff] %vm401, %v372
        %429 = vst.msk [vmem:[#allocation2 + $0xd0] sm:$0x3] %vm404, %v373
        %430 = vst.msk [vmem:[#allocation2 + $0xd8] sm:$0xff] %vm401, %v374
        %431 = vst.msk [vmem:[#allocation2 + $0xe0] sm:$0xff] %vm401, %v375
        %432 = vst.msk [vmem:[#allocation2 + $0xe8] sm:$0x3] %vm404, %v376
        %433 = vst.msk [vmem:[#allocation2 + $0xf0] sm:$0xff] %vm401, %v377
        %434 = vst.msk [vmem:[#allocation2 + $0xf8] sm:$0xff] %vm401, %v378
        %435 = vst.msk [vmem:[#allocation2 + $0x100] sm:$0x3] %vm404, %v379
        %436 = vst.msk [vmem:[#allocation2 + $0x108] sm:$0xff] %vm401, %v380
        %437 = vst.msk [vmem:[#allocation2 + $0x110] sm:$0xff] %vm401, %v381
        %438 = vst.msk [vmem:[#allocation2 + $0x118] sm:$0x3] %vm404, %v382
        %439 = vst.msk [vmem:[#allocation2 + $0x120] sm:$0xff] %vm401, %v383
        %440 = vst.msk [vmem:[#allocation2 + $0x128] sm:$0xff] %vm401, %v384
        %441 = vst.msk [vmem:[#allocation2 + $0x130] sm:$0x3] %vm404, %v385
        %442 = vst.msk [vmem:[#allocation2 + $0x138] sm:$0xff] %vm401, %v386
        %443 = vst.msk [vmem:[#allocation2 + $0x140] sm:$0xff] %vm401, %v387
        %444 = vst.msk [vmem:[#allocation2 + $0x148] sm:$0x3] %vm404, %v388
        %445 = vst.msk [vmem:[#allocation2 + $0x150] sm:$0xff] %vm401, %v389
        %446 = vst.msk [vmem:[#allocation2 + $0x158] sm:$0xff] %vm401, %v390
        %447 = vst.msk [vmem:[#allocation2 + $0x160] sm:$0x3] %vm404, %v391
        %448 = vst.msk [vmem:[#allocation2 + $0x168] sm:$0xff] %vm401, %v392
        %449 = vst.msk [vmem:[#allocation2 + $0x170] sm:$0xff] %vm401, %v393
        %450 = vst.msk [vmem:[#allocation2 + $0x178] sm:$0x3] %vm404, %v394
        %451 = vst.msk [vmem:[#allocation2 + $0x180] sm:$0xff] %vm401, %v395
        %452 = vst.msk [vmem:[#allocation2 + $0x188] sm:$0xff] %vm401, %v396
        %453 = vst.msk [vmem:[#allocation2 + $0x190] sm:$0x3] %vm404, %v397
        %454 = vst.msk [vmem:[#allocation2 + $0x198] sm:$0xff] %vm401, %v398
        %455 = vst.msk [vmem:[#allocation2 + $0x1a0] sm:$0xff] %vm401, %v399
        %456 = vst.msk [vmem:[#allocation2 + $0x1a8] sm:$0x3] %vm404, %v400
        %vm457 = vcmask 523264
        %458 = vst.msk [vmem:[#allocation3] sm:$0xff] %vm457, 0.0
        %vm459 = vcmask 517120
        %460 = vst.msk [vmem:[#allocation3 + $0x8] sm:$0x3] %vm459, 0.0
        %461 = vst.msk [vmem:[#allocation3 + $0x10] sm:$0xff] %vm457, 0.0
        %462 = vst.msk [vmem:[#allocation3 + $0x18] sm:$0x3] %vm459, 0.0
        %463 = vst.msk [vmem:[#allocation3 + $0x20] sm:$0xff] %vm457, 0.0
        %464 = vst.msk [vmem:[#allocation3 + $0x28] sm:$0x3] %vm459, 0.0
        %465 = vst.msk [vmem:[#allocation3 + $0x30] sm:$0xff] %vm457, 0.0
        %466 = vst.msk [vmem:[#allocation3 + $0x38] sm:$0x3] %vm459, 0.0
        %467 = vst.msk [vmem:[#allocation3 + $0x40] sm:$0xff] %vm457, 0.0
        %468 = vst.msk [vmem:[#allocation3 + $0x48] sm:$0x3] %vm459, 0.0
        %469 = vst.msk [vmem:[#allocation3 + $0x50] sm:$0xff] %vm457, 0.0
        %470 = vst.msk [vmem:[#allocation3 + $0x58] sm:$0x3] %vm459, 0.0
        %471 = vst.msk [vmem:[#allocation3 + $0x60] sm:$0xff] %vm457, 0.0
        %472 = vst.msk [vmem:[#allocation3 + $0x68] sm:$0x3] %vm459, 0.0
        %473 = vst.msk [vmem:[#allocation3 + $0x70] sm:$0xff] %vm457, 0.0
        %474 = vst.msk [vmem:[#allocation3 + $0x78] sm:$0x3] %vm459, 0.0
        %475 = vst.msk [vmem:[#allocation3 + $0x80] sm:$0xff] %vm457, 0.0
        %476 = vst.msk [vmem:[#allocation3 + $0x88] sm:$0x3] %vm459, 0.0
        %477 = vst.msk [vmem:[#allocation3 + $0x90] sm:$0xff] %vm457, 0.0
        %478 = vst.msk [vmem:[#allocation3 + $0x98] sm:$0x3] %vm459, 0.0
        %v479 = vld [vmem:[#allocation2] ss:$2 sm:$0xff]
        %s480 = scalar_lea.vmem [#allocation2], 48
        %v481 = vld [vmem:[%s480] ss:$2 sm:$0xff]
        %s482 = scalar_lea.vmem [#allocation2], 96
        %v483 = vld [vmem:[%s482] ss:$2 sm:$0xff]
        %s484 = scalar_lea.vmem [#allocation2], 144
        %v485 = vld [vmem:[%s484] ss:$2 sm:$0xff]
        %s486 = scalar_lea.vmem [#allocation2], 192
        %v487 = vld [vmem:[%s486] ss:$2 sm:$0xff]
        %s488 = scalar_lea.vmem [#allocation2], 240
        %v489 = vld [vmem:[%s488] ss:$2 sm:$0xff]
        %s490 = scalar_lea.vmem [#allocation2], 288
        %v491 = vld [vmem:[%s490] ss:$2 sm:$0xff]
        %s492 = scalar_lea.vmem [#allocation2], 336
        %v493 = vld [vmem:[%s492] ss:$2 sm:$0xff]
        %v494 = vpack.c.bf16 %v479, %v479
        %v495 = vpack.c.bf16 %v481, %v481
        %v496 = vpack.c.bf16 %v483, %v483
        %v497 = vpack.c.bf16 %v485, %v485
        %v498 = vpack.c.bf16 %v487, %v487
        %v499 = vpack.c.bf16 %v489, %v489
        %v500 = vpack.c.bf16 %v491, %v491
        %v501 = vpack.c.bf16 %v493, %v493
        %v502 = vld [vmem:[%s1] sm:$0x3]
        %s503 = scalar_lea.vmem [#allocation2], 1
        %v504 = vld [vmem:[%s503] ss:$2 sm:$0xff]
        %s505 = scalar_lea.vmem [#allocation2], 49
        %v506 = vld [vmem:[%s505] ss:$2 sm:$0xff]
        %s507 = scalar_lea.vmem [#allocation2], 97
        %v508 = vld [vmem:[%s507] ss:$2 sm:$0xff]
        %s509 = scalar_lea.vmem [#allocation2], 145
        %v510 = vld [vmem:[%s509] ss:$2 sm:$0xff]
        %s511 = scalar_lea.vmem [#allocation2], 193
        %v512 = vld [vmem:[%s511] ss:$2 sm:$0xff]
        %s513 = scalar_lea.vmem [#allocation2], 241
        %v514 = vld [vmem:[%s513] ss:$2 sm:$0xff]
        %s515 = scalar_lea.vmem [#allocation2], 289
        %v516 = vld [vmem:[%s515] ss:$2 sm:$0xff]
        %s517 = scalar_lea.vmem [#allocation2], 337
        %v518 = vld [vmem:[%s517] ss:$2 sm:$0xff]
        %v519 = vpack.c.bf16 %v504, %v504
        %v520 = vpack.c.bf16 %v506, %v506
        %v521 = vpack.c.bf16 %v508, %v508
        %v522 = vpack.c.bf16 %v510, %v510
        %v523 = vpack.c.bf16 %v512, %v512
        %v524 = vpack.c.bf16 %v514, %v514
        %v525 = vpack.c.bf16 %v516, %v516
        %v526 = vpack.c.bf16 %v518, %v518
        %s527 = scalar_lea.vmem %s1, 2
        %v528 = vld [vmem:[%s527] sm:$0x3]
        %v530 = vsel %vm401, %v519, 0
        %vm532 = vcmask 1041408
        %v534 = vsel %vm532, %v528, 0
        %536 = vmatprep.subr.bf16.mxu0 0
        %537 = vmatpush1.bf16.msra.mxu0 %v534
        %538 = vmatprep.subr.bf16.mxu0 0
        %539 = vmatpush1.bf16.msra.mxu0 0
        %540 = vmatprep.subr.bf16.mxu0 0
        %541 = vmatpush1.bf16.msra.mxu0 0
        %542 = vmatprep.subr.bf16.mxu0 0
        %543 = vmatpush1.bf16.msra.mxu0 0
        %544 = vmatprep.subr.bf16.mxu0 0
        %545 = vmatpush1.bf16.msra.mxu0 0
        %546 = vmatprep.subr.bf16.mxu0 0
        %547 = vmatpush1.bf16.msra.mxu0 0
        %548 = vmatprep.subr.bf16.mxu0 0
        %549 = vmatpush1.bf16.msra.mxu0 0
        %550 = vmatprep.subr.bf16.mxu0 0
        %551 = vmatpush1.bf16.msra.mxu0 0
        %552 = vmatprep.subr.bf16.mxu0 0
        %553 = vmatpush1.bf16.msra.mxu0 0
        %554 = vmatprep.subr.bf16.mxu0 0
        %555 = vmatpush1.bf16.msra.mxu0 0
        %556 = vmatprep.subr.bf16.mxu0 0
        %557 = vmatpush1.bf16.msra.mxu0 0
        %558 = vmatprep.subr.bf16.mxu0 0
        %559 = vmatpush1.bf16.msra.mxu0 0
        %560 = vmatprep.subr.bf16.mxu0 0
        %561 = vmatpush1.bf16.msra.mxu0 0
        %562 = vmatprep.subr.bf16.mxu0 0
        %563 = vmatpush1.bf16.msra.mxu0 0
        %564 = vmatprep.subr.bf16.mxu0 0
        %565 = vmatpush1.bf16.msra.mxu0 0
        %566 = vmatprep.subr.bf16.mxu0 0
        %567 = vmatpush1.bf16.msra.mxu0 0
        %568 = vmatprep.mubr.bf16.mxu0 0
        %569 = vmatmul.mubr.bf16.gmra.mrb[0].mxu0 %v530
        %v570 = vpop.f32.mrb[0].mxu0
        %v571 = vadd.f32 0.0, %v570
        %v572 = vpop.f32.mrb[0].mxu0
        %v573 = vpop.f32.mrb[0].mxu0
        %v574 = vpop.f32.mrb[0].mxu0
        %575 = vdwg.mxu0
        %v577 = vsel %vm401, %v520, 0
        %579 = vmatprep.subr.bf16.mxu0 0
        %580 = vmatpush1.bf16.msra.mxu0 %v534
        %581 = vmatprep.subr.bf16.mxu0 0
        %582 = vmatpush1.bf16.msra.mxu0 0
        %583 = vmatprep.subr.bf16.mxu0 0
        %584 = vmatpush1.bf16.msra.mxu0 0
        %585 = vmatprep.subr.bf16.mxu0 0
        %586 = vmatpush1.bf16.msra.mxu0 0
        %587 = vmatprep.subr.bf16.mxu0 0
        %588 = vmatpush1.bf16.msra.mxu0 0
        %589 = vmatprep.subr.bf16.mxu0 0
        %590 = vmatpush1.bf16.msra.mxu0 0
        %591 = vmatprep.subr.bf16.mxu0 0
        %592 = vmatpush1.bf16.msra.mxu0 0
        %593 = vmatprep.subr.bf16.mxu0 0
        %594 = vmatpush1.bf16.msra.mxu0 0
        %595 = vmatprep.subr.bf16.mxu0 0
        %596 = vmatpush1.bf16.msra.mxu0 0
        %597 = vmatprep.subr.bf16.mxu0 0
        %598 = vmatpush1.bf16.msra.mxu0 0
        %599 = vmatprep.subr.bf16.mxu0 0
        %600 = vmatpush1.bf16.msra.mxu0 0
        %601 = vmatprep.subr.bf16.mxu0 0
        %602 = vmatpush1.bf16.msra.mxu0 0
        %603 = vmatprep.subr.bf16.mxu0 0
        %604 = vmatpush1.bf16.msra.mxu0 0
        %605 = vmatprep.subr.bf16.mxu0 0
        %606 = vmatpush1.bf16.msra.mxu0 0
        %607 = vmatprep.subr.bf16.mxu0 0
        %608 = vmatpush1.bf16.msra.mxu0 0
        %609 = vmatprep.subr.bf16.mxu0 0
        %610 = vmatpush1.bf16.msra.mxu0 0
        %611 = vmatprep.mubr.bf16.mxu0 0
        %612 = vmatmul.mubr.bf16.gmra.mrb[0].mxu0 %v577
        %v613 = vpop.f32.mrb[0].mxu0
        %v614 = vadd.f32 0.0, %v613
        %v615 = vpop.f32.mrb[0].mxu0
        %v616 = vpop.f32.mrb[0].mxu0
        %v617 = vpop.f32.mrb[0].mxu0
        %618 = vdwg.mxu0
        %v620 = vsel %vm401, %v521, 0
        %622 = vmatprep.subr.bf16.mxu0 0
        %623 = vmatpush1.bf16.msra.mxu0 %v534
        %624 = vmatprep.subr.bf16.mxu0 0
        %625 = vmatpush1.bf16.msra.mxu0 0
        %626 = vmatprep.subr.bf16.mxu0 0
        %627 = vmatpush1.bf16.msra.mxu0 0
        %628 = vmatprep.subr.bf16.mxu0 0
        %629 = vmatpush1.bf16.msra.mxu0 0
        %630 = vmatprep.subr.bf16.mxu0 0
        %631 = vmatpush1.bf16.msra.mxu0 0
        %632 = vmatprep.subr.bf16.mxu0 0
        %633 = vmatpush1.bf16.msra.mxu0 0
        %634 = vmatprep.subr.bf16.mxu0 0
        %635 = vmatpush1.bf16.msra.mxu0 0
        %636 = vmatprep.subr.bf16.mxu0 0
        %637 = vmatpush1.bf16.msra.mxu0 0
        %638 = vmatprep.subr.bf16.mxu0 0
        %639 = vmatpush1.bf16.msra.mxu0 0
        %640 = vmatprep.subr.bf16.mxu0 0
        %641 = vmatpush1.bf16.msra.mxu0 0
        %642 = vmatprep.subr.bf16.mxu0 0
        %643 = vmatpush1.bf16.msra.mxu0 0
        %644 = vmatprep.subr.bf16.mxu0 0
        %645 = vmatpush1.bf16.msra.mxu0 0
        %646 = vmatprep.subr.bf16.mxu0 0
        %647 = vmatpush1.bf16.msra.mxu0 0
        %648 = vmatprep.subr.bf16.mxu0 0
        %649 = vmatpush1.bf16.msra.mxu0 0
        %650 = vmatprep.subr.bf16.mxu0 0
        %651 = vmatpush1.bf16.msra.mxu0 0
        %652 = vmatprep.subr.bf16.mxu0 0
        %653 = vmatpush1.bf16.msra.mxu0 0
        %654 = vmatprep.mubr.bf16.mxu0 0
        %655 = vmatmul.mubr.bf16.gmra.mrb[0].mxu0 %v620
        %v656 = vpop.f32.mrb[0].mxu0
        %v657 = vadd.f32 0.0, %v656
        %v658 = vpop.f32.mrb[0].mxu0
        %v659 = vpop.f32.mrb[0].mxu0
        %v660 = vpop.f32.mrb[0].mxu0
        %661 = vdwg.mxu0
        %v663 = vsel %vm401, %v522, 0
        %665 = vmatprep.subr.bf16.mxu0 0
        %666 = vmatpush1.bf16.msra.mxu0 %v534
        %667 = vmatprep.subr.bf16.mxu0 0
        %668 = vmatpush1.bf16.msra.mxu0 0
        %669 = vmatprep.subr.bf16.mxu0 0
        %670 = vmatpush1.bf16.msra.mxu0 0
        %671 = vmatprep.subr.bf16.mxu0 0
        %672 = vmatpush1.bf16.msra.mxu0 0
        %673 = vmatprep.subr.bf16.mxu0 0
        %674 = vmatpush1.bf16.msra.mxu0 0
        %675 = vmatprep.subr.bf16.mxu0 0
        %676 = vmatpush1.bf16.msra.mxu0 0
        %677 = vmatprep.subr.bf16.mxu0 0
        %678 = vmatpush1.bf16.msra.mxu0 0
        %679 = vmatprep.subr.bf16.mxu0 0
        %680 = vmatpush1.bf16.msra.mxu0 0
        %681 = vmatprep.subr.bf16.mxu0 0
        %682 = vmatpush1.bf16.msra.mxu0 0
        %683 = vmatprep.subr.bf16.mxu0 0
        %684 = vmatpush1.bf16.msra.mxu0 0
        %685 = vmatprep.subr.bf16.mxu0 0
        %686 = vmatpush1.bf16.msra.mxu0 0
        %687 = vmatprep.subr.bf16.mxu0 0
        %688 = vmatpush1.bf16.msra.mxu0 0
        %689 = vmatprep.subr.bf16.mxu0 0
        %690 = vmatpush1.bf16.msra.mxu0 0
        %691 = vmatprep.subr.bf16.mxu0 0
        %692 = vmatpush1.bf16.msra.mxu0 0
        %693 = vmatprep.subr.bf16.mxu0 0
        %694 = vmatpush1.bf16.msra.mxu0 0
        %695 = vmatprep.subr.bf16.mxu0 0
        %696 = vmatpush1.bf16.msra.mxu0 0
        %697 = vmatprep.mubr.bf16.mxu0 0
        %698 = vmatmul.mubr.bf16.gmra.mrb[0].mxu0 %v663
        %v699 = vpop.f32.mrb[0].mxu0
        %v700 = vadd.f32 0.0, %v699
        %v701 = vpop.f32.mrb[0].mxu0
        %v702 = vpop.f32.mrb[0].mxu0
        %v703 = vpop.f32.mrb[0].mxu0
        %704 = vdwg.mxu0
        %v706 = vsel %vm401, %v523, 0
        %708 = vmatprep.subr.bf16.mxu0 0
        %709 = vmatpush1.bf16.msra.mxu0 %v534
        %710 = vmatprep.subr.bf16.mxu0 0
        %711 = vmatpush1.bf16.msra.mxu0 0
        %712 = vmatprep.subr.bf16.mxu0 0
        %713 = vmatpush1.bf16.msra.mxu0 0
        %714 = vmatprep.subr.bf16.mxu0 0
        %715 = vmatpush1.bf16.msra.mxu0 0
        %716 = vmatprep.subr.bf16.mxu0 0
        %717 = vmatpush1.bf16.msra.mxu0 0
        %718 = vmatprep.subr.bf16.mxu0 0
        %719 = vmatpush1.bf16.msra.mxu0 0
        %720 = vmatprep.subr.bf16.mxu0 0
        %721 = vmatpush1.bf16.msra.mxu0 0
        %722 = vmatprep.subr.bf16.mxu0 0
        %723 = vmatpush1.bf16.msra.mxu0 0
        %724 = vmatprep.subr.bf16.mxu0 0
        %725 = vmatpush1.bf16.msra.mxu0 0
        %726 = vmatprep.subr.bf16.mxu0 0
        %727 = vmatpush1.bf16.msra.mxu0 0
        %728 = vmatprep.subr.bf16.mxu0 0
        %729 = vmatpush1.bf16.msra.mxu0 0
        %730 = vmatprep.subr.bf16.mxu0 0
        %731 = vmatpush1.bf16.msra.mxu0 0
        %732 = vmatprep.subr.bf16.mxu0 0
        %733 = vmatpush1.bf16.msra.mxu0 0
        %734 = vmatprep.subr.bf16.mxu0 0
        %735 = vmatpush1.bf16.msra.mxu0 0
        %736 = vmatprep.subr.bf16.mxu0 0
        %737 = vmatpush1.bf16.msra.mxu0 0
        %738 = vmatprep.subr.bf16.mxu0 0
        %739 = vmatpush1.bf16.msra.mxu0 0
        %740 = vmatprep.mubr.bf16.mxu0 0
        %741 = vmatmul.mubr.bf16.gmra.mrb[0].mxu0 %v706
        %v742 = vpop.f32.mrb[0].mxu0
        %v743 = vadd.f32 0.0, %v742
        %v744 = vpop.f32.mrb[0].mxu0
        %v745 = vpop.f32.mrb[0].mxu0
        %v746 = vpop.f32.mrb[0].mxu0
        %747 = vdwg.mxu0
        %v749 = vsel %vm401, %v524, 0
        %751 = vmatprep.subr.bf16.mxu0 0
        %752 = vmatpush1.bf16.msra.mxu0 %v534
        %753 = vmatprep.subr.bf16.mxu0 0
        %754 = vmatpush1.bf16.msra.mxu0 0
        %755 = vmatprep.subr.bf16.mxu0 0
        %756 = vmatpush1.bf16.msra.mxu0 0
        %757 = vmatprep.subr.bf16.mxu0 0
        %758 = vmatpush1.bf16.msra.mxu0 0
        %759 = vmatprep.subr.bf16.mxu0 0
        %760 = vmatpush1.bf16.msra.mxu0 0
        %761 = vmatprep.subr.bf16.mxu0 0
        %762 = vmatpush1.bf16.msra.mxu0 0
        %763 = vmatprep.subr.bf16.mxu0 0
        %764 = vmatpush1.bf16.msra.mxu0 0
        %765 = vmatprep.subr.bf16.mxu0 0
        %766 = vmatpush1.bf16.msra.mxu0 0
        %767 = vmatprep.subr.bf16.mxu0 0
        %768 = vmatpush1.bf16.msra.mxu0 0
        %769 = vmatprep.subr.bf16.mxu0 0
        %770 = vmatpush1.bf16.msra.mxu0 0
        %771 = vmatprep.subr.bf16.mxu0 0
        %772 = vmatpush1.bf16.msra.mxu0 0
        %773 = vmatprep.subr.bf16.mxu0 0
        %774 = vmatpush1.bf16.msra.mxu0 0
        %775 = vmatprep.subr.bf16.mxu0 0
        %776 = vmatpush1.bf16.msra.mxu0 0
        %777 = vmatprep.subr.bf16.mxu0 0
        %778 = vmatpush1.bf16.msra.mxu0 0
        %779 = vmatprep.subr.bf16.mxu0 0
        %780 = vmatpush1.bf16.msra.mxu0 0
        %781 = vmatprep.subr.bf16.mxu0 0
        %782 = vmatpush1.bf16.msra.mxu0 0
        %783 = vmatprep.mubr.bf16.mxu0 0
        %784 = vmatmul.mubr.bf16.gmra.mrb[0].mxu0 %v749
        %v785 = vpop.f32.mrb[0].mxu0
        %v786 = vadd.f32 0.0, %v785
        %v787 = vpop.f32.mrb[0].mxu0
        %v788 = vpop.f32.mrb[0].mxu0
        %v789 = vpop.f32.mrb[0].mxu0
        %790 = vdwg.mxu0
        %v792 = vsel %vm401, %v525, 0
        %794 = vmatprep.subr.bf16.mxu0 0
        %795 = vmatpush1.bf16.msra.mxu0 %v534
        %796 = vmatprep.subr.bf16.mxu0 0
        %797 = vmatpush1.bf16.msra.mxu0 0
        %798 = vmatprep.subr.bf16.mxu0 0
        %799 = vmatpush1.bf16.msra.mxu0 0
        %800 = vmatprep.subr.bf16.mxu0 0
        %801 = vmatpush1.bf16.msra.mxu0 0
        %802 = vmatprep.subr.bf16.mxu0 0
        %803 = vmatpush1.bf16.msra.mxu0 0
        %804 = vmatprep.subr.bf16.mxu0 0
        %805 = vmatpush1.bf16.msra.mxu0 0
        %806 = vmatprep.subr.bf16.mxu0 0
        %807 = vmatpush1.bf16.msra.mxu0 0
        %808 = vmatprep.subr.bf16.mxu0 0
        %809 = vmatpush1.bf16.msra.mxu0 0
        %810 = vmatprep.subr.bf16.mxu0 0
        %811 = vmatpush1.bf16.msra.mxu0 0
        %812 = vmatprep.subr.bf16.mxu0 0
        %813 = vmatpush1.bf16.msra.mxu0 0
        %814 = vmatprep.subr.bf16.mxu0 0
        %815 = vmatpush1.bf16.msra.mxu0 0
        %816 = vmatprep.subr.bf16.mxu0 0
        %817 = vmatpush1.bf16.msra.mxu0 0
        %818 = vmatprep.subr.bf16.mxu0 0
        %819 = vmatpush1.bf16.msra.mxu0 0
        %820 = vmatprep.subr.bf16.mxu0 0
        %821 = vmatpush1.bf16.msra.mxu0 0
        %822 = vmatprep.subr.bf16.mxu0 0
        %823 = vmatpush1.bf16.msra.mxu0 0
        %824 = vmatprep.subr.bf16.mxu0 0
        %825 = vmatpush1.bf16.msra.mxu0 0
        %826 = vmatprep.mubr.bf16.mxu0 0
        %827 = vmatmul.mubr.bf16.gmra.mrb[0].mxu0 %v792
        %v828 = vpop.f32.mrb[0].mxu0
        %v829 = vadd.f32 0.0, %v828
        %v830 = vpop.f32.mrb[0].mxu0
        %v831 = vpop.f32.mrb[0].mxu0
        %v832 = vpop.f32.mrb[0].mxu0
        %833 = vdwg.mxu0
        %v835 = vsel %vm401, %v526, 0
        %837 = vmatprep.subr.bf16.mxu0 0
        %838 = vmatpush1.bf16.msra.mxu0 %v534
        %839 = vmatprep.subr.bf16.mxu0 0
        %840 = vmatpush1.bf16.msra.mxu0 0
        %841 = vmatprep.subr.bf16.mxu0 0
        %842 = vmatpush1.bf16.msra.mxu0 0
        %843 = vmatprep.subr.bf16.mxu0 0
        %844 = vmatpush1.bf16.msra.mxu0 0
        %845 = vmatprep.subr.bf16.mxu0 0
        %846 = vmatpush1.bf16.msra.mxu0 0
        %847 = vmatprep.subr.bf16.mxu0 0
        %848 = vmatpush1.bf16.msra.mxu0 0
        %849 = vmatprep.subr.bf16.mxu0 0
        %850 = vmatpush1.bf16.msra.mxu0 0
        %851 = vmatprep.subr.bf16.mxu0 0
        %852 = vmatpush1.bf16.msra.mxu0 0
        %853 = vmatprep.subr.bf16.mxu0 0
        %854 = vmatpush1.bf16.msra.mxu0 0
        %855 = vmatprep.subr.bf16.mxu0 0
        %856 = vmatpush1.bf16.msra.mxu0 0
        %857 = vmatprep.subr.bf16.mxu0 0
        %858 = vmatpush1.bf16.msra.mxu0 0
        %859 = vmatprep.subr.bf16.mxu0 0
        %860 = vmatpush1.bf16.msra.mxu0 0
        %861 = vmatprep.subr.bf16.mxu0 0
        %862 = vmatpush1.bf16.msra.mxu0 0
        %863 = vmatprep.subr.bf16.mxu0 0
        %864 = vmatpush1.bf16.msra.mxu0 0
        %865 = vmatprep.subr.bf16.mxu0 0
        %866 = vmatpush1.bf16.msra.mxu0 0
        %867 = vmatprep.subr.bf16.mxu0 0
        %868 = vmatpush1.bf16.msra.mxu0 0
        %869 = vmatprep.mubr.bf16.mxu0 0
        %870 = vmatmul.mubr.bf16.gmra.mrb[0].mxu0 %v835
        %v871 = vpop.f32.mrb[0].mxu0
        %v872 = vadd.f32 0.0, %v871
        %v873 = vpop.f32.mrb[0].mxu0
        %v874 = vpop.f32.mrb[0].mxu0
        %v875 = vpop.f32.mrb[0].mxu0
        %876 = vdwg.mxu0
        %v878 = vsel %vm401, %v494, 0
        %v881 = vsel %vm532, %v502, 0
        %883 = vmatprep.subr.bf16.mxu0 0
        %884 = vmatpush1.bf16.msra.mxu0 %v881
        %885 = vmatprep.subr.bf16.mxu0 0
        %886 = vmatpush1.bf16.msra.mxu0 0
        %887 = vmatprep.subr.bf16.mxu0 0
        %888 = vmatpush1.bf16.msra.mxu0 0
        %889 = vmatprep.subr.bf16.mxu0 0
        %890 = vmatpush1.bf16.msra.mxu0 0
        %891 = vmatprep.subr.bf16.mxu0 0
        %892 = vmatpush1.bf16.msra.mxu0 0
        %893 = vmatprep.subr.bf16.mxu0 0
        %894 = vmatpush1.bf16.msra.mxu0 0
        %895 = vmatprep.subr.bf16.mxu0 0
        %896 = vmatpush1.bf16.msra.mxu0 0
        %897 = vmatprep.subr.bf16.mxu0 0
        %898 = vmatpush1.bf16.msra.mxu0 0
        %899 = vmatprep.subr.bf16.mxu0 0
        %900 = vmatpush1.bf16.msra.mxu0 0
        %901 = vmatprep.subr.bf16.mxu0 0
        %902 = vmatpush1.bf16.msra.mxu0 0
        %903 = vmatprep.subr.bf16.mxu0 0
        %904 = vmatpush1.bf16.msra.mxu0 0
        %905 = vmatprep.subr.bf16.mxu0 0
        %906 = vmatpush1.bf16.msra.mxu0 0
        %907 = vmatprep.subr.bf16.mxu0 0
        %908 = vmatpush1.bf16.msra.mxu0 0
        %909 = vmatprep.subr.bf16.mxu0 0
        %910 = vmatpush1.bf16.msra.mxu0 0
        %911 = vmatprep.subr.bf16.mxu0 0
        %912 = vmatpush1.bf16.msra.mxu0 0
        %913 = vmatprep.subr.bf16.mxu0 0
        %914 = vmatpush1.bf16.msra.mxu0 0
        %915 = vmatprep.mubr.bf16.mxu0 0
        %916 = vmatmul.mubr.bf16.gmra.mrb[0].mxu0 %v878
        %v917 = vpop.f32.mrb[0].mxu0
        %v918 = vadd.f32 %v571, %v917
        %v919 = vpop.f32.mrb[0].mxu0
        %v920 = vpop.f32.mrb[0].mxu0
        %v921 = vpop.f32.mrb[0].mxu0
        %922 = vdwg.mxu0
        %v924 = vsel %vm401, %v495, 0
        %926 = vmatprep.subr.bf16.mxu0 0
        %927 = vmatpush1.bf16.msra.mxu0 %v881
        %928 = vmatprep.subr.bf16.mxu0 0
        %929 = vmatpush1.bf16.msra.mxu0 0
        %930 = vmatprep.subr.bf16.mxu0 0
        %931 = vmatpush1.bf16.msra.mxu0 0
        %932 = vmatprep.subr.bf16.mxu0 0
        %933 = vmatpush1.bf16.msra.mxu0 0
        %934 = vmatprep.subr.bf16.mxu0 0
        %935 = vmatpush1.bf16.msra.mxu0 0
        %936 = vmatprep.subr.bf16.mxu0 0
        %937 = vmatpush1.bf16.msra.mxu0 0
        %938 = vmatprep.subr.bf16.mxu0 0
        %939 = vmatpush1.bf16.msra.mxu0 0
        %940 = vmatprep.subr.bf16.mxu0 0
        %941 = vmatpush1.bf16.msra.mxu0 0
        %942 = vmatprep.subr.bf16.mxu0 0
        %943 = vmatpush1.bf16.msra.mxu0 0
        %944 = vmatprep.subr.bf16.mxu0 0
        %945 = vmatpush1.bf16.msra.mxu0 0
        %946 = vmatprep.subr.bf16.mxu0 0
        %947 = vmatpush1.bf16.msra.mxu0 0
        %948 = vmatprep.subr.bf16.mxu0 0
        %949 = vmatpush1.bf16.msra.mxu0 0
        %950 = vmatprep.subr.bf16.mxu0 0
        %951 = vmatpush1.bf16.msra.mxu0 0
        %952 = vmatprep.subr.bf16.mxu0 0
        %953 = vmatpush1.bf16.msra.mxu0 0
        %954 = vmatprep.subr.bf16.mxu0 0
        %955 = vmatpush1.bf16.msra.mxu0 0
        %956 = vmatprep.subr.bf16.mxu0 0
        %957 = vmatpush1.bf16.msra.mxu0 0
        %958 = vmatprep.mubr.bf16.mxu0 0
        %959 = vmatmul.mubr.bf16.gmra.mrb[0].mxu0 %v924
        %v960 = vpop.f32.mrb[0].mxu0
        %v961 = vadd.f32 %v614, %v960
        %v962 = vpop.f32.mrb[0].mxu0
        %v963 = vpop.f32.mrb[0].mxu0
        %v964 = vpop.f32.mrb[0].mxu0
        %965 = vdwg.mxu0
        %v967 = vsel %vm401, %v496, 0
        %969 = vmatprep.subr.bf16.mxu0 0
        %970 = vmatpush1.bf16.msra.mxu0 %v881
        %971 = vmatprep.subr.bf16.mxu0 0
        %972 = vmatpush1.bf16.msra.mxu0 0
        %973 = vmatprep.subr.bf16.mxu0 0
        %974 = vmatpush1.bf16.msra.mxu0 0
        %975 = vmatprep.subr.bf16.mxu0 0
        %976 = vmatpush1.bf16.msra.mxu0 0
        %977 = vmatprep.subr.bf16.mxu0 0
        %978 = vmatpush1.bf16.msra.mxu0 0
        %979 = vmatprep.subr.bf16.mxu0 0
        %980 = vmatpush1.bf16.msra.mxu0 0
        %981 = vmatprep.subr.bf16.mxu0 0
        %982 = vmatpush1.bf16.msra.mxu0 0
        %983 = vmatprep.subr.bf16.mxu0 0
        %984 = vmatpush1.bf16.msra.mxu0 0
        %985 = vmatprep.subr.bf16.mxu0 0
        %986 = vmatpush1.bf16.msra.mxu0 0
        %987 = vmatprep.subr.bf16.mxu0 0
        %988 = vmatpush1.bf16.msra.mxu0 0
        %989 = vmatprep.subr.bf16.mxu0 0
        %990 = vmatpush1.bf16.msra.mxu0 0
        %991 = vmatprep.subr.bf16.mxu0 0
        %992 = vmatpush1.bf16.msra.mxu0 0
        %993 = vmatprep.subr.bf16.mxu0 0
        %994 = vmatpush1.bf16.msra.mxu0 0
        %995 = vmatprep.subr.bf16.mxu0 0
        %996 = vmatpush1.bf16.msra.mxu0 0
        %997 = vmatprep.subr.bf16.mxu0 0
        %998 = vmatpush1.bf16.msra.mxu0 0
        %999 = vmatprep.subr.bf16.mxu0 0
        %1000 = vmatpush1.bf16.msra.mxu0 0
        %1001 = vmatprep.mubr.bf16.mxu0 0
        %1002 = vmatmul.mubr.bf16.gmra.mrb[0].mxu0 %v967
        %v1003 = vpop.f32.mrb[0].mxu0
        %v1004 = vadd.f32 %v657, %v1003
        %v1005 = vpop.f32.mrb[0].mxu0
        %v1006 = vpop.f32.mrb[0].mxu0
        %v1007 = vpop.f32.mrb[0].mxu0
        %1008 = vdwg.mxu0
        %v1010 = vsel %vm401, %v497, 0
        %1012 = vmatprep.subr.bf16.mxu0 0
        %1013 = vmatpush1.bf16.msra.mxu0 %v881
        %1014 = vmatprep.subr.bf16.mxu0 0
        %1015 = vmatpush1.bf16.msra.mxu0 0
        %1016 = vmatprep.subr.bf16.mxu0 0
        %1017 = vmatpush1.bf16.msra.mxu0 0
        %1018 = vmatprep.subr.bf16.mxu0 0
        %1019 = vmatpush1.bf16.msra.mxu0 0
        %1020 = vmatprep.subr.bf16.mxu0 0
        %1021 = vmatpush1.bf16.msra.mxu0 0
        %1022 = vmatprep.subr.bf16.mxu0 0
        %1023 = vmatpush1.bf16.msra.mxu0 0
        %1024 = vmatprep.subr.bf16.mxu0 0
        %1025 = vmatpush1.bf16.msra.mxu0 0
        %1026 = vmatprep.subr.bf16.mxu0 0
        %1027 = vmatpush1.bf16.msra.mxu0 0
        %1028 = vmatprep.subr.bf16.mxu0 0
        %1029 = vmatpush1.bf16.msra.mxu0 0
        %1030 = vmatprep.subr.bf16.mxu0 0
        %1031 = vmatpush1.bf16.msra.mxu0 0
        %1032 = vmatprep.subr.bf16.mxu0 0
        %1033 = vmatpush1.bf16.msra.mxu0 0
        %1034 = vmatprep.subr.bf16.mxu0 0
        %1035 = vmatpush1.bf16.msra.mxu0 0
        %1036 = vmatprep.subr.bf16.mxu0 0
        %1037 = vmatpush1.bf16.msra.mxu0 0
        %1038 = vmatprep.subr.bf16.mxu0 0
        %1039 = vmatpush1.bf16.msra.mxu0 0
        %1040 = vmatprep.subr.bf16.mxu0 0
        %1041 = vmatpush1.bf16.msra.mxu0 0
        %1042 = vmatprep.subr.bf16.mxu0 0
        %1043 = vmatpush1.bf16.msra.mxu0 0
        %1044 = vmatprep.mubr.bf16.mxu0 0
        %1045 = vmatmul.mubr.bf16.gmra.mrb[0].mxu0 %v1010
        %v1046 = vpop.f32.mrb[0].mxu0
        %v1047 = vadd.f32 %v700, %v1046
        %v1048 = vpop.f32.mrb[0].mxu0
        %v1049 = vpop.f32.mrb[0].mxu0
        %v1050 = vpop.f32.mrb[0].mxu0
        %1051 = vdwg.mxu0
        %v1053 = vsel %vm401, %v498, 0
        %1055 = vmatprep.subr.bf16.mxu0 0
        %1056 = vmatpush1.bf16.msra.mxu0 %v881
        %1057 = vmatprep.subr.bf16.mxu0 0
        %1058 = vmatpush1.bf16.msra.mxu0 0
        %1059 = vmatprep.subr.bf16.mxu0 0
        %1060 = vmatpush1.bf16.msra.mxu0 0
        %1061 = vmatprep.subr.bf16.mxu0 0
        %1062 = vmatpush1.bf16.msra.mxu0 0
        %1063 = vmatprep.subr.bf16.mxu0 0
        %1064 = vmatpush1.bf16.msra.mxu0 0
        %1065 = vmatprep.subr.bf16.mxu0 0
        %1066 = vmatpush1.bf16.msra.mxu0 0
        %1067 = vmatprep.subr.bf16.mxu0 0
        %1068 = vmatpush1.bf16.msra.mxu0 0
        %1069 = vmatprep.subr.bf16.mxu0 0
        %1070 = vmatpush1.bf16.msra.mxu0 0
        %1071 = vmatprep.subr.bf16.mxu0 0
        %1072 = vmatpush1.bf16.msra.mxu0 0
        %1073 = vmatprep.subr.bf16.mxu0 0
        %1074 = vmatpush1.bf16.msra.mxu0 0
        %1075 = vmatprep.subr.bf16.mxu0 0
        %1076 = vmatpush1.bf16.msra.mxu0 0
        %1077 = vmatprep.subr.bf16.mxu0 0
        %1078 = vmatpush1.bf16.msra.mxu0 0
        %1079 = vmatprep.subr.bf16.mxu0 0
        %1080 = vmatpush1.bf16.msra.mxu0 0
        %1081 = vmatprep.subr.bf16.mxu0 0
        %1082 = vmatpush1.bf16.msra.mxu0 0
        %1083 = vmatprep.subr.bf16.mxu0 0
        %1084 = vmatpush1.bf16.msra.mxu0 0
        %1085 = vmatprep.subr.bf16.mxu0 0
        %1086 = vmatpush1.bf16.msra.mxu0 0
        %1087 = vmatprep.mubr.bf16.mxu0 0
        %1088 = vmatmul.mubr.bf16.gmra.mrb[0].mxu0 %v1053
        %v1089 = vpop.f32.mrb[0].mxu0
        %v1090 = vadd.f32 %v743, %v1089
        %v1091 = vpop.f32.mrb[0].mxu0
        %v1092 = vpop.f32.mrb[0].mxu0
        %v1093 = vpop.f32.mrb[0].mxu0
        %1094 = vdwg.mxu0
        %v1096 = vsel %vm401, %v499, 0
        %1098 = vmatprep.subr.bf16.mxu0 0
        %1099 = vmatpush1.bf16.msra.mxu0 %v881
        %1100 = vmatprep.subr.bf16.mxu0 0
        %1101 = vmatpush1.bf16.msra.mxu0 0
        %1102 = vmatprep.subr.bf16.mxu0 0
        %1103 = vmatpush1.bf16.msra.mxu0 0
        %1104 = vmatprep.subr.bf16.mxu0 0
        %1105 = vmatpush1.bf16.msra.mxu0 0
        %1106 = vmatprep.subr.bf16.mxu0 0
        %1107 = vmatpush1.bf16.msra.mxu0 0
        %1108 = vmatprep.subr.bf16.mxu0 0
        %1109 = vmatpush1.bf16.msra.mxu0 0
        %1110 = vmatprep.subr.bf16.mxu0 0
        %1111 = vmatpush1.bf16.msra.mxu0 0
        %1112 = vmatprep.subr.bf16.mxu0 0
        %1113 = vmatpush1.bf16.msra.mxu0 0
        %1114 = vmatprep.subr.bf16.mxu0 0
        %1115 = vmatpush1.bf16.msra.mxu0 0
        %1116 = vmatprep.subr.bf16.mxu0 0
        %1117 = vmatpush1.bf16.msra.mxu0 0
        %1118 = vmatprep.subr.bf16.mxu0 0
        %1119 = vmatpush1.bf16.msra.mxu0 0
        %1120 = vmatprep.subr.bf16.mxu0 0
        %1121 = vmatpush1.bf16.msra.mxu0 0
        %1122 = vmatprep.subr.bf16.mxu0 0
        %1123 = vmatpush1.bf16.msra.mxu0 0
        %1124 = vmatprep.subr.bf16.mxu0 0
        %1125 = vmatpush1.bf16.msra.mxu0 0
        %1126 = vmatprep.subr.bf16.mxu0 0
        %1127 = vmatpush1.bf16.msra.mxu0 0
        %1128 = vmatprep.subr.bf16.mxu0 0
        %1129 = vmatpush1.bf16.msra.mxu0 0
        %1130 = vmatprep.mubr.bf16.mxu0 0
        %1131 = vmatmul.mubr.bf16.gmra.mrb[0].mxu0 %v1096
        %v1132 = vpop.f32.mrb[0].mxu0
        %v1133 = vadd.f32 %v786, %v1132
        %v1134 = vpop.f32.mrb[0].mxu0
        %v1135 = vpop.f32.mrb[0].mxu0
        %v1136 = vpop.f32.mrb[0].mxu0
        %1137 = vdwg.mxu0
        %v1139 = vsel %vm401, %v500, 0
        %1141 = vmatprep.subr.bf16.mxu0 0
        %1142 = vmatpush1.bf16.msra.mxu0 %v881
        %1143 = vmatprep.subr.bf16.mxu0 0
        %1144 = vmatpush1.bf16.msra.mxu0 0
        %1145 = vmatprep.subr.bf16.mxu0 0
        %1146 = vmatpush1.bf16.msra.mxu0 0
        %1147 = vmatprep.subr.bf16.mxu0 0
        %1148 = vmatpush1.bf16.msra.mxu0 0
        %1149 = vmatprep.subr.bf16.mxu0 0
        %1150 = vmatpush1.bf16.msra.mxu0 0
        %1151 = vmatprep.subr.bf16.mxu0 0
        %1152 = vmatpush1.bf16.msra.mxu0 0
        %1153 = vmatprep.subr.bf16.mxu0 0
        %1154 = vmatpush1.bf16.msra.mxu0 0
        %1155 = vmatprep.subr.bf16.mxu0 0
        %1156 = vmatpush1.bf16.msra.mxu0 0
        %1157 = vmatprep.subr.bf16.mxu0 0
        %1158 = vmatpush1.bf16.msra.mxu0 0
        %1159 = vmatprep.subr.bf16.mxu0 0
        %1160 = vmatpush1.bf16.msra.mxu0 0
        %1161 = vmatprep.subr.bf16.mxu0 0
        %1162 = vmatpush1.bf16.msra.mxu0 0
        %1163 = vmatprep.subr.bf16.mxu0 0
        %1164 = vmatpush1.bf16.msra.mxu0 0
        %1165 = vmatprep.subr.bf16.mxu0 0
        %1166 = vmatpush1.bf16.msra.mxu0 0
        %1167 = vmatprep.subr.bf16.mxu0 0
        %1168 = vmatpush1.bf16.msra.mxu0 0
        %1169 = vmatprep.subr.bf16.mxu0 0
        %1170 = vmatpush1.bf16.msra.mxu0 0
        %1171 = vmatprep.subr.bf16.mxu0 0
        %1172 = vmatpush1.bf16.msra.mxu0 0
        %1173 = vmatprep.mubr.bf16.mxu0 0
        %1174 = vmatmul.mubr.bf16.gmra.mrb[0].mxu0 %v1139
        %v1175 = vpop.f32.mrb[0].mxu0
        %v1176 = vadd.f32 %v829, %v1175
        %v1177 = vpop.f32.mrb[0].mxu0
        %v1178 = vpop.f32.mrb[0].mxu0
        %v1179 = vpop.f32.mrb[0].mxu0
        %1180 = vdwg.mxu0
        %v1182 = vsel %vm401, %v501, 0
        %1184 = vmatprep.subr.bf16.mxu0 0
        %1185 = vmatpush1.bf16.msra.mxu0 %v881
        %1186 = vmatprep.subr.bf16.mxu0 0
        %1187 = vmatpush1.bf16.msra.mxu0 0
        %1188 = vmatprep.subr.bf16.mxu0 0
        %1189 = vmatpush1.bf16.msra.mxu0 0
        %1190 = vmatprep.subr.bf16.mxu0 0
        %1191 = vmatpush1.bf16.msra.mxu0 0
        %1192 = vmatprep.subr.bf16.mxu0 0
        %1193 = vmatpush1.bf16.msra.mxu0 0
        %1194 = vmatprep.subr.bf16.mxu0 0
        %1195 = vmatpush1.bf16.msra.mxu0 0
        %1196 = vmatprep.subr.bf16.mxu0 0
        %1197 = vmatpush1.bf16.msra.mxu0 0
        %1198 = vmatprep.subr.bf16.mxu0 0
        %1199 = vmatpush1.bf16.msra.mxu0 0
        %1200 = vmatprep.subr.bf16.mxu0 0
        %1201 = vmatpush1.bf16.msra.mxu0 0
        %1202 = vmatprep.subr.bf16.mxu0 0
        %1203 = vmatpush1.bf16.msra.mxu0 0
        %1204 = vmatprep.subr.bf16.mxu0 0
        %1205 = vmatpush1.bf16.msra.mxu0 0
        %1206 = vmatprep.subr.bf16.mxu0 0
        %1207 = vmatpush1.bf16.msra.mxu0 0
        %1208 = vmatprep.subr.bf16.mxu0 0
        %1209 = vmatpush1.bf16.msra.mxu0 0
        %1210 = vmatprep.subr.bf16.mxu0 0
        %1211 = vmatpush1.bf16.msra.mxu0 0
        %1212 = vmatprep.subr.bf16.mxu0 0
        %1213 = vmatpush1.bf16.msra.mxu0 0
        %1214 = vmatprep.subr.bf16.mxu0 0
        %1215 = vmatpush1.bf16.msra.mxu0 0
        %1216 = vmatprep.mubr.bf16.mxu0 0
        %1217 = vmatmul.mubr.bf16.gmra.mrb[0].mxu0 %v1182
        %v1218 = vpop.f32.mrb[0].mxu0
        %v1219 = vadd.f32 %v872, %v1218
        %v1220 = vpop.f32.mrb[0].mxu0
        %v1221 = vpop.f32.mrb[0].mxu0
        %v1222 = vpop.f32.mrb[0].mxu0
        %1223 = vdwg.mxu0
        %s1224 = scalar_lea.vmem [#allocation2], 2
        %v1225 = vld [vmem:[%s1224] ss:$2 sm:$0xff]
        %s1226 = scalar_lea.vmem [#allocation2], 50
        %v1227 = vld [vmem:[%s1226] ss:$2 sm:$0xff]
        %s1228 = scalar_lea.vmem [#allocation2], 98
        %v1229 = vld [vmem:[%s1228] ss:$2 sm:$0xff]
        %s1230 = scalar_lea.vmem [#allocation2], 146
        %v1231 = vld [vmem:[%s1230] ss:$2 sm:$0xff]
        %s1232 = scalar_lea.vmem [#allocation2], 194
        %v1233 = vld [vmem:[%s1232] ss:$2 sm:$0xff]
        %s1234 = scalar_lea.vmem [#allocation2], 242
        %v1235 = vld [vmem:[%s1234] ss:$2 sm:$0xff]
        %s1236 = scalar_lea.vmem [#allocation2], 290
        %v1237 = vld [vmem:[%s1236] ss:$2 sm:$0xff]
        %s1238 = scalar_lea.vmem [#allocation2], 338
        %v1239 = vld [vmem:[%s1238] ss:$2 sm:$0xff]
        %v1240 = vpack.c.bf16 %v1225, %v1225
        %v1241 = vpack.c.bf16 %v1227, %v1227
        %v1242 = vpack.c.bf16 %v1229, %v1229
        %v1243 = vpack.c.bf16 %v1231, %v1231
        %v1244 = vpack.c.bf16 %v1233, %v1233
        %v1245 = vpack.c.bf16 %v1235, %v1235
        %v1246 = vpack.c.bf16 %v1237, %v1237
        %v1247 = vpack.c.bf16 %v1239, %v1239
        %s1248 = scalar_lea.vmem %s1, 4
        %v1249 = vld [vmem:[%s1248] sm:$0x3]
        %v1251 = vsel %vm401, %v1240, 0
        %v1254 = vsel %vm532, %v1249, 0
        %1256 = vmatprep.subr.bf16.mxu0 0
        %1257 = vmatpush1.bf16.msra.mxu0 %v1254
        %1258 = vmatprep.subr.bf16.mxu0 0
        %1259 = vmatpush1.bf16.msra.mxu0 0
        %1260 = vmatprep.subr.bf16.mxu0 0
        %1261 = vmatpush1.bf16.msra.mxu0 0
        %1262 = vmatprep.subr.bf16.mxu0 0
        %1263 = vmatpush1.bf16.msra.mxu0 0
        %1264 = vmatprep.subr.bf16.mxu0 0
        %1265 = vmatpush1.bf16.msra.mxu0 0
        %1266 = vmatprep.subr.bf16.mxu0 0
        %1267 = vmatpush1.bf16.msra.mxu0 0
        %1268 = vmatprep.subr.bf16.mxu0 0
        %1269 = vmatpush1.bf16.msra.mxu0 0
        %1270 = vmatprep.subr.bf16.mxu0 0
        %1271 = vmatpush1.bf16.msra.mxu0 0
        %1272 = vmatprep.subr.bf16.mxu0 0
        %1273 = vmatpush1.bf16.msra.mxu0 0
        %1274 = vmatprep.subr.bf16.mxu0 0
        %1275 = vmatpush1.bf16.msra.mxu0 0
        %1276 = vmatprep.subr.bf16.mxu0 0
        %1277 = vmatpush1.bf16.msra.mxu0 0
        %1278 = vmatprep.subr.bf16.mxu0 0
        %1279 = vmatpush1.bf16.msra.mxu0 0
        %1280 = vmatprep.subr.bf16.mxu0 0
        %1281 = vmatpush1.bf16.msra.mxu0 0
        %1282 = vmatprep.subr.bf16.mxu0 0
        %1283 = vmatpush1.bf16.msra.mxu0 0
        %1284 = vmatprep.subr.bf16.mxu0 0
        %1285 = vmatpush1.bf16.msra.mxu0 0
        %1286 = vmatprep.subr.bf16.mxu0 0
        %1287 = vmatpush1.bf16.msra.mxu0 0
        %1288 = vmatprep.mubr.bf16.mxu0 0
        %1289 = vmatmul.mubr.bf16.gmra.mrb[0].mxu0 %v1251
        %v1290 = vpop.f32.mrb[0].mxu0
        %v1291 = vadd.f32 0.0, %v1290
        %v1292 = vpop.f32.mrb[0].mxu0
        %v1293 = vpop.f32.mrb[0].mxu0
        %v1294 = vpop.f32.mrb[0].mxu0
        %1295 = vdwg.mxu0
        %v1297 = vsel %vm401, %v1241, 0
        %1299 = vmatprep.subr.bf16.mxu0 0
        %1300 = vmatpush1.bf16.msra.mxu0 %v1254
        %1301 = vmatprep.subr.bf16.mxu0 0
        %1302 = vmatpush1.bf16.msra.mxu0 0
        %1303 = vmatprep.subr.bf16.mxu0 0
        %1304 = vmatpush1.bf16.msra.mxu0 0
        %1305 = vmatprep.subr.bf16.mxu0 0
        %1306 = vmatpush1.bf16.msra.mxu0 0
        %1307 = vmatprep.subr.bf16.mxu0 0
        %1308 = vmatpush1.bf16.msra.mxu0 0
        %1309 = vmatprep.subr.bf16.mxu0 0
        %1310 = vmatpush1.bf16.msra.mxu0 0
        %1311 = vmatprep.subr.bf16.mxu0 0
        %1312 = vmatpush1.bf16.msra.mxu0 0
        %1313 = vmatprep.subr.bf16.mxu0 0
        %1314 = vmatpush1.bf16.msra.mxu0 0
        %1315 = vmatprep.subr.bf16.mxu0 0
        %1316 = vmatpush1.bf16.msra.mxu0 0
        %1317 = vmatprep.subr.bf16.mxu0 0
        %1318 = vmatpush1.bf16.msra.mxu0 0
        %1319 = vmatprep.subr.bf16.mxu0 0
        %1320 = vmatpush1.bf16.msra.mxu0 0
        %1321 = vmatprep.subr.bf16.mxu0 0
        %1322 = vmatpush1.bf16.msra.mxu0 0
        %1323 = vmatprep.subr.bf16.mxu0 0
        %1324 = vmatpush1.bf16.msra.mxu0 0
        %1325 = vmatprep.subr.bf16.mxu0 0
        %1326 = vmatpush1.bf16.msra.mxu0 0
        %1327 = vmatprep.subr.bf16.mxu0 0
        %1328 = vmatpush1.bf16.msra.mxu0 0
        %1329 = vmatprep.subr.bf16.mxu0 0
        %1330 = vmatpush1.bf16.msra.mxu0 0
        %1331 = vmatprep.mubr.bf16.mxu0 0
        %1332 = vmatmul.mubr.bf16.gmra.mrb[0].mxu0 %v1297
        %v1333 = vpop.f32.mrb[0].mxu0
        %v1334 = vadd.f32 0.0, %v1333
        %v1335 = vpop.f32.mrb[0].mxu0
        %v1336 = vpop.f32.mrb[0].mxu0
        %v1337 = vpop.f32.mrb[0].mxu0
        %1338 = vdwg.mxu0
        %v1340 = vsel %vm401, %v1242, 0
        %1342 = vmatprep.subr.bf16.mxu0 0
        %1343 = vmatpush1.bf16.msra.mxu0 %v1254
        %1344 = vmatprep.subr.bf16.mxu0 0
        %1345 = vmatpush1.bf16.msra.mxu0 0
        %1346 = vmatprep.subr.bf16.mxu0 0
        %1347 = vmatpush1.bf16.msra.mxu0 0
        %1348 = vmatprep.subr.bf16.mxu0 0
        %1349 = vmatpush1.bf16.msra.mxu0 0
        %1350 = vmatprep.subr.bf16.mxu0 0
        %1351 = vmatpush1.bf16.msra.mxu0 0
        %1352 = vmatprep.subr.bf16.mxu0 0
        %1353 = vmatpush1.bf16.msra.mxu0 0
        %1354 = vmatprep.subr.bf16.mxu0 0
        %1355 = vmatpush1.bf16.msra.mxu0 0
        %1356 = vmatprep.subr.bf16.mxu0 0
        %1357 = vmatpush1.bf16.msra.mxu0 0
        %1358 = vmatprep.subr.bf16.mxu0 0
        %1359 = vmatpush1.bf16.msra.mxu0 0
        %1360 = vmatprep.subr.bf16.mxu0 0
        %1361 = vmatpush1.bf16.msra.mxu0 0
        %1362 = vmatprep.subr.bf16.mxu0 0
        %1363 = vmatpush1.bf16.msra.mxu0 0
        %1364 = vmatprep.subr.bf16.mxu0 0
        %1365 = vmatpush1.bf16.msra.mxu0 0
        %1366 = vmatprep.subr.bf16.mxu0 0
        %1367 = vmatpush1.bf16.msra.mxu0 0
        %1368 = vmatprep.subr.bf16.mxu0 0
        %1369 = vmatpush1.bf16.msra.mxu0 0
        %1370 = vmatprep.subr.bf16.mxu0 0
        %1371 = vmatpush1.bf16.msra.mxu0 0
        %1372 = vmatprep.subr.bf16.mxu0 0
        %1373 = vmatpush1.bf16.msra.mxu0 0
        %1374 = vmatprep.mubr.bf16.mxu0 0
        %1375 = vmatmul.mubr.bf16.gmra.mrb[0].mxu0 %v1340
        %v1376 = vpop.f32.mrb[0].mxu0
        %v1377 = vadd.f32 0.0, %v1376
        %v1378 = vpop.f32.mrb[0].mxu0
        %v1379 = vpop.f32.mrb[0].mxu0
        %v1380 = vpop.f32.mrb[0].mxu0
        %1381 = vdwg.mxu0
        %v1383 = vsel %vm401, %v1243, 0
        %1385 = vmatprep.subr.bf16.mxu0 0
        %1386 = vmatpush1.bf16.msra.mxu0 %v1254
        %1387 = vmatprep.subr.bf16.mxu0 0
        %1388 = vmatpush1.bf16.msra.mxu0 0
        %1389 = vmatprep.subr.bf16.mxu0 0
        %1390 = vmatpush1.bf16.msra.mxu0 0
        %1391 = vmatprep.subr.bf16.mxu0 0
        %1392 = vmatpush1.bf16.msra.mxu0 0
        %1393 = vmatprep.subr.bf16.mxu0 0
        %1394 = vmatpush1.bf16.msra.mxu0 0
        %1395 = vmatprep.subr.bf16.mxu0 0
        %1396 = vmatpush1.bf16.msra.mxu0 0
        %1397 = vmatprep.subr.bf16.mxu0 0
        %1398 = vmatpush1.bf16.msra.mxu0 0
        %1399 = vmatprep.subr.bf16.mxu0 0
        %1400 = vmatpush1.bf16.msra.mxu0 0
        %1401 = vmatprep.subr.bf16.mxu0 0
        %1402 = vmatpush1.bf16.msra.mxu0 0
        %1403 = vmatprep.subr.bf16.mxu0 0
        %1404 = vmatpush1.bf16.msra.mxu0 0
        %1405 = vmatprep.subr.bf16.mxu0 0
        %1406 = vmatpush1.bf16.msra.mxu0 0
        %1407 = vmatprep.subr.bf16.mxu0 0
        %1408 = vmatpush1.bf16.msra.mxu0 0
        %1409 = vmatprep.subr.bf16.mxu0 0
        %1410 = vmatpush1.bf16.msra.mxu0 0
        %1411 = vmatprep.subr.bf16.mxu0 0
        %1412 = vmatpush1.bf16.msra.mxu0 0
        %1413 = vmatprep.subr.bf16.mxu0 0
        %1414 = vmatpush1.bf16.msra.mxu0 0
        %1415 = vmatprep.subr.bf16.mxu0 0
        %1416 = vmatpush1.bf16.msra.mxu0 0
        %1417 = vmatprep.mubr.bf16.mxu0 0
        %1418 = vmatmul.mubr.bf16.gmra.mrb[0].mxu0 %v1383
        %v1419 = vpop.f32.mrb[0].mxu0
        %v1420 = vadd.f32 0.0, %v1419
        %v1421 = vpop.f32.mrb[0].mxu0
        %v1422 = vpop.f32.mrb[0].mxu0
        %v1423 = vpop.f32.mrb[0].mxu0
        %1424 = vdwg.mxu0
        %v1426 = vsel %vm401, %v1244, 0
        %1428 = vmatprep.subr.bf16.mxu0 0
        %1429 = vmatpush1.bf16.msra.mxu0 %v1254
        %1430 = vmatprep.subr.bf16.mxu0 0
        %1431 = vmatpush1.bf16.msra.mxu0 0
        %1432 = vmatprep.subr.bf16.mxu0 0
        %1433 = vmatpush1.bf16.msra.mxu0 0
        %1434 = vmatprep.subr.bf16.mxu0 0
        %1435 = vmatpush1.bf16.msra.mxu0 0
        %1436 = vmatprep.subr.bf16.mxu0 0
        %1437 = vmatpush1.bf16.msra.mxu0 0
        %1438 = vmatprep.subr.bf16.mxu0 0
        %1439 = vmatpush1.bf16.msra.mxu0 0
        %1440 = vmatprep.subr.bf16.mxu0 0
        %1441 = vmatpush1.bf16.msra.mxu0 0
        %1442 = vmatprep.subr.bf16.mxu0 0
        %1443 = vmatpush1.bf16.msra.mxu0 0
        %1444 = vmatprep.subr.bf16.mxu0 0
        %1445 = vmatpush1.bf16.msra.mxu0 0
        %1446 = vmatprep.subr.bf16.mxu0 0
        %1447 = vmatpush1.bf16.msra.mxu0 0
        %1448 = vmatprep.subr.bf16.mxu0 0
        %1449 = vmatpush1.bf16.msra.mxu0 0
        %1450 = vmatprep.subr.bf16.mxu0 0
        %1451 = vmatpush1.bf16.msra.mxu0 0
        %1452 = vmatprep.subr.bf16.mxu0 0
        %1453 = vmatpush1.bf16.msra.mxu0 0
        %1454 = vmatprep.subr.bf16.mxu0 0
        %1455 = vmatpush1.bf16.msra.mxu0 0
        %1456 = vmatprep.subr.bf16.mxu0 0
        %1457 = vmatpush1.bf16.msra.mxu0 0
        %1458 = vmatprep.subr.bf16.mxu0 0
        %1459 = vmatpush1.bf16.msra.mxu0 0
        %1460 = vmatprep.mubr.bf16.mxu0 0
        %1461 = vmatmul.mubr.bf16.gmra.mrb[0].mxu0 %v1426
        %v1462 = vpop.f32.mrb[0].mxu0
        %v1463 = vadd.f32 0.0, %v1462
        %v1464 = vpop.f32.mrb[0].mxu0
        %v1465 = vpop.f32.mrb[0].mxu0
        %v1466 = vpop.f32.mrb[0].mxu0
        %1467 = vdwg.mxu0
        %v1469 = vsel %vm401, %v1245, 0
        %1471 = vmatprep.subr.bf16.mxu0 0
        %1472 = vmatpush1.bf16.msra.mxu0 %v1254
        %1473 = vmatprep.subr.bf16.mxu0 0
        %1474 = vmatpush1.bf16.msra.mxu0 0
        %1475 = vmatprep.subr.bf16.mxu0 0
        %1476 = vmatpush1.bf16.msra.mxu0 0
        %1477 = vmatprep.subr.bf16.mxu0 0
        %1478 = vmatpush1.bf16.msra.mxu0 0
        %1479 = vmatprep.subr.bf16.mxu0 0
        %1480 = vmatpush1.bf16.msra.mxu0 0
        %1481 = vmatprep.subr.bf16.mxu0 0
        %1482 = vmatpush1.bf16.msra.mxu0 0
        %1483 = vmatprep.subr.bf16.mxu0 0
        %1484 = vmatpush1.bf16.msra.mxu0 0
        %1485 = vmatprep.subr.bf16.mxu0 0
        %1486 = vmatpush1.bf16.msra.mxu0 0
        %1487 = vmatprep.subr.bf16.mxu0 0
        %1488 = vmatpush1.bf16.msra.mxu0 0
        %1489 = vmatprep.subr.bf16.mxu0 0
        %1490 = vmatpush1.bf16.msra.mxu0 0
        %1491 = vmatprep.subr.bf16.mxu0 0
        %1492 = vmatpush1.bf16.msra.mxu0 0
        %1493 = vmatprep.subr.bf16.mxu0 0
        %1494 = vmatpush1.bf16.msra.mxu0 0
        %1495 = vmatprep.subr.bf16.mxu0 0
        %1496 = vmatpush1.bf16.msra.mxu0 0
        %1497 = vmatprep.subr.bf16.mxu0 0
        %1498 = vmatpush1.bf16.msra.mxu0 0
        %1499 = vmatprep.subr.bf16.mxu0 0
        %1500 = vmatpush1.bf16.msra.mxu0 0
        %1501 = vmatprep.subr.bf16.mxu0 0
        %1502 = vmatpush1.bf16.msra.mxu0 0
        %1503 = vmatprep.mubr.bf16.mxu0 0
        %1504 = vmatmul.mubr.bf16.gmra.mrb[0].mxu0 %v1469
        %v1505 = vpop.f32.mrb[0].mxu0
        %v1506 = vadd.f32 0.0, %v1505
        %v1507 = vpop.f32.mrb[0].mxu0
        %v1508 = vpop.f32.mrb[0].mxu0
        %v1509 = vpop.f32.mrb[0].mxu0
        %1510 = vdwg.mxu0
        %v1512 = vsel %vm401, %v1246, 0
        %1514 = vmatprep.subr.bf16.mxu0 0
        %1515 = vmatpush1.bf16.msra.mxu0 %v1254
        %1516 = vmatprep.subr.bf16.mxu0 0
        %1517 = vmatpush1.bf16.msra.mxu0 0
        %1518 = vmatprep.subr.bf16.mxu0 0
        %1519 = vmatpush1.bf16.msra.mxu0 0
        %1520 = vmatprep.subr.bf16.mxu0 0
        %1521 = vmatpush1.bf16.msra.mxu0 0
        %1522 = vmatprep.subr.bf16.mxu0 0
        %1523 = vmatpush1.bf16.msra.mxu0 0
        %1524 = vmatprep.subr.bf16.mxu0 0
        %1525 = vmatpush1.bf16.msra.mxu0 0
        %1526 = vmatprep.subr.bf16.mxu0 0
        %1527 = vmatpush1.bf16.msra.mxu0 0
        %1528 = vmatprep.subr.bf16.mxu0 0
        %1529 = vmatpush1.bf16.msra.mxu0 0
        %1530 = vmatprep.subr.bf16.mxu0 0
        %1531 = vmatpush1.bf16.msra.mxu0 0
        %1532 = vmatprep.subr.bf16.mxu0 0
        %1533 = vmatpush1.bf16.msra.mxu0 0
        %1534 = vmatprep.subr.bf16.mxu0 0
        %1535 = vmatpush1.bf16.msra.mxu0 0
        %1536 = vmatprep.subr.bf16.mxu0 0
        %1537 = vmatpush1.bf16.msra.mxu0 0
        %1538 = vmatprep.subr.bf16.mxu0 0
        %1539 = vmatpush1.bf16.msra.mxu0 0
        %1540 = vmatprep.subr.bf16.mxu0 0
        %1541 = vmatpush1.bf16.msra.mxu0 0
        %1542 = vmatprep.subr.bf16.mxu0 0
        %1543 = vmatpush1.bf16.msra.mxu0 0
        %1544 = vmatprep.subr.bf16.mxu0 0
        %1545 = vmatpush1.bf16.msra.mxu0 0
        %1546 = vmatprep.mubr.bf16.mxu0 0
        %1547 = vmatmul.mubr.bf16.gmra.mrb[0].mxu0 %v1512
        %v1548 = vpop.f32.mrb[0].mxu0
        %v1549 = vadd.f32 0.0, %v1548
        %v1550 = vpop.f32.mrb[0].mxu0
        %v1551 = vpop.f32.mrb[0].mxu0
        %v1552 = vpop.f32.mrb[0].mxu0
        %1553 = vdwg.mxu0
        %v1555 = vsel %vm401, %v1247, 0
        %1557 = vmatprep.subr.bf16.mxu0 0
        %1558 = vmatpush1.bf16.msra.mxu0 %v1254
        %1559 = vmatprep.subr.bf16.mxu0 0
        %1560 = vmatpush1.bf16.msra.mxu0 0
        %1561 = vmatprep.subr.bf16.mxu0 0
        %1562 = vmatpush1.bf16.msra.mxu0 0
        %1563 = vmatprep.subr.bf16.mxu0 0
        %1564 = vmatpush1.bf16.msra.mxu0 0
        %1565 = vmatprep.subr.bf16.mxu0 0
        %1566 = vmatpush1.bf16.msra.mxu0 0
        %1567 = vmatprep.subr.bf16.mxu0 0
        %1568 = vmatpush1.bf16.msra.mxu0 0
        %1569 = vmatprep.subr.bf16.mxu0 0
        %1570 = vmatpush1.bf16.msra.mxu0 0
        %1571 = vmatprep.subr.bf16.mxu0 0
        %1572 = vmatpush1.bf16.msra.mxu0 0
        %1573 = vmatprep.subr.bf16.mxu0 0
        %1574 = vmatpush1.bf16.msra.mxu0 0
        %1575 = vmatprep.subr.bf16.mxu0 0
        %1576 = vmatpush1.bf16.msra.mxu0 0
        %1577 = vmatprep.subr.bf16.mxu0 0
        %1578 = vmatpush1.bf16.msra.mxu0 0
        %1579 = vmatprep.subr.bf16.mxu0 0
        %1580 = vmatpush1.bf16.msra.mxu0 0
        %1581 = vmatprep.subr.bf16.mxu0 0
        %1582 = vmatpush1.bf16.msra.mxu0 0
        %1583 = vmatprep.subr.bf16.mxu0 0
        %1584 = vmatpush1.bf16.msra.mxu0 0
        %1585 = vmatprep.subr.bf16.mxu0 0
        %1586 = vmatpush1.bf16.msra.mxu0 0
        %1587 = vmatprep.subr.bf16.mxu0 0
        %1588 = vmatpush1.bf16.msra.mxu0 0
        %1589 = vmatprep.mubr.bf16.mxu0 0
        %1590 = vmatmul.mubr.bf16.gmra.mrb[0].mxu0 %v1555
        %v1591 = vpop.f32.mrb[0].mxu0
        %v1592 = vadd.f32 0.0, %v1591
        %v1593 = vpop.f32.mrb[0].mxu0
        %v1594 = vpop.f32.mrb[0].mxu0
        %v1595 = vpop.f32.mrb[0].mxu0
        %1596 = vdwg.mxu0
        %v1597 = vadd.f32 %v918, %v1291
        %v1598 = vadd.f32 %v961, %v1334
        %v1599 = vadd.f32 %v1004, %v1377
        %v1600 = vadd.f32 %v1047, %v1420
        %v1601 = vadd.f32 %v1090, %v1463
        %v1602 = vadd.f32 %v1133, %v1506
        %v1603 = vadd.f32 %v1176, %v1549
        %v1604 = vadd.f32 %v1219, %v1592
        %s1605 = scalar_lea.vmem [#allocation2], 24
        %v1606 = vld [vmem:[%s1605] ss:$2 sm:$0xff]
        %s1607 = scalar_lea.vmem %s1605, 48 [#allocation2]
        %v1608 = vld [vmem:[%s1607] ss:$2 sm:$0xff]
        %s1609 = scalar_lea.vmem %s1605, 96 [#allocation2]
        %v1610 = vld [vmem:[%s1609] ss:$2 sm:$0xff]
        %s1611 = scalar_lea.vmem %s1605, 144 [#allocation2]
        %v1612 = vld [vmem:[%s1611] ss:$2 sm:$0xff]
        %s1613 = scalar_lea.vmem %s1605, 192 [#allocation2]
        %v1614 = vld [vmem:[%s1613] ss:$2 sm:$0xff]
        %s1615 = scalar_lea.vmem %s1605, 240 [#allocation2]
        %v1616 = vld [vmem:[%s1615] ss:$2 sm:$0xff]
        %s1617 = scalar_lea.vmem %s1605, 288 [#allocation2]
        %v1618 = vld [vmem:[%s1617] ss:$2 sm:$0xff]
        %s1619 = scalar_lea.vmem %s1605, 336 [#allocation2]
        %v1620 = vld [vmem:[%s1619] ss:$2 sm:$0xff]
        %v1621 = vpack.c.bf16 %v1606, %v1606
        %v1622 = vpack.c.bf16 %v1608, %v1608
        %v1623 = vpack.c.bf16 %v1610, %v1610
        %v1624 = vpack.c.bf16 %v1612, %v1612
        %v1625 = vpack.c.bf16 %v1614, %v1614
        %v1626 = vpack.c.bf16 %v1616, %v1616
        %v1627 = vpack.c.bf16 %v1618, %v1618
        %v1628 = vpack.c.bf16 %v1620, %v1620
        %s1629 = scalar_lea.vmem %s1, 6
        %v1630 = vld [vmem:[%s1629] sm:$0x3]
        %v1632 = vsel %vm401, %v1621, 0
        %v1635 = vsel %vm532, %v1630, 0
        %1637 = vmatprep.subr.bf16.mxu0 0
        %1638 = vmatpush1.bf16.msra.mxu0 %v1635
        %1639 = vmatprep.subr.bf16.mxu0 0
        %1640 = vmatpush1.bf16.msra.mxu0 0
        %1641 = vmatprep.subr.bf16.mxu0 0
        %1642 = vmatpush1.bf16.msra.mxu0 0
        %1643 = vmatprep.subr.bf16.mxu0 0
        %1644 = vmatpush1.bf16.msra.mxu0 0
        %1645 = vmatprep.subr.bf16.mxu0 0
        %1646 = vmatpush1.bf16.msra.mxu0 0
        %1647 = vmatprep.subr.bf16.mxu0 0
        %1648 = vmatpush1.bf16.msra.mxu0 0
        %1649 = vmatprep.subr.bf16.mxu0 0
        %1650 = vmatpush1.bf16.msra.mxu0 0
        %1651 = vmatprep.subr.bf16.mxu0 0
        %1652 = vmatpush1.bf16.msra.mxu0 0
        %1653 = vmatprep.subr.bf16.mxu0 0
        %1654 = vmatpush1.bf16.msra.mxu0 0
        %1655 = vmatprep.subr.bf16.mxu0 0
        %1656 = vmatpush1.bf16.msra.mxu0 0
        %1657 = vmatprep.subr.bf16.mxu0 0
        %1658 = vmatpush1.bf16.msra.mxu0 0
        %1659 = vmatprep.subr.bf16.mxu0 0
        %1660 = vmatpush1.bf16.msra.mxu0 0
        %1661 = vmatprep.subr.bf16.mxu0 0
        %1662 = vmatpush1.bf16.msra.mxu0 0
        %1663 = vmatprep.subr.bf16.mxu0 0
        %1664 = vmatpush1.bf16.msra.mxu0 0
        %1665 = vmatprep.subr.bf16.mxu0 0
        %1666 = vmatpush1.bf16.msra.mxu0 0
        %1667 = vmatprep.subr.bf16.mxu0 0
        %1668 = vmatpush1.bf16.msra.mxu0 0
        %1669 = vmatprep.mubr.bf16.mxu0 0
        %1670 = vmatmul.mubr.bf16.gmra.mrb[0].mxu0 %v1632
        %v1671 = vpop.f32.mrb[0].mxu0
        %v1672 = vadd.f32 0.0, %v1671
        %v1673 = vpop.f32.mrb[0].mxu0
        %v1674 = vpop.f32.mrb[0].mxu0
        %v1675 = vpop.f32.mrb[0].mxu0
        %1676 = vdwg.mxu0
        %v1678 = vsel %vm401, %v1622, 0
        %1680 = vmatprep.subr.bf16.mxu0 0
        %1681 = vmatpush1.bf16.msra.mxu0 %v1635
        %1682 = vmatprep.subr.bf16.mxu0 0
        %1683 = vmatpush1.bf16.msra.mxu0 0
        %1684 = vmatprep.subr.bf16.mxu0 0
        %1685 = vmatpush1.bf16.msra.mxu0 0
        %1686 = vmatprep.subr.bf16.mxu0 0
        %1687 = vmatpush1.bf16.msra.mxu0 0
        %1688 = vmatprep.subr.bf16.mxu0 0
        %1689 = vmatpush1.bf16.msra.mxu0 0
        %1690 = vmatprep.subr.bf16.mxu0 0
        %1691 = vmatpush1.bf16.msra.mxu0 0
        %1692 = vmatprep.subr.bf16.mxu0 0
        %1693 = vmatpush1.bf16.msra.mxu0 0
        %1694 = vmatprep.subr.bf16.mxu0 0
        %1695 = vmatpush1.bf16.msra.mxu0 0
        %1696 = vmatprep.subr.bf16.mxu0 0
        %1697 = vmatpush1.bf16.msra.mxu0 0
        %1698 = vmatprep.subr.bf16.mxu0 0
        %1699 = vmatpush1.bf16.msra.mxu0 0
        %1700 = vmatprep.subr.bf16.mxu0 0
        %1701 = vmatpush1.bf16.msra.mxu0 0
        %1702 = vmatprep.subr.bf16.mxu0 0
        %1703 = vmatpush1.bf16.msra.mxu0 0
        %1704 = vmatprep.subr.bf16.mxu0 0
        %1705 = vmatpush1.bf16.msra.mxu0 0
        %1706 = vmatprep.subr.bf16.mxu0 0
        %1707 = vmatpush1.bf16.msra.mxu0 0
        %1708 = vmatprep.subr.bf16.mxu0 0
        %1709 = vmatpush1.bf16.msra.mxu0 0
        %1710 = vmatprep.subr.bf16.mxu0 0
        %1711 = vmatpush1.bf16.msra.mxu0 0
        %1712 = vmatprep.mubr.bf16.mxu0 0
        %1713 = vmatmul.mubr.bf16.gmra.mrb[0].mxu0 %v1678
        %v1714 = vpop.f32.mrb[0].mxu0
        %v1715 = vadd.f32 0.0, %v1714
        %v1716 = vpop.f32.mrb[0].mxu0
        %v1717 = vpop.f32.mrb[0].mxu0
        %v1718 = vpop.f32.mrb[0].mxu0
        %1719 = vdwg.mxu0
        %v1721 = vsel %vm401, %v1623, 0
        %1723 = vmatprep.subr.bf16.mxu0 0
        %1724 = vmatpush1.bf16.msra.mxu0 %v1635
        %1725 = vmatprep.subr.bf16.mxu0 0
        %1726 = vmatpush1.bf16.msra.mxu0 0
        %1727 = vmatprep.subr.bf16.mxu0 0
        %1728 = vmatpush1.bf16.msra.mxu0 0
        %1729 = vmatprep.subr.bf16.mxu0 0
        %1730 = vmatpush1.bf16.msra.mxu0 0
        %1731 = vmatprep.subr.bf16.mxu0 0
        %1732 = vmatpush1.bf16.msra.mxu0 0
        %1733 = vmatprep.subr.bf16.mxu0 0
        %1734 = vmatpush1.bf16.msra.mxu0 0
        %1735 = vmatprep.subr.bf16.mxu0 0
        %1736 = vmatpush1.bf16.msra.mxu0 0
        %1737 = vmatprep.subr.bf16.mxu0 0
        %1738 = vmatpush1.bf16.msra.mxu0 0
        %1739 = vmatprep.subr.bf16.mxu0 0
        %1740 = vmatpush1.bf16.msra.mxu0 0
        %1741 = vmatprep.subr.bf16.mxu0 0
        %1742 = vmatpush1.bf16.msra.mxu0 0
        %1743 = vmatprep.subr.bf16.mxu0 0
        %1744 = vmatpush1.bf16.msra.mxu0 0
        %1745 = vmatprep.subr.bf16.mxu0 0
        %1746 = vmatpush1.bf16.msra.mxu0 0
        %1747 = vmatprep.subr.bf16.mxu0 0
        %1748 = vmatpush1.bf16.msra.mxu0 0
        %1749 = vmatprep.subr.bf16.mxu0 0
        %1750 = vmatpush1.bf16.msra.mxu0 0
        %1751 = vmatprep.subr.bf16.mxu0 0
        %1752 = vmatpush1.bf16.msra.mxu0 0
        %1753 = vmatprep.subr.bf16.mxu0 0
        %1754 = vmatpush1.bf16.msra.mxu0 0
        %1755 = vmatprep.mubr.bf16.mxu0 0
        %1756 = vmatmul.mubr.bf16.gmra.mrb[0].mxu0 %v1721
        %v1757 = vpop.f32.mrb[0].mxu0
        %v1758 = vadd.f32 0.0, %v1757
        %v1759 = vpop.f32.mrb[0].mxu0
        %v1760 = vpop.f32.mrb[0].mxu0
        %v1761 = vpop.f32.mrb[0].mxu0
        %1762 = vdwg.mxu0
        %v1764 = vsel %vm401, %v1624, 0
        %1766 = vmatprep.subr.bf16.mxu0 0
        %1767 = vmatpush1.bf16.msra.mxu0 %v1635
        %1768 = vmatprep.subr.bf16.mxu0 0
        %1769 = vmatpush1.bf16.msra.mxu0 0
        %1770 = vmatprep.subr.bf16.mxu0 0
        %1771 = vmatpush1.bf16.msra.mxu0 0
        %1772 = vmatprep.subr.bf16.mxu0 0
        %1773 = vmatpush1.bf16.msra.mxu0 0
        %1774 = vmatprep.subr.bf16.mxu0 0
        %1775 = vmatpush1.bf16.msra.mxu0 0
        %1776 = vmatprep.subr.bf16.mxu0 0
        %1777 = vmatpush1.bf16.msra.mxu0 0
        %1778 = vmatprep.subr.bf16.mxu0 0
        %1779 = vmatpush1.bf16.msra.mxu0 0
        %1780 = vmatprep.subr.bf16.mxu0 0
        %1781 = vmatpush1.bf16.msra.mxu0 0
        %1782 = vmatprep.subr.bf16.mxu0 0
        %1783 = vmatpush1.bf16.msra.mxu0 0
        %1784 = vmatprep.subr.bf16.mxu0 0
        %1785 = vmatpush1.bf16.msra.mxu0 0
        %1786 = vmatprep.subr.bf16.mxu0 0
        %1787 = vmatpush1.bf16.msra.mxu0 0
        %1788 = vmatprep.subr.bf16.mxu0 0
        %1789 = vmatpush1.bf16.msra.mxu0 0
        %1790 = vmatprep.subr.bf16.mxu0 0
        %1791 = vmatpush1.bf16.msra.mxu0 0
        %1792 = vmatprep.subr.bf16.mxu0 0
        %1793 = vmatpush1.bf16.msra.mxu0 0
        %1794 = vmatprep.subr.bf16.mxu0 0
        %1795 = vmatpush1.bf16.msra.mxu0 0
        %1796 = vmatprep.subr.bf16.mxu0 0
        %1797 = vmatpush1.bf16.msra.mxu0 0
        %1798 = vmatprep.mubr.bf16.mxu0 0
        %1799 = vmatmul.mubr.bf16.gmra.mrb[0].mxu0 %v1764
        %v1800 = vpop.f32.mrb[0].mxu0
        %v1801 = vadd.f32 0.0, %v1800
        %v1802 = vpop.f32.mrb[0].mxu0
        %v1803 = vpop.f32.mrb[0].mxu0
        %v1804 = vpop.f32.mrb[0].mxu0
        %1805 = vdwg.mxu0
        %v1807 = vsel %vm401, %v1625, 0
        %1809 = vmatprep.subr.bf16.mxu0 0
        %1810 = vmatpush1.bf16.msra.mxu0 %v1635
        %1811 = vmatprep.subr.bf16.mxu0 0
        %1812 = vmatpush1.bf16.msra.mxu0 0
        %1813 = vmatprep.subr.bf16.mxu0 0
        %1814 = vmatpush1.bf16.msra.mxu0 0
        %1815 = vmatprep.subr.bf16.mxu0 0
        %1816 = vmatpush1.bf16.msra.mxu0 0
        %1817 = vmatprep.subr.bf16.mxu0 0
        %1818 = vmatpush1.bf16.msra.mxu0 0
        %1819 = vmatprep.subr.bf16.mxu0 0
        %1820 = vmatpush1.bf16.msra.mxu0 0
        %1821 = vmatprep.subr.bf16.mxu0 0
        %1822 = vmatpush1.bf16.msra.mxu0 0
        %1823 = vmatprep.subr.bf16.mxu0 0
        %1824 = vmatpush1.bf16.msra.mxu0 0
        %1825 = vmatprep.subr.bf16.mxu0 0
        %1826 = vmatpush1.bf16.msra.mxu0 0
        %1827 = vmatprep.subr.bf16.mxu0 0
        %1828 = vmatpush1.bf16.msra.mxu0 0
        %1829 = vmatprep.subr.bf16.mxu0 0
        %1830 = vmatpush1.bf16.msra.mxu0 0
        %1831 = vmatprep.subr.bf16.mxu0 0
        %1832 = vmatpush1.bf16.msra.mxu0 0
        %1833 = vmatprep.subr.bf16.mxu0 0
        %1834 = vmatpush1.bf16.msra.mxu0 0
        %1835 = vmatprep.subr.bf16.mxu0 0
        %1836 = vmatpush1.bf16.msra.mxu0 0
        %1837 = vmatprep.subr.bf16.mxu0 0
        %1838 = vmatpush1.bf16.msra.mxu0 0
        %1839 = vmatprep.subr.bf16.mxu0 0
        %1840 = vmatpush1.bf16.msra.mxu0 0
        %1841 = vmatprep.mubr.bf16.mxu0 0
        %1842 = vmatmul.mubr.bf16.gmra.mrb[0].mxu0 %v1807
        %v1843 = vpop.f32.mrb[0].mxu0
        %v1844 = vadd.f32 0.0, %v1843
        %v1845 = vpop.f32.mrb[0].mxu0
        %v1846 = vpop.f32.mrb[0].mxu0
        %v1847 = vpop.f32.mrb[0].mxu0
        %1848 = vdwg.mxu0
        %v1850 = vsel %vm401, %v1626, 0
        %1852 = vmatprep.subr.bf16.mxu0 0
        %1853 = vmatpush1.bf16.msra.mxu0 %v1635
        %1854 = vmatprep.subr.bf16.mxu0 0
        %1855 = vmatpush1.bf16.msra.mxu0 0
        %1856 = vmatprep.subr.bf16.mxu0 0
        %1857 = vmatpush1.bf16.msra.mxu0 0
        %1858 = vmatprep.subr.bf16.mxu0 0
        %1859 = vmatpush1.bf16.msra.mxu0 0
        %1860 = vmatprep.subr.bf16.mxu0 0
        %1861 = vmatpush1.bf16.msra.mxu0 0
        %1862 = vmatprep.subr.bf16.mxu0 0
        %1863 = vmatpush1.bf16.msra.mxu0 0
        %1864 = vmatprep.subr.bf16.mxu0 0
        %1865 = vmatpush1.bf16.msra.mxu0 0
        %1866 = vmatprep.subr.bf16.mxu0 0
        %1867 = vmatpush1.bf16.msra.mxu0 0
        %1868 = vmatprep.subr.bf16.mxu0 0
        %1869 = vmatpush1.bf16.msra.mxu0 0
        %1870 = vmatprep.subr.bf16.mxu0 0
        %1871 = vmatpush1.bf16.msra.mxu0 0
        %1872 = vmatprep.subr.bf16.mxu0 0
        %1873 = vmatpush1.bf16.msra.mxu0 0
        %1874 = vmatprep.subr.bf16.mxu0 0
        %1875 = vmatpush1.bf16.msra.mxu0 0
        %1876 = vmatprep.subr.bf16.mxu0 0
        %1877 = vmatpush1.bf16.msra.mxu0 0
        %1878 = vmatprep.subr.bf16.mxu0 0
        %1879 = vmatpush1.bf16.msra.mxu0 0
        %1880 = vmatprep.subr.bf16.mxu0 0
        %1881 = vmatpush1.bf16.msra.mxu0 0
        %1882 = vmatprep.subr.bf16.mxu0 0
        %1883 = vmatpush1.bf16.msra.mxu0 0
        %1884 = vmatprep.mubr.bf16.mxu0 0
        %1885 = vmatmul.mubr.bf16.gmra.mrb[0].mxu0 %v1850
        %v1886 = vpop.f32.mrb[0].mxu0
        %v1887 = vadd.f32 0.0, %v1886
        %v1888 = vpop.f32.mrb[0].mxu0
        %v1889 = vpop.f32.mrb[0].mxu0
        %v1890 = vpop.f32.mrb[0].mxu0
        %1891 = vdwg.mxu0
        %v1893 = vsel %vm401, %v1627, 0
        %1895 = vmatprep.subr.bf16.mxu0 0
        %1896 = vmatpush1.bf16.msra.mxu0 %v1635
        %1897 = vmatprep.subr.bf16.mxu0 0
        %1898 = vmatpush1.bf16.msra.mxu0 0
        %1899 = vmatprep.subr.bf16.mxu0 0
        %1900 = vmatpush1.bf16.msra.mxu0 0
        %1901 = vmatprep.subr.bf16.mxu0 0
        %1902 = vmatpush1.bf16.msra.mxu0 0
        %1903 = vmatprep.subr.bf16.mxu0 0
        %1904 = vmatpush1.bf16.msra.mxu0 0
        %1905 = vmatprep.subr.bf16.mxu0 0
        %1906 = vmatpush1.bf16.msra.mxu0 0
        %1907 = vmatprep.subr.bf16.mxu0 0
        %1908 = vmatpush1.bf16.msra.mxu0 0
        %1909 = vmatprep.subr.bf16.mxu0 0
        %1910 = vmatpush1.bf16.msra.mxu0 0
        %1911 = vmatprep.subr.bf16.mxu0 0
        %1912 = vmatpush1.bf16.msra.mxu0 0
        %1913 = vmatprep.subr.bf16.mxu0 0
        %1914 = vmatpush1.bf16.msra.mxu0 0
        %1915 = vmatprep.subr.bf16.mxu0 0
        %1916 = vmatpush1.bf16.msra.mxu0 0
        %1917 = vmatprep.subr.bf16.mxu0 0
        %1918 = vmatpush1.bf16.msra.mxu0 0
        %1919 = vmatprep.subr.bf16.mxu0 0
        %1920 = vmatpush1.bf16.msra.mxu0 0
        %1921 = vmatprep.subr.bf16.mxu0 0
        %1922 = vmatpush1.bf16.msra.mxu0 0
        %1923 = vmatprep.subr.bf16.mxu0 0
        %1924 = vmatpush1.bf16.msra.mxu0 0
        %1925 = vmatprep.subr.bf16.mxu0 0
        %1926 = vmatpush1.bf16.msra.mxu0 0
        %1927 = vmatprep.mubr.bf16.mxu0 0
        %1928 = vmatmul.mubr.bf16.gmra.mrb[0].mxu0 %v1893
        %v1929 = vpop.f32.mrb[0].mxu0
        %v1930 = vadd.f32 0.0, %v1929
        %v1931 = vpop.f32.mrb[0].mxu0
        %v1932 = vpop.f32.mrb[0].mxu0
        %v1933 = vpop.f32.mrb[0].mxu0
        %1934 = vdwg.mxu0
        %v1936 = vsel %vm401, %v1628, 0
        %1938 = vmatprep.subr.bf16.mxu0 0
        %1939 = vmatpush1.bf16.msra.mxu0 %v1635
        %1940 = vmatprep.subr.bf16.mxu0 0
        %1941 = vmatpush1.bf16.msra.mxu0 0
        %1942 = vmatprep.subr.bf16.mxu0 0
        %1943 = vmatpush1.bf16.msra.mxu0 0
        %1944 = vmatprep.subr.bf16.mxu0 0
        %1945 = vmatpush1.bf16.msra.mxu0 0
        %1946 = vmatprep.subr.bf16.mxu0 0
        %1947 = vmatpush1.bf16.msra.mxu0 0
        %1948 = vmatprep.subr.bf16.mxu0 0
        %1949 = vmatpush1.bf16.msra.mxu0 0
        %1950 = vmatprep.subr.bf16.mxu0 0
        %1951 = vmatpush1.bf16.msra.mxu0 0
        %1952 = vmatprep.subr.bf16.mxu0 0
        %1953 = vmatpush1.bf16.msra.mxu0 0
        %1954 = vmatprep.subr.bf16.mxu0 0
        %1955 = vmatpush1.bf16.msra.mxu0 0
        %1956 = vmatprep.subr.bf16.mxu0 0
        %1957 = vmatpush1.bf16.msra.mxu0 0
        %1958 = vmatprep.subr.bf16.mxu0 0
        %1959 = vmatpush1.bf16.msra.mxu0 0
        %1960 = vmatprep.subr.bf16.mxu0 0
        %1961 = vmatpush1.bf16.msra.mxu0 0
        %1962 = vmatprep.subr.bf16.mxu0 0
        %1963 = vmatpush1.bf16.msra.mxu0 0
        %1964 = vmatprep.subr.bf16.mxu0 0
        %1965 = vmatpush1.bf16.msra.mxu0 0
        %1966 = vmatprep.subr.bf16.mxu0 0
        %1967 = vmatpush1.bf16.msra.mxu0 0
        %1968 = vmatprep.subr.bf16.mxu0 0
        %1969 = vmatpush1.bf16.msra.mxu0 0
        %1970 = vmatprep.mubr.bf16.mxu0 0
        %1971 = vmatmul.mubr.bf16.gmra.mrb[0].mxu0 %v1936
        %v1972 = vpop.f32.mrb[0].mxu0
        %v1973 = vadd.f32 0.0, %v1972
        %v1974 = vpop.f32.mrb[0].mxu0
        %v1975 = vpop.f32.mrb[0].mxu0
        %v1976 = vpop.f32.mrb[0].mxu0
        %1977 = vdwg.mxu0
        %v1978 = vadd.f32 %v1597, %v1672
        %v1979 = vadd.f32 %v1598, %v1715
        %v1980 = vadd.f32 %v1599, %v1758
        %v1981 = vadd.f32 %v1600, %v1801
        %v1982 = vadd.f32 %v1601, %v1844
        %v1983 = vadd.f32 %v1602, %v1887
        %v1984 = vadd.f32 %v1603, %v1930
        %v1985 = vadd.f32 %v1604, %v1973
        %s1986 = scalar_lea.vmem %s1605, 1 [#allocation2]
        %v1987 = vld [vmem:[%s1986] ss:$2 sm:$0xff]
        %s1988 = scalar_lea.vmem %s1605, 49 [#allocation2]
        %v1989 = vld [vmem:[%s1988] ss:$2 sm:$0xff]
        %s1990 = scalar_lea.vmem %s1605, 97 [#allocation2]
        %v1991 = vld [vmem:[%s1990] ss:$2 sm:$0xff]
        %s1992 = scalar_lea.vmem %s1605, 145 [#allocation2]
        %v1993 = vld [vmem:[%s1992] ss:$2 sm:$0xff]
        %s1994 = scalar_lea.vmem %s1605, 193 [#allocation2]
        %v1995 = vld [vmem:[%s1994] ss:$2 sm:$0xff]
        %s1996 = scalar_lea.vmem %s1605, 241 [#allocation2]
        %v1997 = vld [vmem:[%s1996] ss:$2 sm:$0xff]
        %s1998 = scalar_lea.vmem %s1605, 289 [#allocation2]
        %v1999 = vld [vmem:[%s1998] ss:$2 sm:$0xff]
        %s2000 = scalar_lea.vmem %s1605, 337 [#allocation2]
        %v2001 = vld [vmem:[%s2000] ss:$2 sm:$0xff]
        %v2002 = vpack.c.bf16 %v1987, %v1987
        %v2003 = vpack.c.bf16 %v1989, %v1989
        %v2004 = vpack.c.bf16 %v1991, %v1991
        %v2005 = vpack.c.bf16 %v1993, %v1993
        %v2006 = vpack.c.bf16 %v1995, %v1995
        %v2007 = vpack.c.bf16 %v1997, %v1997
        %v2008 = vpack.c.bf16 %v1999, %v1999
        %v2009 = vpack.c.bf16 %v2001, %v2001
        %s2010 = scalar_lea.vmem %s1, 8
        %v2011 = vld [vmem:[%s2010] sm:$0x3]
        %v2013 = vsel %vm401, %v2002, 0
        %v2016 = vsel %vm532, %v2011, 0
        %2018 = vmatprep.subr.bf16.mxu0 0
        %2019 = vmatpush1.bf16.msra.mxu0 %v2016
        %2020 = vmatprep.subr.bf16.mxu0 0
        %2021 = vmatpush1.bf16.msra.mxu0 0
        %2022 = vmatprep.subr.bf16.mxu0 0
        %2023 = vmatpush1.bf16.msra.mxu0 0
        %2024 = vmatprep.subr.bf16.mxu0 0
        %2025 = vmatpush1.bf16.msra.mxu0 0
        %2026 = vmatprep.subr.bf16.mxu0 0
        %2027 = vmatpush1.bf16.msra.mxu0 0
        %2028 = vmatprep.subr.bf16.mxu0 0
        %2029 = vmatpush1.bf16.msra.mxu0 0
        %2030 = vmatprep.subr.bf16.mxu0 0
        %2031 = vmatpush1.bf16.msra.mxu0 0
        %2032 = vmatprep.subr.bf16.mxu0 0
        %2033 = vmatpush1.bf16.msra.mxu0 0
        %2034 = vmatprep.subr.bf16.mxu0 0
        %2035 = vmatpush1.bf16.msra.mxu0 0
        %2036 = vmatprep.subr.bf16.mxu0 0
        %2037 = vmatpush1.bf16.msra.mxu0 0
        %2038 = vmatprep.subr.bf16.mxu0 0
        %2039 = vmatpush1.bf16.msra.mxu0 0
        %2040 = vmatprep.subr.bf16.mxu0 0
        %2041 = vmatpush1.bf16.msra.mxu0 0
        %2042 = vmatprep.subr.bf16.mxu0 0
        %2043 = vmatpush1.bf16.msra.mxu0 0
        %2044 = vmatprep.subr.bf16.mxu0 0
        %2045 = vmatpush1.bf16.msra.mxu0 0
        %2046 = vmatprep.subr.bf16.mxu0 0
        %2047 = vmatpush1.bf16.msra.mxu0 0
        %2048 = vmatprep.subr.bf16.mxu0 0
        %2049 = vmatpush1.bf16.msra.mxu0 0
        %2050 = vmatprep.mubr.bf16.mxu0 0
        %2051 = vmatmul.mubr.bf16.gmra.mrb[0].mxu0 %v2013
        %v2052 = vpop.f32.mrb[0].mxu0
        %v2053 = vadd.f32 0.0, %v2052
        %v2054 = vpop.f32.mrb[0].mxu0
        %v2055 = vpop.f32.mrb[0].mxu0
        %v2056 = vpop.f32.mrb[0].mxu0
        %2057 = vdwg.mxu0
        %v2059 = vsel %vm401, %v2003, 0
        %2061 = vmatprep.subr.bf16.mxu0 0
        %2062 = vmatpush1.bf16.msra.mxu0 %v2016
        %2063 = vmatprep.subr.bf16.mxu0 0
        %2064 = vmatpush1.bf16.msra.mxu0 0
        %2065 = vmatprep.subr.bf16.mxu0 0
        %2066 = vmatpush1.bf16.msra.mxu0 0
        %2067 = vmatprep.subr.bf16.mxu0 0
        %2068 = vmatpush1.bf16.msra.mxu0 0
        %2069 = vmatprep.subr.bf16.mxu0 0
        %2070 = vmatpush1.bf16.msra.mxu0 0
        %2071 = vmatprep.subr.bf16.mxu0 0
        %2072 = vmatpush1.bf16.msra.mxu0 0
        %2073 = vmatprep.subr.bf16.mxu0 0
        %2074 = vmatpush1.bf16.msra.mxu0 0
        %2075 = vmatprep.subr.bf16.mxu0 0
        %2076 = vmatpush1.bf16.msra.mxu0 0
        %2077 = vmatprep.subr.bf16.mxu0 0
        %2078 = vmatpush1.bf16.msra.mxu0 0
        %2079 = vmatprep.subr.bf16.mxu0 0
        %2080 = vmatpush1.bf16.msra.mxu0 0
        %2081 = vmatprep.subr.bf16.mxu0 0
        %2082 = vmatpush1.bf16.msra.mxu0 0
        %2083 = vmatprep.subr.bf16.mxu0 0
        %2084 = vmatpush1.bf16.msra.mxu0 0
        %2085 = vmatprep.subr.bf16.mxu0 0
        %2086 = vmatpush1.bf16.msra.mxu0 0
        %2087 = vmatprep.subr.bf16.mxu0 0
        %2088 = vmatpush1.bf16.msra.mxu0 0
        %2089 = vmatprep.subr.bf16.mxu0 0
        %2090 = vmatpush1.bf16.msra.mxu0 0
        %2091 = vmatprep.subr.bf16.mxu0 0
        %2092 = vmatpush1.bf16.msra.mxu0 0
        %2093 = vmatprep.mubr.bf16.mxu0 0
        %2094 = vmatmul.mubr.bf16.gmra.mrb[0].mxu0 %v2059
        %v2095 = vpop.f32.mrb[0].mxu0
        %v2096 = vadd.f32 0.0, %v2095
        %v2097 = vpop.f32.mrb[0].mxu0
        %v2098 = vpop.f32.mrb[0].mxu0
        %v2099 = vpop.f32.mrb[0].mxu0
        %2100 = vdwg.mxu0
        %v2102 = vsel %vm401, %v2004, 0
        %2104 = vmatprep.subr.bf16.mxu0 0
        %2105 = vmatpush1.bf16.msra.mxu0 %v2016
        %2106 = vmatprep.subr.bf16.mxu0 0
        %2107 = vmatpush1.bf16.msra.mxu0 0
        %2108 = vmatprep.subr.bf16.mxu0 0
        %2109 = vmatpush1.bf16.msra.mxu0 0
        %2110 = vmatprep.subr.bf16.mxu0 0
        %2111 = vmatpush1.bf16.msra.mxu0 0
        %2112 = vmatprep.subr.bf16.mxu0 0
        %2113 = vmatpush1.bf16.msra.mxu0 0
        %2114 = vmatprep.subr.bf16.mxu0 0
        %2115 = vmatpush1.bf16.msra.mxu0 0
        %2116 = vmatprep.subr.bf16.mxu0 0
        %2117 = vmatpush1.bf16.msra.mxu0 0
        %2118 = vmatprep.subr.bf16.mxu0 0
        %2119 = vmatpush1.bf16.msra.mxu0 0
        %2120 = vmatprep.subr.bf16.mxu0 0
        %2121 = vmatpush1.bf16.msra.mxu0 0
        %2122 = vmatprep.subr.bf16.mxu0 0
        %2123 = vmatpush1.bf16.msra.mxu0 0
        %2124 = vmatprep.subr.bf16.mxu0 0
        %2125 = vmatpush1.bf16.msra.mxu0 0
        %2126 = vmatprep.subr.bf16.mxu0 0
        %2127 = vmatpush1.bf16.msra.mxu0 0
        %2128 = vmatprep.subr.bf16.mxu0 0
        %2129 = vmatpush1.bf16.msra.mxu0 0
        %2130 = vmatprep.subr.bf16.mxu0 0
        %2131 = vmatpush1.bf16.msra.mxu0 0
        %2132 = vmatprep.subr.bf16.mxu0 0
        %2133 = vmatpush1.bf16.msra.mxu0 0
        %2134 = vmatprep.subr.bf16.mxu0 0
        %2135 = vmatpush1.bf16.msra.mxu0 0
        %2136 = vmatprep.mubr.bf16.mxu0 0
        %2137 = vmatmul.mubr.bf16.gmra.mrb[0].mxu0 %v2102
        %v2138 = vpop.f32.mrb[0].mxu0
        %v2139 = vadd.f32 0.0, %v2138
        %v2140 = vpop.f32.mrb[0].mxu0
        %v2141 = vpop.f32.mrb[0].mxu0
        %v2142 = vpop.f32.mrb[0].mxu0
        %2143 = vdwg.mxu0
        %v2145 = vsel %vm401, %v2005, 0
        %2147 = vmatprep.subr.bf16.mxu0 0
        %2148 = vmatpush1.bf16.msra.mxu0 %v2016
        %2149 = vmatprep.subr.bf16.mxu0 0
        %2150 = vmatpush1.bf16.msra.mxu0 0
        %2151 = vmatprep.subr.bf16.mxu0 0
        %2152 = vmatpush1.bf16.msra.mxu0 0
        %2153 = vmatprep.subr.bf16.mxu0 0
        %2154 = vmatpush1.bf16.msra.mxu0 0
        %2155 = vmatprep.subr.bf16.mxu0 0
        %2156 = vmatpush1.bf16.msra.mxu0 0
        %2157 = vmatprep.subr.bf16.mxu0 0
        %2158 = vmatpush1.bf16.msra.mxu0 0
        %2159 = vmatprep.subr.bf16.mxu0 0
        %2160 = vmatpush1.bf16.msra.mxu0 0
        %2161 = vmatprep.subr.bf16.mxu0 0
        %2162 = vmatpush1.bf16.msra.mxu0 0
        %2163 = vmatprep.subr.bf16.mxu0 0
        %2164 = vmatpush1.bf16.msra.mxu0 0
        %2165 = vmatprep.subr.bf16.mxu0 0
        %2166 = vmatpush1.bf16.msra.mxu0 0
        %2167 = vmatprep.subr.bf16.mxu0 0
        %2168 = vmatpush1.bf16.msra.mxu0 0
        %2169 = vmatprep.subr.bf16.mxu0 0
        %2170 = vmatpush1.bf16.msra.mxu0 0
        %2171 = vmatprep.subr.bf16.mxu0 0
        %2172 = vmatpush1.bf16.msra.mxu0 0
        %2173 = vmatprep.subr.bf16.mxu0 0
        %2174 = vmatpush1.bf16.msra.mxu0 0
        %2175 = vmatprep.subr.bf16.mxu0 0
        %2176 = vmatpush1.bf16.msra.mxu0 0
        %2177 = vmatprep.subr.bf16.mxu0 0
        %2178 = vmatpush1.bf16.msra.mxu0 0
        %2179 = vmatprep.mubr.bf16.mxu0 0
        %2180 = vmatmul.mubr.bf16.gmra.mrb[0].mxu0 %v2145
        %v2181 = vpop.f32.mrb[0].mxu0
        %v2182 = vadd.f32 0.0, %v2181
        %v2183 = vpop.f32.mrb[0].mxu0
        %v2184 = vpop.f32.mrb[0].mxu0
        %v2185 = vpop.f32.mrb[0].mxu0
        %2186 = vdwg.mxu0
        %v2188 = vsel %vm401, %v2006, 0
        %2190 = vmatprep.subr.bf16.mxu0 0
        %2191 = vmatpush1.bf16.msra.mxu0 %v2016
        %2192 = vmatprep.subr.bf16.mxu0 0
        %2193 = vmatpush1.bf16.msra.mxu0 0
        %2194 = vmatprep.subr.bf16.mxu0 0
        %2195 = vmatpush1.bf16.msra.mxu0 0
        %2196 = vmatprep.subr.bf16.mxu0 0
        %2197 = vmatpush1.bf16.msra.mxu0 0
        %2198 = vmatprep.subr.bf16.mxu0 0
        %2199 = vmatpush1.bf16.msra.mxu0 0
        %2200 = vmatprep.subr.bf16.mxu0 0
        %2201 = vmatpush1.bf16.msra.mxu0 0
        %2202 = vmatprep.subr.bf16.mxu0 0
        %2203 = vmatpush1.bf16.msra.mxu0 0
        %2204 = vmatprep.subr.bf16.mxu0 0
        %2205 = vmatpush1.bf16.msra.mxu0 0
        %2206 = vmatprep.subr.bf16.mxu0 0
        %2207 = vmatpush1.bf16.msra.mxu0 0
        %2208 = vmatprep.subr.bf16.mxu0 0
        %2209 = vmatpush1.bf16.msra.mxu0 0
        %2210 = vmatprep.subr.bf16.mxu0 0
        %2211 = vmatpush1.bf16.msra.mxu0 0
        %2212 = vmatprep.subr.bf16.mxu0 0
        %2213 = vmatpush1.bf16.msra.mxu0 0
        %2214 = vmatprep.subr.bf16.mxu0 0
        %2215 = vmatpush1.bf16.msra.mxu0 0
        %2216 = vmatprep.subr.bf16.mxu0 0
        %2217 = vmatpush1.bf16.msra.mxu0 0
        %2218 = vmatprep.subr.bf16.mxu0 0
        %2219 = vmatpush1.bf16.msra.mxu0 0
        %2220 = vmatprep.subr.bf16.mxu0 0
        %2221 = vmatpush1.bf16.msra.mxu0 0
        %2222 = vmatprep.mubr.bf16.mxu0 0
        %2223 = vmatmul.mubr.bf16.gmra.mrb[0].mxu0 %v2188
        %v2224 = vpop.f32.mrb[0].mxu0
        %v2225 = vadd.f32 0.0, %v2224
        %v2226 = vpop.f32.mrb[0].mxu0
        %v2227 = vpop.f32.mrb[0].mxu0
        %v2228 = vpop.f32.mrb[0].mxu0
        %2229 = vdwg.mxu0
        %v2231 = vsel %vm401, %v2007, 0
        %2233 = vmatprep.subr.bf16.mxu0 0
        %2234 = vmatpush1.bf16.msra.mxu0 %v2016
        %2235 = vmatprep.subr.bf16.mxu0 0
        %2236 = vmatpush1.bf16.msra.mxu0 0
        %2237 = vmatprep.subr.bf16.mxu0 0
        %2238 = vmatpush1.bf16.msra.mxu0 0
        %2239 = vmatprep.subr.bf16.mxu0 0
        %2240 = vmatpush1.bf16.msra.mxu0 0
        %2241 = vmatprep.subr.bf16.mxu0 0
        %2242 = vmatpush1.bf16.msra.mxu0 0
        %2243 = vmatprep.subr.bf16.mxu0 0
        %2244 = vmatpush1.bf16.msra.mxu0 0
        %2245 = vmatprep.subr.bf16.mxu0 0
        %2246 = vmatpush1.bf16.msra.mxu0 0
        %2247 = vmatprep.subr.bf16.mxu0 0
        %2248 = vmatpush1.bf16.msra.mxu0 0
        %2249 = vmatprep.subr.bf16.mxu0 0
        %2250 = vmatpush1.bf16.msra.mxu0 0
        %2251 = vmatprep.subr.bf16.mxu0 0
        %2252 = vmatpush1.bf16.msra.mxu0 0
        %2253 = vmatprep.subr.bf16.mxu0 0
        %2254 = vmatpush1.bf16.msra.mxu0 0
        %2255 = vmatprep.subr.bf16.mxu0 0
        %2256 = vmatpush1.bf16.msra.mxu0 0
        %2257 = vmatprep.subr.bf16.mxu0 0
        %2258 = vmatpush1.bf16.msra.mxu0 0
        %2259 = vmatprep.subr.bf16.mxu0 0
        %2260 = vmatpush1.bf16.msra.mxu0 0
        %2261 = vmatprep.subr.bf16.mxu0 0
        %2262 = vmatpush1.bf16.msra.mxu0 0
        %2263 = vmatprep.subr.bf16.mxu0 0
        %2264 = vmatpush1.bf16.msra.mxu0 0
        %2265 = vmatprep.mubr.bf16.mxu0 0
        %2266 = vmatmul.mubr.bf16.gmra.mrb[0].mxu0 %v2231
        %v2267 = vpop.f32.mrb[0].mxu0
        %v2268 = vadd.f32 0.0, %v2267
        %v2269 = vpop.f32.mrb[0].mxu0
        %v2270 = vpop.f32.mrb[0].mxu0
        %v2271 = vpop.f32.mrb[0].mxu0
        %2272 = vdwg.mxu0
        %v2274 = vsel %vm401, %v2008, 0
        %2276 = vmatprep.subr.bf16.mxu0 0
        %2277 = vmatpush1.bf16.msra.mxu0 %v2016
        %2278 = vmatprep.subr.bf16.mxu0 0
        %2279 = vmatpush1.bf16.msra.mxu0 0
        %2280 = vmatprep.subr.bf16.mxu0 0
        %2281 = vmatpush1.bf16.msra.mxu0 0
        %2282 = vmatprep.subr.bf16.mxu0 0
        %2283 = vmatpush1.bf16.msra.mxu0 0
        %2284 = vmatprep.subr.bf16.mxu0 0
        %2285 = vmatpush1.bf16.msra.mxu0 0
        %2286 = vmatprep.subr.bf16.mxu0 0
        %2287 = vmatpush1.bf16.msra.mxu0 0
        %2288 = vmatprep.subr.bf16.mxu0 0
        %2289 = vmatpush1.bf16.msra.mxu0 0
        %2290 = vmatprep.subr.bf16.mxu0 0
        %2291 = vmatpush1.bf16.msra.mxu0 0
        %2292 = vmatprep.subr.bf16.mxu0 0
        %2293 = vmatpush1.bf16.msra.mxu0 0
        %2294 = vmatprep.subr.bf16.mxu0 0
        %2295 = vmatpush1.bf16.msra.mxu0 0
        %2296 = vmatprep.subr.bf16.mxu0 0
        %2297 = vmatpush1.bf16.msra.mxu0 0
        %2298 = vmatprep.subr.bf16.mxu0 0
        %2299 = vmatpush1.bf16.msra.mxu0 0
        %2300 = vmatprep.subr.bf16.mxu0 0
        %2301 = vmatpush1.bf16.msra.mxu0 0
        %2302 = vmatprep.subr.bf16.mxu0 0
        %2303 = vmatpush1.bf16.msra.mxu0 0
        %2304 = vmatprep.subr.bf16.mxu0 0
        %2305 = vmatpush1.bf16.msra.mxu0 0
        %2306 = vmatprep.subr.bf16.mxu0 0
        %2307 = vmatpush1.bf16.msra.mxu0 0
        %2308 = vmatprep.mubr.bf16.mxu0 0
        %2309 = vmatmul.mubr.bf16.gmra.mrb[0].mxu0 %v2274
        %v2310 = vpop.f32.mrb[0].mxu0
        %v2311 = vadd.f32 0.0, %v2310
        %v2312 = vpop.f32.mrb[0].mxu0
        %v2313 = vpop.f32.mrb[0].mxu0
        %v2314 = vpop.f32.mrb[0].mxu0
        %2315 = vdwg.mxu0
        %v2317 = vsel %vm401, %v2009, 0
        %2319 = vmatprep.subr.bf16.mxu0 0
        %2320 = vmatpush1.bf16.msra.mxu0 %v2016
        %2321 = vmatprep.subr.bf16.mxu0 0
        %2322 = vmatpush1.bf16.msra.mxu0 0
        %2323 = vmatprep.subr.bf16.mxu0 0
        %2324 = vmatpush1.bf16.msra.mxu0 0
        %2325 = vmatprep.subr.bf16.mxu0 0
        %2326 = vmatpush1.bf16.msra.mxu0 0
        %2327 = vmatprep.subr.bf16.mxu0 0
        %2328 = vmatpush1.bf16.msra.mxu0 0
        %2329 = vmatprep.subr.bf16.mxu0 0
        %2330 = vmatpush1.bf16.msra.mxu0 0
        %2331 = vmatprep.subr.bf16.mxu0 0
        %2332 = vmatpush1.bf16.msra.mxu0 0
        %2333 = vmatprep.subr.bf16.mxu0 0
        %2334 = vmatpush1.bf16.msra.mxu0 0
        %2335 = vmatprep.subr.bf16.mxu0 0
        %2336 = vmatpush1.bf16.msra.mxu0 0
        %2337 = vmatprep.subr.bf16.mxu0 0
        %2338 = vmatpush1.bf16.msra.mxu0 0
        %2339 = vmatprep.subr.bf16.mxu0 0
        %2340 = vmatpush1.bf16.msra.mxu0 0
        %2341 = vmatprep.subr.bf16.mxu0 0
        %2342 = vmatpush1.bf16.msra.mxu0 0
        %2343 = vmatprep.subr.bf16.mxu0 0
        %2344 = vmatpush1.bf16.msra.mxu0 0
        %2345 = vmatprep.subr.bf16.mxu0 0
        %2346 = vmatpush1.bf16.msra.mxu0 0
        %2347 = vmatprep.subr.bf16.mxu0 0
        %2348 = vmatpush1.bf16.msra.mxu0 0
        %2349 = vmatprep.subr.bf16.mxu0 0
        %2350 = vmatpush1.bf16.msra.mxu0 0
        %2351 = vmatprep.mubr.bf16.mxu0 0
        %2352 = vmatmul.mubr.bf16.gmra.mrb[0].mxu0 %v2317
        %v2353 = vpop.f32.mrb[0].mxu0
        %v2354 = vadd.f32 0.0, %v2353
        %v2355 = vpop.f32.mrb[0].mxu0
        %v2356 = vpop.f32.mrb[0].mxu0
        %v2357 = vpop.f32.mrb[0].mxu0
        %2358 = vdwg.mxu0
        %v2359 = vadd.f32 %v1978, %v2053
        %v2360 = vadd.f32 %v1979, %v2096
        %v2361 = vadd.f32 %v1980, %v2139
        %v2362 = vadd.f32 %v1981, %v2182
        %v2363 = vadd.f32 %v1982, %v2225
        %v2364 = vadd.f32 %v1983, %v2268
        %v2365 = vadd.f32 %v1984, %v2311
        %v2366 = vadd.f32 %v1985, %v2354
        %s2367 = scalar_lea.vmem %s1605, 2 [#allocation2]
        %v2368 = vld [vmem:[%s2367] ss:$2 sm:$0xff]
        %s2369 = scalar_lea.vmem %s1605, 50 [#allocation2]
        %v2370 = vld [vmem:[%s2369] ss:$2 sm:$0xff]
        %s2371 = scalar_lea.vmem %s1605, 98 [#allocation2]
        %v2372 = vld [vmem:[%s2371] ss:$2 sm:$0xff]
        %s2373 = scalar_lea.vmem %s1605, 146 [#allocation2]
        %v2374 = vld [vmem:[%s2373] ss:$2 sm:$0xff]
        %s2375 = scalar_lea.vmem %s1605, 194 [#allocation2]
        %v2376 = vld [vmem:[%s2375] ss:$2 sm:$0xff]
        %s2377 = scalar_lea.vmem %s1605, 242 [#allocation2]
        %v2378 = vld [vmem:[%s2377] ss:$2 sm:$0xff]
        %s2379 = scalar_lea.vmem %s1605, 290 [#allocation2]
        %v2380 = vld [vmem:[%s2379] ss:$2 sm:$0xff]
        %s2381 = scalar_lea.vmem %s1605, 338 [#allocation2]
        %v2382 = vld [vmem:[%s2381] ss:$2 sm:$0xff]
        %v2383 = vpack.c.bf16 %v2368, %v2368
        %v2384 = vpack.c.bf16 %v2370, %v2370
        %v2385 = vpack.c.bf16 %v2372, %v2372
        %v2386 = vpack.c.bf16 %v2374, %v2374
        %v2387 = vpack.c.bf16 %v2376, %v2376
        %v2388 = vpack.c.bf16 %v2378, %v2378
        %v2389 = vpack.c.bf16 %v2380, %v2380
        %v2390 = vpack.c.bf16 %v2382, %v2382
        %s2391 = scalar_lea.vmem %s1, 10
        %v2392 = vld [vmem:[%s2391] sm:$0x3]
        %v2394 = vsel %vm401, %v2383, 0
        %v2397 = vsel %vm532, %v2392, 0
        %2399 = vmatprep.subr.bf16.mxu0 0
        %2400 = vmatpush1.bf16.msra.mxu0 %v2397
        %2401 = vmatprep.subr.bf16.mxu0 0
        %2402 = vmatpush1.bf16.msra.mxu0 0
        %2403 = vmatprep.subr.bf16.mxu0 0
        %2404 = vmatpush1.bf16.msra.mxu0 0
        %2405 = vmatprep.subr.bf16.mxu0 0
        %2406 = vmatpush1.bf16.msra.mxu0 0
        %2407 = vmatprep.subr.bf16.mxu0 0
        %2408 = vmatpush1.bf16.msra.mxu0 0
        %2409 = vmatprep.subr.bf16.mxu0 0
        %2410 = vmatpush1.bf16.msra.mxu0 0
        %2411 = vmatprep.subr.bf16.mxu0 0
        %2412 = vmatpush1.bf16.msra.mxu0 0
        %2413 = vmatprep.subr.bf16.mxu0 0
        %2414 = vmatpush1.bf16.msra.mxu0 0
        %2415 = vmatprep.subr.bf16.mxu0 0
        %2416 = vmatpush1.bf16.msra.mxu0 0
        %2417 = vmatprep.subr.bf16.mxu0 0
        %2418 = vmatpush1.bf16.msra.mxu0 0
        %2419 = vmatprep.subr.bf16.mxu0 0
        %2420 = vmatpush1.bf16.msra.mxu0 0
        %2421 = vmatprep.subr.bf16.mxu0 0
        %2422 = vmatpush1.bf16.msra.mxu0 0
        %2423 = vmatprep.subr.bf16.mxu0 0
        %2424 = vmatpush1.bf16.msra.mxu0 0
        %2425 = vmatprep.subr.bf16.mxu0 0
        %2426 = vmatpush1.bf16.msra.mxu0 0
        %2427 = vmatprep.subr.bf16.mxu0 0
        %2428 = vmatpush1.bf16.msra.mxu0 0
        %2429 = vmatprep.subr.bf16.mxu0 0
        %2430 = vmatpush1.bf16.msra.mxu0 0
        %2431 = vmatprep.mubr.bf16.mxu0 0
        %2432 = vmatmul.mubr.bf16.gmra.mrb[0].mxu0 %v2394
        %v2433 = vpop.f32.mrb[0].mxu0
        %v2434 = vadd.f32 0.0, %v2433
        %v2435 = vpop.f32.mrb[0].mxu0
        %v2436 = vpop.f32.mrb[0].mxu0
        %v2437 = vpop.f32.mrb[0].mxu0
        %2438 = vdwg.mxu0
        %v2440 = vsel %vm401, %v2384, 0
        %2442 = vmatprep.subr.bf16.mxu0 0
        %2443 = vmatpush1.bf16.msra.mxu0 %v2397
        %2444 = vmatprep.subr.bf16.mxu0 0
        %2445 = vmatpush1.bf16.msra.mxu0 0
        %2446 = vmatprep.subr.bf16.mxu0 0
        %2447 = vmatpush1.bf16.msra.mxu0 0
        %2448 = vmatprep.subr.bf16.mxu0 0
        %2449 = vmatpush1.bf16.msra.mxu0 0
        %2450 = vmatprep.subr.bf16.mxu0 0
        %2451 = vmatpush1.bf16.msra.mxu0 0
        %2452 = vmatprep.subr.bf16.mxu0 0
        %2453 = vmatpush1.bf16.msra.mxu0 0
        %2454 = vmatprep.subr.bf16.mxu0 0
        %2455 = vmatpush1.bf16.msra.mxu0 0
        %2456 = vmatprep.subr.bf16.mxu0 0
        %2457 = vmatpush1.bf16.msra.mxu0 0
        %2458 = vmatprep.subr.bf16.mxu0 0
        %2459 = vmatpush1.bf16.msra.mxu0 0
        %2460 = vmatprep.subr.bf16.mxu0 0
        %2461 = vmatpush1.bf16.msra.mxu0 0
        %2462 = vmatprep.subr.bf16.mxu0 0
        %2463 = vmatpush1.bf16.msra.mxu0 0
        %2464 = vmatprep.subr.bf16.mxu0 0
        %2465 = vmatpush1.bf16.msra.mxu0 0
        %2466 = vmatprep.subr.bf16.mxu0 0
        %2467 = vmatpush1.bf16.msra.mxu0 0
        %2468 = vmatprep.subr.bf16.mxu0 0
        %2469 = vmatpush1.bf16.msra.mxu0 0
        %2470 = vmatprep.subr.bf16.mxu0 0
        %2471 = vmatpush1.bf16.msra.mxu0 0
        %2472 = vmatprep.subr.bf16.mxu0 0
        %2473 = vmatpush1.bf16.msra.mxu0 0
        %2474 = vmatprep.mubr.bf16.mxu0 0
        %2475 = vmatmul.mubr.bf16.gmra.mrb[0].mxu0 %v2440
        %v2476 = vpop.f32.mrb[0].mxu0
        %v2477 = vadd.f32 0.0, %v2476
        %v2478 = vpop.f32.mrb[0].mxu0
        %v2479 = vpop.f32.mrb[0].mxu0
        %v2480 = vpop.f32.mrb[0].mxu0
        %2481 = vdwg.mxu0
        %v2483 = vsel %vm401, %v2385, 0
        %2485 = vmatprep.subr.bf16.mxu0 0
        %2486 = vmatpush1.bf16.msra.mxu0 %v2397
        %2487 = vmatprep.subr.bf16.mxu0 0
        %2488 = vmatpush1.bf16.msra.mxu0 0
        %2489 = vmatprep.subr.bf16.mxu0 0
        %2490 = vmatpush1.bf16.msra.mxu0 0
        %2491 = vmatprep.subr.bf16.mxu0 0
        %2492 = vmatpush1.bf16.msra.mxu0 0
        %2493 = vmatprep.subr.bf16.mxu0 0
        %2494 = vmatpush1.bf16.msra.mxu0 0
        %2495 = vmatprep.subr.bf16.mxu0 0
        %2496 = vmatpush1.bf16.msra.mxu0 0
        %2497 = vmatprep.subr.bf16.mxu0 0
        %2498 = vmatpush1.bf16.msra.mxu0 0
        %2499 = vmatprep.subr.bf16.mxu0 0
        %2500 = vmatpush1.bf16.msra.mxu0 0
        %2501 = vmatprep.subr.bf16.mxu0 0
        %2502 = vmatpush1.bf16.msra.mxu0 0
        %2503 = vmatprep.subr.bf16.mxu0 0
        %2504 = vmatpush1.bf16.msra.mxu0 0
        %2505 = vmatprep.subr.bf16.mxu0 0
        %2506 = vmatpush1.bf16.msra.mxu0 0
        %2507 = vmatprep.subr.bf16.mxu0 0
        %2508 = vmatpush1.bf16.msra.mxu0 0
        %2509 = vmatprep.subr.bf16.mxu0 0
        %2510 = vmatpush1.bf16.msra.mxu0 0
        %2511 = vmatprep.subr.bf16.mxu0 0
        %2512 = vmatpush1.bf16.msra.mxu0 0
        %2513 = vmatprep.subr.bf16.mxu0 0
        %2514 = vmatpush1.bf16.msra.mxu0 0
        %2515 = vmatprep.subr.bf16.mxu0 0
        %2516 = vmatpush1.bf16.msra.mxu0 0
        %2517 = vmatprep.mubr.bf16.mxu0 0
        %2518 = vmatmul.mubr.bf16.gmra.mrb[0].mxu0 %v2483
        %v2519 = vpop.f32.mrb[0].mxu0
        %v2520 = vadd.f32 0.0, %v2519
        %v2521 = vpop.f32.mrb[0].mxu0
        %v2522 = vpop.f32.mrb[0].mxu0
        %v2523 = vpop.f32.mrb[0].mxu0
        %2524 = vdwg.mxu0
        %v2526 = vsel %vm401, %v2386, 0
        %2528 = vmatprep.subr.bf16.mxu0 0
        %2529 = vmatpush1.bf16.msra.mxu0 %v2397
        %2530 = vmatprep.subr.bf16.mxu0 0
        %2531 = vmatpush1.bf16.msra.mxu0 0
        %2532 = vmatprep.subr.bf16.mxu0 0
        %2533 = vmatpush1.bf16.msra.mxu0 0
        %2534 = vmatprep.subr.bf16.mxu0 0
        %2535 = vmatpush1.bf16.msra.mxu0 0
        %2536 = vmatprep.subr.bf16.mxu0 0
        %2537 = vmatpush1.bf16.msra.mxu0 0
        %2538 = vmatprep.subr.bf16.mxu0 0
        %2539 = vmatpush1.bf16.msra.mxu0 0
        %2540 = vmatprep.subr.bf16.mxu0 0
        %2541 = vmatpush1.bf16.msra.mxu0 0
        %2542 = vmatprep.subr.bf16.mxu0 0
        %2543 = vmatpush1.bf16.msra.mxu0 0
        %2544 = vmatprep.subr.bf16.mxu0 0
        %2545 = vmatpush1.bf16.msra.mxu0 0
        %2546 = vmatprep.subr.bf16.mxu0 0
        %2547 = vmatpush1.bf16.msra.mxu0 0
        %2548 = vmatprep.subr.bf16.mxu0 0
        %2549 = vmatpush1.bf16.msra.mxu0 0
        %2550 = vmatprep.subr.bf16.mxu0 0
        %2551 = vmatpush1.bf16.msra.mxu0 0
        %2552 = vmatprep.subr.bf16.mxu0 0
        %2553 = vmatpush1.bf16.msra.mxu0 0
        %2554 = vmatprep.subr.bf16.mxu0 0
        %2555 = vmatpush1.bf16.msra.mxu0 0
        %2556 = vmatprep.subr.bf16.mxu0 0
        %2557 = vmatpush1.bf16.msra.mxu0 0
        %2558 = vmatprep.subr.bf16.mxu0 0
        %2559 = vmatpush1.bf16.msra.mxu0 0
        %2560 = vmatprep.mubr.bf16.mxu0 0
        %2561 = vmatmul.mubr.bf16.gmra.mrb[0].mxu0 %v2526
        %v2562 = vpop.f32.mrb[0].mxu0
        %v2563 = vadd.f32 0.0, %v2562
        %v2564 = vpop.f32.mrb[0].mxu0
        %v2565 = vpop.f32.mrb[0].mxu0
        %v2566 = vpop.f32.mrb[0].mxu0
        %2567 = vdwg.mxu0
        %v2569 = vsel %vm401, %v2387, 0
        %2571 = vmatprep.subr.bf16.mxu0 0
        %2572 = vmatpush1.bf16.msra.mxu0 %v2397
        %2573 = vmatprep.subr.bf16.mxu0 0
        %2574 = vmatpush1.bf16.msra.mxu0 0
        %2575 = vmatprep.subr.bf16.mxu0 0
        %2576 = vmatpush1.bf16.msra.mxu0 0
        %2577 = vmatprep.subr.bf16.mxu0 0
        %2578 = vmatpush1.bf16.msra.mxu0 0
        %2579 = vmatprep.subr.bf16.mxu0 0
        %2580 = vmatpush1.bf16.msra.mxu0 0
        %2581 = vmatprep.subr.bf16.mxu0 0
        %2582 = vmatpush1.bf16.msra.mxu0 0
        %2583 = vmatprep.subr.bf16.mxu0 0
        %2584 = vmatpush1.bf16.msra.mxu0 0
        %2585 = vmatprep.subr.bf16.mxu0 0
        %2586 = vmatpush1.bf16.msra.mxu0 0
        %2587 = vmatprep.subr.bf16.mxu0 0
        %2588 = vmatpush1.bf16.msra.mxu0 0
        %2589 = vmatprep.subr.bf16.mxu0 0
        %2590 = vmatpush1.bf16.msra.mxu0 0
        %2591 = vmatprep.subr.bf16.mxu0 0
        %2592 = vmatpush1.bf16.msra.mxu0 0
        %2593 = vmatprep.subr.bf16.mxu0 0
        %2594 = vmatpush1.bf16.msra.mxu0 0
        %2595 = vmatprep.subr.bf16.mxu0 0
        %2596 = vmatpush1.bf16.msra.mxu0 0
        %2597 = vmatprep.subr.bf16.mxu0 0
        %2598 = vmatpush1.bf16.msra.mxu0 0
        %2599 = vmatprep.subr.bf16.mxu0 0
        %2600 = vmatpush1.bf16.msra.mxu0 0
        %2601 = vmatprep.subr.bf16.mxu0 0
        %2602 = vmatpush1.bf16.msra.mxu0 0
        %2603 = vmatprep.mubr.bf16.mxu0 0
        %2604 = vmatmul.mubr.bf16.gmra.mrb[0].mxu0 %v2569
        %v2605 = vpop.f32.mrb[0].mxu0
        %v2606 = vadd.f32 0.0, %v2605
        %v2607 = vpop.f32.mrb[0].mxu0
        %v2608 = vpop.f32.mrb[0].mxu0
        %v2609 = vpop.f32.mrb[0].mxu0
        %2610 = vdwg.mxu0
        %v2612 = vsel %vm401, %v2388, 0
        %2614 = vmatprep.subr.bf16.mxu0 0
        %2615 = vmatpush1.bf16.msra.mxu0 %v2397
        %2616 = vmatprep.subr.bf16.mxu0 0
        %2617 = vmatpush1.bf16.msra.mxu0 0
        %2618 = vmatprep.subr.bf16.mxu0 0
        %2619 = vmatpush1.bf16.msra.mxu0 0
        %2620 = vmatprep.subr.bf16.mxu0 0
        %2621 = vmatpush1.bf16.msra.mxu0 0
        %2622 = vmatprep.subr.bf16.mxu0 0
        %2623 = vmatpush1.bf16.msra.mxu0 0
        %2624 = vmatprep.subr.bf16.mxu0 0
        %2625 = vmatpush1.bf16.msra.mxu0 0
        %2626 = vmatprep.subr.bf16.mxu0 0
        %2627 = vmatpush1.bf16.msra.mxu0 0
        %2628 = vmatprep.subr.bf16.mxu0 0
        %2629 = vmatpush1.bf16.msra.mxu0 0
        %2630 = vmatprep.subr.bf16.mxu0 0
        %2631 = vmatpush1.bf16.msra.mxu0 0
        %2632 = vmatprep.subr.bf16.mxu0 0
        %2633 = vmatpush1.bf16.msra.mxu0 0
        %2634 = vmatprep.subr.bf16.mxu0 0
        %2635 = vmatpush1.bf16.msra.mxu0 0
        %2636 = vmatprep.subr.bf16.mxu0 0
        %2637 = vmatpush1.bf16.msra.mxu0 0
        %2638 = vmatprep.subr.bf16.mxu0 0
        %2639 = vmatpush1.bf16.msra.mxu0 0
        %2640 = vmatprep.subr.bf16.mxu0 0
        %2641 = vmatpush1.bf16.msra.mxu0 0
        %2642 = vmatprep.subr.bf16.mxu0 0
        %2643 = vmatpush1.bf16.msra.mxu0 0
        %2644 = vmatprep.subr.bf16.mxu0 0
        %2645 = vmatpush1.bf16.msra.mxu0 0
        %2646 = vmatprep.mubr.bf16.mxu0 0
        %2647 = vmatmul.mubr.bf16.gmra.mrb[0].mxu0 %v2612
        %v2648 = vpop.f32.mrb[0].mxu0
        %v2649 = vadd.f32 0.0, %v2648
        %v2650 = vpop.f32.mrb[0].mxu0
        %v2651 = vpop.f32.mrb[0].mxu0
        %v2652 = vpop.f32.mrb[0].mxu0
        %2653 = vdwg.mxu0
        %v2655 = vsel %vm401, %v2389, 0
        %2657 = vmatprep.subr.bf16.mxu0 0
        %2658 = vmatpush1.bf16.msra.mxu0 %v2397
        %2659 = vmatprep.subr.bf16.mxu0 0
        %2660 = vmatpush1.bf16.msra.mxu0 0
        %2661 = vmatprep.subr.bf16.mxu0 0
        %2662 = vmatpush1.bf16.msra.mxu0 0
        %2663 = vmatprep.subr.bf16.mxu0 0
        %2664 = vmatpush1.bf16.msra.mxu0 0
        %2665 = vmatprep.subr.bf16.mxu0 0
        %2666 = vmatpush1.bf16.msra.mxu0 0
        %2667 = vmatprep.subr.bf16.mxu0 0
        %2668 = vmatpush1.bf16.msra.mxu0 0
        %2669 = vmatprep.subr.bf16.mxu0 0
        %2670 = vmatpush1.bf16.msra.mxu0 0
        %2671 = vmatprep.subr.bf16.mxu0 0
        %2672 = vmatpush1.bf16.msra.mxu0 0
        %2673 = vmatprep.subr.bf16.mxu0 0
        %2674 = vmatpush1.bf16.msra.mxu0 0
        %2675 = vmatprep.subr.bf16.mxu0 0
        %2676 = vmatpush1.bf16.msra.mxu0 0
        %2677 = vmatprep.subr.bf16.mxu0 0
        %2678 = vmatpush1.bf16.msra.mxu0 0
        %2679 = vmatprep.subr.bf16.mxu0 0
        %2680 = vmatpush1.bf16.msra.mxu0 0
        %2681 = vmatprep.subr.bf16.mxu0 0
        %2682 = vmatpush1.bf16.msra.mxu0 0
        %2683 = vmatprep.subr.bf16.mxu0 0
        %2684 = vmatpush1.bf16.msra.mxu0 0
        %2685 = vmatprep.subr.bf16.mxu0 0
        %2686 = vmatpush1.bf16.msra.mxu0 0
        %2687 = vmatprep.subr.bf16.mxu0 0
        %2688 = vmatpush1.bf16.msra.mxu0 0
        %2689 = vmatprep.mubr.bf16.mxu0 0
        %2690 = vmatmul.mubr.bf16.gmra.mrb[0].mxu0 %v2655
        %v2691 = vpop.f32.mrb[0].mxu0
        %v2692 = vadd.f32 0.0, %v2691
        %v2693 = vpop.f32.mrb[0].mxu0
        %v2694 = vpop.f32.mrb[0].mxu0
        %v2695 = vpop.f32.mrb[0].mxu0
        %2696 = vdwg.mxu0
        %v2698 = vsel %vm401, %v2390, 0
        %2700 = vmatprep.subr.bf16.mxu0 0
        %2701 = vmatpush1.bf16.msra.mxu0 %v2397
        %2702 = vmatprep.subr.bf16.mxu0 0
        %2703 = vmatpush1.bf16.msra.mxu0 0
        %2704 = vmatprep.subr.bf16.mxu0 0
        %2705 = vmatpush1.bf16.msra.mxu0 0
        %2706 = vmatprep.subr.bf16.mxu0 0
        %2707 = vmatpush1.bf16.msra.mxu0 0
        %2708 = vmatprep.subr.bf16.mxu0 0
        %2709 = vmatpush1.bf16.msra.mxu0 0
        %2710 = vmatprep.subr.bf16.mxu0 0
        %2711 = vmatpush1.bf16.msra.mxu0 0
        %2712 = vmatprep.subr.bf16.mxu0 0
        %2713 = vmatpush1.bf16.msra.mxu0 0
        %2714 = vmatprep.subr.bf16.mxu0 0
        %2715 = vmatpush1.bf16.msra.mxu0 0
        %2716 = vmatprep.subr.bf16.mxu0 0
        %2717 = vmatpush1.bf16.msra.mxu0 0
        %2718 = vmatprep.subr.bf16.mxu0 0
        %2719 = vmatpush1.bf16.msra.mxu0 0
        %2720 = vmatprep.subr.bf16.mxu0 0
        %2721 = vmatpush1.bf16.msra.mxu0 0
        %2722 = vmatprep.subr.bf16.mxu0 0
        %2723 = vmatpush1.bf16.msra.mxu0 0
        %2724 = vmatprep.subr.bf16.mxu0 0
        %2725 = vmatpush1.bf16.msra.mxu0 0
        %2726 = vmatprep.subr.bf16.mxu0 0
        %2727 = vmatpush1.bf16.msra.mxu0 0
        %2728 = vmatprep.subr.bf16.mxu0 0
        %2729 = vmatpush1.bf16.msra.mxu0 0
        %2730 = vmatprep.subr.bf16.mxu0 0
        %2731 = vmatpush1.bf16.msra.mxu0 0
        %2732 = vmatprep.mubr.bf16.mxu0 0
        %2733 = vmatmul.mubr.bf16.gmra.mrb[0].mxu0 %v2698
        %v2734 = vpop.f32.mrb[0].mxu0
        %v2735 = vadd.f32 0.0, %v2734
        %v2736 = vpop.f32.mrb[0].mxu0
        %v2737 = vpop.f32.mrb[0].mxu0
        %v2738 = vpop.f32.mrb[0].mxu0
        %2739 = vdwg.mxu0
        %v2740 = vadd.f32 %v2359, %v2434
        %v2741 = vadd.f32 %v2360, %v2477
        %v2742 = vadd.f32 %v2361, %v2520
        %v2743 = vadd.f32 %v2362, %v2563
        %v2744 = vadd.f32 %v2363, %v2606
        %v2745 = vadd.f32 %v2364, %v2649
        %v2746 = vadd.f32 %v2365, %v2692
        %v2747 = vadd.f32 %v2366, %v2735
        %s2748 = scalar_lea.vmem [#allocation2], 48
        %v2749 = vld [vmem:[%s2748] ss:$2 sm:$0xff]
        %s2750 = scalar_lea.vmem %s2748, 48 [#allocation2]
        %v2751 = vld [vmem:[%s2750] ss:$2 sm:$0xff]
        %s2752 = scalar_lea.vmem %s2748, 96 [#allocation2]
        %v2753 = vld [vmem:[%s2752] ss:$2 sm:$0xff]
        %s2754 = scalar_lea.vmem %s2748, 144 [#allocation2]
        %v2755 = vld [vmem:[%s2754] ss:$2 sm:$0xff]
        %s2756 = scalar_lea.vmem %s2748, 192 [#allocation2]
        %v2757 = vld [vmem:[%s2756] ss:$2 sm:$0xff]
        %s2758 = scalar_lea.vmem %s2748, 240 [#allocation2]
        %v2759 = vld [vmem:[%s2758] ss:$2 sm:$0xff]
        %s2760 = scalar_lea.vmem %s2748, 288 [#allocation2]
        %v2761 = vld [vmem:[%s2760] ss:$2 sm:$0xff]
        %s2762 = scalar_lea.vmem %s2748, 336 [#allocation2]
        %v2763 = vld [vmem:[%s2762] ss:$2 sm:$0xff]
        %v2764 = vpack.c.bf16 %v2749, %v2749
        %v2765 = vpack.c.bf16 %v2751, %v2751
        %v2766 = vpack.c.bf16 %v2753, %v2753
        %v2767 = vpack.c.bf16 %v2755, %v2755
        %v2768 = vpack.c.bf16 %v2757, %v2757
        %v2769 = vpack.c.bf16 %v2759, %v2759
        %v2770 = vpack.c.bf16 %v2761, %v2761
        %v2771 = vpack.c.bf16 %v2763, %v2763
        %s2772 = scalar_lea.vmem %s1, 12
        %v2773 = vld [vmem:[%s2772] sm:$0x3]
        %v2775 = vsel %vm401, %v2764, 0
        %v2778 = vsel %vm532, %v2773, 0
        %2780 = vmatprep.subr.bf16.mxu0 0
        %2781 = vmatpush1.bf16.msra.mxu0 %v2778
        %2782 = vmatprep.subr.bf16.mxu0 0
        %2783 = vmatpush1.bf16.msra.mxu0 0
        %2784 = vmatprep.subr.bf16.mxu0 0
        %2785 = vmatpush1.bf16.msra.mxu0 0
        %2786 = vmatprep.subr.bf16.mxu0 0
        %2787 = vmatpush1.bf16.msra.mxu0 0
        %2788 = vmatprep.subr.bf16.mxu0 0
        %2789 = vmatpush1.bf16.msra.mxu0 0
        %2790 = vmatprep.subr.bf16.mxu0 0
        %2791 = vmatpush1.bf16.msra.mxu0 0
        %2792 = vmatprep.subr.bf16.mxu0 0
        %2793 = vmatpush1.bf16.msra.mxu0 0
        %2794 = vmatprep.subr.bf16.mxu0 0
        %2795 = vmatpush1.bf16.msra.mxu0 0
        %2796 = vmatprep.subr.bf16.mxu0 0
        %2797 = vmatpush1.bf16.msra.mxu0 0
        %2798 = vmatprep.subr.bf16.mxu0 0
        %2799 = vmatpush1.bf16.msra.mxu0 0
        %2800 = vmatprep.subr.bf16.mxu0 0
        %2801 = vmatpush1.bf16.msra.mxu0 0
        %2802 = vmatprep.subr.bf16.mxu0 0
        %2803 = vmatpush1.bf16.msra.mxu0 0
        %2804 = vmatprep.subr.bf16.mxu0 0
        %2805 = vmatpush1.bf16.msra.mxu0 0
        %2806 = vmatprep.subr.bf16.mxu0 0
        %2807 = vmatpush1.bf16.msra.mxu0 0
        %2808 = vmatprep.subr.bf16.mxu0 0
        %2809 = vmatpush1.bf16.msra.mxu0 0
        %2810 = vmatprep.subr.bf16.mxu0 0
        %2811 = vmatpush1.bf16.msra.mxu0 0
        %2812 = vmatprep.mubr.bf16.mxu0 0
        %2813 = vmatmul.mubr.bf16.gmra.mrb[0].mxu0 %v2775
        %v2814 = vpop.f32.mrb[0].mxu0
        %v2815 = vadd.f32 0.0, %v2814
        %v2816 = vpop.f32.mrb[0].mxu0
        %v2817 = vpop.f32.mrb[0].mxu0
        %v2818 = vpop.f32.mrb[0].mxu0
        %2819 = vdwg.mxu0
        %v2821 = vsel %vm401, %v2765, 0
        %2823 = vmatprep.subr.bf16.mxu0 0
        %2824 = vmatpush1.bf16.msra.mxu0 %v2778
        %2825 = vmatprep.subr.bf16.mxu0 0
        %2826 = vmatpush1.bf16.msra.mxu0 0
        %2827 = vmatprep.subr.bf16.mxu0 0
        %2828 = vmatpush1.bf16.msra.mxu0 0
        %2829 = vmatprep.subr.bf16.mxu0 0
        %2830 = vmatpush1.bf16.msra.mxu0 0
        %2831 = vmatprep.subr.bf16.mxu0 0
        %2832 = vmatpush1.bf16.msra.mxu0 0
        %2833 = vmatprep.subr.bf16.mxu0 0
        %2834 = vmatpush1.bf16.msra.mxu0 0
        %2835 = vmatprep.subr.bf16.mxu0 0
        %2836 = vmatpush1.bf16.msra.mxu0 0
        %2837 = vmatprep.subr.bf16.mxu0 0
        %2838 = vmatpush1.bf16.msra.mxu0 0
        %2839 = vmatprep.subr.bf16.mxu0 0
        %2840 = vmatpush1.bf16.msra.mxu0 0
        %2841 = vmatprep.subr.bf16.mxu0 0
        %2842 = vmatpush1.bf16.msra.mxu0 0
        %2843 = vmatprep.subr.bf16.mxu0 0
        %2844 = vmatpush1.bf16.msra.mxu0 0
        %2845 = vmatprep.subr.bf16.mxu0 0
        %2846 = vmatpush1.bf16.msra.mxu0 0
        %2847 = vmatprep.subr.bf16.mxu0 0
        %2848 = vmatpush1.bf16.msra.mxu0 0
        %2849 = vmatprep.subr.bf16.mxu0 0
        %2850 = vmatpush1.bf16.msra.mxu0 0
        %2851 = vmatprep.subr.bf16.mxu0 0
        %2852 = vmatpush1.bf16.msra.mxu0 0
        %2853 = vmatprep.subr.bf16.mxu0 0
        %2854 = vmatpush1.bf16.msra.mxu0 0
        %2855 = vmatprep.mubr.bf16.mxu0 0
        %2856 = vmatmul.mubr.bf16.gmra.mrb[0].mxu0 %v2821
        %v2857 = vpop.f32.mrb[0].mxu0
        %v2858 = vadd.f32 0.0, %v2857
        %v2859 = vpop.f32.mrb[0].mxu0
        %v2860 = vpop.f32.mrb[0].mxu0
        %v2861 = vpop.f32.mrb[0].mxu0
        %2862 = vdwg.mxu0
        %v2864 = vsel %vm401, %v2766, 0
        %2866 = vmatprep.subr.bf16.mxu0 0
        %2867 = vmatpush1.bf16.msra.mxu0 %v2778
        %2868 = vmatprep.subr.bf16.mxu0 0
        %2869 = vmatpush1.bf16.msra.mxu0 0
        %2870 = vmatprep.subr.bf16.mxu0 0
        %2871 = vmatpush1.bf16.msra.mxu0 0
        %2872 = vmatprep.subr.bf16.mxu0 0
        %2873 = vmatpush1.bf16.msra.mxu0 0
        %2874 = vmatprep.subr.bf16.mxu0 0
        %2875 = vmatpush1.bf16.msra.mxu0 0
        %2876 = vmatprep.subr.bf16.mxu0 0
        %2877 = vmatpush1.bf16.msra.mxu0 0
        %2878 = vmatprep.subr.bf16.mxu0 0
        %2879 = vmatpush1.bf16.msra.mxu0 0
        %2880 = vmatprep.subr.bf16.mxu0 0
        %2881 = vmatpush1.bf16.msra.mxu0 0
        %2882 = vmatprep.subr.bf16.mxu0 0
        %2883 = vmatpush1.bf16.msra.mxu0 0
        %2884 = vmatprep.subr.bf16.mxu0 0
        %2885 = vmatpush1.bf16.msra.mxu0 0
        %2886 = vmatprep.subr.bf16.mxu0 0
        %2887 = vmatpush1.bf16.msra.mxu0 0
        %2888 = vmatprep.subr.bf16.mxu0 0
        %2889 = vmatpush1.bf16.msra.mxu0 0
        %2890 = vmatprep.subr.bf16.mxu0 0
        %2891 = vmatpush1.bf16.msra.mxu0 0
        %2892 = vmatprep.subr.bf16.mxu0 0
        %2893 = vmatpush1.bf16.msra.mxu0 0
        %2894 = vmatprep.subr.bf16.mxu0 0
        %2895 = vmatpush1.bf16.msra.mxu0 0
        %2896 = vmatprep.subr.bf16.mxu0 0
        %2897 = vmatpush1.bf16.msra.mxu0 0
        %2898 = vmatprep.mubr.bf16.mxu0 0
        %2899 = vmatmul.mubr.bf16.gmra.mrb[0].mxu0 %v2864
        %v2900 = vpop.f32.mrb[0].mxu0
        %v2901 = vadd.f32 0.0, %v2900
        %v2902 = vpop.f32.mrb[0].mxu0
        %v2903 = vpop.f32.mrb[0].mxu0
        %v2904 = vpop.f32.mrb[0].mxu0
        %2905 = vdwg.mxu0
        %v2907 = vsel %vm401, %v2767, 0
        %2909 = vmatprep.subr.bf16.mxu0 0
        %2910 = vmatpush1.bf16.msra.mxu0 %v2778
        %2911 = vmatprep.subr.bf16.mxu0 0
        %2912 = vmatpush1.bf16.msra.mxu0 0
        %2913 = vmatprep.subr.bf16.mxu0 0
        %2914 = vmatpush1.bf16.msra.mxu0 0
        %2915 = vmatprep.subr.bf16.mxu0 0
        %2916 = vmatpush1.bf16.msra.mxu0 0
        %2917 = vmatprep.subr.bf16.mxu0 0
        %2918 = vmatpush1.bf16.msra.mxu0 0
        %2919 = vmatprep.subr.bf16.mxu0 0
        %2920 = vmatpush1.bf16.msra.mxu0 0
        %2921 = vmatprep.subr.bf16.mxu0 0
        %2922 = vmatpush1.bf16.msra.mxu0 0
        %2923 = vmatprep.subr.bf16.mxu0 0
        %2924 = vmatpush1.bf16.msra.mxu0 0
        %2925 = vmatprep.subr.bf16.mxu0 0
        %2926 = vmatpush1.bf16.msra.mxu0 0
        %2927 = vmatprep.subr.bf16.mxu0 0
        %2928 = vmatpush1.bf16.msra.mxu0 0
        %2929 = vmatprep.subr.bf16.mxu0 0
        %2930 = vmatpush1.bf16.msra.mxu0 0
        %2931 = vmatprep.subr.bf16.mxu0 0
        %2932 = vmatpush1.bf16.msra.mxu0 0
        %2933 = vmatprep.subr.bf16.mxu0 0
        %2934 = vmatpush1.bf16.msra.mxu0 0
        %2935 = vmatprep.subr.bf16.mxu0 0
        %2936 = vmatpush1.bf16.msra.mxu0 0
        %2937 = vmatprep.subr.bf16.mxu0 0
        %2938 = vmatpush1.bf16.msra.mxu0 0
        %2939 = vmatprep.subr.bf16.mxu0 0
        %2940 = vmatpush1.bf16.msra.mxu0 0
        %2941 = vmatprep.mubr.bf16.mxu0 0
        %2942 = vmatmul.mubr.bf16.gmra.mrb[0].mxu0 %v2907
        %v2943 = vpop.f32.mrb[0].mxu0
        %v2944 = vadd.f32 0.0, %v2943
        %v2945 = vpop.f32.mrb[0].mxu0
        %v2946 = vpop.f32.mrb[0].mxu0
        %v2947 = vpop.f32.mrb[0].mxu0
        %2948 = vdwg.mxu0
        %v2950 = vsel %vm401, %v2768, 0
        %2952 = vmatprep.subr.bf16.mxu0 0
        %2953 = vmatpush1.bf16.msra.mxu0 %v2778
        %2954 = vmatprep.subr.bf16.mxu0 0
        %2955 = vmatpush1.bf16.msra.mxu0 0
        %2956 = vmatprep.subr.bf16.mxu0 0
        %2957 = vmatpush1.bf16.msra.mxu0 0
        %2958 = vmatprep.subr.bf16.mxu0 0
        %2959 = vmatpush1.bf16.msra.mxu0 0
        %2960 = vmatprep.subr.bf16.mxu0 0
        %2961 = vmatpush1.bf16.msra.mxu0 0
        %2962 = vmatprep.subr.bf16.mxu0 0
        %2963 = vmatpush1.bf16.msra.mxu0 0
        %2964 = vmatprep.subr.bf16.mxu0 0
        %2965 = vmatpush1.bf16.msra.mxu0 0
        %2966 = vmatprep.subr.bf16.mxu0 0
        %2967 = vmatpush1.bf16.msra.mxu0 0
        %2968 = vmatprep.subr.bf16.mxu0 0
        %2969 = vmatpush1.bf16.msra.mxu0 0
        %2970 = vmatprep.subr.bf16.mxu0 0
        %2971 = vmatpush1.bf16.msra.mxu0 0
        %2972 = vmatprep.subr.bf16.mxu0 0
        %2973 = vmatpush1.bf16.msra.mxu0 0
        %2974 = vmatprep.subr.bf16.mxu0 0
        %2975 = vmatpush1.bf16.msra.mxu0 0
        %2976 = vmatprep.subr.bf16.mxu0 0
        %2977 = vmatpush1.bf16.msra.mxu0 0
        %2978 = vmatprep.subr.bf16.mxu0 0
        %2979 = vmatpush1.bf16.msra.mxu0 0
        %2980 = vmatprep.subr.bf16.mxu0 0
        %2981 = vmatpush1.bf16.msra.mxu0 0
        %2982 = vmatprep.subr.bf16.mxu0 0
        %2983 = vmatpush1.bf16.msra.mxu0 0
        %2984 = vmatprep.mubr.bf16.mxu0 0
        %2985 = vmatmul.mubr.bf16.gmra.mrb[0].mxu0 %v2950
        %v2986 = vpop.f32.mrb[0].mxu0
        %v2987 = vadd.f32 0.0, %v2986
        %v2988 = vpop.f32.mrb[0].mxu0
        %v2989 = vpop.f32.mrb[0].mxu0
        %v2990 = vpop.f32.mrb[0].mxu0
        %2991 = vdwg.mxu0
        %v2993 = vsel %vm401, %v2769, 0
        %2995 = vmatprep.subr.bf16.mxu0 0
        %2996 = vmatpush1.bf16.msra.mxu0 %v2778
        %2997 = vmatprep.subr.bf16.mxu0 0
        %2998 = vmatpush1.bf16.msra.mxu0 0
        %2999 = vmatprep.subr.bf16.mxu0 0
        %3000 = vmatpush1.bf16.msra.mxu0 0
        %3001 = vmatprep.subr.bf16.mxu0 0
        %3002 = vmatpush1.bf16.msra.mxu0 0
        %3003 = vmatprep.subr.bf16.mxu0 0
        %3004 = vmatpush1.bf16.msra.mxu0 0
        %3005 = vmatprep.subr.bf16.mxu0 0
        %3006 = vmatpush1.bf16.msra.mxu0 0
        %3007 = vmatprep.subr.bf16.mxu0 0
        %3008 = vmatpush1.bf16.msra.mxu0 0
        %3009 = vmatprep.subr.bf16.mxu0 0
        %3010 = vmatpush1.bf16.msra.mxu0 0
        %3011 = vmatprep.subr.bf16.mxu0 0
        %3012 = vmatpush1.bf16.msra.mxu0 0
        %3013 = vmatprep.subr.bf16.mxu0 0
        %3014 = vmatpush1.bf16.msra.mxu0 0
        %3015 = vmatprep.subr.bf16.mxu0 0
        %3016 = vmatpush1.bf16.msra.mxu0 0
        %3017 = vmatprep.subr.bf16.mxu0 0
        %3018 = vmatpush1.bf16.msra.mxu0 0
        %3019 = vmatprep.subr.bf16.mxu0 0
        %3020 = vmatpush1.bf16.msra.mxu0 0
        %3021 = vmatprep.subr.bf16.mxu0 0
        %3022 = vmatpush1.bf16.msra.mxu0 0
        %3023 = vmatprep.subr.bf16.mxu0 0
        %3024 = vmatpush1.bf16.msra.mxu0 0
        %3025 = vmatprep.subr.bf16.mxu0 0
        %3026 = vmatpush1.bf16.msra.mxu0 0
        %3027 = vmatprep.mubr.bf16.mxu0 0
        %3028 = vmatmul.mubr.bf16.gmra.mrb[0].mxu0 %v2993
        %v3029 = vpop.f32.mrb[0].mxu0
        %v3030 = vadd.f32 0.0, %v3029
        %v3031 = vpop.f32.mrb[0].mxu0
        %v3032 = vpop.f32.mrb[0].mxu0
        %v3033 = vpop.f32.mrb[0].mxu0
        %3034 = vdwg.mxu0
        %v3036 = vsel %vm401, %v2770, 0
        %3038 = vmatprep.subr.bf16.mxu0 0
        %3039 = vmatpush1.bf16.msra.mxu0 %v2778
        %3040 = vmatprep.subr.bf16.mxu0 0
        %3041 = vmatpush1.bf16.msra.mxu0 0
        %3042 = vmatprep.subr.bf16.mxu0 0
        %3043 = vmatpush1.bf16.msra.mxu0 0
        %3044 = vmatprep.subr.bf16.mxu0 0
        %3045 = vmatpush1.bf16.msra.mxu0 0
        %3046 = vmatprep.subr.bf16.mxu0 0
        %3047 = vmatpush1.bf16.msra.mxu0 0
        %3048 = vmatprep.subr.bf16.mxu0 0
        %3049 = vmatpush1.bf16.msra.mxu0 0
        %3050 = vmatprep.subr.bf16.mxu0 0
        %3051 = vmatpush1.bf16.msra.mxu0 0
        %3052 = vmatprep.subr.bf16.mxu0 0
        %3053 = vmatpush1.bf16.msra.mxu0 0
        %3054 = vmatprep.subr.bf16.mxu0 0
        %3055 = vmatpush1.bf16.msra.mxu0 0
        %3056 = vmatprep.subr.bf16.mxu0 0
        %3057 = vmatpush1.bf16.msra.mxu0 0
        %3058 = vmatprep.subr.bf16.mxu0 0
        %3059 = vmatpush1.bf16.msra.mxu0 0
        %3060 = vmatprep.subr.bf16.mxu0 0
        %3061 = vmatpush1.bf16.msra.mxu0 0
        %3062 = vmatprep.subr.bf16.mxu0 0
        %3063 = vmatpush1.bf16.msra.mxu0 0
        %3064 = vmatprep.subr.bf16.mxu0 0
        %3065 = vmatpush1.bf16.msra.mxu0 0
        %3066 = vmatprep.subr.bf16.mxu0 0
        %3067 = vmatpush1.bf16.msra.mxu0 0
        %3068 = vmatprep.subr.bf16.mxu0 0
        %3069 = vmatpush1.bf16.msra.mxu0 0
        %3070 = vmatprep.mubr.bf16.mxu0 0
        %3071 = vmatmul.mubr.bf16.gmra.mrb[0].mxu0 %v3036
        %v3072 = vpop.f32.mrb[0].mxu0
        %v3073 = vadd.f32 0.0, %v3072
        %v3074 = vpop.f32.mrb[0].mxu0
        %v3075 = vpop.f32.mrb[0].mxu0
        %v3076 = vpop.f32.mrb[0].mxu0
        %3077 = vdwg.mxu0
        %v3079 = vsel %vm401, %v2771, 0
        %3081 = vmatprep.subr.bf16.mxu0 0
        %3082 = vmatpush1.bf16.msra.mxu0 %v2778
        %3083 = vmatprep.subr.bf16.mxu0 0
        %3084 = vmatpush1.bf16.msra.mxu0 0
        %3085 = vmatprep.subr.bf16.mxu0 0
        %3086 = vmatpush1.bf16.msra.mxu0 0
        %3087 = vmatprep.subr.bf16.mxu0 0
        %3088 = vmatpush1.bf16.msra.mxu0 0
        %3089 = vmatprep.subr.bf16.mxu0 0
        %3090 = vmatpush1.bf16.msra.mxu0 0
        %3091 = vmatprep.subr.bf16.mxu0 0
        %3092 = vmatpush1.bf16.msra.mxu0 0
        %3093 = vmatprep.subr.bf16.mxu0 0
        %3094 = vmatpush1.bf16.msra.mxu0 0
        %3095 = vmatprep.subr.bf16.mxu0 0
        %3096 = vmatpush1.bf16.msra.mxu0 0
        %3097 = vmatprep.subr.bf16.mxu0 0
        %3098 = vmatpush1.bf16.msra.mxu0 0
        %3099 = vmatprep.subr.bf16.mxu0 0
        %3100 = vmatpush1.bf16.msra.mxu0 0
        %3101 = vmatprep.subr.bf16.mxu0 0
        %3102 = vmatpush1.bf16.msra.mxu0 0
        %3103 = vmatprep.subr.bf16.mxu0 0
        %3104 = vmatpush1.bf16.msra.mxu0 0
        %3105 = vmatprep.subr.bf16.mxu0 0
        %3106 = vmatpush1.bf16.msra.mxu0 0
        %3107 = vmatprep.subr.bf16.mxu0 0
        %3108 = vmatpush1.bf16.msra.mxu0 0
        %3109 = vmatprep.subr.bf16.mxu0 0
        %3110 = vmatpush1.bf16.msra.mxu0 0
        %3111 = vmatprep.subr.bf16.mxu0 0
        %3112 = vmatpush1.bf16.msra.mxu0 0
        %3113 = vmatprep.mubr.bf16.mxu0 0
        %3114 = vmatmul.mubr.bf16.gmra.mrb[0].mxu0 %v3079
        %v3115 = vpop.f32.mrb[0].mxu0
        %v3116 = vadd.f32 0.0, %v3115
        %v3117 = vpop.f32.mrb[0].mxu0
        %v3118 = vpop.f32.mrb[0].mxu0
        %v3119 = vpop.f32.mrb[0].mxu0
        %3120 = vdwg.mxu0
        %v3121 = vadd.f32 %v2740, %v2815
        %v3122 = vadd.f32 %v2741, %v2858
        %v3123 = vadd.f32 %v2742, %v2901
        %v3124 = vadd.f32 %v2743, %v2944
        %v3125 = vadd.f32 %v2744, %v2987
        %v3126 = vadd.f32 %v2745, %v3030
        %v3127 = vadd.f32 %v2746, %v3073
        %v3128 = vadd.f32 %v2747, %v3116
        %s3129 = scalar_lea.vmem %s2748, 1 [#allocation2]
        %v3130 = vld [vmem:[%s3129] ss:$2 sm:$0xff]
        %s3131 = scalar_lea.vmem %s2748, 49 [#allocation2]
        %v3132 = vld [vmem:[%s3131] ss:$2 sm:$0xff]
        %s3133 = scalar_lea.vmem %s2748, 97 [#allocation2]
        %v3134 = vld [vmem:[%s3133] ss:$2 sm:$0xff]
        %s3135 = scalar_lea.vmem %s2748, 145 [#allocation2]
        %v3136 = vld [vmem:[%s3135] ss:$2 sm:$0xff]
        %s3137 = scalar_lea.vmem %s2748, 193 [#allocation2]
        %v3138 = vld [vmem:[%s3137] ss:$2 sm:$0xff]
        %s3139 = scalar_lea.vmem %s2748, 241 [#allocation2]
        %v3140 = vld [vmem:[%s3139] ss:$2 sm:$0xff]
        %s3141 = scalar_lea.vmem %s2748, 289 [#allocation2]
        %v3142 = vld [vmem:[%s3141] ss:$2 sm:$0xff]
        %s3143 = scalar_lea.vmem %s2748, 337 [#allocation2]
        %v3144 = vld [vmem:[%s3143] ss:$2 sm:$0xff]
        %v3145 = vpack.c.bf16 %v3130, %v3130
        %v3146 = vpack.c.bf16 %v3132, %v3132
        %v3147 = vpack.c.bf16 %v3134, %v3134
        %v3148 = vpack.c.bf16 %v3136, %v3136
        %v3149 = vpack.c.bf16 %v3138, %v3138
        %v3150 = vpack.c.bf16 %v3140, %v3140
        %v3151 = vpack.c.bf16 %v3142, %v3142
        %v3152 = vpack.c.bf16 %v3144, %v3144
        %s3153 = scalar_lea.vmem %s1, 14
        %v3154 = vld [vmem:[%s3153] sm:$0x3]
        %v3156 = vsel %vm401, %v3145, 0
        %v3159 = vsel %vm532, %v3154, 0
        %3161 = vmatprep.subr.bf16.mxu0 0
        %3162 = vmatpush1.bf16.msra.mxu0 %v3159
        %3163 = vmatprep.subr.bf16.mxu0 0
        %3164 = vmatpush1.bf16.msra.mxu0 0
        %3165 = vmatprep.subr.bf16.mxu0 0
        %3166 = vmatpush1.bf16.msra.mxu0 0
        %3167 = vmatprep.subr.bf16.mxu0 0
        %3168 = vmatpush1.bf16.msra.mxu0 0
        %3169 = vmatprep.subr.bf16.mxu0 0
        %3170 = vmatpush1.bf16.msra.mxu0 0
        %3171 = vmatprep.subr.bf16.mxu0 0
        %3172 = vmatpush1.bf16.msra.mxu0 0
        %3173 = vmatprep.subr.bf16.mxu0 0
        %3174 = vmatpush1.bf16.msra.mxu0 0
        %3175 = vmatprep.subr.bf16.mxu0 0
        %3176 = vmatpush1.bf16.msra.mxu0 0
        %3177 = vmatprep.subr.bf16.mxu0 0
        %3178 = vmatpush1.bf16.msra.mxu0 0
        %3179 = vmatprep.subr.bf16.mxu0 0
        %3180 = vmatpush1.bf16.msra.mxu0 0
        %3181 = vmatprep.subr.bf16.mxu0 0
        %3182 = vmatpush1.bf16.msra.mxu0 0
        %3183 = vmatprep.subr.bf16.mxu0 0
        %3184 = vmatpush1.bf16.msra.mxu0 0
        %3185 = vmatprep.subr.bf16.mxu0 0
        %3186 = vmatpush1.bf16.msra.mxu0 0
        %3187 = vmatprep.subr.bf16.mxu0 0
        %3188 = vmatpush1.bf16.msra.mxu0 0
        %3189 = vmatprep.subr.bf16.mxu0 0
        %3190 = vmatpush1.bf16.msra.mxu0 0
        %3191 = vmatprep.subr.bf16.mxu0 0
        %3192 = vmatpush1.bf16.msra.mxu0 0
        %3193 = vmatprep.mubr.bf16.mxu0 0
        %3194 = vmatmul.mubr.bf16.gmra.mrb[0].mxu0 %v3156
        %v3195 = vpop.f32.mrb[0].mxu0
        %v3196 = vadd.f32 0.0, %v3195
        %v3197 = vpop.f32.mrb[0].mxu0
        %v3198 = vpop.f32.mrb[0].mxu0
        %v3199 = vpop.f32.mrb[0].mxu0
        %3200 = vdwg.mxu0
        %v3202 = vsel %vm401, %v3146, 0
        %3204 = vmatprep.subr.bf16.mxu0 0
        %3205 = vmatpush1.bf16.msra.mxu0 %v3159
        %3206 = vmatprep.subr.bf16.mxu0 0
        %3207 = vmatpush1.bf16.msra.mxu0 0
        %3208 = vmatprep.subr.bf16.mxu0 0
        %3209 = vmatpush1.bf16.msra.mxu0 0
        %3210 = vmatprep.subr.bf16.mxu0 0
        %3211 = vmatpush1.bf16.msra.mxu0 0
        %3212 = vmatprep.subr.bf16.mxu0 0
        %3213 = vmatpush1.bf16.msra.mxu0 0
        %3214 = vmatprep.subr.bf16.mxu0 0
        %3215 = vmatpush1.bf16.msra.mxu0 0
        %3216 = vmatprep.subr.bf16.mxu0 0
        %3217 = vmatpush1.bf16.msra.mxu0 0
        %3218 = vmatprep.subr.bf16.mxu0 0
        %3219 = vmatpush1.bf16.msra.mxu0 0
        %3220 = vmatprep.subr.bf16.mxu0 0
        %3221 = vmatpush1.bf16.msra.mxu0 0
        %3222 = vmatprep.subr.bf16.mxu0 0
        %3223 = vmatpush1.bf16.msra.mxu0 0
        %3224 = vmatprep.subr.bf16.mxu0 0
        %3225 = vmatpush1.bf16.msra.mxu0 0
        %3226 = vmatprep.subr.bf16.mxu0 0
        %3227 = vmatpush1.bf16.msra.mxu0 0
        %3228 = vmatprep.subr.bf16.mxu0 0
        %3229 = vmatpush1.bf16.msra.mxu0 0
        %3230 = vmatprep.subr.bf16.mxu0 0
        %3231 = vmatpush1.bf16.msra.mxu0 0
        %3232 = vmatprep.subr.bf16.mxu0 0
        %3233 = vmatpush1.bf16.msra.mxu0 0
        %3234 = vmatprep.subr.bf16.mxu0 0
        %3235 = vmatpush1.bf16.msra.mxu0 0
        %3236 = vmatprep.mubr.bf16.mxu0 0
        %3237 = vmatmul.mubr.bf16.gmra.mrb[0].mxu0 %v3202
        %v3238 = vpop.f32.mrb[0].mxu0
        %v3239 = vadd.f32 0.0, %v3238
        %v3240 = vpop.f32.mrb[0].mxu0
        %v3241 = vpop.f32.mrb[0].mxu0
        %v3242 = vpop.f32.mrb[0].mxu0
        %3243 = vdwg.mxu0
        %v3245 = vsel %vm401, %v3147, 0
        %3247 = vmatprep.subr.bf16.mxu0 0
        %3248 = vmatpush1.bf16.msra.mxu0 %v3159
        %3249 = vmatprep.subr.bf16.mxu0 0
        %3250 = vmatpush1.bf16.msra.mxu0 0
        %3251 = vmatprep.subr.bf16.mxu0 0
        %3252 = vmatpush1.bf16.msra.mxu0 0
        %3253 = vmatprep.subr.bf16.mxu0 0
        %3254 = vmatpush1.bf16.msra.mxu0 0
        %3255 = vmatprep.subr.bf16.mxu0 0
        %3256 = vmatpush1.bf16.msra.mxu0 0
        %3257 = vmatprep.subr.bf16.mxu0 0
        %3258 = vmatpush1.bf16.msra.mxu0 0
        %3259 = vmatprep.subr.bf16.mxu0 0
        %3260 = vmatpush1.bf16.msra.mxu0 0
        %3261 = vmatprep.subr.bf16.mxu0 0
        %3262 = vmatpush1.bf16.msra.mxu0 0
        %3263 = vmatprep.subr.bf16.mxu0 0
        %3264 = vmatpush1.bf16.msra.mxu0 0
        %3265 = vmatprep.subr.bf16.mxu0 0
        %3266 = vmatpush1.bf16.msra.mxu0 0
        %3267 = vmatprep.subr.bf16.mxu0 0
        %3268 = vmatpush1.bf16.msra.mxu0 0
        %3269 = vmatprep.subr.bf16.mxu0 0
        %3270 = vmatpush1.bf16.msra.mxu0 0
        %3271 = vmatprep.subr.bf16.mxu0 0
        %3272 = vmatpush1.bf16.msra.mxu0 0
        %3273 = vmatprep.subr.bf16.mxu0 0
        %3274 = vmatpush1.bf16.msra.mxu0 0
        %3275 = vmatprep.subr.bf16.mxu0 0
        %3276 = vmatpush1.bf16.msra.mxu0 0
        %3277 = vmatprep.subr.bf16.mxu0 0
        %3278 = vmatpush1.bf16.msra.mxu0 0
        %3279 = vmatprep.mubr.bf16.mxu0 0
        %3280 = vmatmul.mubr.bf16.gmra.mrb[0].mxu0 %v3245
        %v3281 = vpop.f32.mrb[0].mxu0
        %v3282 = vadd.f32 0.0, %v3281
        %v3283 = vpop.f32.mrb[0].mxu0
        %v3284 = vpop.f32.mrb[0].mxu0
        %v3285 = vpop.f32.mrb[0].mxu0
        %3286 = vdwg.mxu0
        %v3288 = vsel %vm401, %v3148, 0
        %3290 = vmatprep.subr.bf16.mxu0 0
        %3291 = vmatpush1.bf16.msra.mxu0 %v3159
        %3292 = vmatprep.subr.bf16.mxu0 0
        %3293 = vmatpush1.bf16.msra.mxu0 0
        %3294 = vmatprep.subr.bf16.mxu0 0
        %3295 = vmatpush1.bf16.msra.mxu0 0
        %3296 = vmatprep.subr.bf16.mxu0 0
        %3297 = vmatpush1.bf16.msra.mxu0 0
        %3298 = vmatprep.subr.bf16.mxu0 0
        %3299 = vmatpush1.bf16.msra.mxu0 0
        %3300 = vmatprep.subr.bf16.mxu0 0
        %3301 = vmatpush1.bf16.msra.mxu0 0
        %3302 = vmatprep.subr.bf16.mxu0 0
        %3303 = vmatpush1.bf16.msra.mxu0 0
        %3304 = vmatprep.subr.bf16.mxu0 0
        %3305 = vmatpush1.bf16.msra.mxu0 0
        %3306 = vmatprep.subr.bf16.mxu0 0
        %3307 = vmatpush1.bf16.msra.mxu0 0
        %3308 = vmatprep.subr.bf16.mxu0 0
        %3309 = vmatpush1.bf16.msra.mxu0 0
        %3310 = vmatprep.subr.bf16.mxu0 0
        %3311 = vmatpush1.bf16.msra.mxu0 0
        %3312 = vmatprep.subr.bf16.mxu0 0
        %3313 = vmatpush1.bf16.msra.mxu0 0
        %3314 = vmatprep.subr.bf16.mxu0 0
        %3315 = vmatpush1.bf16.msra.mxu0 0
        %3316 = vmatprep.subr.bf16.mxu0 0
        %3317 = vmatpush1.bf16.msra.mxu0 0
        %3318 = vmatprep.subr.bf16.mxu0 0
        %3319 = vmatpush1.bf16.msra.mxu0 0
        %3320 = vmatprep.subr.bf16.mxu0 0
        %3321 = vmatpush1.bf16.msra.mxu0 0
        %3322 = vmatprep.mubr.bf16.mxu0 0
        %3323 = vmatmul.mubr.bf16.gmra.mrb[0].mxu0 %v3288
        %v3324 = vpop.f32.mrb[0].mxu0
        %v3325 = vadd.f32 0.0, %v3324
        %v3326 = vpop.f32.mrb[0].mxu0
        %v3327 = vpop.f32.mrb[0].mxu0
        %v3328 = vpop.f32.mrb[0].mxu0
        %3329 = vdwg.mxu0
        %v3331 = vsel %vm401, %v3149, 0
        %3333 = vmatprep.subr.bf16.mxu0 0
        %3334 = vmatpush1.bf16.msra.mxu0 %v3159
        %3335 = vmatprep.subr.bf16.mxu0 0
        %3336 = vmatpush1.bf16.msra.mxu0 0
        %3337 = vmatprep.subr.bf16.mxu0 0
        %3338 = vmatpush1.bf16.msra.mxu0 0
        %3339 = vmatprep.subr.bf16.mxu0 0
        %3340 = vmatpush1.bf16.msra.mxu0 0
        %3341 = vmatprep.subr.bf16.mxu0 0
        %3342 = vmatpush1.bf16.msra.mxu0 0
        %3343 = vmatprep.subr.bf16.mxu0 0
        %3344 = vmatpush1.bf16.msra.mxu0 0
        %3345 = vmatprep.subr.bf16.mxu0 0
        %3346 = vmatpush1.bf16.msra.mxu0 0
        %3347 = vmatprep.subr.bf16.mxu0 0
        %3348 = vmatpush1.bf16.msra.mxu0 0
        %3349 = vmatprep.subr.bf16.mxu0 0
        %3350 = vmatpush1.bf16.msra.mxu0 0
        %3351 = vmatprep.subr.bf16.mxu0 0
        %3352 = vmatpush1.bf16.msra.mxu0 0
        %3353 = vmatprep.subr.bf16.mxu0 0
        %3354 = vmatpush1.bf16.msra.mxu0 0
        %3355 = vmatprep.subr.bf16.mxu0 0
        %3356 = vmatpush1.bf16.msra.mxu0 0
        %3357 = vmatprep.subr.bf16.mxu0 0
        %3358 = vmatpush1.bf16.msra.mxu0 0
        %3359 = vmatprep.subr.bf16.mxu0 0
        %3360 = vmatpush1.bf16.msra.mxu0 0
        %3361 = vmatprep.subr.bf16.mxu0 0
        %3362 = vmatpush1.bf16.msra.mxu0 0
        %3363 = vmatprep.subr.bf16.mxu0 0
        %3364 = vmatpush1.bf16.msra.mxu0 0
        %3365 = vmatprep.mubr.bf16.mxu0 0
        %3366 = vmatmul.mubr.bf16.gmra.mrb[0].mxu0 %v3331
        %v3367 = vpop.f32.mrb[0].mxu0
        %v3368 = vadd.f32 0.0, %v3367
        %v3369 = vpop.f32.mrb[0].mxu0
        %v3370 = vpop.f32.mrb[0].mxu0
        %v3371 = vpop.f32.mrb[0].mxu0
        %3372 = vdwg.mxu0
        %v3374 = vsel %vm401, %v3150, 0
        %3376 = vmatprep.subr.bf16.mxu0 0
        %3377 = vmatpush1.bf16.msra.mxu0 %v3159
        %3378 = vmatprep.subr.bf16.mxu0 0
        %3379 = vmatpush1.bf16.msra.mxu0 0
        %3380 = vmatprep.subr.bf16.mxu0 0
        %3381 = vmatpush1.bf16.msra.mxu0 0
        %3382 = vmatprep.subr.bf16.mxu0 0
        %3383 = vmatpush1.bf16.msra.mxu0 0
        %3384 = vmatprep.subr.bf16.mxu0 0
        %3385 = vmatpush1.bf16.msra.mxu0 0
        %3386 = vmatprep.subr.bf16.mxu0 0
        %3387 = vmatpush1.bf16.msra.mxu0 0
        %3388 = vmatprep.subr.bf16.mxu0 0
        %3389 = vmatpush1.bf16.msra.mxu0 0
        %3390 = vmatprep.subr.bf16.mxu0 0
        %3391 = vmatpush1.bf16.msra.mxu0 0
        %3392 = vmatprep.subr.bf16.mxu0 0
        %3393 = vmatpush1.bf16.msra.mxu0 0
        %3394 = vmatprep.subr.bf16.mxu0 0
        %3395 = vmatpush1.bf16.msra.mxu0 0
        %3396 = vmatprep.subr.bf16.mxu0 0
        %3397 = vmatpush1.bf16.msra.mxu0 0
        %3398 = vmatprep.subr.bf16.mxu0 0
        %3399 = vmatpush1.bf16.msra.mxu0 0
        %3400 = vmatprep.subr.bf16.mxu0 0
        %3401 = vmatpush1.bf16.msra.mxu0 0
        %3402 = vmatprep.subr.bf16.mxu0 0
        %3403 = vmatpush1.bf16.msra.mxu0 0
        %3404 = vmatprep.subr.bf16.mxu0 0
        %3405 = vmatpush1.bf16.msra.mxu0 0
        %3406 = vmatprep.subr.bf16.mxu0 0
        %3407 = vmatpush1.bf16.msra.mxu0 0
        %3408 = vmatprep.mubr.bf16.mxu0 0
        %3409 = vmatmul.mubr.bf16.gmra.mrb[0].mxu0 %v3374
        %v3410 = vpop.f32.mrb[0].mxu0
        %v3411 = vadd.f32 0.0, %v3410
        %v3412 = vpop.f32.mrb[0].mxu0
        %v3413 = vpop.f32.mrb[0].mxu0
        %v3414 = vpop.f32.mrb[0].mxu0
        %3415 = vdwg.mxu0
        %v3417 = vsel %vm401, %v3151, 0
        %3419 = vmatprep.subr.bf16.mxu0 0
        %3420 = vmatpush1.bf16.msra.mxu0 %v3159
        %3421 = vmatprep.subr.bf16.mxu0 0
        %3422 = vmatpush1.bf16.msra.mxu0 0
        %3423 = vmatprep.subr.bf16.mxu0 0
        %3424 = vmatpush1.bf16.msra.mxu0 0
        %3425 = vmatprep.subr.bf16.mxu0 0
        %3426 = vmatpush1.bf16.msra.mxu0 0
        %3427 = vmatprep.subr.bf16.mxu0 0
        %3428 = vmatpush1.bf16.msra.mxu0 0
        %3429 = vmatprep.subr.bf16.mxu0 0
        %3430 = vmatpush1.bf16.msra.mxu0 0
        %3431 = vmatprep.subr.bf16.mxu0 0
        %3432 = vmatpush1.bf16.msra.mxu0 0
        %3433 = vmatprep.subr.bf16.mxu0 0
        %3434 = vmatpush1.bf16.msra.mxu0 0
        %3435 = vmatprep.subr.bf16.mxu0 0
        %3436 = vmatpush1.bf16.msra.mxu0 0
        %3437 = vmatprep.subr.bf16.mxu0 0
        %3438 = vmatpush1.bf16.msra.mxu0 0
        %3439 = vmatprep.subr.bf16.mxu0 0
        %3440 = vmatpush1.bf16.msra.mxu0 0
        %3441 = vmatprep.subr.bf16.mxu0 0
        %3442 = vmatpush1.bf16.msra.mxu0 0
        %3443 = vmatprep.subr.bf16.mxu0 0
        %3444 = vmatpush1.bf16.msra.mxu0 0
        %3445 = vmatprep.subr.bf16.mxu0 0
        %3446 = vmatpush1.bf16.msra.mxu0 0
        %3447 = vmatprep.subr.bf16.mxu0 0
        %3448 = vmatpush1.bf16.msra.mxu0 0
        %3449 = vmatprep.subr.bf16.mxu0 0
        %3450 = vmatpush1.bf16.msra.mxu0 0
        %3451 = vmatprep.mubr.bf16.mxu0 0
        %3452 = vmatmul.mubr.bf16.gmra.mrb[0].mxu0 %v3417
        %v3453 = vpop.f32.mrb[0].mxu0
        %v3454 = vadd.f32 0.0, %v3453
        %v3455 = vpop.f32.mrb[0].mxu0
        %v3456 = vpop.f32.mrb[0].mxu0
        %v3457 = vpop.f32.mrb[0].mxu0
        %3458 = vdwg.mxu0
        %v3460 = vsel %vm401, %v3152, 0
        %3462 = vmatprep.subr.bf16.mxu0 0
        %3463 = vmatpush1.bf16.msra.mxu0 %v3159
        %3464 = vmatprep.subr.bf16.mxu0 0
        %3465 = vmatpush1.bf16.msra.mxu0 0
        %3466 = vmatprep.subr.bf16.mxu0 0
        %3467 = vmatpush1.bf16.msra.mxu0 0
        %3468 = vmatprep.subr.bf16.mxu0 0
        %3469 = vmatpush1.bf16.msra.mxu0 0
        %3470 = vmatprep.subr.bf16.mxu0 0
        %3471 = vmatpush1.bf16.msra.mxu0 0
        %3472 = vmatprep.subr.bf16.mxu0 0
        %3473 = vmatpush1.bf16.msra.mxu0 0
        %3474 = vmatprep.subr.bf16.mxu0 0
        %3475 = vmatpush1.bf16.msra.mxu0 0
        %3476 = vmatprep.subr.bf16.mxu0 0
        %3477 = vmatpush1.bf16.msra.mxu0 0
        %3478 = vmatprep.subr.bf16.mxu0 0
        %3479 = vmatpush1.bf16.msra.mxu0 0
        %3480 = vmatprep.subr.bf16.mxu0 0
        %3481 = vmatpush1.bf16.msra.mxu0 0
        %3482 = vmatprep.subr.bf16.mxu0 0
        %3483 = vmatpush1.bf16.msra.mxu0 0
        %3484 = vmatprep.subr.bf16.mxu0 0
        %3485 = vmatpush1.bf16.msra.mxu0 0
        %3486 = vmatprep.subr.bf16.mxu0 0
        %3487 = vmatpush1.bf16.msra.mxu0 0
        %3488 = vmatprep.subr.bf16.mxu0 0
        %3489 = vmatpush1.bf16.msra.mxu0 0
        %3490 = vmatprep.subr.bf16.mxu0 0
        %3491 = vmatpush1.bf16.msra.mxu0 0
        %3492 = vmatprep.subr.bf16.mxu0 0
        %3493 = vmatpush1.bf16.msra.mxu0 0
        %3494 = vmatprep.mubr.bf16.mxu0 0
        %3495 = vmatmul.mubr.bf16.gmra.mrb[0].mxu0 %v3460
        %v3496 = vpop.f32.mrb[0].mxu0
        %v3497 = vadd.f32 0.0, %v3496
        %v3498 = vpop.f32.mrb[0].mxu0
        %v3499 = vpop.f32.mrb[0].mxu0
        %v3500 = vpop.f32.mrb[0].mxu0
        %3501 = vdwg.mxu0
        %v3502 = vadd.f32 %v3121, %v3196
        %v3503 = vadd.f32 %v3122, %v3239
        %v3504 = vadd.f32 %v3123, %v3282
        %v3505 = vadd.f32 %v3124, %v3325
        %v3506 = vadd.f32 %v3125, %v3368
        %v3507 = vadd.f32 %v3126, %v3411
        %v3508 = vadd.f32 %v3127, %v3454
        %v3509 = vadd.f32 %v3128, %v3497
        %s3510 = scalar_lea.vmem %s2748, 2 [#allocation2]
        %v3511 = vld [vmem:[%s3510] ss:$2 sm:$0xff]
        %s3512 = scalar_lea.vmem %s2748, 50 [#allocation2]
        %v3513 = vld [vmem:[%s3512] ss:$2 sm:$0xff]
        %s3514 = scalar_lea.vmem %s2748, 98 [#allocation2]
        %v3515 = vld [vmem:[%s3514] ss:$2 sm:$0xff]
        %s3516 = scalar_lea.vmem %s2748, 146 [#allocation2]
        %v3517 = vld [vmem:[%s3516] ss:$2 sm:$0xff]
        %s3518 = scalar_lea.vmem %s2748, 194 [#allocation2]
        %v3519 = vld [vmem:[%s3518] ss:$2 sm:$0xff]
        %s3520 = scalar_lea.vmem %s2748, 242 [#allocation2]
        %v3521 = vld [vmem:[%s3520] ss:$2 sm:$0xff]
        %s3522 = scalar_lea.vmem %s2748, 290 [#allocation2]
        %v3523 = vld [vmem:[%s3522] ss:$2 sm:$0xff]
        %s3524 = scalar_lea.vmem %s2748, 338 [#allocation2]
        %v3525 = vld [vmem:[%s3524] ss:$2 sm:$0xff]
        %v3526 = vpack.c.bf16 %v3511, %v3511
        %v3527 = vpack.c.bf16 %v3513, %v3513
        %v3528 = vpack.c.bf16 %v3515, %v3515
        %v3529 = vpack.c.bf16 %v3517, %v3517
        %v3530 = vpack.c.bf16 %v3519, %v3519
        %v3531 = vpack.c.bf16 %v3521, %v3521
        %v3532 = vpack.c.bf16 %v3523, %v3523
        %v3533 = vpack.c.bf16 %v3525, %v3525
        %s3534 = scalar_lea.vmem %s1, 16
        %v3535 = vld [vmem:[%s3534] sm:$0x3]
        %v3537 = vsel %vm401, %v3526, 0
        %v3540 = vsel %vm532, %v3535, 0
        %3542 = vmatprep.subr.bf16.mxu0 0
        %3543 = vmatpush1.bf16.msra.mxu0 %v3540
        %3544 = vmatprep.subr.bf16.mxu0 0
        %3545 = vmatpush1.bf16.msra.mxu0 0
        %3546 = vmatprep.subr.bf16.mxu0 0
        %3547 = vmatpush1.bf16.msra.mxu0 0
        %3548 = vmatprep.subr.bf16.mxu0 0
        %3549 = vmatpush1.bf16.msra.mxu0 0
        %3550 = vmatprep.subr.bf16.mxu0 0
        %3551 = vmatpush1.bf16.msra.mxu0 0
        %3552 = vmatprep.subr.bf16.mxu0 0
        %3553 = vmatpush1.bf16.msra.mxu0 0
        %3554 = vmatprep.subr.bf16.mxu0 0
        %3555 = vmatpush1.bf16.msra.mxu0 0
        %3556 = vmatprep.subr.bf16.mxu0 0
        %3557 = vmatpush1.bf16.msra.mxu0 0
        %3558 = vmatprep.subr.bf16.mxu0 0
        %3559 = vmatpush1.bf16.msra.mxu0 0
        %3560 = vmatprep.subr.bf16.mxu0 0
        %3561 = vmatpush1.bf16.msra.mxu0 0
        %3562 = vmatprep.subr.bf16.mxu0 0
        %3563 = vmatpush1.bf16.msra.mxu0 0
        %3564 = vmatprep.subr.bf16.mxu0 0
        %3565 = vmatpush1.bf16.msra.mxu0 0
        %3566 = vmatprep.subr.bf16.mxu0 0
        %3567 = vmatpush1.bf16.msra.mxu0 0
        %3568 = vmatprep.subr.bf16.mxu0 0
        %3569 = vmatpush1.bf16.msra.mxu0 0
        %3570 = vmatprep.subr.bf16.mxu0 0
        %3571 = vmatpush1.bf16.msra.mxu0 0
        %3572 = vmatprep.subr.bf16.mxu0 0
        %3573 = vmatpush1.bf16.msra.mxu0 0
        %3574 = vmatprep.mubr.bf16.mxu0 0
        %3575 = vmatmul.mubr.bf16.gmra.mrb[0].mxu0 %v3537
        %v3576 = vpop.f32.mrb[0].mxu0
        %v3577 = vadd.f32 0.0, %v3576
        %v3578 = vpop.f32.mrb[0].mxu0
        %v3579 = vpop.f32.mrb[0].mxu0
        %v3580 = vpop.f32.mrb[0].mxu0
        %3581 = vdwg.mxu0
        %v3583 = vsel %vm401, %v3527, 0
        %3585 = vmatprep.subr.bf16.mxu0 0
        %3586 = vmatpush1.bf16.msra.mxu0 %v3540
        %3587 = vmatprep.subr.bf16.mxu0 0
        %3588 = vmatpush1.bf16.msra.mxu0 0
        %3589 = vmatprep.subr.bf16.mxu0 0
        %3590 = vmatpush1.bf16.msra.mxu0 0
        %3591 = vmatprep.subr.bf16.mxu0 0
        %3592 = vmatpush1.bf16.msra.mxu0 0
        %3593 = vmatprep.subr.bf16.mxu0 0
        %3594 = vmatpush1.bf16.msra.mxu0 0
        %3595 = vmatprep.subr.bf16.mxu0 0
        %3596 = vmatpush1.bf16.msra.mxu0 0
        %3597 = vmatprep.subr.bf16.mxu0 0
        %3598 = vmatpush1.bf16.msra.mxu0 0
        %3599 = vmatprep.subr.bf16.mxu0 0
        %3600 = vmatpush1.bf16.msra.mxu0 0
        %3601 = vmatprep.subr.bf16.mxu0 0
        %3602 = vmatpush1.bf16.msra.mxu0 0
        %3603 = vmatprep.subr.bf16.mxu0 0
        %3604 = vmatpush1.bf16.msra.mxu0 0
        %3605 = vmatprep.subr.bf16.mxu0 0
        %3606 = vmatpush1.bf16.msra.mxu0 0
        %3607 = vmatprep.subr.bf16.mxu0 0
        %3608 = vmatpush1.bf16.msra.mxu0 0
        %3609 = vmatprep.subr.bf16.mxu0 0
        %3610 = vmatpush1.bf16.msra.mxu0 0
        %3611 = vmatprep.subr.bf16.mxu0 0
        %3612 = vmatpush1.bf16.msra.mxu0 0
        %3613 = vmatprep.subr.bf16.mxu0 0
        %3614 = vmatpush1.bf16.msra.mxu0 0
        %3615 = vmatprep.subr.bf16.mxu0 0
        %3616 = vmatpush1.bf16.msra.mxu0 0
        %3617 = vmatprep.mubr.bf16.mxu0 0
        %3618 = vmatmul.mubr.bf16.gmra.mrb[0].mxu0 %v3583
        %v3619 = vpop.f32.mrb[0].mxu0
        %v3620 = vadd.f32 0.0, %v3619
        %v3621 = vpop.f32.mrb[0].mxu0
        %v3622 = vpop.f32.mrb[0].mxu0
        %v3623 = vpop.f32.mrb[0].mxu0
        %3624 = vdwg.mxu0
        %v3626 = vsel %vm401, %v3528, 0
        %3628 = vmatprep.subr.bf16.mxu0 0
        %3629 = vmatpush1.bf16.msra.mxu0 %v3540
        %3630 = vmatprep.subr.bf16.mxu0 0
        %3631 = vmatpush1.bf16.msra.mxu0 0
        %3632 = vmatprep.subr.bf16.mxu0 0
        %3633 = vmatpush1.bf16.msra.mxu0 0
        %3634 = vmatprep.subr.bf16.mxu0 0
        %3635 = vmatpush1.bf16.msra.mxu0 0
        %3636 = vmatprep.subr.bf16.mxu0 0
        %3637 = vmatpush1.bf16.msra.mxu0 0
        %3638 = vmatprep.subr.bf16.mxu0 0
        %3639 = vmatpush1.bf16.msra.mxu0 0
        %3640 = vmatprep.subr.bf16.mxu0 0
        %3641 = vmatpush1.bf16.msra.mxu0 0
        %3642 = vmatprep.subr.bf16.mxu0 0
        %3643 = vmatpush1.bf16.msra.mxu0 0
        %3644 = vmatprep.subr.bf16.mxu0 0
        %3645 = vmatpush1.bf16.msra.mxu0 0
        %3646 = vmatprep.subr.bf16.mxu0 0
        %3647 = vmatpush1.bf16.msra.mxu0 0
        %3648 = vmatprep.subr.bf16.mxu0 0
        %3649 = vmatpush1.bf16.msra.mxu0 0
        %3650 = vmatprep.subr.bf16.mxu0 0
        %3651 = vmatpush1.bf16.msra.mxu0 0
        %3652 = vmatprep.subr.bf16.mxu0 0
        %3653 = vmatpush1.bf16.msra.mxu0 0
        %3654 = vmatprep.subr.bf16.mxu0 0
        %3655 = vmatpush1.bf16.msra.mxu0 0
        %3656 = vmatprep.subr.bf16.mxu0 0
        %3657 = vmatpush1.bf16.msra.mxu0 0
        %3658 = vmatprep.subr.bf16.mxu0 0
        %3659 = vmatpush1.bf16.msra.mxu0 0
        %3660 = vmatprep.mubr.bf16.mxu0 0
        %3661 = vmatmul.mubr.bf16.gmra.mrb[0].mxu0 %v3626
        %v3662 = vpop.f32.mrb[0].mxu0
        %v3663 = vadd.f32 0.0, %v3662
        %v3664 = vpop.f32.mrb[0].mxu0
        %v3665 = vpop.f32.mrb[0].mxu0
        %v3666 = vpop.f32.mrb[0].mxu0
        %3667 = vdwg.mxu0
        %v3669 = vsel %vm401, %v3529, 0
        %3671 = vmatprep.subr.bf16.mxu0 0
        %3672 = vmatpush1.bf16.msra.mxu0 %v3540
        %3673 = vmatprep.subr.bf16.mxu0 0
        %3674 = vmatpush1.bf16.msra.mxu0 0
        %3675 = vmatprep.subr.bf16.mxu0 0
        %3676 = vmatpush1.bf16.msra.mxu0 0
        %3677 = vmatprep.subr.bf16.mxu0 0
        %3678 = vmatpush1.bf16.msra.mxu0 0
        %3679 = vmatprep.subr.bf16.mxu0 0
        %3680 = vmatpush1.bf16.msra.mxu0 0
        %3681 = vmatprep.subr.bf16.mxu0 0
        %3682 = vmatpush1.bf16.msra.mxu0 0
        %3683 = vmatprep.subr.bf16.mxu0 0
        %3684 = vmatpush1.bf16.msra.mxu0 0
        %3685 = vmatprep.subr.bf16.mxu0 0
        %3686 = vmatpush1.bf16.msra.mxu0 0
        %3687 = vmatprep.subr.bf16.mxu0 0
        %3688 = vmatpush1.bf16.msra.mxu0 0
        %3689 = vmatprep.subr.bf16.mxu0 0
        %3690 = vmatpush1.bf16.msra.mxu0 0
        %3691 = vmatprep.subr.bf16.mxu0 0
        %3692 = vmatpush1.bf16.msra.mxu0 0
        %3693 = vmatprep.subr.bf16.mxu0 0
        %3694 = vmatpush1.bf16.msra.mxu0 0
        %3695 = vmatprep.subr.bf16.mxu0 0
        %3696 = vmatpush1.bf16.msra.mxu0 0
        %3697 = vmatprep.subr.bf16.mxu0 0
        %3698 = vmatpush1.bf16.msra.mxu0 0
        %3699 = vmatprep.subr.bf16.mxu0 0
        %3700 = vmatpush1.bf16.msra.mxu0 0
        %3701 = vmatprep.subr.bf16.mxu0 0
        %3702 = vmatpush1.bf16.msra.mxu0 0
        %3703 = vmatprep.mubr.bf16.mxu0 0
        %3704 = vmatmul.mubr.bf16.gmra.mrb[0].mxu0 %v3669
        %v3705 = vpop.f32.mrb[0].mxu0
        %v3706 = vadd.f32 0.0, %v3705
        %v3707 = vpop.f32.mrb[0].mxu0
        %v3708 = vpop.f32.mrb[0].mxu0
        %v3709 = vpop.f32.mrb[0].mxu0
        %3710 = vdwg.mxu0
        %v3712 = vsel %vm401, %v3530, 0
        %3714 = vmatprep.subr.bf16.mxu0 0
        %3715 = vmatpush1.bf16.msra.mxu0 %v3540
        %3716 = vmatprep.subr.bf16.mxu0 0
        %3717 = vmatpush1.bf16.msra.mxu0 0
        %3718 = vmatprep.subr.bf16.mxu0 0
        %3719 = vmatpush1.bf16.msra.mxu0 0
        %3720 = vmatprep.subr.bf16.mxu0 0
        %3721 = vmatpush1.bf16.msra.mxu0 0
        %3722 = vmatprep.subr.bf16.mxu0 0
        %3723 = vmatpush1.bf16.msra.mxu0 0
        %3724 = vmatprep.subr.bf16.mxu0 0
        %3725 = vmatpush1.bf16.msra.mxu0 0
        %3726 = vmatprep.subr.bf16.mxu0 0
        %3727 = vmatpush1.bf16.msra.mxu0 0
        %3728 = vmatprep.subr.bf16.mxu0 0
        %3729 = vmatpush1.bf16.msra.mxu0 0
        %3730 = vmatprep.subr.bf16.mxu0 0
        %3731 = vmatpush1.bf16.msra.mxu0 0
        %3732 = vmatprep.subr.bf16.mxu0 0
        %3733 = vmatpush1.bf16.msra.mxu0 0
        %3734 = vmatprep.subr.bf16.mxu0 0
        %3735 = vmatpush1.bf16.msra.mxu0 0
        %3736 = vmatprep.subr.bf16.mxu0 0
        %3737 = vmatpush1.bf16.msra.mxu0 0
        %3738 = vmatprep.subr.bf16.mxu0 0
        %3739 = vmatpush1.bf16.msra.mxu0 0
        %3740 = vmatprep.subr.bf16.mxu0 0
        %3741 = vmatpush1.bf16.msra.mxu0 0
        %3742 = vmatprep.subr.bf16.mxu0 0
        %3743 = vmatpush1.bf16.msra.mxu0 0
        %3744 = vmatprep.subr.bf16.mxu0 0
        %3745 = vmatpush1.bf16.msra.mxu0 0
        %3746 = vmatprep.mubr.bf16.mxu0 0
        %3747 = vmatmul.mubr.bf16.gmra.mrb[0].mxu0 %v3712
        %v3748 = vpop.f32.mrb[0].mxu0
        %v3749 = vadd.f32 0.0, %v3748
        %v3750 = vpop.f32.mrb[0].mxu0
        %v3751 = vpop.f32.mrb[0].mxu0
        %v3752 = vpop.f32.mrb[0].mxu0
        %3753 = vdwg.mxu0
        %v3755 = vsel %vm401, %v3531, 0
        %3757 = vmatprep.subr.bf16.mxu0 0
        %3758 = vmatpush1.bf16.msra.mxu0 %v3540
        %3759 = vmatprep.subr.bf16.mxu0 0
        %3760 = vmatpush1.bf16.msra.mxu0 0
        %3761 = vmatprep.subr.bf16.mxu0 0
        %3762 = vmatpush1.bf16.msra.mxu0 0
        %3763 = vmatprep.subr.bf16.mxu0 0
        %3764 = vmatpush1.bf16.msra.mxu0 0
        %3765 = vmatprep.subr.bf16.mxu0 0
        %3766 = vmatpush1.bf16.msra.mxu0 0
        %3767 = vmatprep.subr.bf16.mxu0 0
        %3768 = vmatpush1.bf16.msra.mxu0 0
        %3769 = vmatprep.subr.bf16.mxu0 0
        %3770 = vmatpush1.bf16.msra.mxu0 0
        %3771 = vmatprep.subr.bf16.mxu0 0
        %3772 = vmatpush1.bf16.msra.mxu0 0
        %3773 = vmatprep.subr.bf16.mxu0 0
        %3774 = vmatpush1.bf16.msra.mxu0 0
        %3775 = vmatprep.subr.bf16.mxu0 0
        %3776 = vmatpush1.bf16.msra.mxu0 0
        %3777 = vmatprep.subr.bf16.mxu0 0
        %3778 = vmatpush1.bf16.msra.mxu0 0
        %3779 = vmatprep.subr.bf16.mxu0 0
        %3780 = vmatpush1.bf16.msra.mxu0 0
        %3781 = vmatprep.subr.bf16.mxu0 0
        %3782 = vmatpush1.bf16.msra.mxu0 0
        %3783 = vmatprep.subr.bf16.mxu0 0
        %3784 = vmatpush1.bf16.msra.mxu0 0
        %3785 = vmatprep.subr.bf16.mxu0 0
        %3786 = vmatpush1.bf16.msra.mxu0 0
        %3787 = vmatprep.subr.bf16.mxu0 0
        %3788 = vmatpush1.bf16.msra.mxu0 0
        %3789 = vmatprep.mubr.bf16.mxu0 0
        %3790 = vmatmul.mubr.bf16.gmra.mrb[0].mxu0 %v3755
        %v3791 = vpop.f32.mrb[0].mxu0
        %v3792 = vadd.f32 0.0, %v3791
        %v3793 = vpop.f32.mrb[0].mxu0
        %v3794 = vpop.f32.mrb[0].mxu0
        %v3795 = vpop.f32.mrb[0].mxu0
        %3796 = vdwg.mxu0
        %v3798 = vsel %vm401, %v3532, 0
        %3800 = vmatprep.subr.bf16.mxu0 0
        %3801 = vmatpush1.bf16.msra.mxu0 %v3540
        %3802 = vmatprep.subr.bf16.mxu0 0
        %3803 = vmatpush1.bf16.msra.mxu0 0
        %3804 = vmatprep.subr.bf16.mxu0 0
        %3805 = vmatpush1.bf16.msra.mxu0 0
        %3806 = vmatprep.subr.bf16.mxu0 0
        %3807 = vmatpush1.bf16.msra.mxu0 0
        %3808 = vmatprep.subr.bf16.mxu0 0
        %3809 = vmatpush1.bf16.msra.mxu0 0
        %3810 = vmatprep.subr.bf16.mxu0 0
        %3811 = vmatpush1.bf16.msra.mxu0 0
        %3812 = vmatprep.subr.bf16.mxu0 0
        %3813 = vmatpush1.bf16.msra.mxu0 0
        %3814 = vmatprep.subr.bf16.mxu0 0
        %3815 = vmatpush1.bf16.msra.mxu0 0
        %3816 = vmatprep.subr.bf16.mxu0 0
        %3817 = vmatpush1.bf16.msra.mxu0 0
        %3818 = vmatprep.subr.bf16.mxu0 0
        %3819 = vmatpush1.bf16.msra.mxu0 0
        %3820 = vmatprep.subr.bf16.mxu0 0
        %3821 = vmatpush1.bf16.msra.mxu0 0
        %3822 = vmatprep.subr.bf16.mxu0 0
        %3823 = vmatpush1.bf16.msra.mxu0 0
        %3824 = vmatprep.subr.bf16.mxu0 0
        %3825 = vmatpush1.bf16.msra.mxu0 0
        %3826 = vmatprep.subr.bf16.mxu0 0
        %3827 = vmatpush1.bf16.msra.mxu0 0
        %3828 = vmatprep.subr.bf16.mxu0 0
        %3829 = vmatpush1.bf16.msra.mxu0 0
        %3830 = vmatprep.subr.bf16.mxu0 0
        %3831 = vmatpush1.bf16.msra.mxu0 0
        %3832 = vmatprep.mubr.bf16.mxu0 0
        %3833 = vmatmul.mubr.bf16.gmra.mrb[0].mxu0 %v3798
        %v3834 = vpop.f32.mrb[0].mxu0
        %v3835 = vadd.f32 0.0, %v3834
        %v3836 = vpop.f32.mrb[0].mxu0
        %v3837 = vpop.f32.mrb[0].mxu0
        %v3838 = vpop.f32.mrb[0].mxu0
        %3839 = vdwg.mxu0
        %v3841 = vsel %vm401, %v3533, 0
        %3843 = vmatprep.subr.bf16.mxu0 0
        %3844 = vmatpush1.bf16.msra.mxu0 %v3540
        %3845 = vmatprep.subr.bf16.mxu0 0
        %3846 = vmatpush1.bf16.msra.mxu0 0
        %3847 = vmatprep.subr.bf16.mxu0 0
        %3848 = vmatpush1.bf16.msra.mxu0 0
        %3849 = vmatprep.subr.bf16.mxu0 0
        %3850 = vmatpush1.bf16.msra.mxu0 0
        %3851 = vmatprep.subr.bf16.mxu0 0
        %3852 = vmatpush1.bf16.msra.mxu0 0
        %3853 = vmatprep.subr.bf16.mxu0 0
        %3854 = vmatpush1.bf16.msra.mxu0 0
        %3855 = vmatprep.subr.bf16.mxu0 0
        %3856 = vmatpush1.bf16.msra.mxu0 0
        %3857 = vmatprep.subr.bf16.mxu0 0
        %3858 = vmatpush1.bf16.msra.mxu0 0
        %3859 = vmatprep.subr.bf16.mxu0 0
        %3860 = vmatpush1.bf16.msra.mxu0 0
        %3861 = vmatprep.subr.bf16.mxu0 0
        %3862 = vmatpush1.bf16.msra.mxu0 0
        %3863 = vmatprep.subr.bf16.mxu0 0
        %3864 = vmatpush1.bf16.msra.mxu0 0
        %3865 = vmatprep.subr.bf16.mxu0 0
        %3866 = vmatpush1.bf16.msra.mxu0 0
        %3867 = vmatprep.subr.bf16.mxu0 0
        %3868 = vmatpush1.bf16.msra.mxu0 0
        %3869 = vmatprep.subr.bf16.mxu0 0
        %3870 = vmatpush1.bf16.msra.mxu0 0
        %3871 = vmatprep.subr.bf16.mxu0 0
        %3872 = vmatpush1.bf16.msra.mxu0 0
        %3873 = vmatprep.subr.bf16.mxu0 0
        %3874 = vmatpush1.bf16.msra.mxu0 0
        %3875 = vmatprep.mubr.bf16.mxu0 0
        %3876 = vmatmul.mubr.bf16.gmra.mrb[0].mxu0 %v3841
        %v3877 = vpop.f32.mrb[0].mxu0
        %v3878 = vadd.f32 0.0, %v3877
        %v3879 = vpop.f32.mrb[0].mxu0
        %v3880 = vpop.f32.mrb[0].mxu0
        %v3881 = vpop.f32.mrb[0].mxu0
        %3882 = vdwg.mxu0
        %v3883 = vadd.f32 %v3502, %v3577
        %v3884 = vadd.f32 %v3503, %v3620
        %v3885 = vadd.f32 %v3504, %v3663
        %v3886 = vadd.f32 %v3505, %v3706
        %v3887 = vadd.f32 %v3506, %v3749
        %v3888 = vadd.f32 %v3507, %v3792
        %v3889 = vadd.f32 %v3508, %v3835
        %v3890 = vadd.f32 %v3509, %v3878
        %v3891 = vld [vmem:[%s2] sm:$0x1]
        %v3893 = vlaneseq
        %v3894 = vshrl.u32 %v3893, 7
        %v3895 = vsub.s32 0, %v3894
        %v3896 = vrot.slane %v3891, %v3895
        %v3898 = vadd.f32 %v3883, %v3896
        %v3899 = vadd.f32 %v3884, %v3896
        %v3900 = vadd.f32 %v3885, %v3896
        %v3901 = vadd.f32 %v3886, %v3896
        %v3902 = vadd.f32 %v3887, %v3896
        %v3903 = vadd.f32 %v3888, %v3896
        %v3904 = vadd.f32 %v3889, %v3896
        %v3905 = vadd.f32 %v3890, %v3896
        %v3906 = vmax.f32 %v3898, 0.0
        %v3907 = vmax.f32 %v3899, 0.0
        %v3908 = vmax.f32 %v3900, 0.0
        %v3909 = vmax.f32 %v3901, 0.0
        %v3910 = vmax.f32 %v3902, 0.0
        %v3911 = vmax.f32 %v3903, 0.0
        %v3912 = vmax.f32 %v3904, 0.0
        %v3913 = vmax.f32 %v3905, 0.0
        %s3914 = scalar_lea.vmem [#allocation3], 16
        %3915 = vst.msk [vmem:[%s3914 + $0x1] sm:$0xff] %vm457, %v3906
        %3916 = vst.msk [vmem:[%s3914 + $0x11] sm:$0xff] %vm457, %v3907
        %3917 = vst.msk [vmem:[%s3914 + $0x21] sm:$0xff] %vm457, %v3908
        %3918 = vst.msk [vmem:[%s3914 + $0x31] sm:$0xff] %vm457, %v3909
        %3919 = vst.msk [vmem:[%s3914 + $0x41] sm:$0xff] %vm457, %v3910
        %3920 = vst.msk [vmem:[%s3914 + $0x51] sm:$0xff] %vm457, %v3911
        %3921 = vst.msk [vmem:[%s3914 + $0x61] sm:$0xff] %vm457, %v3912
        %3922 = vst.msk [vmem:[%s3914 + $0x71] sm:$0xff] %vm457, %v3913
        %vm3923 = vcmask 521216
        %3924 = vst.msk [vmem:[#allocation4] sm:$0x3f] %vm3923, 0.0
        %3925 = vst.msk [vmem:[#allocation4 + $0x8] sm:$0x3f] %vm3923, 0.0
        %3926 = vst.msk [vmem:[#allocation4 + $0x10] sm:$0x3f] %vm3923, 0.0
        %3927 = vst.msk [vmem:[#allocation4 + $0x18] sm:$0x3f] %vm3923, 0.0
        %3928 = vst.msk [vmem:[#allocation4 + $0x20] sm:$0x3f] %vm3923, 0.0
        %3929 = vst.msk [vmem:[#allocation4 + $0x28] sm:$0x3f] %vm3923, 0.0
        %v3930 = vld [vmem:[#allocation3] ss:$2 sm:$0xf]
        %s3931 = scalar_lea.vmem [#allocation3], 32
        %v3932 = vld [vmem:[%s3931] ss:$2 sm:$0xf]
        %s3933 = scalar_lea.vmem [#allocation3], 64
        %v3934 = vld [vmem:[%s3933] ss:$2 sm:$0xf]
        %s3935 = scalar_lea.vmem [#allocation3], 96
        %v3936 = vld [vmem:[%s3935] ss:$2 sm:$0xf]
        %v3937 = vpack.c.bf16 %v3930, %v3930
        %v3938 = vpack.c.bf16 %v3932, %v3932
        %v3939 = vpack.c.bf16 %v3934, %v3934
        %v3940 = vpack.c.bf16 %v3936, %v3936
        %v3941 = vld [vmem:[%s3] sm:$0xf]
        %v3942 = vld [vmem:[%s3 + $0x4] sm:$0xf]
        %v3943 = vld [vmem:[%s3 + $0x8] sm:$0xf]
        %v3944 = vld [vmem:[%s3 + $0xc] sm:$0xf]
        %v3945 = vld [vmem:[%s3 + $0x10] sm:$0xf]
        %v3946 = vld [vmem:[%s3 + $0x14] sm:$0xf]
        %v3947 = vld [vmem:[%s3 + $0x18] sm:$0xf]
        %v3948 = vld [vmem:[%s3 + $0x1c] sm:$0xf]
        %s3949 = scalar_lea.vmem [#allocation3], 1
        %v3950 = vld [vmem:[%s3949] ss:$2 sm:$0xf]
        %s3951 = scalar_lea.vmem [#allocation3], 33
        %v3952 = vld [vmem:[%s3951] ss:$2 sm:$0xf]
        %s3953 = scalar_lea.vmem [#allocation3], 65
        %v3954 = vld [vmem:[%s3953] ss:$2 sm:$0xf]
        %s3955 = scalar_lea.vmem [#allocation3], 97
        %v3956 = vld [vmem:[%s3955] ss:$2 sm:$0xf]
        %v3957 = vpack.c.bf16 %v3950, %v3950
        %v3958 = vpack.c.bf16 %v3952, %v3952
        %v3959 = vpack.c.bf16 %v3954, %v3954
        %v3960 = vpack.c.bf16 %v3956, %v3956
        %s3961 = scalar_lea.vmem %s3, 32
        %v3962 = vld [vmem:[%s3961] sm:$0xf]
        %v3963 = vld [vmem:[%s3961 + $0x4] sm:$0xf]
        %v3964 = vld [vmem:[%s3961 + $0x8] sm:$0xf]
        %v3965 = vld [vmem:[%s3961 + $0xc] sm:$0xf]
        %v3966 = vld [vmem:[%s3961 + $0x10] sm:$0xf]
        %v3967 = vld [vmem:[%s3961 + $0x14] sm:$0xf]
        %v3968 = vld [vmem:[%s3961 + $0x18] sm:$0xf]
        %v3969 = vld [vmem:[%s3961 + $0x1c] sm:$0xf]
        %v3978 = vunpack.c.l.b16 %v3962
        %v3979 = vunpack.c.l.b16 %v3963
        %v3980 = vunpack.c.l.b16 %v3964
        %v3981 = vunpack.c.l.b16 %v3965
        %v3982 = vunpack.c.l.b16 %v3966
        %v3983 = vunpack.c.l.b16 %v3967
        %v3984 = vunpack.c.l.b16 %v3968
        %v3985 = vunpack.c.l.b16 %v3969
        %v3986 = vpack.c.b16 %v3979, %v3978
        %v3987 = vpack.c.b16 %v3981, %v3980
        %v3988 = vpack.c.b16 %v3983, %v3982
        %v3989 = vpack.c.b16 %v3985, %v3984
        %v3995 = vsel %vm457, %v3957, 0
        %3997 = vmatprep.subr.bf16.mxu0 0
        %3998 = vmatpush1.bf16.msra.mxu0 %v3986
        %3999 = vmatprep.subr.bf16.mxu0 0
        %4000 = vmatpush1.bf16.msra.mxu0 %v3987
        %4001 = vmatprep.subr.bf16.mxu0 0
        %4002 = vmatpush1.bf16.msra.mxu0 %v3988
        %4003 = vmatprep.subr.bf16.mxu0 0
        %4004 = vmatpush1.bf16.msra.mxu0 %v3989
        %4005 = vmatprep.subr.bf16.mxu0 0
        %4006 = vmatpush1.bf16.msra.mxu0 0
        %4007 = vmatprep.subr.bf16.mxu0 0
        %4008 = vmatpush1.bf16.msra.mxu0 0
        %4009 = vmatprep.subr.bf16.mxu0 0
        %4010 = vmatpush1.bf16.msra.mxu0 0
        %4011 = vmatprep.subr.bf16.mxu0 0
        %4012 = vmatpush1.bf16.msra.mxu0 0
        %4013 = vmatprep.subr.bf16.mxu0 0
        %4014 = vmatpush1.bf16.msra.mxu0 0
        %4015 = vmatprep.subr.bf16.mxu0 0
        %4016 = vmatpush1.bf16.msra.mxu0 0
        %4017 = vmatprep.subr.bf16.mxu0 0
        %4018 = vmatpush1.bf16.msra.mxu0 0
        %4019 = vmatprep.subr.bf16.mxu0 0
        %4020 = vmatpush1.bf16.msra.mxu0 0
        %4021 = vmatprep.subr.bf16.mxu0 0
        %4022 = vmatpush1.bf16.msra.mxu0 0
        %4023 = vmatprep.subr.bf16.mxu0 0
        %4024 = vmatpush1.bf16.msra.mxu0 0
        %4025 = vmatprep.subr.bf16.mxu0 0
        %4026 = vmatpush1.bf16.msra.mxu0 0
        %4027 = vmatprep.subr.bf16.mxu0 0
        %4028 = vmatpush1.bf16.msra.mxu0 0
        %4029 = vmatprep.mubr.bf16.mxu0 0
        %4030 = vmatmul.mubr.bf16.gmra.mrb[0].mxu0 %v3995
        %v4031 = vpop.f32.mrb[0].mxu0
        %v4032 = vadd.f32 0.0, %v4031
        %v4033 = vpop.f32.mrb[0].mxu0
        %v4034 = vpop.f32.mrb[0].mxu0
        %v4035 = vpop.f32.mrb[0].mxu0
        %4036 = vdwg.mxu0
        %v4038 = vsel %vm457, %v3958, 0
        %4040 = vmatprep.subr.bf16.mxu0 0
        %4041 = vmatpush1.bf16.msra.mxu0 %v3986
        %4042 = vmatprep.subr.bf16.mxu0 0
        %4043 = vmatpush1.bf16.msra.mxu0 %v3987
        %4044 = vmatprep.subr.bf16.mxu0 0
        %4045 = vmatpush1.bf16.msra.mxu0 %v3988
        %4046 = vmatprep.subr.bf16.mxu0 0
        %4047 = vmatpush1.bf16.msra.mxu0 %v3989
        %4048 = vmatprep.subr.bf16.mxu0 0
        %4049 = vmatpush1.bf16.msra.mxu0 0
        %4050 = vmatprep.subr.bf16.mxu0 0
        %4051 = vmatpush1.bf16.msra.mxu0 0
        %4052 = vmatprep.subr.bf16.mxu0 0
        %4053 = vmatpush1.bf16.msra.mxu0 0
        %4054 = vmatprep.subr.bf16.mxu0 0
        %4055 = vmatpush1.bf16.msra.mxu0 0
        %4056 = vmatprep.subr.bf16.mxu0 0
        %4057 = vmatpush1.bf16.msra.mxu0 0
        %4058 = vmatprep.subr.bf16.mxu0 0
        %4059 = vmatpush1.bf16.msra.mxu0 0
        %4060 = vmatprep.subr.bf16.mxu0 0
        %4061 = vmatpush1.bf16.msra.mxu0 0
        %4062 = vmatprep.subr.bf16.mxu0 0
        %4063 = vmatpush1.bf16.msra.mxu0 0
        %4064 = vmatprep.subr.bf16.mxu0 0
        %4065 = vmatpush1.bf16.msra.mxu0 0
        %4066 = vmatprep.subr.bf16.mxu0 0
        %4067 = vmatpush1.bf16.msra.mxu0 0
        %4068 = vmatprep.subr.bf16.mxu0 0
        %4069 = vmatpush1.bf16.msra.mxu0 0
        %4070 = vmatprep.subr.bf16.mxu0 0
        %4071 = vmatpush1.bf16.msra.mxu0 0
        %4072 = vmatprep.mubr.bf16.mxu0 0
        %4073 = vmatmul.mubr.bf16.gmra.mrb[0].mxu0 %v4038
        %v4074 = vpop.f32.mrb[0].mxu0
        %v4075 = vadd.f32 0.0, %v4074
        %v4076 = vpop.f32.mrb[0].mxu0
        %v4077 = vpop.f32.mrb[0].mxu0
        %v4078 = vpop.f32.mrb[0].mxu0
        %4079 = vdwg.mxu0
        %v4081 = vsel %vm457, %v3959, 0
        %4083 = vmatprep.subr.bf16.mxu0 0
        %4084 = vmatpush1.bf16.msra.mxu0 %v3986
        %4085 = vmatprep.subr.bf16.mxu0 0
        %4086 = vmatpush1.bf16.msra.mxu0 %v3987
        %4087 = vmatprep.subr.bf16.mxu0 0
        %4088 = vmatpush1.bf16.msra.mxu0 %v3988
        %4089 = vmatprep.subr.bf16.mxu0 0
        %4090 = vmatpush1.bf16.msra.mxu0 %v3989
        %4091 = vmatprep.subr.bf16.mxu0 0
        %4092 = vmatpush1.bf16.msra.mxu0 0
        %4093 = vmatprep.subr.bf16.mxu0 0
        %4094 = vmatpush1.bf16.msra.mxu0 0
        %4095 = vmatprep.subr.bf16.mxu0 0
        %4096 = vmatpush1.bf16.msra.mxu0 0
        %4097 = vmatprep.subr.bf16.mxu0 0
        %4098 = vmatpush1.bf16.msra.mxu0 0
        %4099 = vmatprep.subr.bf16.mxu0 0
        %4100 = vmatpush1.bf16.msra.mxu0 0
        %4101 = vmatprep.subr.bf16.mxu0 0
        %4102 = vmatpush1.bf16.msra.mxu0 0
        %4103 = vmatprep.subr.bf16.mxu0 0
        %4104 = vmatpush1.bf16.msra.mxu0 0
        %4105 = vmatprep.subr.bf16.mxu0 0
        %4106 = vmatpush1.bf16.msra.mxu0 0
        %4107 = vmatprep.subr.bf16.mxu0 0
        %4108 = vmatpush1.bf16.msra.mxu0 0
        %4109 = vmatprep.subr.bf16.mxu0 0
        %4110 = vmatpush1.bf16.msra.mxu0 0
        %4111 = vmatprep.subr.bf16.mxu0 0
        %4112 = vmatpush1.bf16.msra.mxu0 0
        %4113 = vmatprep.subr.bf16.mxu0 0
        %4114 = vmatpush1.bf16.msra.mxu0 0
        %4115 = vmatprep.mubr.bf16.mxu0 0
        %4116 = vmatmul.mubr.bf16.gmra.mrb[0].mxu0 %v4081
        %v4117 = vpop.f32.mrb[0].mxu0
        %v4118 = vadd.f32 0.0, %v4117
        %v4119 = vpop.f32.mrb[0].mxu0
        %v4120 = vpop.f32.mrb[0].mxu0
        %v4121 = vpop.f32.mrb[0].mxu0
        %4122 = vdwg.mxu0
        %v4124 = vsel %vm457, %v3960, 0
        %4126 = vmatprep.subr.bf16.mxu0 0
        %4127 = vmatpush1.bf16.msra.mxu0 %v3986
        %4128 = vmatprep.subr.bf16.mxu0 0
        %4129 = vmatpush1.bf16.msra.mxu0 %v3987
        %4130 = vmatprep.subr.bf16.mxu0 0
        %4131 = vmatpush1.bf16.msra.mxu0 %v3988
        %4132 = vmatprep.subr.bf16.mxu0 0
        %4133 = vmatpush1.bf16.msra.mxu0 %v3989
        %4134 = vmatprep.subr.bf16.mxu0 0
        %4135 = vmatpush1.bf16.msra.mxu0 0
        %4136 = vmatprep.subr.bf16.mxu0 0
        %4137 = vmatpush1.bf16.msra.mxu0 0
        %4138 = vmatprep.subr.bf16.mxu0 0
        %4139 = vmatpush1.bf16.msra.mxu0 0
        %4140 = vmatprep.subr.bf16.mxu0 0
        %4141 = vmatpush1.bf16.msra.mxu0 0
        %4142 = vmatprep.subr.bf16.mxu0 0
        %4143 = vmatpush1.bf16.msra.mxu0 0
        %4144 = vmatprep.subr.bf16.mxu0 0
        %4145 = vmatpush1.bf16.msra.mxu0 0
        %4146 = vmatprep.subr.bf16.mxu0 0
        %4147 = vmatpush1.bf16.msra.mxu0 0
        %4148 = vmatprep.subr.bf16.mxu0 0
        %4149 = vmatpush1.bf16.msra.mxu0 0
        %4150 = vmatprep.subr.bf16.mxu0 0
        %4151 = vmatpush1.bf16.msra.mxu0 0
        %4152 = vmatprep.subr.bf16.mxu0 0
        %4153 = vmatpush1.bf16.msra.mxu0 0
        %4154 = vmatprep.subr.bf16.mxu0 0
        %4155 = vmatpush1.bf16.msra.mxu0 0
        %4156 = vmatprep.subr.bf16.mxu0 0
        %4157 = vmatpush1.bf16.msra.mxu0 0
        %4158 = vmatprep.mubr.bf16.mxu0 0
        %4159 = vmatmul.mubr.bf16.gmra.mrb[0].mxu0 %v4124
        %v4160 = vpop.f32.mrb[0].mxu0
        %v4161 = vadd.f32 0.0, %v4160
        %v4162 = vpop.f32.mrb[0].mxu0
        %v4163 = vpop.f32.mrb[0].mxu0
        %v4164 = vpop.f32.mrb[0].mxu0
        %4165 = vdwg.mxu0
        %v4174 = vunpack.c.l.b16 %v3941
        %v4175 = vunpack.c.l.b16 %v3942
        %v4176 = vunpack.c.l.b16 %v3943
        %v4177 = vunpack.c.l.b16 %v3944
        %v4178 = vunpack.c.l.b16 %v3945
        %v4179 = vunpack.c.l.b16 %v3946
        %v4180 = vunpack.c.l.b16 %v3947
        %v4181 = vunpack.c.l.b16 %v3948
        %v4182 = vpack.c.b16 %v4175, %v4174
        %v4183 = vpack.c.b16 %v4177, %v4176
        %v4184 = vpack.c.b16 %v4179, %v4178
        %v4185 = vpack.c.b16 %v4181, %v4180
        %v4191 = vsel %vm457, %v3937, 0
        %4193 = vmatprep.subr.bf16.mxu0 0
        %4194 = vmatpush1.bf16.msra.mxu0 %v4182
        %4195 = vmatprep.subr.bf16.mxu0 0
        %4196 = vmatpush1.bf16.msra.mxu0 %v4183
        %4197 = vmatprep.subr.bf16.mxu0 0
        %4198 = vmatpush1.bf16.msra.mxu0 %v4184
        %4199 = vmatprep.subr.bf16.mxu0 0
        %4200 = vmatpush1.bf16.msra.mxu0 %v4185
        %4201 = vmatprep.subr.bf16.mxu0 0
        %4202 = vmatpush1.bf16.msra.mxu0 0
        %4203 = vmatprep.subr.bf16.mxu0 0
        %4204 = vmatpush1.bf16.msra.mxu0 0
        %4205 = vmatprep.subr.bf16.mxu0 0
        %4206 = vmatpush1.bf16.msra.mxu0 0
        %4207 = vmatprep.subr.bf16.mxu0 0
        %4208 = vmatpush1.bf16.msra.mxu0 0
        %4209 = vmatprep.subr.bf16.mxu0 0
        %4210 = vmatpush1.bf16.msra.mxu0 0
        %4211 = vmatprep.subr.bf16.mxu0 0
        %4212 = vmatpush1.bf16.msra.mxu0 0
        %4213 = vmatprep.subr.bf16.mxu0 0
        %4214 = vmatpush1.bf16.msra.mxu0 0
        %4215 = vmatprep.subr.bf16.mxu0 0
        %4216 = vmatpush1.bf16.msra.mxu0 0
        %4217 = vmatprep.subr.bf16.mxu0 0
        %4218 = vmatpush1.bf16.msra.mxu0 0
        %4219 = vmatprep.subr.bf16.mxu0 0
        %4220 = vmatpush1.bf16.msra.mxu0 0
        %4221 = vmatprep.subr.bf16.mxu0 0
        %4222 = vmatpush1.bf16.msra.mxu0 0
        %4223 = vmatprep.subr.bf16.mxu0 0
        %4224 = vmatpush1.bf16.msra.mxu0 0
        %4225 = vmatprep.mubr.bf16.mxu0 0
        %4226 = vmatmul.mubr.bf16.gmra.mrb[0].mxu0 %v4191
        %v4227 = vpop.f32.mrb[0].mxu0
        %v4228 = vadd.f32 %v4032, %v4227
        %v4229 = vpop.f32.mrb[0].mxu0
        %v4230 = vpop.f32.mrb[0].mxu0
        %v4231 = vpop.f32.mrb[0].mxu0
        %4232 = vdwg.mxu0
        %v4234 = vsel %vm457, %v3938, 0
        %4236 = vmatprep.subr.bf16.mxu0 0
        %4237 = vmatpush1.bf16.msra.mxu0 %v4182
        %4238 = vmatprep.subr.bf16.mxu0 0
        %4239 = vmatpush1.bf16.msra.mxu0 %v4183
        %4240 = vmatprep.subr.bf16.mxu0 0
        %4241 = vmatpush1.bf16.msra.mxu0 %v4184
        %4242 = vmatprep.subr.bf16.mxu0 0
        %4243 = vmatpush1.bf16.msra.mxu0 %v4185
        %4244 = vmatprep.subr.bf16.mxu0 0
        %4245 = vmatpush1.bf16.msra.mxu0 0
        %4246 = vmatprep.subr.bf16.mxu0 0
        %4247 = vmatpush1.bf16.msra.mxu0 0
        %4248 = vmatprep.subr.bf16.mxu0 0
        %4249 = vmatpush1.bf16.msra.mxu0 0
        %4250 = vmatprep.subr.bf16.mxu0 0
        %4251 = vmatpush1.bf16.msra.mxu0 0
        %4252 = vmatprep.subr.bf16.mxu0 0
        %4253 = vmatpush1.bf16.msra.mxu0 0
        %4254 = vmatprep.subr.bf16.mxu0 0
        %4255 = vmatpush1.bf16.msra.mxu0 0
        %4256 = vmatprep.subr.bf16.mxu0 0
        %4257 = vmatpush1.bf16.msra.mxu0 0
        %4258 = vmatprep.subr.bf16.mxu0 0
        %4259 = vmatpush1.bf16.msra.mxu0 0
        %4260 = vmatprep.subr.bf16.mxu0 0
        %4261 = vmatpush1.bf16.msra.mxu0 0
        %4262 = vmatprep.subr.bf16.mxu0 0
        %4263 = vmatpush1.bf16.msra.mxu0 0
        %4264 = vmatprep.subr.bf16.mxu0 0
        %4265 = vmatpush1.bf16.msra.mxu0 0
        %4266 = vmatprep.subr.bf16.mxu0 0
        %4267 = vmatpush1.bf16.msra.mxu0 0
        %4268 = vmatprep.mubr.bf16.mxu0 0
        %4269 = vmatmul.mubr.bf16.gmra.mrb[0].mxu0 %v4234
        %v4270 = vpop.f32.mrb[0].mxu0
        %v4271 = vadd.f32 %v4075, %v4270
        %v4272 = vpop.f32.mrb[0].mxu0
        %v4273 = vpop.f32.mrb[0].mxu0
        %v4274 = vpop.f32.mrb[0].mxu0
        %4275 = vdwg.mxu0
        %v4277 = vsel %vm457, %v3939, 0
        %4279 = vmatprep.subr.bf16.mxu0 0
        %4280 = vmatpush1.bf16.msra.mxu0 %v4182
        %4281 = vmatprep.subr.bf16.mxu0 0
        %4282 = vmatpush1.bf16.msra.mxu0 %v4183
        %4283 = vmatprep.subr.bf16.mxu0 0
        %4284 = vmatpush1.bf16.msra.mxu0 %v4184
        %4285 = vmatprep.subr.bf16.mxu0 0
        %4286 = vmatpush1.bf16.msra.mxu0 %v4185
        %4287 = vmatprep.subr.bf16.mxu0 0
        %4288 = vmatpush1.bf16.msra.mxu0 0
        %4289 = vmatprep.subr.bf16.mxu0 0
        %4290 = vmatpush1.bf16.msra.mxu0 0
        %4291 = vmatprep.subr.bf16.mxu0 0
        %4292 = vmatpush1.bf16.msra.mxu0 0
        %4293 = vmatprep.subr.bf16.mxu0 0
        %4294 = vmatpush1.bf16.msra.mxu0 0
        %4295 = vmatprep.subr.bf16.mxu0 0
        %4296 = vmatpush1.bf16.msra.mxu0 0
        %4297 = vmatprep.subr.bf16.mxu0 0
        %4298 = vmatpush1.bf16.msra.mxu0 0
        %4299 = vmatprep.subr.bf16.mxu0 0
        %4300 = vmatpush1.bf16.msra.mxu0 0
        %4301 = vmatprep.subr.bf16.mxu0 0
        %4302 = vmatpush1.bf16.msra.mxu0 0
        %4303 = vmatprep.subr.bf16.mxu0 0
        %4304 = vmatpush1.bf16.msra.mxu0 0
        %4305 = vmatprep.subr.bf16.mxu0 0
        %4306 = vmatpush1.bf16.msra.mxu0 0
        %4307 = vmatprep.subr.bf16.mxu0 0
        %4308 = vmatpush1.bf16.msra.mxu0 0
        %4309 = vmatprep.subr.bf16.mxu0 0
        %4310 = vmatpush1.bf16.msra.mxu0 0
        %4311 = vmatprep.mubr.bf16.mxu0 0
        %4312 = vmatmul.mubr.bf16.gmra.mrb[0].mxu0 %v4277
        %v4313 = vpop.f32.mrb[0].mxu0
        %v4314 = vadd.f32 %v4118, %v4313
        %v4315 = vpop.f32.mrb[0].mxu0
        %v4316 = vpop.f32.mrb[0].mxu0
        %v4317 = vpop.f32.mrb[0].mxu0
        %4318 = vdwg.mxu0
        %v4320 = vsel %vm457, %v3940, 0
        %4322 = vmatprep.subr.bf16.mxu0 0
        %4323 = vmatpush1.bf16.msra.mxu0 %v4182
        %4324 = vmatprep.subr.bf16.mxu0 0
        %4325 = vmatpush1.bf16.msra.mxu0 %v4183
        %4326 = vmatprep.subr.bf16.mxu0 0
        %4327 = vmatpush1.bf16.msra.mxu0 %v4184
        %4328 = vmatprep.subr.bf16.mxu0 0
        %4329 = vmatpush1.bf16.msra.mxu0 %v4185
        %4330 = vmatprep.subr.bf16.mxu0 0
        %4331 = vmatpush1.bf16.msra.mxu0 0
        %4332 = vmatprep.subr.bf16.mxu0 0
        %4333 = vmatpush1.bf16.msra.mxu0 0
        %4334 = vmatprep.subr.bf16.mxu0 0
        %4335 = vmatpush1.bf16.msra.mxu0 0
        %4336 = vmatprep.subr.bf16.mxu0 0
        %4337 = vmatpush1.bf16.msra.mxu0 0
        %4338 = vmatprep.subr.bf16.mxu0 0
        %4339 = vmatpush1.bf16.msra.mxu0 0
        %4340 = vmatprep.subr.bf16.mxu0 0
        %4341 = vmatpush1.bf16.msra.mxu0 0
        %4342 = vmatprep.subr.bf16.mxu0 0
        %4343 = vmatpush1.bf16.msra.mxu0 0
        %4344 = vmatprep.subr.bf16.mxu0 0
        %4345 = vmatpush1.bf16.msra.mxu0 0
        %4346 = vmatprep.subr.bf16.mxu0 0
        %4347 = vmatpush1.bf16.msra.mxu0 0
        %4348 = vmatprep.subr.bf16.mxu0 0
        %4349 = vmatpush1.bf16.msra.mxu0 0
        %4350 = vmatprep.subr.bf16.mxu0 0
        %4351 = vmatpush1.bf16.msra.mxu0 0
        %4352 = vmatprep.subr.bf16.mxu0 0
        %4353 = vmatpush1.bf16.msra.mxu0 0
        %4354 = vmatprep.mubr.bf16.mxu0 0
        %4355 = vmatmul.mubr.bf16.gmra.mrb[0].mxu0 %v4320
        %v4356 = vpop.f32.mrb[0].mxu0
        %v4357 = vadd.f32 %v4161, %v4356
        %v4358 = vpop.f32.mrb[0].mxu0
        %v4359 = vpop.f32.mrb[0].mxu0
        %v4360 = vpop.f32.mrb[0].mxu0
        %4361 = vdwg.mxu0
        %s4362 = scalar_lea.vmem [#allocation3], 2
        %v4363 = vld [vmem:[%s4362] ss:$2 sm:$0xf]
        %s4364 = scalar_lea.vmem [#allocation3], 34
        %v4365 = vld [vmem:[%s4364] ss:$2 sm:$0xf]
        %s4366 = scalar_lea.vmem [#allocation3], 66
        %v4367 = vld [vmem:[%s4366] ss:$2 sm:$0xf]
        %s4368 = scalar_lea.vmem [#allocation3], 98
        %v4369 = vld [vmem:[%s4368] ss:$2 sm:$0xf]
        %v4370 = vpack.c.bf16 %v4363, %v4363
        %v4371 = vpack.c.bf16 %v4365, %v4365
        %v4372 = vpack.c.bf16 %v4367, %v4367
        %v4373 = vpack.c.bf16 %v4369, %v4369
        %s4374 = scalar_lea.vmem %s3, 64
        %v4375 = vld [vmem:[%s4374] sm:$0xf]
        %v4376 = vld [vmem:[%s4374 + $0x4] sm:$0xf]
        %v4377 = vld [vmem:[%s4374 + $0x8] sm:$0xf]
        %v4378 = vld [vmem:[%s4374 + $0xc] sm:$0xf]
        %v4379 = vld [vmem:[%s4374 + $0x10] sm:$0xf]
        %v4380 = vld [vmem:[%s4374 + $0x14] sm:$0xf]
        %v4381 = vld [vmem:[%s4374 + $0x18] sm:$0xf]
        %v4382 = vld [vmem:[%s4374 + $0x1c] sm:$0xf]
        %v4391 = vunpack.c.l.b16 %v4375
        %v4392 = vunpack.c.l.b16 %v4376
        %v4393 = vunpack.c.l.b16 %v4377
        %v4394 = vunpack.c.l.b16 %v4378
        %v4395 = vunpack.c.l.b16 %v4379
        %v4396 = vunpack.c.l.b16 %v4380
        %v4397 = vunpack.c.l.b16 %v4381
        %v4398 = vunpack.c.l.b16 %v4382
        %v4399 = vpack.c.b16 %v4392, %v4391
        %v4400 = vpack.c.b16 %v4394, %v4393
        %v4401 = vpack.c.b16 %v4396, %v4395
        %v4402 = vpack.c.b16 %v4398, %v4397
        %v4408 = vsel %vm457, %v4370, 0
        %4410 = vmatprep.subr.bf16.mxu0 0
        %4411 = vmatpush1.bf16.msra.mxu0 %v4399
        %4412 = vmatprep.subr.bf16.mxu0 0
        %4413 = vmatpush1.bf16.msra.mxu0 %v4400
        %4414 = vmatprep.subr.bf16.mxu0 0
        %4415 = vmatpush1.bf16.msra.mxu0 %v4401
        %4416 = vmatprep.subr.bf16.mxu0 0
        %4417 = vmatpush1.bf16.msra.mxu0 %v4402
        %4418 = vmatprep.subr.bf16.mxu0 0
        %4419 = vmatpush1.bf16.msra.mxu0 0
        %4420 = vmatprep.subr.bf16.mxu0 0
        %4421 = vmatpush1.bf16.msra.mxu0 0
        %4422 = vmatprep.subr.bf16.mxu0 0
        %4423 = vmatpush1.bf16.msra.mxu0 0
        %4424 = vmatprep.subr.bf16.mxu0 0
        %4425 = vmatpush1.bf16.msra.mxu0 0
        %4426 = vmatprep.subr.bf16.mxu0 0
        %4427 = vmatpush1.bf16.msra.mxu0 0
        %4428 = vmatprep.subr.bf16.mxu0 0
        %4429 = vmatpush1.bf16.msra.mxu0 0
        %4430 = vmatprep.subr.bf16.mxu0 0
        %4431 = vmatpush1.bf16.msra.mxu0 0
        %4432 = vmatprep.subr.bf16.mxu0 0
        %4433 = vmatpush1.bf16.msra.mxu0 0
        %4434 = vmatprep.subr.bf16.mxu0 0
        %4435 = vmatpush1.bf16.msra.mxu0 0
        %4436 = vmatprep.subr.bf16.mxu0 0
        %4437 = vmatpush1.bf16.msra.mxu0 0
        %4438 = vmatprep.subr.bf16.mxu0 0
        %4439 = vmatpush1.bf16.msra.mxu0 0
        %4440 = vmatprep.subr.bf16.mxu0 0
        %4441 = vmatpush1.bf16.msra.mxu0 0
        %4442 = vmatprep.mubr.bf16.mxu0 0
        %4443 = vmatmul.mubr.bf16.gmra.mrb[0].mxu0 %v4408
        %v4444 = vpop.f32.mrb[0].mxu0
        %v4445 = vadd.f32 0.0, %v4444
        %v4446 = vpop.f32.mrb[0].mxu0
        %v4447 = vpop.f32.mrb[0].mxu0
        %v4448 = vpop.f32.mrb[0].mxu0
        %4449 = vdwg.mxu0
        %v4451 = vsel %vm457, %v4371, 0
        %4453 = vmatprep.subr.bf16.mxu0 0
        %4454 = vmatpush1.bf16.msra.mxu0 %v4399
        %4455 = vmatprep.subr.bf16.mxu0 0
        %4456 = vmatpush1.bf16.msra.mxu0 %v4400
        %4457 = vmatprep.subr.bf16.mxu0 0
        %4458 = vmatpush1.bf16.msra.mxu0 %v4401
        %4459 = vmatprep.subr.bf16.mxu0 0
        %4460 = vmatpush1.bf16.msra.mxu0 %v4402
        %4461 = vmatprep.subr.bf16.mxu0 0
        %4462 = vmatpush1.bf16.msra.mxu0 0
        %4463 = vmatprep.subr.bf16.mxu0 0
        %4464 = vmatpush1.bf16.msra.mxu0 0
        %4465 = vmatprep.subr.bf16.mxu0 0
        %4466 = vmatpush1.bf16.msra.mxu0 0
        %4467 = vmatprep.subr.bf16.mxu0 0
        %4468 = vmatpush1.bf16.msra.mxu0 0
        %4469 = vmatprep.subr.bf16.mxu0 0
        %4470 = vmatpush1.bf16.msra.mxu0 0
        %4471 = vmatprep.subr.bf16.mxu0 0
        %4472 = vmatpush1.bf16.msra.mxu0 0
        %4473 = vmatprep.subr.bf16.mxu0 0
        %4474 = vmatpush1.bf16.msra.mxu0 0
        %4475 = vmatprep.subr.bf16.mxu0 0
        %4476 = vmatpush1.bf16.msra.mxu0 0
        %4477 = vmatprep.subr.bf16.mxu0 0
        %4478 = vmatpush1.bf16.msra.mxu0 0
        %4479 = vmatprep.subr.bf16.mxu0 0
        %4480 = vmatpush1.bf16.msra.mxu0 0
        %4481 = vmatprep.subr.bf16.mxu0 0
        %4482 = vmatpush1.bf16.msra.mxu0 0
        %4483 = vmatprep.subr.bf16.mxu0 0
        %4484 = vmatpush1.bf16.msra.mxu0 0
        %4485 = vmatprep.mubr.bf16.mxu0 0
        %4486 = vmatmul.mubr.bf16.gmra.mrb[0].mxu0 %v4451
        %v4487 = vpop.f32.mrb[0].mxu0
        %v4488 = vadd.f32 0.0, %v4487
        %v4489 = vpop.f32.mrb[0].mxu0
        %v4490 = vpop.f32.mrb[0].mxu0
        %v4491 = vpop.f32.mrb[0].mxu0
        %4492 = vdwg.mxu0
        %v4494 = vsel %vm457, %v4372, 0
        %4496 = vmatprep.subr.bf16.mxu0 0
        %4497 = vmatpush1.bf16.msra.mxu0 %v4399
        %4498 = vmatprep.subr.bf16.mxu0 0
        %4499 = vmatpush1.bf16.msra.mxu0 %v4400
        %4500 = vmatprep.subr.bf16.mxu0 0
        %4501 = vmatpush1.bf16.msra.mxu0 %v4401
        %4502 = vmatprep.subr.bf16.mxu0 0
        %4503 = vmatpush1.bf16.msra.mxu0 %v4402
        %4504 = vmatprep.subr.bf16.mxu0 0
        %4505 = vmatpush1.bf16.msra.mxu0 0
        %4506 = vmatprep.subr.bf16.mxu0 0
        %4507 = vmatpush1.bf16.msra.mxu0 0
        %4508 = vmatprep.subr.bf16.mxu0 0
        %4509 = vmatpush1.bf16.msra.mxu0 0
        %4510 = vmatprep.subr.bf16.mxu0 0
        %4511 = vmatpush1.bf16.msra.mxu0 0
        %4512 = vmatprep.subr.bf16.mxu0 0
        %4513 = vmatpush1.bf16.msra.mxu0 0
        %4514 = vmatprep.subr.bf16.mxu0 0
        %4515 = vmatpush1.bf16.msra.mxu0 0
        %4516 = vmatprep.subr.bf16.mxu0 0
        %4517 = vmatpush1.bf16.msra.mxu0 0
        %4518 = vmatprep.subr.bf16.mxu0 0
        %4519 = vmatpush1.bf16.msra.mxu0 0
        %4520 = vmatprep.subr.bf16.mxu0 0
        %4521 = vmatpush1.bf16.msra.mxu0 0
        %4522 = vmatprep.subr.bf16.mxu0 0
        %4523 = vmatpush1.bf16.msra.mxu0 0
        %4524 = vmatprep.subr.bf16.mxu0 0
        %4525 = vmatpush1.bf16.msra.mxu0 0
        %4526 = vmatprep.subr.bf16.mxu0 0
        %4527 = vmatpush1.bf16.msra.mxu0 0
        %4528 = vmatprep.mubr.bf16.mxu0 0
        %4529 = vmatmul.mubr.bf16.gmra.mrb[0].mxu0 %v4494
        %v4530 = vpop.f32.mrb[0].mxu0
        %v4531 = vadd.f32 0.0, %v4530
        %v4532 = vpop.f32.mrb[0].mxu0
        %v4533 = vpop.f32.mrb[0].mxu0
        %v4534 = vpop.f32.mrb[0].mxu0
        %4535 = vdwg.mxu0
        %v4537 = vsel %vm457, %v4373, 0
        %4539 = vmatprep.subr.bf16.mxu0 0
        %4540 = vmatpush1.bf16.msra.mxu0 %v4399
        %4541 = vmatprep.subr.bf16.mxu0 0
        %4542 = vmatpush1.bf16.msra.mxu0 %v4400
        %4543 = vmatprep.subr.bf16.mxu0 0
        %4544 = vmatpush1.bf16.msra.mxu0 %v4401
        %4545 = vmatprep.subr.bf16.mxu0 0
        %4546 = vmatpush1.bf16.msra.mxu0 %v4402
        %4547 = vmatprep.subr.bf16.mxu0 0
        %4548 = vmatpush1.bf16.msra.mxu0 0
        %4549 = vmatprep.subr.bf16.mxu0 0
        %4550 = vmatpush1.bf16.msra.mxu0 0
        %4551 = vmatprep.subr.bf16.mxu0 0
        %4552 = vmatpush1.bf16.msra.mxu0 0
        %4553 = vmatprep.subr.bf16.mxu0 0
        %4554 = vmatpush1.bf16.msra.mxu0 0
        %4555 = vmatprep.subr.bf16.mxu0 0
        %4556 = vmatpush1.bf16.msra.mxu0 0
        %4557 = vmatprep.subr.bf16.mxu0 0
        %4558 = vmatpush1.bf16.msra.mxu0 0
        %4559 = vmatprep.subr.bf16.mxu0 0
        %4560 = vmatpush1.bf16.msra.mxu0 0
        %4561 = vmatprep.subr.bf16.mxu0 0
        %4562 = vmatpush1.bf16.msra.mxu0 0
        %4563 = vmatprep.subr.bf16.mxu0 0
        %4564 = vmatpush1.bf16.msra.mxu0 0
        %4565 = vmatprep.subr.bf16.mxu0 0
        %4566 = vmatpush1.bf16.msra.mxu0 0
        %4567 = vmatprep.subr.bf16.mxu0 0
        %4568 = vmatpush1.bf16.msra.mxu0 0
        %4569 = vmatprep.subr.bf16.mxu0 0
        %4570 = vmatpush1.bf16.msra.mxu0 0
        %4571 = vmatprep.mubr.bf16.mxu0 0
        %4572 = vmatmul.mubr.bf16.gmra.mrb[0].mxu0 %v4537
        %v4573 = vpop.f32.mrb[0].mxu0
        %v4574 = vadd.f32 0.0, %v4573
        %v4575 = vpop.f32.mrb[0].mxu0
        %v4576 = vpop.f32.mrb[0].mxu0
        %v4577 = vpop.f32.mrb[0].mxu0
        %4578 = vdwg.mxu0
        %v4579 = vadd.f32 %v4228, %v4445
        %v4580 = vadd.f32 %v4271, %v4488
        %v4581 = vadd.f32 %v4314, %v4531
        %v4582 = vadd.f32 %v4357, %v4574
        %v4583 = vld [vmem:[%s3914] ss:$2 sm:$0xf]
        %s4584 = scalar_lea.vmem %s3914, 32 [#allocation3]
        %v4585 = vld [vmem:[%s4584] ss:$2 sm:$0xf]
        %s4586 = scalar_lea.vmem %s3914, 64 [#allocation3]
        %v4587 = vld [vmem:[%s4586] ss:$2 sm:$0xf]
        %s4588 = scalar_lea.vmem %s3914, 96 [#allocation3]
        %v4589 = vld [vmem:[%s4588] ss:$2 sm:$0xf]
        %v4590 = vpack.c.bf16 %v4583, %v4583
        %v4591 = vpack.c.bf16 %v4585, %v4585
        %v4592 = vpack.c.bf16 %v4587, %v4587
        %v4593 = vpack.c.bf16 %v4589, %v4589
        %s4594 = scalar_lea.vmem %s3, 96
        %v4595 = vld [vmem:[%s4594] sm:$0xf]
        %v4596 = vld [vmem:[%s4594 + $0x4] sm:$0xf]
        %v4597 = vld [vmem:[%s4594 + $0x8] sm:$0xf]
        %v4598 = vld [vmem:[%s4594 + $0xc] sm:$0xf]
        %v4599 = vld [vmem:[%s4594 + $0x10] sm:$0xf]
        %v4600 = vld [vmem:[%s4594 + $0x14] sm:$0xf]
        %v4601 = vld [vmem:[%s4594 + $0x18] sm:$0xf]
        %v4602 = vld [vmem:[%s4594 + $0x1c] sm:$0xf]
        %v4611 = vunpack.c.l.b16 %v4595
        %v4612 = vunpack.c.l.b16 %v4596
        %v4613 = vunpack.c.l.b16 %v4597
        %v4614 = vunpack.c.l.b16 %v4598
        %v4615 = vunpack.c.l.b16 %v4599
        %v4616 = vunpack.c.l.b16 %v4600
        %v4617 = vunpack.c.l.b16 %v4601
        %v4618 = vunpack.c.l.b16 %v4602
        %v4619 = vpack.c.b16 %v4612, %v4611
        %v4620 = vpack.c.b16 %v4614, %v4613
        %v4621 = vpack.c.b16 %v4616, %v4615
        %v4622 = vpack.c.b16 %v4618, %v4617
        %v4628 = vsel %vm457, %v4590, 0
        %4630 = vmatprep.subr.bf16.mxu0 0
        %4631 = vmatpush1.bf16.msra.mxu0 %v4619
        %4632 = vmatprep.subr.bf16.mxu0 0
        %4633 = vmatpush1.bf16.msra.mxu0 %v4620
        %4634 = vmatprep.subr.bf16.mxu0 0
        %4635 = vmatpush1.bf16.msra.mxu0 %v4621
        %4636 = vmatprep.subr.bf16.mxu0 0
        %4637 = vmatpush1.bf16.msra.mxu0 %v4622
        %4638 = vmatprep.subr.bf16.mxu0 0
        %4639 = vmatpush1.bf16.msra.mxu0 0
        %4640 = vmatprep.subr.bf16.mxu0 0
        %4641 = vmatpush1.bf16.msra.mxu0 0
        %4642 = vmatprep.subr.bf16.mxu0 0
        %4643 = vmatpush1.bf16.msra.mxu0 0
        %4644 = vmatprep.subr.bf16.mxu0 0
        %4645 = vmatpush1.bf16.msra.mxu0 0
        %4646 = vmatprep.subr.bf16.mxu0 0
        %4647 = vmatpush1.bf16.msra.mxu0 0
        %4648 = vmatprep.subr.bf16.mxu0 0
        %4649 = vmatpush1.bf16.msra.mxu0 0
        %4650 = vmatprep.subr.bf16.mxu0 0
        %4651 = vmatpush1.bf16.msra.mxu0 0
        %4652 = vmatprep.subr.bf16.mxu0 0
        %4653 = vmatpush1.bf16.msra.mxu0 0
        %4654 = vmatprep.subr.bf16.mxu0 0
        %4655 = vmatpush1.bf16.msra.mxu0 0
        %4656 = vmatprep.subr.bf16.mxu0 0
        %4657 = vmatpush1.bf16.msra.mxu0 0
        %4658 = vmatprep.subr.bf16.mxu0 0
        %4659 = vmatpush1.bf16.msra.mxu0 0
        %4660 = vmatprep.subr.bf16.mxu0 0
        %4661 = vmatpush1.bf16.msra.mxu0 0
        %4662 = vmatprep.mubr.bf16.mxu0 0
        %4663 = vmatmul.mubr.bf16.gmra.mrb[0].mxu0 %v4628
        %v4664 = vpop.f32.mrb[0].mxu0
        %v4665 = vadd.f32 0.0, %v4664
        %v4666 = vpop.f32.mrb[0].mxu0
        %v4667 = vpop.f32.mrb[0].mxu0
        %v4668 = vpop.f32.mrb[0].mxu0
        %4669 = vdwg.mxu0
        %v4671 = vsel %vm457, %v4591, 0
        %4673 = vmatprep.subr.bf16.mxu0 0
        %4674 = vmatpush1.bf16.msra.mxu0 %v4619
        %4675 = vmatprep.subr.bf16.mxu0 0
        %4676 = vmatpush1.bf16.msra.mxu0 %v4620
        %4677 = vmatprep.subr.bf16.mxu0 0
        %4678 = vmatpush1.bf16.msra.mxu0 %v4621
        %4679 = vmatprep.subr.bf16.mxu0 0
        %4680 = vmatpush1.bf16.msra.mxu0 %v4622
        %4681 = vmatprep.subr.bf16.mxu0 0
        %4682 = vmatpush1.bf16.msra.mxu0 0
        %4683 = vmatprep.subr.bf16.mxu0 0
        %4684 = vmatpush1.bf16.msra.mxu0 0
        %4685 = vmatprep.subr.bf16.mxu0 0
        %4686 = vmatpush1.bf16.msra.mxu0 0
        %4687 = vmatprep.subr.bf16.mxu0 0
        %4688 = vmatpush1.bf16.msra.mxu0 0
        %4689 = vmatprep.subr.bf16.mxu0 0
        %4690 = vmatpush1.bf16.msra.mxu0 0
        %4691 = vmatprep.subr.bf16.mxu0 0
        %4692 = vmatpush1.bf16.msra.mxu0 0
        %4693 = vmatprep.subr.bf16.mxu0 0
        %4694 = vmatpush1.bf16.msra.mxu0 0
        %4695 = vmatprep.subr.bf16.mxu0 0
        %4696 = vmatpush1.bf16.msra.mxu0 0
        %4697 = vmatprep.subr.bf16.mxu0 0
        %4698 = vmatpush1.bf16.msra.mxu0 0
        %4699 = vmatprep.subr.bf16.mxu0 0
        %4700 = vmatpush1.bf16.msra.mxu0 0
        %4701 = vmatprep.subr.bf16.mxu0 0
        %4702 = vmatpush1.bf16.msra.mxu0 0
        %4703 = vmatprep.subr.bf16.mxu0 0
        %4704 = vmatpush1.bf16.msra.mxu0 0
        %4705 = vmatprep.mubr.bf16.mxu0 0
        %4706 = vmatmul.mubr.bf16.gmra.mrb[0].mxu0 %v4671
        %v4707 = vpop.f32.mrb[0].mxu0
        %v4708 = vadd.f32 0.0, %v4707
        %v4709 = vpop.f32.mrb[0].mxu0
        %v4710 = vpop.f32.mrb[0].mxu0
        %v4711 = vpop.f32.mrb[0].mxu0
        %4712 = vdwg.mxu0
        %v4714 = vsel %vm457, %v4592, 0
        %4716 = vmatprep.subr.bf16.mxu0 0
        %4717 = vmatpush1.bf16.msra.mxu0 %v4619
        %4718 = vmatprep.subr.bf16.mxu0 0
        %4719 = vmatpush1.bf16.msra.mxu0 %v4620
        %4720 = vmatprep.subr.bf16.mxu0 0
        %4721 = vmatpush1.bf16.msra.mxu0 %v4621
        %4722 = vmatprep.subr.bf16.mxu0 0
        %4723 = vmatpush1.bf16.msra.mxu0 %v4622
        %4724 = vmatprep.subr.bf16.mxu0 0
        %4725 = vmatpush1.bf16.msra.mxu0 0
        %4726 = vmatprep.subr.bf16.mxu0 0
        %4727 = vmatpush1.bf16.msra.mxu0 0
        %4728 = vmatprep.subr.bf16.mxu0 0
        %4729 = vmatpush1.bf16.msra.mxu0 0
        %4730 = vmatprep.subr.bf16.mxu0 0
        %4731 = vmatpush1.bf16.msra.mxu0 0
        %4732 = vmatprep.subr.bf16.mxu0 0
        %4733 = vmatpush1.bf16.msra.mxu0 0
        %4734 = vmatprep.subr.bf16.mxu0 0
        %4735 = vmatpush1.bf16.msra.mxu0 0
        %4736 = vmatprep.subr.bf16.mxu0 0
        %4737 = vmatpush1.bf16.msra.mxu0 0
        %4738 = vmatprep.subr.bf16.mxu0 0
        %4739 = vmatpush1.bf16.msra.mxu0 0
        %4740 = vmatprep.subr.bf16.mxu0 0
        %4741 = vmatpush1.bf16.msra.mxu0 0
        %4742 = vmatprep.subr.bf16.mxu0 0
        %4743 = vmatpush1.bf16.msra.mxu0 0
        %4744 = vmatprep.subr.bf16.mxu0 0
        %4745 = vmatpush1.bf16.msra.mxu0 0
        %4746 = vmatprep.subr.bf16.mxu0 0
        %4747 = vmatpush1.bf16.msra.mxu0 0
        %4748 = vmatprep.mubr.bf16.mxu0 0
        %4749 = vmatmul.mubr.bf16.gmra.mrb[0].mxu0 %v4714
        %v4750 = vpop.f32.mrb[0].mxu0
        %v4751 = vadd.f32 0.0, %v4750
        %v4752 = vpop.f32.mrb[0].mxu0
        %v4753 = vpop.f32.mrb[0].mxu0
        %v4754 = vpop.f32.mrb[0].mxu0
        %4755 = vdwg.mxu0
        %v4757 = vsel %vm457, %v4593, 0
        %4759 = vmatprep.subr.bf16.mxu0 0
        %4760 = vmatpush1.bf16.msra.mxu0 %v4619
        %4761 = vmatprep.subr.bf16.mxu0 0
        %4762 = vmatpush1.bf16.msra.mxu0 %v4620
        %4763 = vmatprep.subr.bf16.mxu0 0
        %4764 = vmatpush1.bf16.msra.mxu0 %v4621
        %4765 = vmatprep.subr.bf16.mxu0 0
        %4766 = vmatpush1.bf16.msra.mxu0 %v4622
        %4767 = vmatprep.subr.bf16.mxu0 0
        %4768 = vmatpush1.bf16.msra.mxu0 0
        %4769 = vmatprep.subr.bf16.mxu0 0
        %4770 = vmatpush1.bf16.msra.mxu0 0
        %4771 = vmatprep.subr.bf16.mxu0 0
        %4772 = vmatpush1.bf16.msra.mxu0 0
        %4773 = vmatprep.subr.bf16.mxu0 0
        %4774 = vmatpush1.bf16.msra.mxu0 0
        %4775 = vmatprep.subr.bf16.mxu0 0
        %4776 = vmatpush1.bf16.msra.mxu0 0
        %4777 = vmatprep.subr.bf16.mxu0 0
        %4778 = vmatpush1.bf16.msra.mxu0 0
        %4779 = vmatprep.subr.bf16.mxu0 0
        %4780 = vmatpush1.bf16.msra.mxu0 0
        %4781 = vmatprep.subr.bf16.mxu0 0
        %4782 = vmatpush1.bf16.msra.mxu0 0
        %4783 = vmatprep.subr.bf16.mxu0 0
        %4784 = vmatpush1.bf16.msra.mxu0 0
        %4785 = vmatprep.subr.bf16.mxu0 0
        %4786 = vmatpush1.bf16.msra.mxu0 0
        %4787 = vmatprep.subr.bf16.mxu0 0
        %4788 = vmatpush1.bf16.msra.mxu0 0
        %4789 = vmatprep.subr.bf16.mxu0 0
        %4790 = vmatpush1.bf16.msra.mxu0 0
        %4791 = vmatprep.mubr.bf16.mxu0 0
        %4792 = vmatmul.mubr.bf16.gmra.mrb[0].mxu0 %v4757
        %v4793 = vpop.f32.mrb[0].mxu0
        %v4794 = vadd.f32 0.0, %v4793
        %v4795 = vpop.f32.mrb[0].mxu0
        %v4796 = vpop.f32.mrb[0].mxu0
        %v4797 = vpop.f32.mrb[0].mxu0
        %4798 = vdwg.mxu0
        %v4799 = vadd.f32 %v4579, %v4665
        %v4800 = vadd.f32 %v4580, %v4708
        %v4801 = vadd.f32 %v4581, %v4751
        %v4802 = vadd.f32 %v4582, %v4794
        %s4803 = scalar_lea.vmem %s3914, 1 [#allocation3]
        %v4804 = vld [vmem:[%s4803] ss:$2 sm:$0xf]
        %s4805 = scalar_lea.vmem %s3914, 33 [#allocation3]
        %v4806 = vld [vmem:[%s4805] ss:$2 sm:$0xf]
        %s4807 = scalar_lea.vmem %s3914, 65 [#allocation3]
        %v4808 = vld [vmem:[%s4807] ss:$2 sm:$0xf]
        %s4809 = scalar_lea.vmem %s3914, 97 [#allocation3]
        %v4810 = vld [vmem:[%s4809] ss:$2 sm:$0xf]
        %v4811 = vpack.c.bf16 %v4804, %v4804
        %v4812 = vpack.c.bf16 %v4806, %v4806
        %v4813 = vpack.c.bf16 %v4808, %v4808
        %v4814 = vpack.c.bf16 %v4810, %v4810
        %s4815 = scalar_lea.vmem %s3, 128
        %v4816 = vld [vmem:[%s4815] sm:$0xf]
        %v4817 = vld [vmem:[%s4815 + $0x4] sm:$0xf]
        %v4818 = vld [vmem:[%s4815 + $0x8] sm:$0xf]
        %v4819 = vld [vmem:[%s4815 + $0xc] sm:$0xf]
        %v4820 = vld [vmem:[%s4815 + $0x10] sm:$0xf]
        %v4821 = vld [vmem:[%s4815 + $0x14] sm:$0xf]
        %v4822 = vld [vmem:[%s4815 + $0x18] sm:$0xf]
        %v4823 = vld [vmem:[%s4815 + $0x1c] sm:$0xf]
        %v4832 = vunpack.c.l.b16 %v4816
        %v4833 = vunpack.c.l.b16 %v4817
        %v4834 = vunpack.c.l.b16 %v4818
        %v4835 = vunpack.c.l.b16 %v4819
        %v4836 = vunpack.c.l.b16 %v4820
        %v4837 = vunpack.c.l.b16 %v4821
        %v4838 = vunpack.c.l.b16 %v4822
        %v4839 = vunpack.c.l.b16 %v4823
        %v4840 = vpack.c.b16 %v4833, %v4832
        %v4841 = vpack.c.b16 %v4835, %v4834
        %v4842 = vpack.c.b16 %v4837, %v4836
        %v4843 = vpack.c.b16 %v4839, %v4838
        %v4849 = vsel %vm457, %v4811, 0
        %4851 = vmatprep.subr.bf16.mxu0 0
        %4852 = vmatpush1.bf16.msra.mxu0 %v4840
        %4853 = vmatprep.subr.bf16.mxu0 0
        %4854 = vmatpush1.bf16.msra.mxu0 %v4841
        %4855 = vmatprep.subr.bf16.mxu0 0
        %4856 = vmatpush1.bf16.msra.mxu0 %v4842
        %4857 = vmatprep.subr.bf16.mxu0 0
        %4858 = vmatpush1.bf16.msra.mxu0 %v4843
        %4859 = vmatprep.subr.bf16.mxu0 0
        %4860 = vmatpush1.bf16.msra.mxu0 0
        %4861 = vmatprep.subr.bf16.mxu0 0
        %4862 = vmatpush1.bf16.msra.mxu0 0
        %4863 = vmatprep.subr.bf16.mxu0 0
        %4864 = vmatpush1.bf16.msra.mxu0 0
        %4865 = vmatprep.subr.bf16.mxu0 0
        %4866 = vmatpush1.bf16.msra.mxu0 0
        %4867 = vmatprep.subr.bf16.mxu0 0
        %4868 = vmatpush1.bf16.msra.mxu0 0
        %4869 = vmatprep.subr.bf16.mxu0 0
        %4870 = vmatpush1.bf16.msra.mxu0 0
        %4871 = vmatprep.subr.bf16.mxu0 0
        %4872 = vmatpush1.bf16.msra.mxu0 0
        %4873 = vmatprep.subr.bf16.mxu0 0
        %4874 = vmatpush1.bf16.msra.mxu0 0
        %4875 = vmatprep.subr.bf16.mxu0 0
        %4876 = vmatpush1.bf16.msra.mxu0 0
        %4877 = vmatprep.subr.bf16.mxu0 0
        %4878 = vmatpush1.bf16.msra.mxu0 0
        %4879 = vmatprep.subr.bf16.mxu0 0
        %4880 = vmatpush1.bf16.msra.mxu0 0
        %4881 = vmatprep.subr.bf16.mxu0 0
        %4882 = vmatpush1.bf16.msra.mxu0 0
        %4883 = vmatprep.mubr.bf16.mxu0 0
        %4884 = vmatmul.mubr.bf16.gmra.mrb[0].mxu0 %v4849
        %v4885 = vpop.f32.mrb[0].mxu0
        %v4886 = vadd.f32 0.0, %v4885
        %v4887 = vpop.f32.mrb[0].mxu0
        %v4888 = vpop.f32.mrb[0].mxu0
        %v4889 = vpop.f32.mrb[0].mxu0
        %4890 = vdwg.mxu0
        %v4892 = vsel %vm457, %v4812, 0
        %4894 = vmatprep.subr.bf16.mxu0 0
        %4895 = vmatpush1.bf16.msra.mxu0 %v4840
        %4896 = vmatprep.subr.bf16.mxu0 0
        %4897 = vmatpush1.bf16.msra.mxu0 %v4841
        %4898 = vmatprep.subr.bf16.mxu0 0
        %4899 = vmatpush1.bf16.msra.mxu0 %v4842
        %4900 = vmatprep.subr.bf16.mxu0 0
        %4901 = vmatpush1.bf16.msra.mxu0 %v4843
        %4902 = vmatprep.subr.bf16.mxu0 0
        %4903 = vmatpush1.bf16.msra.mxu0 0
        %4904 = vmatprep.subr.bf16.mxu0 0
        %4905 = vmatpush1.bf16.msra.mxu0 0
        %4906 = vmatprep.subr.bf16.mxu0 0
        %4907 = vmatpush1.bf16.msra.mxu0 0
        %4908 = vmatprep.subr.bf16.mxu0 0
        %4909 = vmatpush1.bf16.msra.mxu0 0
        %4910 = vmatprep.subr.bf16.mxu0 0
        %4911 = vmatpush1.bf16.msra.mxu0 0
        %4912 = vmatprep.subr.bf16.mxu0 0
        %4913 = vmatpush1.bf16.msra.mxu0 0
        %4914 = vmatprep.subr.bf16.mxu0 0
        %4915 = vmatpush1.bf16.msra.mxu0 0
        %4916 = vmatprep.subr.bf16.mxu0 0
        %4917 = vmatpush1.bf16.msra.mxu0 0
        %4918 = vmatprep.subr.bf16.mxu0 0
        %4919 = vmatpush1.bf16.msra.mxu0 0
        %4920 = vmatprep.subr.bf16.mxu0 0
        %4921 = vmatpush1.bf16.msra.mxu0 0
        %4922 = vmatprep.subr.bf16.mxu0 0
        %4923 = vmatpush1.bf16.msra.mxu0 0
        %4924 = vmatprep.subr.bf16.mxu0 0
        %4925 = vmatpush1.bf16.msra.mxu0 0
        %4926 = vmatprep.mubr.bf16.mxu0 0
        %4927 = vmatmul.mubr.bf16.gmra.mrb[0].mxu0 %v4892
        %v4928 = vpop.f32.mrb[0].mxu0
        %v4929 = vadd.f32 0.0, %v4928
        %v4930 = vpop.f32.mrb[0].mxu0
        %v4931 = vpop.f32.mrb[0].mxu0
        %v4932 = vpop.f32.mrb[0].mxu0
        %4933 = vdwg.mxu0
        %v4935 = vsel %vm457, %v4813, 0
        %4937 = vmatprep.subr.bf16.mxu0 0
        %4938 = vmatpush1.bf16.msra.mxu0 %v4840
        %4939 = vmatprep.subr.bf16.mxu0 0
        %4940 = vmatpush1.bf16.msra.mxu0 %v4841
        %4941 = vmatprep.subr.bf16.mxu0 0
        %4942 = vmatpush1.bf16.msra.mxu0 %v4842
        %4943 = vmatprep.subr.bf16.mxu0 0
        %4944 = vmatpush1.bf16.msra.mxu0 %v4843
        %4945 = vmatprep.subr.bf16.mxu0 0
        %4946 = vmatpush1.bf16.msra.mxu0 0
        %4947 = vmatprep.subr.bf16.mxu0 0
        %4948 = vmatpush1.bf16.msra.mxu0 0
        %4949 = vmatprep.subr.bf16.mxu0 0
        %4950 = vmatpush1.bf16.msra.mxu0 0
        %4951 = vmatprep.subr.bf16.mxu0 0
        %4952 = vmatpush1.bf16.msra.mxu0 0
        %4953 = vmatprep.subr.bf16.mxu0 0
        %4954 = vmatpush1.bf16.msra.mxu0 0
        %4955 = vmatprep.subr.bf16.mxu0 0
        %4956 = vmatpush1.bf16.msra.mxu0 0
        %4957 = vmatprep.subr.bf16.mxu0 0
        %4958 = vmatpush1.bf16.msra.mxu0 0
        %4959 = vmatprep.subr.bf16.mxu0 0
        %4960 = vmatpush1.bf16.msra.mxu0 0
        %4961 = vmatprep.subr.bf16.mxu0 0
        %4962 = vmatpush1.bf16.msra.mxu0 0
        %4963 = vmatprep.subr.bf16.mxu0 0
        %4964 = vmatpush1.bf16.msra.mxu0 0
        %4965 = vmatprep.subr.bf16.mxu0 0
        %4966 = vmatpush1.bf16.msra.mxu0 0
        %4967 = vmatprep.subr.bf16.mxu0 0
        %4968 = vmatpush1.bf16.msra.mxu0 0
        %4969 = vmatprep.mubr.bf16.mxu0 0
        %4970 = vmatmul.mubr.bf16.gmra.mrb[0].mxu0 %v4935
        %v4971 = vpop.f32.mrb[0].mxu0
        %v4972 = vadd.f32 0.0, %v4971
        %v4973 = vpop.f32.mrb[0].mxu0
        %v4974 = vpop.f32.mrb[0].mxu0
        %v4975 = vpop.f32.mrb[0].mxu0
        %4976 = vdwg.mxu0
        %v4978 = vsel %vm457, %v4814, 0
        %4980 = vmatprep.subr.bf16.mxu0 0
        %4981 = vmatpush1.bf16.msra.mxu0 %v4840
        %4982 = vmatprep.subr.bf16.mxu0 0
        %4983 = vmatpush1.bf16.msra.mxu0 %v4841
        %4984 = vmatprep.subr.bf16.mxu0 0
        %4985 = vmatpush1.bf16.msra.mxu0 %v4842
        %4986 = vmatprep.subr.bf16.mxu0 0
        %4987 = vmatpush1.bf16.msra.mxu0 %v4843
        %4988 = vmatprep.subr.bf16.mxu0 0
        %4989 = vmatpush1.bf16.msra.mxu0 0
        %4990 = vmatprep.subr.bf16.mxu0 0
        %4991 = vmatpush1.bf16.msra.mxu0 0
        %4992 = vmatprep.subr.bf16.mxu0 0
        %4993 = vmatpush1.bf16.msra.mxu0 0
        %4994 = vmatprep.subr.bf16.mxu0 0
        %4995 = vmatpush1.bf16.msra.mxu0 0
        %4996 = vmatprep.subr.bf16.mxu0 0
        %4997 = vmatpush1.bf16.msra.mxu0 0
        %4998 = vmatprep.subr.bf16.mxu0 0
        %4999 = vmatpush1.bf16.msra.mxu0 0
        %5000 = vmatprep.subr.bf16.mxu0 0
        %5001 = vmatpush1.bf16.msra.mxu0 0
        %5002 = vmatprep.subr.bf16.mxu0 0
        %5003 = vmatpush1.bf16.msra.mxu0 0
        %5004 = vmatprep.subr.bf16.mxu0 0
        %5005 = vmatpush1.bf16.msra.mxu0 0
        %5006 = vmatprep.subr.bf16.mxu0 0
        %5007 = vmatpush1.bf16.msra.mxu0 0
        %5008 = vmatprep.subr.bf16.mxu0 0
        %5009 = vmatpush1.bf16.msra.mxu0 0
        %5010 = vmatprep.subr.bf16.mxu0 0
        %5011 = vmatpush1.bf16.msra.mxu0 0
        %5012 = vmatprep.mubr.bf16.mxu0 0
        %5013 = vmatmul.mubr.bf16.gmra.mrb[0].mxu0 %v4978
        %v5014 = vpop.f32.mrb[0].mxu0
        %v5015 = vadd.f32 0.0, %v5014
        %v5016 = vpop.f32.mrb[0].mxu0
        %v5017 = vpop.f32.mrb[0].mxu0
        %v5018 = vpop.f32.mrb[0].mxu0
        %5019 = vdwg.mxu0
        %v5020 = vadd.f32 %v4799, %v4886
        %v5021 = vadd.f32 %v4800, %v4929
        %v5022 = vadd.f32 %v4801, %v4972
        %v5023 = vadd.f32 %v4802, %v5015
        %s5024 = scalar_lea.vmem %s3914, 2 [#allocation3]
        %v5025 = vld [vmem:[%s5024] ss:$2 sm:$0xf]
        %s5026 = scalar_lea.vmem %s3914, 34 [#allocation3]
        %v5027 = vld [vmem:[%s5026] ss:$2 sm:$0xf]
        %s5028 = scalar_lea.vmem %s3914, 66 [#allocation3]
        %v5029 = vld [vmem:[%s5028] ss:$2 sm:$0xf]
        %s5030 = scalar_lea.vmem %s3914, 98 [#allocation3]
        %v5031 = vld [vmem:[%s5030] ss:$2 sm:$0xf]
        %v5032 = vpack.c.bf16 %v5025, %v5025
        %v5033 = vpack.c.bf16 %v5027, %v5027
        %v5034 = vpack.c.bf16 %v5029, %v5029
        %v5035 = vpack.c.bf16 %v5031, %v5031
        %s5036 = scalar_lea.vmem %s3, 160
        %v5037 = vld [vmem:[%s5036] sm:$0xf]
        %v5038 = vld [vmem:[%s5036 + $0x4] sm:$0xf]
        %v5039 = vld [vmem:[%s5036 + $0x8] sm:$0xf]
        %v5040 = vld [vmem:[%s5036 + $0xc] sm:$0xf]
        %v5041 = vld [vmem:[%s5036 + $0x10] sm:$0xf]
        %v5042 = vld [vmem:[%s5036 + $0x14] sm:$0xf]
        %v5043 = vld [vmem:[%s5036 + $0x18] sm:$0xf]
        %v5044 = vld [vmem:[%s5036 + $0x1c] sm:$0xf]
        %v5053 = vunpack.c.l.b16 %v5037
        %v5054 = vunpack.c.l.b16 %v5038
        %v5055 = vunpack.c.l.b16 %v5039
        %v5056 = vunpack.c.l.b16 %v5040
        %v5057 = vunpack.c.l.b16 %v5041
        %v5058 = vunpack.c.l.b16 %v5042
        %v5059 = vunpack.c.l.b16 %v5043
        %v5060 = vunpack.c.l.b16 %v5044
        %v5061 = vpack.c.b16 %v5054, %v5053
        %v5062 = vpack.c.b16 %v5056, %v5055
        %v5063 = vpack.c.b16 %v5058, %v5057
        %v5064 = vpack.c.b16 %v5060, %v5059
        %v5070 = vsel %vm457, %v5032, 0
        %5072 = vmatprep.subr.bf16.mxu0 0
        %5073 = vmatpush1.bf16.msra.mxu0 %v5061
        %5074 = vmatprep.subr.bf16.mxu0 0
        %5075 = vmatpush1.bf16.msra.mxu0 %v5062
        %5076 = vmatprep.subr.bf16.mxu0 0
        %5077 = vmatpush1.bf16.msra.mxu0 %v5063
        %5078 = vmatprep.subr.bf16.mxu0 0
        %5079 = vmatpush1.bf16.msra.mxu0 %v5064
        %5080 = vmatprep.subr.bf16.mxu0 0
        %5081 = vmatpush1.bf16.msra.mxu0 0
        %5082 = vmatprep.subr.bf16.mxu0 0
        %5083 = vmatpush1.bf16.msra.mxu0 0
        %5084 = vmatprep.subr.bf16.mxu0 0
        %5085 = vmatpush1.bf16.msra.mxu0 0
        %5086 = vmatprep.subr.bf16.mxu0 0
        %5087 = vmatpush1.bf16.msra.mxu0 0
        %5088 = vmatprep.subr.bf16.mxu0 0
        %5089 = vmatpush1.bf16.msra.mxu0 0
        %5090 = vmatprep.subr.bf16.mxu0 0
        %5091 = vmatpush1.bf16.msra.mxu0 0
        %5092 = vmatprep.subr.bf16.mxu0 0
        %5093 = vmatpush1.bf16.msra.mxu0 0
        %5094 = vmatprep.subr.bf16.mxu0 0
        %5095 = vmatpush1.bf16.msra.mxu0 0
        %5096 = vmatprep.subr.bf16.mxu0 0
        %5097 = vmatpush1.bf16.msra.mxu0 0
        %5098 = vmatprep.subr.bf16.mxu0 0
        %5099 = vmatpush1.bf16.msra.mxu0 0
        %5100 = vmatprep.subr.bf16.mxu0 0
        %5101 = vmatpush1.bf16.msra.mxu0 0
        %5102 = vmatprep.subr.bf16.mxu0 0
        %5103 = vmatpush1.bf16.msra.mxu0 0
        %5104 = vmatprep.mubr.bf16.mxu0 0
        %5105 = vmatmul.mubr.bf16.gmra.mrb[0].mxu0 %v5070
        %v5106 = vpop.f32.mrb[0].mxu0
        %v5107 = vadd.f32 0.0, %v5106
        %v5108 = vpop.f32.mrb[0].mxu0
        %v5109 = vpop.f32.mrb[0].mxu0
        %v5110 = vpop.f32.mrb[0].mxu0
        %5111 = vdwg.mxu0
        %v5113 = vsel %vm457, %v5033, 0
        %5115 = vmatprep.subr.bf16.mxu0 0
        %5116 = vmatpush1.bf16.msra.mxu0 %v5061
        %5117 = vmatprep.subr.bf16.mxu0 0
        %5118 = vmatpush1.bf16.msra.mxu0 %v5062
        %5119 = vmatprep.subr.bf16.mxu0 0
        %5120 = vmatpush1.bf16.msra.mxu0 %v5063
        %5121 = vmatprep.subr.bf16.mxu0 0
        %5122 = vmatpush1.bf16.msra.mxu0 %v5064
        %5123 = vmatprep.subr.bf16.mxu0 0
        %5124 = vmatpush1.bf16.msra.mxu0 0
        %5125 = vmatprep.subr.bf16.mxu0 0
        %5126 = vmatpush1.bf16.msra.mxu0 0
        %5127 = vmatprep.subr.bf16.mxu0 0
        %5128 = vmatpush1.bf16.msra.mxu0 0
        %5129 = vmatprep.subr.bf16.mxu0 0
        %5130 = vmatpush1.bf16.msra.mxu0 0
        %5131 = vmatprep.subr.bf16.mxu0 0
        %5132 = vmatpush1.bf16.msra.mxu0 0
        %5133 = vmatprep.subr.bf16.mxu0 0
        %5134 = vmatpush1.bf16.msra.mxu0 0
        %5135 = vmatprep.subr.bf16.mxu0 0
        %5136 = vmatpush1.bf16.msra.mxu0 0
        %5137 = vmatprep.subr.bf16.mxu0 0
        %5138 = vmatpush1.bf16.msra.mxu0 0
        %5139 = vmatprep.subr.bf16.mxu0 0
        %5140 = vmatpush1.bf16.msra.mxu0 0
        %5141 = vmatprep.subr.bf16.mxu0 0
        %5142 = vmatpush1.bf16.msra.mxu0 0
        %5143 = vmatprep.subr.bf16.mxu0 0
        %5144 = vmatpush1.bf16.msra.mxu0 0
        %5145 = vmatprep.subr.bf16.mxu0 0
        %5146 = vmatpush1.bf16.msra.mxu0 0
        %5147 = vmatprep.mubr.bf16.mxu0 0
        %5148 = vmatmul.mubr.bf16.gmra.mrb[0].mxu0 %v5113
        %v5149 = vpop.f32.mrb[0].mxu0
        %v5150 = vadd.f32 0.0, %v5149
        %v5151 = vpop.f32.mrb[0].mxu0
        %v5152 = vpop.f32.mrb[0].mxu0
        %v5153 = vpop.f32.mrb[0].mxu0
        %5154 = vdwg.mxu0
        %v5156 = vsel %vm457, %v5034, 0
        %5158 = vmatprep.subr.bf16.mxu0 0
        %5159 = vmatpush1.bf16.msra.mxu0 %v5061
        %5160 = vmatprep.subr.bf16.mxu0 0
        %5161 = vmatpush1.bf16.msra.mxu0 %v5062
        %5162 = vmatprep.subr.bf16.mxu0 0
        %5163 = vmatpush1.bf16.msra.mxu0 %v5063
        %5164 = vmatprep.subr.bf16.mxu0 0
        %5165 = vmatpush1.bf16.msra.mxu0 %v5064
        %5166 = vmatprep.subr.bf16.mxu0 0
        %5167 = vmatpush1.bf16.msra.mxu0 0
        %5168 = vmatprep.subr.bf16.mxu0 0
        %5169 = vmatpush1.bf16.msra.mxu0 0
        %5170 = vmatprep.subr.bf16.mxu0 0
        %5171 = vmatpush1.bf16.msra.mxu0 0
        %5172 = vmatprep.subr.bf16.mxu0 0
        %5173 = vmatpush1.bf16.msra.mxu0 0
        %5174 = vmatprep.subr.bf16.mxu0 0
        %5175 = vmatpush1.bf16.msra.mxu0 0
        %5176 = vmatprep.subr.bf16.mxu0 0
        %5177 = vmatpush1.bf16.msra.mxu0 0
        %5178 = vmatprep.subr.bf16.mxu0 0
        %5179 = vmatpush1.bf16.msra.mxu0 0
        %5180 = vmatprep.subr.bf16.mxu0 0
        %5181 = vmatpush1.bf16.msra.mxu0 0
        %5182 = vmatprep.subr.bf16.mxu0 0
        %5183 = vmatpush1.bf16.msra.mxu0 0
        %5184 = vmatprep.subr.bf16.mxu0 0
        %5185 = vmatpush1.bf16.msra.mxu0 0
        %5186 = vmatprep.subr.bf16.mxu0 0
        %5187 = vmatpush1.bf16.msra.mxu0 0
        %5188 = vmatprep.subr.bf16.mxu0 0
        %5189 = vmatpush1.bf16.msra.mxu0 0
        %5190 = vmatprep.mubr.bf16.mxu0 0
        %5191 = vmatmul.mubr.bf16.gmra.mrb[0].mxu0 %v5156
        %v5192 = vpop.f32.mrb[0].mxu0
        %v5193 = vadd.f32 0.0, %v5192
        %v5194 = vpop.f32.mrb[0].mxu0
        %v5195 = vpop.f32.mrb[0].mxu0
        %v5196 = vpop.f32.mrb[0].mxu0
        %5197 = vdwg.mxu0
        %v5199 = vsel %vm457, %v5035, 0
        %5201 = vmatprep.subr.bf16.mxu0 0
        %5202 = vmatpush1.bf16.msra.mxu0 %v5061
        %5203 = vmatprep.subr.bf16.mxu0 0
        %5204 = vmatpush1.bf16.msra.mxu0 %v5062
        %5205 = vmatprep.subr.bf16.mxu0 0
        %5206 = vmatpush1.bf16.msra.mxu0 %v5063
        %5207 = vmatprep.subr.bf16.mxu0 0
        %5208 = vmatpush1.bf16.msra.mxu0 %v5064
        %5209 = vmatprep.subr.bf16.mxu0 0
        %5210 = vmatpush1.bf16.msra.mxu0 0
        %5211 = vmatprep.subr.bf16.mxu0 0
        %5212 = vmatpush1.bf16.msra.mxu0 0
        %5213 = vmatprep.subr.bf16.mxu0 0
        %5214 = vmatpush1.bf16.msra.mxu0 0
        %5215 = vmatprep.subr.bf16.mxu0 0
        %5216 = vmatpush1.bf16.msra.mxu0 0
        %5217 = vmatprep.subr.bf16.mxu0 0
        %5218 = vmatpush1.bf16.msra.mxu0 0
        %5219 = vmatprep.subr.bf16.mxu0 0
        %5220 = vmatpush1.bf16.msra.mxu0 0
        %5221 = vmatprep.subr.bf16.mxu0 0
        %5222 = vmatpush1.bf16.msra.mxu0 0
        %5223 = vmatprep.subr.bf16.mxu0 0
        %5224 = vmatpush1.bf16.msra.mxu0 0
        %5225 = vmatprep.subr.bf16.mxu0 0
        %5226 = vmatpush1.bf16.msra.mxu0 0
        %5227 = vmatprep.subr.bf16.mxu0 0
        %5228 = vmatpush1.bf16.msra.mxu0 0
        %5229 = vmatprep.subr.bf16.mxu0 0
        %5230 = vmatpush1.bf16.msra.mxu0 0
        %5231 = vmatprep.subr.bf16.mxu0 0
        %5232 = vmatpush1.bf16.msra.mxu0 0
        %5233 = vmatprep.mubr.bf16.mxu0 0
        %5234 = vmatmul.mubr.bf16.gmra.mrb[0].mxu0 %v5199
        %v5235 = vpop.f32.mrb[0].mxu0
        %v5236 = vadd.f32 0.0, %v5235
        %v5237 = vpop.f32.mrb[0].mxu0
        %v5238 = vpop.f32.mrb[0].mxu0
        %v5239 = vpop.f32.mrb[0].mxu0
        %5240 = vdwg.mxu0
        %v5241 = vadd.f32 %v5020, %v5107
        %v5242 = vadd.f32 %v5021, %v5150
        %v5243 = vadd.f32 %v5022, %v5193
        %v5244 = vadd.f32 %v5023, %v5236
        %s5245 = scalar_lea.vmem [#allocation3], 32
        %v5246 = vld [vmem:[%s5245] ss:$2 sm:$0xf]
        %s5247 = scalar_lea.vmem %s5245, 32 [#allocation3]
        %v5248 = vld [vmem:[%s5247] ss:$2 sm:$0xf]
        %s5249 = scalar_lea.vmem %s5245, 64 [#allocation3]
        %v5250 = vld [vmem:[%s5249] ss:$2 sm:$0xf]
        %s5251 = scalar_lea.vmem %s5245, 96 [#allocation3]
        %v5252 = vld [vmem:[%s5251] ss:$2 sm:$0xf]
        %v5253 = vpack.c.bf16 %v5246, %v5246
        %v5254 = vpack.c.bf16 %v5248, %v5248
        %v5255 = vpack.c.bf16 %v5250, %v5250
        %v5256 = vpack.c.bf16 %v5252, %v5252
        %s5257 = scalar_lea.vmem %s3, 192
        %v5258 = vld [vmem:[%s5257] sm:$0xf]
        %v5259 = vld [vmem:[%s5257 + $0x4] sm:$0xf]
        %v5260 = vld [vmem:[%s5257 + $0x8] sm:$0xf]
        %v5261 = vld [vmem:[%s5257 + $0xc] sm:$0xf]
        %v5262 = vld [vmem:[%s5257 + $0x10] sm:$0xf]
        %v5263 = vld [vmem:[%s5257 + $0x14] sm:$0xf]
        %v5264 = vld [vmem:[%s5257 + $0x18] sm:$0xf]
        %v5265 = vld [vmem:[%s5257 + $0x1c] sm:$0xf]
        %v5274 = vunpack.c.l.b16 %v5258
        %v5275 = vunpack.c.l.b16 %v5259
        %v5276 = vunpack.c.l.b16 %v5260
        %v5277 = vunpack.c.l.b16 %v5261
        %v5278 = vunpack.c.l.b16 %v5262
        %v5279 = vunpack.c.l.b16 %v5263
        %v5280 = vunpack.c.l.b16 %v5264
        %v5281 = vunpack.c.l.b16 %v5265
        %v5282 = vpack.c.b16 %v5275, %v5274
        %v5283 = vpack.c.b16 %v5277, %v5276
        %v5284 = vpack.c.b16 %v5279, %v5278
        %v5285 = vpack.c.b16 %v5281, %v5280
        %v5291 = vsel %vm457, %v5253, 0
        %5293 = vmatprep.subr.bf16.mxu0 0
        %5294 = vmatpush1.bf16.msra.mxu0 %v5282
        %5295 = vmatprep.subr.bf16.mxu0 0
        %5296 = vmatpush1.bf16.msra.mxu0 %v5283
        %5297 = vmatprep.subr.bf16.mxu0 0
        %5298 = vmatpush1.bf16.msra.mxu0 %v5284
        %5299 = vmatprep.subr.bf16.mxu0 0
        %5300 = vmatpush1.bf16.msra.mxu0 %v5285
        %5301 = vmatprep.subr.bf16.mxu0 0
        %5302 = vmatpush1.bf16.msra.mxu0 0
        %5303 = vmatprep.subr.bf16.mxu0 0
        %5304 = vmatpush1.bf16.msra.mxu0 0
        %5305 = vmatprep.subr.bf16.mxu0 0
        %5306 = vmatpush1.bf16.msra.mxu0 0
        %5307 = vmatprep.subr.bf16.mxu0 0
        %5308 = vmatpush1.bf16.msra.mxu0 0
        %5309 = vmatprep.subr.bf16.mxu0 0
        %5310 = vmatpush1.bf16.msra.mxu0 0
        %5311 = vmatprep.subr.bf16.mxu0 0
        %5312 = vmatpush1.bf16.msra.mxu0 0
        %5313 = vmatprep.subr.bf16.mxu0 0
        %5314 = vmatpush1.bf16.msra.mxu0 0
        %5315 = vmatprep.subr.bf16.mxu0 0
        %5316 = vmatpush1.bf16.msra.mxu0 0
        %5317 = vmatprep.subr.bf16.mxu0 0
        %5318 = vmatpush1.bf16.msra.mxu0 0
        %5319 = vmatprep.subr.bf16.mxu0 0
        %5320 = vmatpush1.bf16.msra.mxu0 0
        %5321 = vmatprep.subr.bf16.mxu0 0
        %5322 = vmatpush1.bf16.msra.mxu0 0
        %5323 = vmatprep.subr.bf16.mxu0 0
        %5324 = vmatpush1.bf16.msra.mxu0 0
        %5325 = vmatprep.mubr.bf16.mxu0 0
        %5326 = vmatmul.mubr.bf16.gmra.mrb[0].mxu0 %v5291
        %v5327 = vpop.f32.mrb[0].mxu0
        %v5328 = vadd.f32 0.0, %v5327
        %v5329 = vpop.f32.mrb[0].mxu0
        %v5330 = vpop.f32.mrb[0].mxu0
        %v5331 = vpop.f32.mrb[0].mxu0
        %5332 = vdwg.mxu0
        %v5334 = vsel %vm457, %v5254, 0
        %5336 = vmatprep.subr.bf16.mxu0 0
        %5337 = vmatpush1.bf16.msra.mxu0 %v5282
        %5338 = vmatprep.subr.bf16.mxu0 0
        %5339 = vmatpush1.bf16.msra.mxu0 %v5283
        %5340 = vmatprep.subr.bf16.mxu0 0
        %5341 = vmatpush1.bf16.msra.mxu0 %v5284
        %5342 = vmatprep.subr.bf16.mxu0 0
        %5343 = vmatpush1.bf16.msra.mxu0 %v5285
        %5344 = vmatprep.subr.bf16.mxu0 0
        %5345 = vmatpush1.bf16.msra.mxu0 0
        %5346 = vmatprep.subr.bf16.mxu0 0
        %5347 = vmatpush1.bf16.msra.mxu0 0
        %5348 = vmatprep.subr.bf16.mxu0 0
        %5349 = vmatpush1.bf16.msra.mxu0 0
        %5350 = vmatprep.subr.bf16.mxu0 0
        %5351 = vmatpush1.bf16.msra.mxu0 0
        %5352 = vmatprep.subr.bf16.mxu0 0
        %5353 = vmatpush1.bf16.msra.mxu0 0
        %5354 = vmatprep.subr.bf16.mxu0 0
        %5355 = vmatpush1.bf16.msra.mxu0 0
        %5356 = vmatprep.subr.bf16.mxu0 0
        %5357 = vmatpush1.bf16.msra.mxu0 0
        %5358 = vmatprep.subr.bf16.mxu0 0
        %5359 = vmatpush1.bf16.msra.mxu0 0
        %5360 = vmatprep.subr.bf16.mxu0 0
        %5361 = vmatpush1.bf16.msra.mxu0 0
        %5362 = vmatprep.subr.bf16.mxu0 0
        %5363 = vmatpush1.bf16.msra.mxu0 0
        %5364 = vmatprep.subr.bf16.mxu0 0
        %5365 = vmatpush1.bf16.msra.mxu0 0
        %5366 = vmatprep.subr.bf16.mxu0 0
        %5367 = vmatpush1.bf16.msra.mxu0 0
        %5368 = vmatprep.mubr.bf16.mxu0 0
        %5369 = vmatmul.mubr.bf16.gmra.mrb[0].mxu0 %v5334
        %v5370 = vpop.f32.mrb[0].mxu0
        %v5371 = vadd.f32 0.0, %v5370
        %v5372 = vpop.f32.mrb[0].mxu0
        %v5373 = vpop.f32.mrb[0].mxu0
        %v5374 = vpop.f32.mrb[0].mxu0
        %5375 = vdwg.mxu0
        %v5377 = vsel %vm457, %v5255, 0
        %5379 = vmatprep.subr.bf16.mxu0 0
        %5380 = vmatpush1.bf16.msra.mxu0 %v5282
        %5381 = vmatprep.subr.bf16.mxu0 0
        %5382 = vmatpush1.bf16.msra.mxu0 %v5283
        %5383 = vmatprep.subr.bf16.mxu0 0
        %5384 = vmatpush1.bf16.msra.mxu0 %v5284
        %5385 = vmatprep.subr.bf16.mxu0 0
        %5386 = vmatpush1.bf16.msra.mxu0 %v5285
        %5387 = vmatprep.subr.bf16.mxu0 0
        %5388 = vmatpush1.bf16.msra.mxu0 0
        %5389 = vmatprep.subr.bf16.mxu0 0
        %5390 = vmatpush1.bf16.msra.mxu0 0
        %5391 = vmatprep.subr.bf16.mxu0 0
        %5392 = vmatpush1.bf16.msra.mxu0 0
        %5393 = vmatprep.subr.bf16.mxu0 0
        %5394 = vmatpush1.bf16.msra.mxu0 0
        %5395 = vmatprep.subr.bf16.mxu0 0
        %5396 = vmatpush1.bf16.msra.mxu0 0
        %5397 = vmatprep.subr.bf16.mxu0 0
        %5398 = vmatpush1.bf16.msra.mxu0 0
        %5399 = vmatprep.subr.bf16.mxu0 0
        %5400 = vmatpush1.bf16.msra.mxu0 0
        %5401 = vmatprep.subr.bf16.mxu0 0
        %5402 = vmatpush1.bf16.msra.mxu0 0
        %5403 = vmatprep.subr.bf16.mxu0 0
        %5404 = vmatpush1.bf16.msra.mxu0 0
        %5405 = vmatprep.subr.bf16.mxu0 0
        %5406 = vmatpush1.bf16.msra.mxu0 0
        %5407 = vmatprep.subr.bf16.mxu0 0
        %5408 = vmatpush1.bf16.msra.mxu0 0
        %5409 = vmatprep.subr.bf16.mxu0 0
        %5410 = vmatpush1.bf16.msra.mxu0 0
        %5411 = vmatprep.mubr.bf16.mxu0 0
        %5412 = vmatmul.mubr.bf16.gmra.mrb[0].mxu0 %v5377
        %v5413 = vpop.f32.mrb[0].mxu0
        %v5414 = vadd.f32 0.0, %v5413
        %v5415 = vpop.f32.mrb[0].mxu0
        %v5416 = vpop.f32.mrb[0].mxu0
        %v5417 = vpop.f32.mrb[0].mxu0
        %5418 = vdwg.mxu0
        %v5420 = vsel %vm457, %v5256, 0
        %5422 = vmatprep.subr.bf16.mxu0 0
        %5423 = vmatpush1.bf16.msra.mxu0 %v5282
        %5424 = vmatprep.subr.bf16.mxu0 0
        %5425 = vmatpush1.bf16.msra.mxu0 %v5283
        %5426 = vmatprep.subr.bf16.mxu0 0
        %5427 = vmatpush1.bf16.msra.mxu0 %v5284
        %5428 = vmatprep.subr.bf16.mxu0 0
        %5429 = vmatpush1.bf16.msra.mxu0 %v5285
        %5430 = vmatprep.subr.bf16.mxu0 0
        %5431 = vmatpush1.bf16.msra.mxu0 0
        %5432 = vmatprep.subr.bf16.mxu0 0
        %5433 = vmatpush1.bf16.msra.mxu0 0
        %5434 = vmatprep.subr.bf16.mxu0 0
        %5435 = vmatpush1.bf16.msra.mxu0 0
        %5436 = vmatprep.subr.bf16.mxu0 0
        %5437 = vmatpush1.bf16.msra.mxu0 0
        %5438 = vmatprep.subr.bf16.mxu0 0
        %5439 = vmatpush1.bf16.msra.mxu0 0
        %5440 = vmatprep.subr.bf16.mxu0 0
        %5441 = vmatpush1.bf16.msra.mxu0 0
        %5442 = vmatprep.subr.bf16.mxu0 0
        %5443 = vmatpush1.bf16.msra.mxu0 0
        %5444 = vmatprep.subr.bf16.mxu0 0
        %5445 = vmatpush1.bf16.msra.mxu0 0
        %5446 = vmatprep.subr.bf16.mxu0 0
        %5447 = vmatpush1.bf16.msra.mxu0 0
        %5448 = vmatprep.subr.bf16.mxu0 0
        %5449 = vmatpush1.bf16.msra.mxu0 0
        %5450 = vmatprep.subr.bf16.mxu0 0
        %5451 = vmatpush1.bf16.msra.mxu0 0
        %5452 = vmatprep.subr.bf16.mxu0 0
        %5453 = vmatpush1.bf16.msra.mxu0 0
        %5454 = vmatprep.mubr.bf16.mxu0 0
        %5455 = vmatmul.mubr.bf16.gmra.mrb[0].mxu0 %v5420
        %v5456 = vpop.f32.mrb[0].mxu0
        %v5457 = vadd.f32 0.0, %v5456
        %v5458 = vpop.f32.mrb[0].mxu0
        %v5459 = vpop.f32.mrb[0].mxu0
        %v5460 = vpop.f32.mrb[0].mxu0
        %5461 = vdwg.mxu0
        %v5462 = vadd.f32 %v5241, %v5328
        %v5463 = vadd.f32 %v5242, %v5371
        %v5464 = vadd.f32 %v5243, %v5414
        %v5465 = vadd.f32 %v5244, %v5457
        %s5466 = scalar_lea.vmem %s5245, 1 [#allocation3]
        %v5467 = vld [vmem:[%s5466] ss:$2 sm:$0xf]
        %s5468 = scalar_lea.vmem %s5245, 33 [#allocation3]
        %v5469 = vld [vmem:[%s5468] ss:$2 sm:$0xf]
        %s5470 = scalar_lea.vmem %s5245, 65 [#allocation3]
        %v5471 = vld [vmem:[%s5470] ss:$2 sm:$0xf]
        %s5472 = scalar_lea.vmem %s5245, 97 [#allocation3]
        %v5473 = vld [vmem:[%s5472] ss:$2 sm:$0xf]
        %v5474 = vpack.c.bf16 %v5467, %v5467
        %v5475 = vpack.c.bf16 %v5469, %v5469
        %v5476 = vpack.c.bf16 %v5471, %v5471
        %v5477 = vpack.c.bf16 %v5473, %v5473
        %s5478 = scalar_lea.vmem %s3, 224
        %v5479 = vld [vmem:[%s5478] sm:$0xf]
        %v5480 = vld [vmem:[%s5478 + $0x4] sm:$0xf]
        %v5481 = vld [vmem:[%s5478 + $0x8] sm:$0xf]
        %v5482 = vld [vmem:[%s5478 + $0xc] sm:$0xf]
        %v5483 = vld [vmem:[%s5478 + $0x10] sm:$0xf]
        %v5484 = vld [vmem:[%s5478 + $0x14] sm:$0xf]
        %v5485 = vld [vmem:[%s5478 + $0x18] sm:$0xf]
        %v5486 = vld [vmem:[%s5478 + $0x1c] sm:$0xf]
        %v5495 = vunpack.c.l.b16 %v5479
        %v5496 = vunpack.c.l.b16 %v5480
        %v5497 = vunpack.c.l.b16 %v5481
        %v5498 = vunpack.c.l.b16 %v5482
        %v5499 = vunpack.c.l.b16 %v5483
        %v5500 = vunpack.c.l.b16 %v5484
        %v5501 = vunpack.c.l.b16 %v5485
        %v5502 = vunpack.c.l.b16 %v5486
        %v5503 = vpack.c.b16 %v5496, %v5495
        %v5504 = vpack.c.b16 %v5498, %v5497
        %v5505 = vpack.c.b16 %v5500, %v5499
        %v5506 = vpack.c.b16 %v5502, %v5501
        %v5512 = vsel %vm457, %v5474, 0
        %5514 = vmatprep.subr.bf16.mxu0 0
        %5515 = vmatpush1.bf16.msra.mxu0 %v5503
        %5516 = vmatprep.subr.bf16.mxu0 0
        %5517 = vmatpush1.bf16.msra.mxu0 %v5504
        %5518 = vmatprep.subr.bf16.mxu0 0
        %5519 = vmatpush1.bf16.msra.mxu0 %v5505
        %5520 = vmatprep.subr.bf16.mxu0 0
        %5521 = vmatpush1.bf16.msra.mxu0 %v5506
        %5522 = vmatprep.subr.bf16.mxu0 0
        %5523 = vmatpush1.bf16.msra.mxu0 0
        %5524 = vmatprep.subr.bf16.mxu0 0
        %5525 = vmatpush1.bf16.msra.mxu0 0
        %5526 = vmatprep.subr.bf16.mxu0 0
        %5527 = vmatpush1.bf16.msra.mxu0 0
        %5528 = vmatprep.subr.bf16.mxu0 0
        %5529 = vmatpush1.bf16.msra.mxu0 0
        %5530 = vmatprep.subr.bf16.mxu0 0
        %5531 = vmatpush1.bf16.msra.mxu0 0
        %5532 = vmatprep.subr.bf16.mxu0 0
        %5533 = vmatpush1.bf16.msra.mxu0 0
        %5534 = vmatprep.subr.bf16.mxu0 0
        %5535 = vmatpush1.bf16.msra.mxu0 0
        %5536 = vmatprep.subr.bf16.mxu0 0
        %5537 = vmatpush1.bf16.msra.mxu0 0
        %5538 = vmatprep.subr.bf16.mxu0 0
        %5539 = vmatpush1.bf16.msra.mxu0 0
        %5540 = vmatprep.subr.bf16.mxu0 0
        %5541 = vmatpush1.bf16.msra.mxu0 0
        %5542 = vmatprep.subr.bf16.mxu0 0
        %5543 = vmatpush1.bf16.msra.mxu0 0
        %5544 = vmatprep.subr.bf16.mxu0 0
        %5545 = vmatpush1.bf16.msra.mxu0 0
        %5546 = vmatprep.mubr.bf16.mxu0 0
        %5547 = vmatmul.mubr.bf16.gmra.mrb[0].mxu0 %v5512
        %v5548 = vpop.f32.mrb[0].mxu0
        %v5549 = vadd.f32 0.0, %v5548
        %v5550 = vpop.f32.mrb[0].mxu0
        %v5551 = vpop.f32.mrb[0].mxu0
        %v5552 = vpop.f32.mrb[0].mxu0
        %5553 = vdwg.mxu0
        %v5555 = vsel %vm457, %v5475, 0
        %5557 = vmatprep.subr.bf16.mxu0 0
        %5558 = vmatpush1.bf16.msra.mxu0 %v5503
        %5559 = vmatprep.subr.bf16.mxu0 0
        %5560 = vmatpush1.bf16.msra.mxu0 %v5504
        %5561 = vmatprep.subr.bf16.mxu0 0
        %5562 = vmatpush1.bf16.msra.mxu0 %v5505
        %5563 = vmatprep.subr.bf16.mxu0 0
        %5564 = vmatpush1.bf16.msra.mxu0 %v5506
        %5565 = vmatprep.subr.bf16.mxu0 0
        %5566 = vmatpush1.bf16.msra.mxu0 0
        %5567 = vmatprep.subr.bf16.mxu0 0
        %5568 = vmatpush1.bf16.msra.mxu0 0
        %5569 = vmatprep.subr.bf16.mxu0 0
        %5570 = vmatpush1.bf16.msra.mxu0 0
        %5571 = vmatprep.subr.bf16.mxu0 0
        %5572 = vmatpush1.bf16.msra.mxu0 0
        %5573 = vmatprep.subr.bf16.mxu0 0
        %5574 = vmatpush1.bf16.msra.mxu0 0
        %5575 = vmatprep.subr.bf16.mxu0 0
        %5576 = vmatpush1.bf16.msra.mxu0 0
        %5577 = vmatprep.subr.bf16.mxu0 0
        %5578 = vmatpush1.bf16.msra.mxu0 0
        %5579 = vmatprep.subr.bf16.mxu0 0
        %5580 = vmatpush1.bf16.msra.mxu0 0
        %5581 = vmatprep.subr.bf16.mxu0 0
        %5582 = vmatpush1.bf16.msra.mxu0 0
        %5583 = vmatprep.subr.bf16.mxu0 0
        %5584 = vmatpush1.bf16.msra.mxu0 0
        %5585 = vmatprep.subr.bf16.mxu0 0
        %5586 = vmatpush1.bf16.msra.mxu0 0
        %5587 = vmatprep.subr.bf16.mxu0 0
        %5588 = vmatpush1.bf16.msra.mxu0 0
        %5589 = vmatprep.mubr.bf16.mxu0 0
        %5590 = vmatmul.mubr.bf16.gmra.mrb[0].mxu0 %v5555
        %v5591 = vpop.f32.mrb[0].mxu0
        %v5592 = vadd.f32 0.0, %v5591
        %v5593 = vpop.f32.mrb[0].mxu0
        %v5594 = vpop.f32.mrb[0].mxu0
        %v5595 = vpop.f32.mrb[0].mxu0
        %5596 = vdwg.mxu0
        %v5598 = vsel %vm457, %v5476, 0
        %5600 = vmatprep.subr.bf16.mxu0 0
        %5601 = vmatpush1.bf16.msra.mxu0 %v5503
        %5602 = vmatprep.subr.bf16.mxu0 0
        %5603 = vmatpush1.bf16.msra.mxu0 %v5504
        %5604 = vmatprep.subr.bf16.mxu0 0
        %5605 = vmatpush1.bf16.msra.mxu0 %v5505
        %5606 = vmatprep.subr.bf16.mxu0 0
        %5607 = vmatpush1.bf16.msra.mxu0 %v5506
        %5608 = vmatprep.subr.bf16.mxu0 0
        %5609 = vmatpush1.bf16.msra.mxu0 0
        %5610 = vmatprep.subr.bf16.mxu0 0
        %5611 = vmatpush1.bf16.msra.mxu0 0
        %5612 = vmatprep.subr.bf16.mxu0 0
        %5613 = vmatpush1.bf16.msra.mxu0 0
        %5614 = vmatprep.subr.bf16.mxu0 0
        %5615 = vmatpush1.bf16.msra.mxu0 0
        %5616 = vmatprep.subr.bf16.mxu0 0
        %5617 = vmatpush1.bf16.msra.mxu0 0
        %5618 = vmatprep.subr.bf16.mxu0 0
        %5619 = vmatpush1.bf16.msra.mxu0 0
        %5620 = vmatprep.subr.bf16.mxu0 0
        %5621 = vmatpush1.bf16.msra.mxu0 0
        %5622 = vmatprep.subr.bf16.mxu0 0
        %5623 = vmatpush1.bf16.msra.mxu0 0
        %5624 = vmatprep.subr.bf16.mxu0 0
        %5625 = vmatpush1.bf16.msra.mxu0 0
        %5626 = vmatprep.subr.bf16.mxu0 0
        %5627 = vmatpush1.bf16.msra.mxu0 0
        %5628 = vmatprep.subr.bf16.mxu0 0
        %5629 = vmatpush1.bf16.msra.mxu0 0
        %5630 = vmatprep.subr.bf16.mxu0 0
        %5631 = vmatpush1.bf16.msra.mxu0 0
        %5632 = vmatprep.mubr.bf16.mxu0 0
        %5633 = vmatmul.mubr.bf16.gmra.mrb[0].mxu0 %v5598
        %v5634 = vpop.f32.mrb[0].mxu0
        %v5635 = vadd.f32 0.0, %v5634
        %v5636 = vpop.f32.mrb[0].mxu0
        %v5637 = vpop.f32.mrb[0].mxu0
        %v5638 = vpop.f32.mrb[0].mxu0
        %5639 = vdwg.mxu0
        %v5641 = vsel %vm457, %v5477, 0
        %5643 = vmatprep.subr.bf16.mxu0 0
        %5644 = vmatpush1.bf16.msra.mxu0 %v5503
        %5645 = vmatprep.subr.bf16.mxu0 0
        %5646 = vmatpush1.bf16.msra.mxu0 %v5504
        %5647 = vmatprep.subr.bf16.mxu0 0
        %5648 = vmatpush1.bf16.msra.mxu0 %v5505
        %5649 = vmatprep.subr.bf16.mxu0 0
        %5650 = vmatpush1.bf16.msra.mxu0 %v5506
        %5651 = vmatprep.subr.bf16.mxu0 0
        %5652 = vmatpush1.bf16.msra.mxu0 0
        %5653 = vmatprep.subr.bf16.mxu0 0
        %5654 = vmatpush1.bf16.msra.mxu0 0
        %5655 = vmatprep.subr.bf16.mxu0 0
        %5656 = vmatpush1.bf16.msra.mxu0 0
        %5657 = vmatprep.subr.bf16.mxu0 0
        %5658 = vmatpush1.bf16.msra.mxu0 0
        %5659 = vmatprep.subr.bf16.mxu0 0
        %5660 = vmatpush1.bf16.msra.mxu0 0
        %5661 = vmatprep.subr.bf16.mxu0 0
        %5662 = vmatpush1.bf16.msra.mxu0 0
        %5663 = vmatprep.subr.bf16.mxu0 0
        %5664 = vmatpush1.bf16.msra.mxu0 0
        %5665 = vmatprep.subr.bf16.mxu0 0
        %5666 = vmatpush1.bf16.msra.mxu0 0
        %5667 = vmatprep.subr.bf16.mxu0 0
        %5668 = vmatpush1.bf16.msra.mxu0 0
        %5669 = vmatprep.subr.bf16.mxu0 0
        %5670 = vmatpush1.bf16.msra.mxu0 0
        %5671 = vmatprep.subr.bf16.mxu0 0
        %5672 = vmatpush1.bf16.msra.mxu0 0
        %5673 = vmatprep.subr.bf16.mxu0 0
        %5674 = vmatpush1.bf16.msra.mxu0 0
        %5675 = vmatprep.mubr.bf16.mxu0 0
        %5676 = vmatmul.mubr.bf16.gmra.mrb[0].mxu0 %v5641
        %v5677 = vpop.f32.mrb[0].mxu0
        %v5678 = vadd.f32 0.0, %v5677
        %v5679 = vpop.f32.mrb[0].mxu0
        %v5680 = vpop.f32.mrb[0].mxu0
        %v5681 = vpop.f32.mrb[0].mxu0
        %5682 = vdwg.mxu0
        %v5683 = vadd.f32 %v5462, %v5549
        %v5684 = vadd.f32 %v5463, %v5592
        %v5685 = vadd.f32 %v5464, %v5635
        %v5686 = vadd.f32 %v5465, %v5678
        %s5687 = scalar_lea.vmem %s5245, 2 [#allocation3]
        %v5688 = vld [vmem:[%s5687] ss:$2 sm:$0xf]
        %s5689 = scalar_lea.vmem %s5245, 34 [#allocation3]
        %v5690 = vld [vmem:[%s5689] ss:$2 sm:$0xf]
        %s5691 = scalar_lea.vmem %s5245, 66 [#allocation3]
        %v5692 = vld [vmem:[%s5691] ss:$2 sm:$0xf]
        %s5693 = scalar_lea.vmem %s5245, 98 [#allocation3]
        %v5694 = vld [vmem:[%s5693] ss:$2 sm:$0xf]
        %v5695 = vpack.c.bf16 %v5688, %v5688
        %v5696 = vpack.c.bf16 %v5690, %v5690
        %v5697 = vpack.c.bf16 %v5692, %v5692
        %v5698 = vpack.c.bf16 %v5694, %v5694
        %s5699 = scalar_lea.vmem %s3, 256
        %v5700 = vld [vmem:[%s5699] sm:$0xf]
        %v5701 = vld [vmem:[%s5699 + $0x4] sm:$0xf]
        %v5702 = vld [vmem:[%s5699 + $0x8] sm:$0xf]
        %v5703 = vld [vmem:[%s5699 + $0xc] sm:$0xf]
        %v5704 = vld [vmem:[%s5699 + $0x10] sm:$0xf]
        %v5705 = vld [vmem:[%s5699 + $0x14] sm:$0xf]
        %v5706 = vld [vmem:[%s5699 + $0x18] sm:$0xf]
        %v5707 = vld [vmem:[%s5699 + $0x1c] sm:$0xf]
        %v5716 = vunpack.c.l.b16 %v5700
        %v5717 = vunpack.c.l.b16 %v5701
        %v5718 = vunpack.c.l.b16 %v5702
        %v5719 = vunpack.c.l.b16 %v5703
        %v5720 = vunpack.c.l.b16 %v5704
        %v5721 = vunpack.c.l.b16 %v5705
        %v5722 = vunpack.c.l.b16 %v5706
        %v5723 = vunpack.c.l.b16 %v5707
        %v5724 = vpack.c.b16 %v5717, %v5716
        %v5725 = vpack.c.b16 %v5719, %v5718
        %v5726 = vpack.c.b16 %v5721, %v5720
        %v5727 = vpack.c.b16 %v5723, %v5722
        %v5733 = vsel %vm457, %v5695, 0
        %5735 = vmatprep.subr.bf16.mxu0 0
        %5736 = vmatpush1.bf16.msra.mxu0 %v5724
        %5737 = vmatprep.subr.bf16.mxu0 0
        %5738 = vmatpush1.bf16.msra.mxu0 %v5725
        %5739 = vmatprep.subr.bf16.mxu0 0
        %5740 = vmatpush1.bf16.msra.mxu0 %v5726
        %5741 = vmatprep.subr.bf16.mxu0 0
        %5742 = vmatpush1.bf16.msra.mxu0 %v5727
        %5743 = vmatprep.subr.bf16.mxu0 0
        %5744 = vmatpush1.bf16.msra.mxu0 0
        %5745 = vmatprep.subr.bf16.mxu0 0
        %5746 = vmatpush1.bf16.msra.mxu0 0
        %5747 = vmatprep.subr.bf16.mxu0 0
        %5748 = vmatpush1.bf16.msra.mxu0 0
        %5749 = vmatprep.subr.bf16.mxu0 0
        %5750 = vmatpush1.bf16.msra.mxu0 0
        %5751 = vmatprep.subr.bf16.mxu0 0
        %5752 = vmatpush1.bf16.msra.mxu0 0
        %5753 = vmatprep.subr.bf16.mxu0 0
        %5754 = vmatpush1.bf16.msra.mxu0 0
        %5755 = vmatprep.subr.bf16.mxu0 0
        %5756 = vmatpush1.bf16.msra.mxu0 0
        %5757 = vmatprep.subr.bf16.mxu0 0
        %5758 = vmatpush1.bf16.msra.mxu0 0
        %5759 = vmatprep.subr.bf16.mxu0 0
        %5760 = vmatpush1.bf16.msra.mxu0 0
        %5761 = vmatprep.subr.bf16.mxu0 0
        %5762 = vmatpush1.bf16.msra.mxu0 0
        %5763 = vmatprep.subr.bf16.mxu0 0
        %5764 = vmatpush1.bf16.msra.mxu0 0
        %5765 = vmatprep.subr.bf16.mxu0 0
        %5766 = vmatpush1.bf16.msra.mxu0 0
        %5767 = vmatprep.mubr.bf16.mxu0 0
        %5768 = vmatmul.mubr.bf16.gmra.mrb[0].mxu0 %v5733
        %v5769 = vpop.f32.mrb[0].mxu0
        %v5770 = vadd.f32 0.0, %v5769
        %v5771 = vpop.f32.mrb[0].mxu0
        %v5772 = vpop.f32.mrb[0].mxu0
        %v5773 = vpop.f32.mrb[0].mxu0
        %5774 = vdwg.mxu0
        %v5776 = vsel %vm457, %v5696, 0
        %5778 = vmatprep.subr.bf16.mxu0 0
        %5779 = vmatpush1.bf16.msra.mxu0 %v5724
        %5780 = vmatprep.subr.bf16.mxu0 0
        %5781 = vmatpush1.bf16.msra.mxu0 %v5725
        %5782 = vmatprep.subr.bf16.mxu0 0
        %5783 = vmatpush1.bf16.msra.mxu0 %v5726
        %5784 = vmatprep.subr.bf16.mxu0 0
        %5785 = vmatpush1.bf16.msra.mxu0 %v5727
        %5786 = vmatprep.subr.bf16.mxu0 0
        %5787 = vmatpush1.bf16.msra.mxu0 0
        %5788 = vmatprep.subr.bf16.mxu0 0
        %5789 = vmatpush1.bf16.msra.mxu0 0
        %5790 = vmatprep.subr.bf16.mxu0 0
        %5791 = vmatpush1.bf16.msra.mxu0 0
        %5792 = vmatprep.subr.bf16.mxu0 0
        %5793 = vmatpush1.bf16.msra.mxu0 0
        %5794 = vmatprep.subr.bf16.mxu0 0
        %5795 = vmatpush1.bf16.msra.mxu0 0
        %5796 = vmatprep.subr.bf16.mxu0 0
        %5797 = vmatpush1.bf16.msra.mxu0 0
        %5798 = vmatprep.subr.bf16.mxu0 0
        %5799 = vmatpush1.bf16.msra.mxu0 0
        %5800 = vmatprep.subr.bf16.mxu0 0
        %5801 = vmatpush1.bf16.msra.mxu0 0
        %5802 = vmatprep.subr.bf16.mxu0 0
        %5803 = vmatpush1.bf16.msra.mxu0 0
        %5804 = vmatprep.subr.bf16.mxu0 0
        %5805 = vmatpush1.bf16.msra.mxu0 0
        %5806 = vmatprep.subr.bf16.mxu0 0
        %5807 = vmatpush1.bf16.msra.mxu0 0
        %5808 = vmatprep.subr.bf16.mxu0 0
        %5809 = vmatpush1.bf16.msra.mxu0 0
        %5810 = vmatprep.mubr.bf16.mxu0 0
        %5811 = vmatmul.mubr.bf16.gmra.mrb[0].mxu0 %v5776
        %v5812 = vpop.f32.mrb[0].mxu0
        %v5813 = vadd.f32 0.0, %v5812
        %v5814 = vpop.f32.mrb[0].mxu0
        %v5815 = vpop.f32.mrb[0].mxu0
        %v5816 = vpop.f32.mrb[0].mxu0
        %5817 = vdwg.mxu0
        %v5819 = vsel %vm457, %v5697, 0
        %5821 = vmatprep.subr.bf16.mxu0 0
        %5822 = vmatpush1.bf16.msra.mxu0 %v5724
        %5823 = vmatprep.subr.bf16.mxu0 0
        %5824 = vmatpush1.bf16.msra.mxu0 %v5725
        %5825 = vmatprep.subr.bf16.mxu0 0
        %5826 = vmatpush1.bf16.msra.mxu0 %v5726
        %5827 = vmatprep.subr.bf16.mxu0 0
        %5828 = vmatpush1.bf16.msra.mxu0 %v5727
        %5829 = vmatprep.subr.bf16.mxu0 0
        %5830 = vmatpush1.bf16.msra.mxu0 0
        %5831 = vmatprep.subr.bf16.mxu0 0
        %5832 = vmatpush1.bf16.msra.mxu0 0
        %5833 = vmatprep.subr.bf16.mxu0 0
        %5834 = vmatpush1.bf16.msra.mxu0 0
        %5835 = vmatprep.subr.bf16.mxu0 0
        %5836 = vmatpush1.bf16.msra.mxu0 0
        %5837 = vmatprep.subr.bf16.mxu0 0
        %5838 = vmatpush1.bf16.msra.mxu0 0
        %5839 = vmatprep.subr.bf16.mxu0 0
        %5840 = vmatpush1.bf16.msra.mxu0 0
        %5841 = vmatprep.subr.bf16.mxu0 0
        %5842 = vmatpush1.bf16.msra.mxu0 0
        %5843 = vmatprep.subr.bf16.mxu0 0
        %5844 = vmatpush1.bf16.msra.mxu0 0
        %5845 = vmatprep.subr.bf16.mxu0 0
        %5846 = vmatpush1.bf16.msra.mxu0 0
        %5847 = vmatprep.subr.bf16.mxu0 0
        %5848 = vmatpush1.bf16.msra.mxu0 0
        %5849 = vmatprep.subr.bf16.mxu0 0
        %5850 = vmatpush1.bf16.msra.mxu0 0
        %5851 = vmatprep.subr.bf16.mxu0 0
        %5852 = vmatpush1.bf16.msra.mxu0 0
        %5853 = vmatprep.mubr.bf16.mxu0 0
        %5854 = vmatmul.mubr.bf16.gmra.mrb[0].mxu0 %v5819
        %v5855 = vpop.f32.mrb[0].mxu0
        %v5856 = vadd.f32 0.0, %v5855
        %v5857 = vpop.f32.mrb[0].mxu0
        %v5858 = vpop.f32.mrb[0].mxu0
        %v5859 = vpop.f32.mrb[0].mxu0
        %5860 = vdwg.mxu0
        %v5862 = vsel %vm457, %v5698, 0
        %5864 = vmatprep.subr.bf16.mxu0 0
        %5865 = vmatpush1.bf16.msra.mxu0 %v5724
        %5866 = vmatprep.subr.bf16.mxu0 0
        %5867 = vmatpush1.bf16.msra.mxu0 %v5725
        %5868 = vmatprep.subr.bf16.mxu0 0
        %5869 = vmatpush1.bf16.msra.mxu0 %v5726
        %5870 = vmatprep.subr.bf16.mxu0 0
        %5871 = vmatpush1.bf16.msra.mxu0 %v5727
        %5872 = vmatprep.subr.bf16.mxu0 0
        %5873 = vmatpush1.bf16.msra.mxu0 0
        %5874 = vmatprep.subr.bf16.mxu0 0
        %5875 = vmatpush1.bf16.msra.mxu0 0
        %5876 = vmatprep.subr.bf16.mxu0 0
        %5877 = vmatpush1.bf16.msra.mxu0 0
        %5878 = vmatprep.subr.bf16.mxu0 0
        %5879 = vmatpush1.bf16.msra.mxu0 0
        %5880 = vmatprep.subr.bf16.mxu0 0
        %5881 = vmatpush1.bf16.msra.mxu0 0
        %5882 = vmatprep.subr.bf16.mxu0 0
        %5883 = vmatpush1.bf16.msra.mxu0 0
        %5884 = vmatprep.subr.bf16.mxu0 0
        %5885 = vmatpush1.bf16.msra.mxu0 0
        %5886 = vmatprep.subr.bf16.mxu0 0
        %5887 = vmatpush1.bf16.msra.mxu0 0
        %5888 = vmatprep.subr.bf16.mxu0 0
        %5889 = vmatpush1.bf16.msra.mxu0 0
        %5890 = vmatprep.subr.bf16.mxu0 0
        %5891 = vmatpush1.bf16.msra.mxu0 0
        %5892 = vmatprep.subr.bf16.mxu0 0
        %5893 = vmatpush1.bf16.msra.mxu0 0
        %5894 = vmatprep.subr.bf16.mxu0 0
        %5895 = vmatpush1.bf16.msra.mxu0 0
        %5896 = vmatprep.mubr.bf16.mxu0 0
        %5897 = vmatmul.mubr.bf16.gmra.mrb[0].mxu0 %v5862
        %v5898 = vpop.f32.mrb[0].mxu0
        %v5899 = vadd.f32 0.0, %v5898
        %v5900 = vpop.f32.mrb[0].mxu0
        %v5901 = vpop.f32.mrb[0].mxu0
        %v5902 = vpop.f32.mrb[0].mxu0
        %5903 = vdwg.mxu0
        %v5904 = vadd.f32 %v5683, %v5770
        %v5905 = vadd.f32 %v5684, %v5813
        %v5906 = vadd.f32 %v5685, %v5856
        %v5907 = vadd.f32 %v5686, %v5899
        %v5908 = vld [vmem:[%s4] sm:$0x1]
        %v5910 = vlaneseq
        %v5911 = vshrl.u32 %v5910, 7
        %v5912 = vsub.s32 0, %v5911
        %v5913 = vrot.slane %v5908, %v5912
        %v5915 = vadd.f32 %v5904, %v5913
        %v5916 = vadd.f32 %v5905, %v5913
        %v5917 = vadd.f32 %v5906, %v5913
        %v5918 = vadd.f32 %v5907, %v5913
        %v5919 = vmax.f32 %v5915, 0.0
        %v5920 = vmax.f32 %v5916, 0.0
        %v5921 = vmax.f32 %v5917, 0.0
        %v5922 = vmax.f32 %v5918, 0.0
        %s5923 = scalar_lea.vmem [#allocation4], 8
        %vm5924 = vcmask 519168
        %5925 = vst.msk [vmem:[%s5923 + $0x1] sm:$0xf] %vm5924, %v5919
        %5926 = vst.msk [vmem:[%s5923 + $0x9] sm:$0xf] %vm5924, %v5920
        %5927 = vst.msk [vmem:[%s5923 + $0x11] sm:$0xf] %vm5924, %v5921
        %5928 = vst.msk [vmem:[%s5923 + $0x19] sm:$0xf] %vm5924, %v5922
        %v5929 = vld [vmem:[#allocation4] ss:$2 sm:$0x3]
        %s5930 = scalar_lea.vmem [#allocation4], 16
        %v5931 = vld [vmem:[%s5930] ss:$2 sm:$0x3]
        %v5932 = vpack.c.bf16 %v5929, %v5929
        %v5933 = vpack.c.bf16 %v5931, %v5931
        %v5934 = vld [vmem:[#allocation5] sm:$0xf]
        %v5935 = vld [vmem:[#allocation5 + $0x4] sm:$0xf]
        %v5936 = vld [vmem:[#allocation5 + $0x8] sm:$0xf]
        %v5937 = vld [vmem:[#allocation5 + $0xc] sm:$0xf]
        %v5938 = vld [vmem:[#allocation5 + $0x10] sm:$0xf]
        %v5939 = vld [vmem:[#allocation5 + $0x14] sm:$0xf]
        %v5940 = vld [vmem:[#allocation5 + $0x18] sm:$0xf]
        %v5941 = vld [vmem:[#allocation5 + $0x1c] sm:$0xf]
        %s5942 = scalar_lea.vmem [#allocation4], 1
        %v5943 = vld [vmem:[%s5942] ss:$2 sm:$0x3]
        %s5944 = scalar_lea.vmem [#allocation4], 17
        %v5945 = vld [vmem:[%s5944] ss:$2 sm:$0x3]
        %v5946 = vpack.c.bf16 %v5943, %v5943
        %v5947 = vpack.c.bf16 %v5945, %v5945
        %s5948 = scalar_lea.vmem [#allocation5], 32
        %v5949 = vld [vmem:[%s5948] sm:$0xf]
        %v5950 = vld [vmem:[%s5948 + $0x4] sm:$0xf]
        %v5951 = vld [vmem:[%s5948 + $0x8] sm:$0xf]
        %v5952 = vld [vmem:[%s5948 + $0xc] sm:$0xf]
        %v5953 = vld [vmem:[%s5948 + $0x10] sm:$0xf]
        %v5954 = vld [vmem:[%s5948 + $0x14] sm:$0xf]
        %v5955 = vld [vmem:[%s5948 + $0x18] sm:$0xf]
        %v5956 = vld [vmem:[%s5948 + $0x1c] sm:$0xf]
        %v5965 = vunpack.c.l.b16 %v5949
        %v5966 = vunpack.c.l.b16 %v5950
        %v5967 = vunpack.c.l.b16 %v5951
        %v5968 = vunpack.c.l.b16 %v5952
        %v5969 = vunpack.c.l.b16 %v5953
        %v5970 = vunpack.c.l.b16 %v5954
        %v5971 = vunpack.c.l.b16 %v5955
        %v5972 = vunpack.c.l.b16 %v5956
        %v5973 = vpack.c.b16 %v5966, %v5965
        %v5974 = vpack.c.b16 %v5968, %v5967
        %v5975 = vpack.c.b16 %v5970, %v5969
        %v5976 = vpack.c.b16 %v5972, %v5971
        %v5982 = vsel %vm457, %v5946, 0
        %5984 = vmatprep.subr.bf16.mxu0 0
        %5985 = vmatpush1.bf16.msra.mxu0 %v5973
        %5986 = vmatprep.subr.bf16.mxu0 0
        %5987 = vmatpush1.bf16.msra.mxu0 %v5974
        %5988 = vmatprep.subr.bf16.mxu0 0
        %5989 = vmatpush1.bf16.msra.mxu0 %v5975
        %5990 = vmatprep.subr.bf16.mxu0 0
        %5991 = vmatpush1.bf16.msra.mxu0 %v5976
        %5992 = vmatprep.subr.bf16.mxu0 0
        %5993 = vmatpush1.bf16.msra.mxu0 0
        %5994 = vmatprep.subr.bf16.mxu0 0
        %5995 = vmatpush1.bf16.msra.mxu0 0
        %5996 = vmatprep.subr.bf16.mxu0 0
        %5997 = vmatpush1.bf16.msra.mxu0 0
        %5998 = vmatprep.subr.bf16.mxu0 0
        %5999 = vmatpush1.bf16.msra.mxu0 0
        %6000 = vmatprep.subr.bf16.mxu0 0
        %6001 = vmatpush1.bf16.msra.mxu0 0
        %6002 = vmatprep.subr.bf16.mxu0 0
        %6003 = vmatpush1.bf16.msra.mxu0 0
        %6004 = vmatprep.subr.bf16.mxu0 0
        %6005 = vmatpush1.bf16.msra.mxu0 0
        %6006 = vmatprep.subr.bf16.mxu0 0
        %6007 = vmatpush1.bf16.msra.mxu0 0
        %6008 = vmatprep.subr.bf16.mxu0 0
        %6009 = vmatpush1.bf16.msra.mxu0 0
        %6010 = vmatprep.subr.bf16.mxu0 0
        %6011 = vmatpush1.bf16.msra.mxu0 0
        %6012 = vmatprep.subr.bf16.mxu0 0
        %6013 = vmatpush1.bf16.msra.mxu0 0
        %6014 = vmatprep.subr.bf16.mxu0 0
        %6015 = vmatpush1.bf16.msra.mxu0 0
        %6016 = vmatprep.mubr.bf16.mxu0 0
        %6017 = vmatmul.mubr.bf16.gmra.mrb[0].mxu0 %v5982
        %v6018 = vpop.f32.mrb[0].mxu0
        %v6019 = vadd.f32 0.0, %v6018
        %v6020 = vpop.f32.mrb[0].mxu0
        %v6021 = vpop.f32.mrb[0].mxu0
        %v6022 = vpop.f32.mrb[0].mxu0
        %6023 = vdwg.mxu0
        %v6025 = vsel %vm457, %v5947, 0
        %6027 = vmatprep.subr.bf16.mxu0 0
        %6028 = vmatpush1.bf16.msra.mxu0 %v5973
        %6029 = vmatprep.subr.bf16.mxu0 0
        %6030 = vmatpush1.bf16.msra.mxu0 %v5974
        %6031 = vmatprep.subr.bf16.mxu0 0
        %6032 = vmatpush1.bf16.msra.mxu0 %v5975
        %6033 = vmatprep.subr.bf16.mxu0 0
        %6034 = vmatpush1.bf16.msra.mxu0 %v5976
        %6035 = vmatprep.subr.bf16.mxu0 0
        %6036 = vmatpush1.bf16.msra.mxu0 0
        %6037 = vmatprep.subr.bf16.mxu0 0
        %6038 = vmatpush1.bf16.msra.mxu0 0
        %6039 = vmatprep.subr.bf16.mxu0 0
        %6040 = vmatpush1.bf16.msra.mxu0 0
        %6041 = vmatprep.subr.bf16.mxu0 0
        %6042 = vmatpush1.bf16.msra.mxu0 0
        %6043 = vmatprep.subr.bf16.mxu0 0
        %6044 = vmatpush1.bf16.msra.mxu0 0
        %6045 = vmatprep.subr.bf16.mxu0 0
        %6046 = vmatpush1.bf16.msra.mxu0 0
        %6047 = vmatprep.subr.bf16.mxu0 0
        %6048 = vmatpush1.bf16.msra.mxu0 0
        %6049 = vmatprep.subr.bf16.mxu0 0
        %6050 = vmatpush1.bf16.msra.mxu0 0
        %6051 = vmatprep.subr.bf16.mxu0 0
        %6052 = vmatpush1.bf16.msra.mxu0 0
        %6053 = vmatprep.subr.bf16.mxu0 0
        %6054 = vmatpush1.bf16.msra.mxu0 0
        %6055 = vmatprep.subr.bf16.mxu0 0
        %6056 = vmatpush1.bf16.msra.mxu0 0
        %6057 = vmatprep.subr.bf16.mxu0 0
        %6058 = vmatpush1.bf16.msra.mxu0 0
        %6059 = vmatprep.mubr.bf16.mxu0 0
        %6060 = vmatmul.mubr.bf16.gmra.mrb[0].mxu0 %v6025
        %v6061 = vpop.f32.mrb[0].mxu0
        %v6062 = vadd.f32 0.0, %v6061
        %v6063 = vpop.f32.mrb[0].mxu0
        %v6064 = vpop.f32.mrb[0].mxu0
        %v6065 = vpop.f32.mrb[0].mxu0
        %6066 = vdwg.mxu0
        %v6075 = vunpack.c.l.b16 %v5934
        %v6076 = vunpack.c.l.b16 %v5935
        %v6077 = vunpack.c.l.b16 %v5936
        %v6078 = vunpack.c.l.b16 %v5937
        %v6079 = vunpack.c.l.b16 %v5938
        %v6080 = vunpack.c.l.b16 %v5939
        %v6081 = vunpack.c.l.b16 %v5940
        %v6082 = vunpack.c.l.b16 %v5941
        %v6083 = vpack.c.b16 %v6076, %v6075
        %v6084 = vpack.c.b16 %v6078, %v6077
        %v6085 = vpack.c.b16 %v6080, %v6079
        %v6086 = vpack.c.b16 %v6082, %v6081
        %v6092 = vsel %vm457, %v5932, 0
        %6094 = vmatprep.subr.bf16.mxu0 0
        %6095 = vmatpush1.bf16.msra.mxu0 %v6083
        %6096 = vmatprep.subr.bf16.mxu0 0
        %6097 = vmatpush1.bf16.msra.mxu0 %v6084
        %6098 = vmatprep.subr.bf16.mxu0 0
        %6099 = vmatpush1.bf16.msra.mxu0 %v6085
        %6100 = vmatprep.subr.bf16.mxu0 0
        %6101 = vmatpush1.bf16.msra.mxu0 %v6086
        %6102 = vmatprep.subr.bf16.mxu0 0
        %6103 = vmatpush1.bf16.msra.mxu0 0
        %6104 = vmatprep.subr.bf16.mxu0 0
        %6105 = vmatpush1.bf16.msra.mxu0 0
        %6106 = vmatprep.subr.bf16.mxu0 0
        %6107 = vmatpush1.bf16.msra.mxu0 0
        %6108 = vmatprep.subr.bf16.mxu0 0
        %6109 = vmatpush1.bf16.msra.mxu0 0
        %6110 = vmatprep.subr.bf16.mxu0 0
        %6111 = vmatpush1.bf16.msra.mxu0 0
        %6112 = vmatprep.subr.bf16.mxu0 0
        %6113 = vmatpush1.bf16.msra.mxu0 0
        %6114 = vmatprep.subr.bf16.mxu0 0
        %6115 = vmatpush1.bf16.msra.mxu0 0
        %6116 = vmatprep.subr.bf16.mxu0 0
        %6117 = vmatpush1.bf16.msra.mxu0 0
        %6118 = vmatprep.subr.bf16.mxu0 0
        %6119 = vmatpush1.bf16.msra.mxu0 0
        %6120 = vmatprep.subr.bf16.mxu0 0
        %6121 = vmatpush1.bf16.msra.mxu0 0
        %6122 = vmatprep.subr.bf16.mxu0 0
        %6123 = vmatpush1.bf16.msra.mxu0 0
        %6124 = vmatprep.subr.bf16.mxu0 0
        %6125 = vmatpush1.bf16.msra.mxu0 0
        %6126 = vmatprep.mubr.bf16.mxu0 0
        %6127 = vmatmul.mubr.bf16.gmra.mrb[0].mxu0 %v6092
        %v6128 = vpop.f32.mrb[0].mxu0
        %v6129 = vadd.f32 %v6019, %v6128
        %v6130 = vpop.f32.mrb[0].mxu0
        %v6131 = vpop.f32.mrb[0].mxu0
        %v6132 = vpop.f32.mrb[0].mxu0
        %6133 = vdwg.mxu0
        %v6135 = vsel %vm457, %v5933, 0
        %6137 = vmatprep.subr.bf16.mxu0 0
        %6138 = vmatpush1.bf16.msra.mxu0 %v6083
        %6139 = vmatprep.subr.bf16.mxu0 0
        %6140 = vmatpush1.bf16.msra.mxu0 %v6084
        %6141 = vmatprep.subr.bf16.mxu0 0
        %6142 = vmatpush1.bf16.msra.mxu0 %v6085
        %6143 = vmatprep.subr.bf16.mxu0 0
        %6144 = vmatpush1.bf16.msra.mxu0 %v6086
        %6145 = vmatprep.subr.bf16.mxu0 0
        %6146 = vmatpush1.bf16.msra.mxu0 0
        %6147 = vmatprep.subr.bf16.mxu0 0
        %6148 = vmatpush1.bf16.msra.mxu0 0
        %6149 = vmatprep.subr.bf16.mxu0 0
        %6150 = vmatpush1.bf16.msra.mxu0 0
        %6151 = vmatprep.subr.bf16.mxu0 0
        %6152 = vmatpush1.bf16.msra.mxu0 0
        %6153 = vmatprep.subr.bf16.mxu0 0
        %6154 = vmatpush1.bf16.msra.mxu0 0
        %6155 = vmatprep.subr.bf16.mxu0 0
        %6156 = vmatpush1.bf16.msra.mxu0 0
        %6157 = vmatprep.subr.bf16.mxu0 0
        %6158 = vmatpush1.bf16.msra.mxu0 0
        %6159 = vmatprep.subr.bf16.mxu0 0
        %6160 = vmatpush1.bf16.msra.mxu0 0
        %6161 = vmatprep.subr.bf16.mxu0 0
        %6162 = vmatpush1.bf16.msra.mxu0 0
        %6163 = vmatprep.subr.bf16.mxu0 0
        %6164 = vmatpush1.bf16.msra.mxu0 0
        %6165 = vmatprep.subr.bf16.mxu0 0
        %6166 = vmatpush1.bf16.msra.mxu0 0
        %6167 = vmatprep.subr.bf16.mxu0 0
        %6168 = vmatpush1.bf16.msra.mxu0 0
        %6169 = vmatprep.mubr.bf16.mxu0 0
        %6170 = vmatmul.mubr.bf16.gmra.mrb[0].mxu0 %v6135
        %v6171 = vpop.f32.mrb[0].mxu0
        %v6172 = vadd.f32 %v6062, %v6171
        %v6173 = vpop.f32.mrb[0].mxu0
        %v6174 = vpop.f32.mrb[0].mxu0
        %v6175 = vpop.f32.mrb[0].mxu0
        %6176 = vdwg.mxu0
        %s6177 = scalar_lea.vmem [#allocation4], 2
        %v6178 = vld [vmem:[%s6177] ss:$2 sm:$0x3]
        %s6179 = scalar_lea.vmem [#allocation4], 18
        %v6180 = vld [vmem:[%s6179] ss:$2 sm:$0x3]
        %v6181 = vpack.c.bf16 %v6178, %v6178
        %v6182 = vpack.c.bf16 %v6180, %v6180
        %s6183 = scalar_lea.vmem [#allocation5], 64
        %v6184 = vld [vmem:[%s6183] sm:$0xf]
        %v6185 = vld [vmem:[%s6183 + $0x4] sm:$0xf]
        %v6186 = vld [vmem:[%s6183 + $0x8] sm:$0xf]
        %v6187 = vld [vmem:[%s6183 + $0xc] sm:$0xf]
        %v6188 = vld [vmem:[%s6183 + $0x10] sm:$0xf]
        %v6189 = vld [vmem:[%s6183 + $0x14] sm:$0xf]
        %v6190 = vld [vmem:[%s6183 + $0x18] sm:$0xf]
        %v6191 = vld [vmem:[%s6183 + $0x1c] sm:$0xf]
        %v6200 = vunpack.c.l.b16 %v6184
        %v6201 = vunpack.c.l.b16 %v6185
        %v6202 = vunpack.c.l.b16 %v6186
        %v6203 = vunpack.c.l.b16 %v6187
        %v6204 = vunpack.c.l.b16 %v6188
        %v6205 = vunpack.c.l.b16 %v6189
        %v6206 = vunpack.c.l.b16 %v6190
        %v6207 = vunpack.c.l.b16 %v6191
        %v6208 = vpack.c.b16 %v6201, %v6200
        %v6209 = vpack.c.b16 %v6203, %v6202
        %v6210 = vpack.c.b16 %v6205, %v6204
        %v6211 = vpack.c.b16 %v6207, %v6206
        %v6217 = vsel %vm457, %v6181, 0
        %6219 = vmatprep.subr.bf16.mxu0 0
        %6220 = vmatpush1.bf16.msra.mxu0 %v6208
        %6221 = vmatprep.subr.bf16.mxu0 0
        %6222 = vmatpush1.bf16.msra.mxu0 %v6209
        %6223 = vmatprep.subr.bf16.mxu0 0
        %6224 = vmatpush1.bf16.msra.mxu0 %v6210
        %6225 = vmatprep.subr.bf16.mxu0 0
        %6226 = vmatpush1.bf16.msra.mxu0 %v6211
        %6227 = vmatprep.subr.bf16.mxu0 0
        %6228 = vmatpush1.bf16.msra.mxu0 0
        %6229 = vmatprep.subr.bf16.mxu0 0
        %6230 = vmatpush1.bf16.msra.mxu0 0
        %6231 = vmatprep.subr.bf16.mxu0 0
        %6232 = vmatpush1.bf16.msra.mxu0 0
        %6233 = vmatprep.subr.bf16.mxu0 0
        %6234 = vmatpush1.bf16.msra.mxu0 0
        %6235 = vmatprep.subr.bf16.mxu0 0
        %6236 = vmatpush1.bf16.msra.mxu0 0
        %6237 = vmatprep.subr.bf16.mxu0 0
        %6238 = vmatpush1.bf16.msra.mxu0 0
        %6239 = vmatprep.subr.bf16.mxu0 0
        %6240 = vmatpush1.bf16.msra.mxu0 0
        %6241 = vmatprep.subr.bf16.mxu0 0
        %6242 = vmatpush1.bf16.msra.mxu0 0
        %6243 = vmatprep.subr.bf16.mxu0 0
        %6244 = vmatpush1.bf16.msra.mxu0 0
        %6245 = vmatprep.subr.bf16.mxu0 0
        %6246 = vmatpush1.bf16.msra.mxu0 0
        %6247 = vmatprep.subr.bf16.mxu0 0
        %6248 = vmatpush1.bf16.msra.mxu0 0
        %6249 = vmatprep.subr.bf16.mxu0 0
        %6250 = vmatpush1.bf16.msra.mxu0 0
        %6251 = vmatprep.mubr.bf16.mxu0 0
        %6252 = vmatmul.mubr.bf16.gmra.mrb[0].mxu0 %v6217
        %v6253 = vpop.f32.mrb[0].mxu0
        %v6254 = vadd.f32 0.0, %v6253
        %v6255 = vpop.f32.mrb[0].mxu0
        %v6256 = vpop.f32.mrb[0].mxu0
        %v6257 = vpop.f32.mrb[0].mxu0
        %6258 = vdwg.mxu0
        %v6260 = vsel %vm457, %v6182, 0
        %6262 = vmatprep.subr.bf16.mxu0 0
        %6263 = vmatpush1.bf16.msra.mxu0 %v6208
        %6264 = vmatprep.subr.bf16.mxu0 0
        %6265 = vmatpush1.bf16.msra.mxu0 %v6209
        %6266 = vmatprep.subr.bf16.mxu0 0
        %6267 = vmatpush1.bf16.msra.mxu0 %v6210
        %6268 = vmatprep.subr.bf16.mxu0 0
        %6269 = vmatpush1.bf16.msra.mxu0 %v6211
        %6270 = vmatprep.subr.bf16.mxu0 0
        %6271 = vmatpush1.bf16.msra.mxu0 0
        %6272 = vmatprep.subr.bf16.mxu0 0
        %6273 = vmatpush1.bf16.msra.mxu0 0
        %6274 = vmatprep.subr.bf16.mxu0 0
        %6275 = vmatpush1.bf16.msra.mxu0 0
        %6276 = vmatprep.subr.bf16.mxu0 0
        %6277 = vmatpush1.bf16.msra.mxu0 0
        %6278 = vmatprep.subr.bf16.mxu0 0
        %6279 = vmatpush1.bf16.msra.mxu0 0
        %6280 = vmatprep.subr.bf16.mxu0 0
        %6281 = vmatpush1.bf16.msra.mxu0 0
        %6282 = vmatprep.subr.bf16.mxu0 0
        %6283 = vmatpush1.bf16.msra.mxu0 0
        %6284 = vmatprep.subr.bf16.mxu0 0
        %6285 = vmatpush1.bf16.msra.mxu0 0
        %6286 = vmatprep.subr.bf16.mxu0 0
        %6287 = vmatpush1.bf16.msra.mxu0 0
        %6288 = vmatprep.subr.bf16.mxu0 0
        %6289 = vmatpush1.bf16.msra.mxu0 0
        %6290 = vmatprep.subr.bf16.mxu0 0
        %6291 = vmatpush1.bf16.msra.mxu0 0
        %6292 = vmatprep.subr.bf16.mxu0 0
        %6293 = vmatpush1.bf16.msra.mxu0 0
        %6294 = vmatprep.mubr.bf16.mxu0 0
        %6295 = vmatmul.mubr.bf16.gmra.mrb[0].mxu0 %v6260
        %v6296 = vpop.f32.mrb[0].mxu0
        %v6297 = vadd.f32 0.0, %v6296
        %v6298 = vpop.f32.mrb[0].mxu0
        %v6299 = vpop.f32.mrb[0].mxu0
        %v6300 = vpop.f32.mrb[0].mxu0
        %6301 = vdwg.mxu0
        %v6302 = vadd.f32 %v6129, %v6254
        %v6303 = vadd.f32 %v6172, %v6297
        %v6304 = vld [vmem:[%s5923] ss:$2 sm:$0x3]
        %s6305 = scalar_lea.vmem %s5923, 16 [#allocation4]
        %v6306 = vld [vmem:[%s6305] ss:$2 sm:$0x3]
        %v6307 = vpack.c.bf16 %v6304, %v6304
        %v6308 = vpack.c.bf16 %v6306, %v6306
        %s6309 = scalar_lea.vmem [#allocation5], 96
        %v6310 = vld [vmem:[%s6309] sm:$0xf]
        %v6311 = vld [vmem:[%s6309 + $0x4] sm:$0xf]
        %v6312 = vld [vmem:[%s6309 + $0x8] sm:$0xf]
        %v6313 = vld [vmem:[%s6309 + $0xc] sm:$0xf]
        %v6314 = vld [vmem:[%s6309 + $0x10] sm:$0xf]
        %v6315 = vld [vmem:[%s6309 + $0x14] sm:$0xf]
        %v6316 = vld [vmem:[%s6309 + $0x18] sm:$0xf]
        %v6317 = vld [vmem:[%s6309 + $0x1c] sm:$0xf]
        %v6326 = vunpack.c.l.b16 %v6310
        %v6327 = vunpack.c.l.b16 %v6311
        %v6328 = vunpack.c.l.b16 %v6312
        %v6329 = vunpack.c.l.b16 %v6313
        %v6330 = vunpack.c.l.b16 %v6314
        %v6331 = vunpack.c.l.b16 %v6315
        %v6332 = vunpack.c.l.b16 %v6316
        %v6333 = vunpack.c.l.b16 %v6317
        %v6334 = vpack.c.b16 %v6327, %v6326
        %v6335 = vpack.c.b16 %v6329, %v6328
        %v6336 = vpack.c.b16 %v6331, %v6330
        %v6337 = vpack.c.b16 %v6333, %v6332
        %v6343 = vsel %vm457, %v6307, 0
        %6345 = vmatprep.subr.bf16.mxu0 0
        %6346 = vmatpush1.bf16.msra.mxu0 %v6334
        %6347 = vmatprep.subr.bf16.mxu0 0
        %6348 = vmatpush1.bf16.msra.mxu0 %v6335
        %6349 = vmatprep.subr.bf16.mxu0 0
        %6350 = vmatpush1.bf16.msra.mxu0 %v6336
        %6351 = vmatprep.subr.bf16.mxu0 0
        %6352 = vmatpush1.bf16.msra.mxu0 %v6337
        %6353 = vmatprep.subr.bf16.mxu0 0
        %6354 = vmatpush1.bf16.msra.mxu0 0
        %6355 = vmatprep.subr.bf16.mxu0 0
        %6356 = vmatpush1.bf16.msra.mxu0 0
        %6357 = vmatprep.subr.bf16.mxu0 0
        %6358 = vmatpush1.bf16.msra.mxu0 0
        %6359 = vmatprep.subr.bf16.mxu0 0
        %6360 = vmatpush1.bf16.msra.mxu0 0
        %6361 = vmatprep.subr.bf16.mxu0 0
        %6362 = vmatpush1.bf16.msra.mxu0 0
        %6363 = vmatprep.subr.bf16.mxu0 0
        %6364 = vmatpush1.bf16.msra.mxu0 0
        %6365 = vmatprep.subr.bf16.mxu0 0
        %6366 = vmatpush1.bf16.msra.mxu0 0
        %6367 = vmatprep.subr.bf16.mxu0 0
        %6368 = vmatpush1.bf16.msra.mxu0 0
        %6369 = vmatprep.subr.bf16.mxu0 0
        %6370 = vmatpush1.bf16.msra.mxu0 0
        %6371 = vmatprep.subr.bf16.mxu0 0
        %6372 = vmatpush1.bf16.msra.mxu0 0
        %6373 = vmatprep.subr.bf16.mxu0 0
        %6374 = vmatpush1.bf16.msra.mxu0 0
        %6375 = vmatprep.subr.bf16.mxu0 0
        %6376 = vmatpush1.bf16.msra.mxu0 0
        %6377 = vmatprep.mubr.bf16.mxu0 0
        %6378 = vmatmul.mubr.bf16.gmra.mrb[0].mxu0 %v6343
        %v6379 = vpop.f32.mrb[0].mxu0
        %v6380 = vadd.f32 0.0, %v6379
        %v6381 = vpop.f32.mrb[0].mxu0
        %v6382 = vpop.f32.mrb[0].mxu0
        %v6383 = vpop.f32.mrb[0].mxu0
        %6384 = vdwg.mxu0
        %v6386 = vsel %vm457, %v6308, 0
        %6388 = vmatprep.subr.bf16.mxu0 0
        %6389 = vmatpush1.bf16.msra.mxu0 %v6334
        %6390 = vmatprep.subr.bf16.mxu0 0
        %6391 = vmatpush1.bf16.msra.mxu0 %v6335
        %6392 = vmatprep.subr.bf16.mxu0 0
        %6393 = vmatpush1.bf16.msra.mxu0 %v6336
        %6394 = vmatprep.subr.bf16.mxu0 0
        %6395 = vmatpush1.bf16.msra.mxu0 %v6337
        %6396 = vmatprep.subr.bf16.mxu0 0
        %6397 = vmatpush1.bf16.msra.mxu0 0
        %6398 = vmatprep.subr.bf16.mxu0 0
        %6399 = vmatpush1.bf16.msra.mxu0 0
        %6400 = vmatprep.subr.bf16.mxu0 0
        %6401 = vmatpush1.bf16.msra.mxu0 0
        %6402 = vmatprep.subr.bf16.mxu0 0
        %6403 = vmatpush1.bf16.msra.mxu0 0
        %6404 = vmatprep.subr.bf16.mxu0 0
        %6405 = vmatpush1.bf16.msra.mxu0 0
        %6406 = vmatprep.subr.bf16.mxu0 0
        %6407 = vmatpush1.bf16.msra.mxu0 0
        %6408 = vmatprep.subr.bf16.mxu0 0
        %6409 = vmatpush1.bf16.msra.mxu0 0
        %6410 = vmatprep.subr.bf16.mxu0 0
        %6411 = vmatpush1.bf16.msra.mxu0 0
        %6412 = vmatprep.subr.bf16.mxu0 0
        %6413 = vmatpush1.bf16.msra.mxu0 0
        %6414 = vmatprep.subr.bf16.mxu0 0
        %6415 = vmatpush1.bf16.msra.mxu0 0
        %6416 = vmatprep.subr.bf16.mxu0 0
        %6417 = vmatpush1.bf16.msra.mxu0 0
        %6418 = vmatprep.subr.bf16.mxu0 0
        %6419 = vmatpush1.bf16.msra.mxu0 0
        %6420 = vmatprep.mubr.bf16.mxu0 0
        %6421 = vmatmul.mubr.bf16.gmra.mrb[0].mxu0 %v6386
        %v6422 = vpop.f32.mrb[0].mxu0
        %v6423 = vadd.f32 0.0, %v6422
        %v6424 = vpop.f32.mrb[0].mxu0
        %v6425 = vpop.f32.mrb[0].mxu0
        %v6426 = vpop.f32.mrb[0].mxu0
        %6427 = vdwg.mxu0
        %v6428 = vadd.f32 %v6302, %v6380
        %v6429 = vadd.f32 %v6303, %v6423
        %s6430 = scalar_lea.vmem %s5923, 1 [#allocation4]
        %v6431 = vld [vmem:[%s6430] ss:$2 sm:$0x3]
        %s6432 = scalar_lea.vmem %s5923, 17 [#allocation4]
        %v6433 = vld [vmem:[%s6432] ss:$2 sm:$0x3]
        %v6434 = vpack.c.bf16 %v6431, %v6431
        %v6435 = vpack.c.bf16 %v6433, %v6433
        %s6436 = scalar_lea.vmem [#allocation5], 128
        %v6437 = vld [vmem:[%s6436] sm:$0xf]
        %v6438 = vld [vmem:[%s6436 + $0x4] sm:$0xf]
        %v6439 = vld [vmem:[%s6436 + $0x8] sm:$0xf]
        %v6440 = vld [vmem:[%s6436 + $0xc] sm:$0xf]
        %v6441 = vld [vmem:[%s6436 + $0x10] sm:$0xf]
        %v6442 = vld [vmem:[%s6436 + $0x14] sm:$0xf]
        %v6443 = vld [vmem:[%s6436 + $0x18] sm:$0xf]
        %v6444 = vld [vmem:[%s6436 + $0x1c] sm:$0xf]
        %v6453 = vunpack.c.l.b16 %v6437
        %v6454 = vunpack.c.l.b16 %v6438
        %v6455 = vunpack.c.l.b16 %v6439
        %v6456 = vunpack.c.l.b16 %v6440
        %v6457 = vunpack.c.l.b16 %v6441
        %v6458 = vunpack.c.l.b16 %v6442
        %v6459 = vunpack.c.l.b16 %v6443
        %v6460 = vunpack.c.l.b16 %v6444
        %v6461 = vpack.c.b16 %v6454, %v6453
        %v6462 = vpack.c.b16 %v6456, %v6455
        %v6463 = vpack.c.b16 %v6458, %v6457
        %v6464 = vpack.c.b16 %v6460, %v6459
        %v6470 = vsel %vm457, %v6434, 0
        %6472 = vmatprep.subr.bf16.mxu0 0
        %6473 = vmatpush1.bf16.msra.mxu0 %v6461
        %6474 = vmatprep.subr.bf16.mxu0 0
        %6475 = vmatpush1.bf16.msra.mxu0 %v6462
        %6476 = vmatprep.subr.bf16.mxu0 0
        %6477 = vmatpush1.bf16.msra.mxu0 %v6463
        %6478 = vmatprep.subr.bf16.mxu0 0
        %6479 = vmatpush1.bf16.msra.mxu0 %v6464
        %6480 = vmatprep.subr.bf16.mxu0 0
        %6481 = vmatpush1.bf16.msra.mxu0 0
        %6482 = vmatprep.subr.bf16.mxu0 0
        %6483 = vmatpush1.bf16.msra.mxu0 0
        %6484 = vmatprep.subr.bf16.mxu0 0
        %6485 = vmatpush1.bf16.msra.mxu0 0
        %6486 = vmatprep.subr.bf16.mxu0 0
        %6487 = vmatpush1.bf16.msra.mxu0 0
        %6488 = vmatprep.subr.bf16.mxu0 0
        %6489 = vmatpush1.bf16.msra.mxu0 0
        %6490 = vmatprep.subr.bf16.mxu0 0
        %6491 = vmatpush1.bf16.msra.mxu0 0
        %6492 = vmatprep.subr.bf16.mxu0 0
        %6493 = vmatpush1.bf16.msra.mxu0 0
        %6494 = vmatprep.subr.bf16.mxu0 0
        %6495 = vmatpush1.bf16.msra.mxu0 0
        %6496 = vmatprep.subr.bf16.mxu0 0
        %6497 = vmatpush1.bf16.msra.mxu0 0
        %6498 = vmatprep.subr.bf16.mxu0 0
        %6499 = vmatpush1.bf16.msra.mxu0 0
        %6500 = vmatprep.subr.bf16.mxu0 0
        %6501 = vmatpush1.bf16.msra.mxu0 0
        %6502 = vmatprep.subr.bf16.mxu0 0
        %6503 = vmatpush1.bf16.msra.mxu0 0
        %6504 = vmatprep.mubr.bf16.mxu0 0
        %6505 = vmatmul.mubr.bf16.gmra.mrb[0].mxu0 %v6470
        %v6506 = vpop.f32.mrb[0].mxu0
        %v6507 = vadd.f32 0.0, %v6506
        %v6508 = vpop.f32.mrb[0].mxu0
        %v6509 = vpop.f32.mrb[0].mxu0
        %v6510 = vpop.f32.mrb[0].mxu0
        %6511 = vdwg.mxu0
        %v6513 = vsel %vm457, %v6435, 0
        %6515 = vmatprep.subr.bf16.mxu0 0
        %6516 = vmatpush1.bf16.msra.mxu0 %v6461
        %6517 = vmatprep.subr.bf16.mxu0 0
        %6518 = vmatpush1.bf16.msra.mxu0 %v6462
        %6519 = vmatprep.subr.bf16.mxu0 0
        %6520 = vmatpush1.bf16.msra.mxu0 %v6463
        %6521 = vmatprep.subr.bf16.mxu0 0
        %6522 = vmatpush1.bf16.msra.mxu0 %v6464
        %6523 = vmatprep.subr.bf16.mxu0 0
        %6524 = vmatpush1.bf16.msra.mxu0 0
        %6525 = vmatprep.subr.bf16.mxu0 0
        %6526 = vmatpush1.bf16.msra.mxu0 0
        %6527 = vmatprep.subr.bf16.mxu0 0
        %6528 = vmatpush1.bf16.msra.mxu0 0
        %6529 = vmatprep.subr.bf16.mxu0 0
        %6530 = vmatpush1.bf16.msra.mxu0 0
        %6531 = vmatprep.subr.bf16.mxu0 0
        %6532 = vmatpush1.bf16.msra.mxu0 0
        %6533 = vmatprep.subr.bf16.mxu0 0
        %6534 = vmatpush1.bf16.msra.mxu0 0
        %6535 = vmatprep.subr.bf16.mxu0 0
        %6536 = vmatpush1.bf16.msra.mxu0 0
        %6537 = vmatprep.subr.bf16.mxu0 0
        %6538 = vmatpush1.bf16.msra.mxu0 0
        %6539 = vmatprep.subr.bf16.mxu0 0
        %6540 = vmatpush1.bf16.msra.mxu0 0
        %6541 = vmatprep.subr.bf16.mxu0 0
        %6542 = vmatpush1.bf16.msra.mxu0 0
        %6543 = vmatprep.subr.bf16.mxu0 0
        %6544 = vmatpush1.bf16.msra.mxu0 0
        %6545 = vmatprep.subr.bf16.mxu0 0
        %6546 = vmatpush1.bf16.msra.mxu0 0
        %6547 = vmatprep.mubr.bf16.mxu0 0
        %6548 = vmatmul.mubr.bf16.gmra.mrb[0].mxu0 %v6513
        %v6549 = vpop.f32.mrb[0].mxu0
        %v6550 = vadd.f32 0.0, %v6549
        %v6551 = vpop.f32.mrb[0].mxu0
        %v6552 = vpop.f32.mrb[0].mxu0
        %v6553 = vpop.f32.mrb[0].mxu0
        %6554 = vdwg.mxu0
        %v6555 = vadd.f32 %v6428, %v6507
        %v6556 = vadd.f32 %v6429, %v6550
        %s6557 = scalar_lea.vmem %s5923, 2 [#allocation4]
        %v6558 = vld [vmem:[%s6557] ss:$2 sm:$0x3]
        %s6559 = scalar_lea.vmem %s5923, 18 [#allocation4]
        %v6560 = vld [vmem:[%s6559] ss:$2 sm:$0x3]
        %v6561 = vpack.c.bf16 %v6558, %v6558
        %v6562 = vpack.c.bf16 %v6560, %v6560
        %s6563 = scalar_lea.vmem [#allocation5], 160
        %v6564 = vld [vmem:[%s6563] sm:$0xf]
        %v6565 = vld [vmem:[%s6563 + $0x4] sm:$0xf]
        %v6566 = vld [vmem:[%s6563 + $0x8] sm:$0xf]
        %v6567 = vld [vmem:[%s6563 + $0xc] sm:$0xf]
        %v6568 = vld [vmem:[%s6563 + $0x10] sm:$0xf]
        %v6569 = vld [vmem:[%s6563 + $0x14] sm:$0xf]
        %v6570 = vld [vmem:[%s6563 + $0x18] sm:$0xf]
        %v6571 = vld [vmem:[%s6563 + $0x1c] sm:$0xf]
        %v6580 = vunpack.c.l.b16 %v6564
        %v6581 = vunpack.c.l.b16 %v6565
        %v6582 = vunpack.c.l.b16 %v6566
        %v6583 = vunpack.c.l.b16 %v6567
        %v6584 = vunpack.c.l.b16 %v6568
        %v6585 = vunpack.c.l.b16 %v6569
        %v6586 = vunpack.c.l.b16 %v6570
        %v6587 = vunpack.c.l.b16 %v6571
        %v6588 = vpack.c.b16 %v6581, %v6580
        %v6589 = vpack.c.b16 %v6583, %v6582
        %v6590 = vpack.c.b16 %v6585, %v6584
        %v6591 = vpack.c.b16 %v6587, %v6586
        %v6597 = vsel %vm457, %v6561, 0
        %6599 = vmatprep.subr.bf16.mxu0 0
        %6600 = vmatpush1.bf16.msra.mxu0 %v6588
        %6601 = vmatprep.subr.bf16.mxu0 0
        %6602 = vmatpush1.bf16.msra.mxu0 %v6589
        %6603 = vmatprep.subr.bf16.mxu0 0
        %6604 = vmatpush1.bf16.msra.mxu0 %v6590
        %6605 = vmatprep.subr.bf16.mxu0 0
        %6606 = vmatpush1.bf16.msra.mxu0 %v6591
        %6607 = vmatprep.subr.bf16.mxu0 0
        %6608 = vmatpush1.bf16.msra.mxu0 0
        %6609 = vmatprep.subr.bf16.mxu0 0
        %6610 = vmatpush1.bf16.msra.mxu0 0
        %6611 = vmatprep.subr.bf16.mxu0 0
        %6612 = vmatpush1.bf16.msra.mxu0 0
        %6613 = vmatprep.subr.bf16.mxu0 0
        %6614 = vmatpush1.bf16.msra.mxu0 0
        %6615 = vmatprep.subr.bf16.mxu0 0
        %6616 = vmatpush1.bf16.msra.mxu0 0
        %6617 = vmatprep.subr.bf16.mxu0 0
        %6618 = vmatpush1.bf16.msra.mxu0 0
        %6619 = vmatprep.subr.bf16.mxu0 0
        %6620 = vmatpush1.bf16.msra.mxu0 0
        %6621 = vmatprep.subr.bf16.mxu0 0
        %6622 = vmatpush1.bf16.msra.mxu0 0
        %6623 = vmatprep.subr.bf16.mxu0 0
        %6624 = vmatpush1.bf16.msra.mxu0 0
        %6625 = vmatprep.subr.bf16.mxu0 0
        %6626 = vmatpush1.bf16.msra.mxu0 0
        %6627 = vmatprep.subr.bf16.mxu0 0
        %6628 = vmatpush1.bf16.msra.mxu0 0
        %6629 = vmatprep.subr.bf16.mxu0 0
        %6630 = vmatpush1.bf16.msra.mxu0 0
        %6631 = vmatprep.mubr.bf16.mxu0 0
        %6632 = vmatmul.mubr.bf16.gmra.mrb[0].mxu0 %v6597
        %v6633 = vpop.f32.mrb[0].mxu0
        %v6634 = vadd.f32 0.0, %v6633
        %v6635 = vpop.f32.mrb[0].mxu0
        %v6636 = vpop.f32.mrb[0].mxu0
        %v6637 = vpop.f32.mrb[0].mxu0
        %6638 = vdwg.mxu0
        %v6640 = vsel %vm457, %v6562, 0
        %6642 = vmatprep.subr.bf16.mxu0 0
        %6643 = vmatpush1.bf16.msra.mxu0 %v6588
        %6644 = vmatprep.subr.bf16.mxu0 0
        %6645 = vmatpush1.bf16.msra.mxu0 %v6589
        %6646 = vmatprep.subr.bf16.mxu0 0
        %6647 = vmatpush1.bf16.msra.mxu0 %v6590
        %6648 = vmatprep.subr.bf16.mxu0 0
        %6649 = vmatpush1.bf16.msra.mxu0 %v6591
        %6650 = vmatprep.subr.bf16.mxu0 0
        %6651 = vmatpush1.bf16.msra.mxu0 0
        %6652 = vmatprep.subr.bf16.mxu0 0
        %6653 = vmatpush1.bf16.msra.mxu0 0
        %6654 = vmatprep.subr.bf16.mxu0 0
        %6655 = vmatpush1.bf16.msra.mxu0 0
        %6656 = vmatprep.subr.bf16.mxu0 0
        %6657 = vmatpush1.bf16.msra.mxu0 0
        %6658 = vmatprep.subr.bf16.mxu0 0
        %6659 = vmatpush1.bf16.msra.mxu0 0
        %6660 = vmatprep.subr.bf16.mxu0 0
        %6661 = vmatpush1.bf16.msra.mxu0 0
        %6662 = vmatprep.subr.bf16.mxu0 0
        %6663 = vmatpush1.bf16.msra.mxu0 0
        %6664 = vmatprep.subr.bf16.mxu0 0
        %6665 = vmatpush1.bf16.msra.mxu0 0
        %6666 = vmatprep.subr.bf16.mxu0 0
        %6667 = vmatpush1.bf16.msra.mxu0 0
        %6668 = vmatprep.subr.bf16.mxu0 0
        %6669 = vmatpush1.bf16.msra.mxu0 0
        %6670 = vmatprep.subr.bf16.mxu0 0
        %6671 = vmatpush1.bf16.msra.mxu0 0
        %6672 = vmatprep.subr.bf16.mxu0 0
        %6673 = vmatpush1.bf16.msra.mxu0 0
        %6674 = vmatprep.mubr.bf16.mxu0 0
        %6675 = vmatmul.mubr.bf16.gmra.mrb[0].mxu0 %v6640
        %v6676 = vpop.f32.mrb[0].mxu0
        %v6677 = vadd.f32 0.0, %v6676
        %v6678 = vpop.f32.mrb[0].mxu0
        %v6679 = vpop.f32.mrb[0].mxu0
        %v6680 = vpop.f32.mrb[0].mxu0
        %6681 = vdwg.mxu0
        %v6682 = vadd.f32 %v6555, %v6634
        %v6683 = vadd.f32 %v6556, %v6677
        %s6684 = scalar_lea.vmem [#allocation4], 16
        %v6685 = vld [vmem:[%s6684] ss:$2 sm:$0x3]
        %s6686 = scalar_lea.vmem %s6684, 16 [#allocation4]
        %v6687 = vld [vmem:[%s6686] ss:$2 sm:$0x3]
        %v6688 = vpack.c.bf16 %v6685, %v6685
        %v6689 = vpack.c.bf16 %v6687, %v6687
        %s6690 = scalar_lea.vmem [#allocation5], 192
        %v6691 = vld [vmem:[%s6690] sm:$0xf]
        %v6692 = vld [vmem:[%s6690 + $0x4] sm:$0xf]
        %v6693 = vld [vmem:[%s6690 + $0x8] sm:$0xf]
        %v6694 = vld [vmem:[%s6690 + $0xc] sm:$0xf]
        %v6695 = vld [vmem:[%s6690 + $0x10] sm:$0xf]
        %v6696 = vld [vmem:[%s6690 + $0x14] sm:$0xf]
        %v6697 = vld [vmem:[%s6690 + $0x18] sm:$0xf]
        %v6698 = vld [vmem:[%s6690 + $0x1c] sm:$0xf]
        %v6707 = vunpack.c.l.b16 %v6691
        %v6708 = vunpack.c.l.b16 %v6692
        %v6709 = vunpack.c.l.b16 %v6693
        %v6710 = vunpack.c.l.b16 %v6694
        %v6711 = vunpack.c.l.b16 %v6695
        %v6712 = vunpack.c.l.b16 %v6696
        %v6713 = vunpack.c.l.b16 %v6697
        %v6714 = vunpack.c.l.b16 %v6698
        %v6715 = vpack.c.b16 %v6708, %v6707
        %v6716 = vpack.c.b16 %v6710, %v6709
        %v6717 = vpack.c.b16 %v6712, %v6711
        %v6718 = vpack.c.b16 %v6714, %v6713
        %v6724 = vsel %vm457, %v6688, 0
        %6726 = vmatprep.subr.bf16.mxu0 0
        %6727 = vmatpush1.bf16.msra.mxu0 %v6715
        %6728 = vmatprep.subr.bf16.mxu0 0
        %6729 = vmatpush1.bf16.msra.mxu0 %v6716
        %6730 = vmatprep.subr.bf16.mxu0 0
        %6731 = vmatpush1.bf16.msra.mxu0 %v6717
        %6732 = vmatprep.subr.bf16.mxu0 0
        %6733 = vmatpush1.bf16.msra.mxu0 %v6718
        %6734 = vmatprep.subr.bf16.mxu0 0
        %6735 = vmatpush1.bf16.msra.mxu0 0
        %6736 = vmatprep.subr.bf16.mxu0 0
        %6737 = vmatpush1.bf16.msra.mxu0 0
        %6738 = vmatprep.subr.bf16.mxu0 0
        %6739 = vmatpush1.bf16.msra.mxu0 0
        %6740 = vmatprep.subr.bf16.mxu0 0
        %6741 = vmatpush1.bf16.msra.mxu0 0
        %6742 = vmatprep.subr.bf16.mxu0 0
        %6743 = vmatpush1.bf16.msra.mxu0 0
        %6744 = vmatprep.subr.bf16.mxu0 0
        %6745 = vmatpush1.bf16.msra.mxu0 0
        %6746 = vmatprep.subr.bf16.mxu0 0
        %6747 = vmatpush1.bf16.msra.mxu0 0
        %6748 = vmatprep.subr.bf16.mxu0 0
        %6749 = vmatpush1.bf16.msra.mxu0 0
        %6750 = vmatprep.subr.bf16.mxu0 0
        %6751 = vmatpush1.bf16.msra.mxu0 0
        %6752 = vmatprep.subr.bf16.mxu0 0
        %6753 = vmatpush1.bf16.msra.mxu0 0
        %6754 = vmatprep.subr.bf16.mxu0 0
        %6755 = vmatpush1.bf16.msra.mxu0 0
        %6756 = vmatprep.subr.bf16.mxu0 0
        %6757 = vmatpush1.bf16.msra.mxu0 0
        %6758 = vmatprep.mubr.bf16.mxu0 0
        %6759 = vmatmul.mubr.bf16.gmra.mrb[0].mxu0 %v6724
        %v6760 = vpop.f32.mrb[0].mxu0
        %v6761 = vadd.f32 0.0, %v6760
        %v6762 = vpop.f32.mrb[0].mxu0
        %v6763 = vpop.f32.mrb[0].mxu0
        %v6764 = vpop.f32.mrb[0].mxu0
        %6765 = vdwg.mxu0
        %v6767 = vsel %vm457, %v6689, 0
        %6769 = vmatprep.subr.bf16.mxu0 0
        %6770 = vmatpush1.bf16.msra.mxu0 %v6715
        %6771 = vmatprep.subr.bf16.mxu0 0
        %6772 = vmatpush1.bf16.msra.mxu0 %v6716
        %6773 = vmatprep.subr.bf16.mxu0 0
        %6774 = vmatpush1.bf16.msra.mxu0 %v6717
        %6775 = vmatprep.subr.bf16.mxu0 0
        %6776 = vmatpush1.bf16.msra.mxu0 %v6718
        %6777 = vmatprep.subr.bf16.mxu0 0
        %6778 = vmatpush1.bf16.msra.mxu0 0
        %6779 = vmatprep.subr.bf16.mxu0 0
        %6780 = vmatpush1.bf16.msra.mxu0 0
        %6781 = vmatprep.subr.bf16.mxu0 0
        %6782 = vmatpush1.bf16.msra.mxu0 0
        %6783 = vmatprep.subr.bf16.mxu0 0
        %6784 = vmatpush1.bf16.msra.mxu0 0
        %6785 = vmatprep.subr.bf16.mxu0 0
        %6786 = vmatpush1.bf16.msra.mxu0 0
        %6787 = vmatprep.subr.bf16.mxu0 0
        %6788 = vmatpush1.bf16.msra.mxu0 0
        %6789 = vmatprep.subr.bf16.mxu0 0
        %6790 = vmatpush1.bf16.msra.mxu0 0
        %6791 = vmatprep.subr.bf16.mxu0 0
        %6792 = vmatpush1.bf16.msra.mxu0 0
        %6793 = vmatprep.subr.bf16.mxu0 0
        %6794 = vmatpush1.bf16.msra.mxu0 0
        %6795 = vmatprep.subr.bf16.mxu0 0
        %6796 = vmatpush1.bf16.msra.mxu0 0
        %6797 = vmatprep.subr.bf16.mxu0 0
        %6798 = vmatpush1.bf16.msra.mxu0 0
        %6799 = vmatprep.subr.bf16.mxu0 0
        %6800 = vmatpush1.bf16.msra.mxu0 0
        %6801 = vmatprep.mubr.bf16.mxu0 0
        %6802 = vmatmul.mubr.bf16.gmra.mrb[0].mxu0 %v6767
        %v6803 = vpop.f32.mrb[0].mxu0
        %v6804 = vadd.f32 0.0, %v6803
        %v6805 = vpop.f32.mrb[0].mxu0
        %v6806 = vpop.f32.mrb[0].mxu0
        %v6807 = vpop.f32.mrb[0].mxu0
        %6808 = vdwg.mxu0
        %v6809 = vadd.f32 %v6682, %v6761
        %v6810 = vadd.f32 %v6683, %v6804
        %s6811 = scalar_lea.vmem %s6684, 1 [#allocation4]
        %v6812 = vld [vmem:[%s6811] ss:$2 sm:$0x3]
        %s6813 = scalar_lea.vmem %s6684, 17 [#allocation4]
        %v6814 = vld [vmem:[%s6813] ss:$2 sm:$0x3]
        %v6815 = vpack.c.bf16 %v6812, %v6812
        %v6816 = vpack.c.bf16 %v6814, %v6814
        %s6817 = scalar_lea.vmem [#allocation5], 224
        %v6818 = vld [vmem:[%s6817] sm:$0xf]
        %v6819 = vld [vmem:[%s6817 + $0x4] sm:$0xf]
        %v6820 = vld [vmem:[%s6817 + $0x8] sm:$0xf]
        %v6821 = vld [vmem:[%s6817 + $0xc] sm:$0xf]
        %v6822 = vld [vmem:[%s6817 + $0x10] sm:$0xf]
        %v6823 = vld [vmem:[%s6817 + $0x14] sm:$0xf]
        %v6824 = vld [vmem:[%s6817 + $0x18] sm:$0xf]
        %v6825 = vld [vmem:[%s6817 + $0x1c] sm:$0xf]
        %v6834 = vunpack.c.l.b16 %v6818
        %v6835 = vunpack.c.l.b16 %v6819
        %v6836 = vunpack.c.l.b16 %v6820
        %v6837 = vunpack.c.l.b16 %v6821
        %v6838 = vunpack.c.l.b16 %v6822
        %v6839 = vunpack.c.l.b16 %v6823
        %v6840 = vunpack.c.l.b16 %v6824
        %v6841 = vunpack.c.l.b16 %v6825
        %v6842 = vpack.c.b16 %v6835, %v6834
        %v6843 = vpack.c.b16 %v6837, %v6836
        %v6844 = vpack.c.b16 %v6839, %v6838
        %v6845 = vpack.c.b16 %v6841, %v6840
        %v6851 = vsel %vm457, %v6815, 0
        %6853 = vmatprep.subr.bf16.mxu0 0
        %6854 = vmatpush1.bf16.msra.mxu0 %v6842
        %6855 = vmatprep.subr.bf16.mxu0 0
        %6856 = vmatpush1.bf16.msra.mxu0 %v6843
        %6857 = vmatprep.subr.bf16.mxu0 0
        %6858 = vmatpush1.bf16.msra.mxu0 %v6844
        %6859 = vmatprep.subr.bf16.mxu0 0
        %6860 = vmatpush1.bf16.msra.mxu0 %v6845
        %6861 = vmatprep.subr.bf16.mxu0 0
        %6862 = vmatpush1.bf16.msra.mxu0 0
        %6863 = vmatprep.subr.bf16.mxu0 0
        %6864 = vmatpush1.bf16.msra.mxu0 0
        %6865 = vmatprep.subr.bf16.mxu0 0
        %6866 = vmatpush1.bf16.msra.mxu0 0
        %6867 = vmatprep.subr.bf16.mxu0 0
        %6868 = vmatpush1.bf16.msra.mxu0 0
        %6869 = vmatprep.subr.bf16.mxu0 0
        %6870 = vmatpush1.bf16.msra.mxu0 0
        %6871 = vmatprep.subr.bf16.mxu0 0
        %6872 = vmatpush1.bf16.msra.mxu0 0
        %6873 = vmatprep.subr.bf16.mxu0 0
        %6874 = vmatpush1.bf16.msra.mxu0 0
        %6875 = vmatprep.subr.bf16.mxu0 0
        %6876 = vmatpush1.bf16.msra.mxu0 0
        %6877 = vmatprep.subr.bf16.mxu0 0
        %6878 = vmatpush1.bf16.msra.mxu0 0
        %6879 = vmatprep.subr.bf16.mxu0 0
        %6880 = vmatpush1.bf16.msra.mxu0 0
        %6881 = vmatprep.subr.bf16.mxu0 0
        %6882 = vmatpush1.bf16.msra.mxu0 0
        %6883 = vmatprep.subr.bf16.mxu0 0
        %6884 = vmatpush1.bf16.msra.mxu0 0
        %6885 = vmatprep.mubr.bf16.mxu0 0
        %6886 = vmatmul.mubr.bf16.gmra.mrb[0].mxu0 %v6851
        %v6887 = vpop.f32.mrb[0].mxu0
        %v6888 = vadd.f32 0.0, %v6887
        %v6889 = vpop.f32.mrb[0].mxu0
        %v6890 = vpop.f32.mrb[0].mxu0
        %v6891 = vpop.f32.mrb[0].mxu0
        %6892 = vdwg.mxu0
        %v6894 = vsel %vm457, %v6816, 0
        %6896 = vmatprep.subr.bf16.mxu0 0
        %6897 = vmatpush1.bf16.msra.mxu0 %v6842
        %6898 = vmatprep.subr.bf16.mxu0 0
        %6899 = vmatpush1.bf16.msra.mxu0 %v6843
        %6900 = vmatprep.subr.bf16.mxu0 0
        %6901 = vmatpush1.bf16.msra.mxu0 %v6844
        %6902 = vmatprep.subr.bf16.mxu0 0
        %6903 = vmatpush1.bf16.msra.mxu0 %v6845
        %6904 = vmatprep.subr.bf16.mxu0 0
        %6905 = vmatpush1.bf16.msra.mxu0 0
        %6906 = vmatprep.subr.bf16.mxu0 0
        %6907 = vmatpush1.bf16.msra.mxu0 0
        %6908 = vmatprep.subr.bf16.mxu0 0
        %6909 = vmatpush1.bf16.msra.mxu0 0
        %6910 = vmatprep.subr.bf16.mxu0 0
        %6911 = vmatpush1.bf16.msra.mxu0 0
        %6912 = vmatprep.subr.bf16.mxu0 0
        %6913 = vmatpush1.bf16.msra.mxu0 0
        %6914 = vmatprep.subr.bf16.mxu0 0
        %6915 = vmatpush1.bf16.msra.mxu0 0
        %6916 = vmatprep.subr.bf16.mxu0 0
        %6917 = vmatpush1.bf16.msra.mxu0 0
        %6918 = vmatprep.subr.bf16.mxu0 0
        %6919 = vmatpush1.bf16.msra.mxu0 0
        %6920 = vmatprep.subr.bf16.mxu0 0
        %6921 = vmatpush1.bf16.msra.mxu0 0
        %6922 = vmatprep.subr.bf16.mxu0 0
        %6923 = vmatpush1.bf16.msra.mxu0 0
        %6924 = vmatprep.subr.bf16.mxu0 0
        %6925 = vmatpush1.bf16.msra.mxu0 0
        %6926 = vmatprep.subr.bf16.mxu0 0
        %6927 = vmatpush1.bf16.msra.mxu0 0
        %6928 = vmatprep.mubr.bf16.mxu0 0
        %6929 = vmatmul.mubr.bf16.gmra.mrb[0].mxu0 %v6894
        %v6930 = vpop.f32.mrb[0].mxu0
        %v6931 = vadd.f32 0.0, %v6930
        %v6932 = vpop.f32.mrb[0].mxu0
        %v6933 = vpop.f32.mrb[0].mxu0
        %v6934 = vpop.f32.mrb[0].mxu0
        %6935 = vdwg.mxu0
        %v6936 = vadd.f32 %v6809, %v6888
        %v6937 = vadd.f32 %v6810, %v6931
        %s6938 = scalar_lea.vmem %s6684, 2 [#allocation4]
        %v6939 = vld [vmem:[%s6938] ss:$2 sm:$0x3]
        %s6940 = scalar_lea.vmem %s6684, 18 [#allocation4]
        %v6941 = vld [vmem:[%s6940] ss:$2 sm:$0x3]
        %v6942 = vpack.c.bf16 %v6939, %v6939
        %v6943 = vpack.c.bf16 %v6941, %v6941
        %s6944 = scalar_lea.vmem [#allocation5], 256
        %v6945 = vld [vmem:[%s6944] sm:$0xf]
        %v6946 = vld [vmem:[%s6944 + $0x4] sm:$0xf]
        %v6947 = vld [vmem:[%s6944 + $0x8] sm:$0xf]
        %v6948 = vld [vmem:[%s6944 + $0xc] sm:$0xf]
        %v6949 = vld [vmem:[%s6944 + $0x10] sm:$0xf]
        %v6950 = vld [vmem:[%s6944 + $0x14] sm:$0xf]
        %v6951 = vld [vmem:[%s6944 + $0x18] sm:$0xf]
        %v6952 = vld [vmem:[%s6944 + $0x1c] sm:$0xf]
        %v6961 = vunpack.c.l.b16 %v6945
        %v6962 = vunpack.c.l.b16 %v6946
        %v6963 = vunpack.c.l.b16 %v6947
        %v6964 = vunpack.c.l.b16 %v6948
        %v6965 = vunpack.c.l.b16 %v6949
        %v6966 = vunpack.c.l.b16 %v6950
        %v6967 = vunpack.c.l.b16 %v6951
        %v6968 = vunpack.c.l.b16 %v6952
        %v6969 = vpack.c.b16 %v6962, %v6961
        %v6970 = vpack.c.b16 %v6964, %v6963
        %v6971 = vpack.c.b16 %v6966, %v6965
        %v6972 = vpack.c.b16 %v6968, %v6967
        %v6978 = vsel %vm457, %v6942, 0
        %6980 = vmatprep.subr.bf16.mxu0 0
        %6981 = vmatpush1.bf16.msra.mxu0 %v6969
        %6982 = vmatprep.subr.bf16.mxu0 0
        %6983 = vmatpush1.bf16.msra.mxu0 %v6970
        %6984 = vmatprep.subr.bf16.mxu0 0
        %6985 = vmatpush1.bf16.msra.mxu0 %v6971
        %6986 = vmatprep.subr.bf16.mxu0 0
        %6987 = vmatpush1.bf16.msra.mxu0 %v6972
        %6988 = vmatprep.subr.bf16.mxu0 0
        %6989 = vmatpush1.bf16.msra.mxu0 0
        %6990 = vmatprep.subr.bf16.mxu0 0
        %6991 = vmatpush1.bf16.msra.mxu0 0
        %6992 = vmatprep.subr.bf16.mxu0 0
        %6993 = vmatpush1.bf16.msra.mxu0 0
        %6994 = vmatprep.subr.bf16.mxu0 0
        %6995 = vmatpush1.bf16.msra.mxu0 0
        %6996 = vmatprep.subr.bf16.mxu0 0
        %6997 = vmatpush1.bf16.msra.mxu0 0
        %6998 = vmatprep.subr.bf16.mxu0 0
        %6999 = vmatpush1.bf16.msra.mxu0 0
        %7000 = vmatprep.subr.bf16.mxu0 0
        %7001 = vmatpush1.bf16.msra.mxu0 0
        %7002 = vmatprep.subr.bf16.mxu0 0
        %7003 = vmatpush1.bf16.msra.mxu0 0
        %7004 = vmatprep.subr.bf16.mxu0 0
        %7005 = vmatpush1.bf16.msra.mxu0 0
        %7006 = vmatprep.subr.bf16.mxu0 0
        %7007 = vmatpush1.bf16.msra.mxu0 0
        %7008 = vmatprep.subr.bf16.mxu0 0
        %7009 = vmatpush1.bf16.msra.mxu0 0
        %7010 = vmatprep.subr.bf16.mxu0 0
        %7011 = vmatpush1.bf16.msra.mxu0 0
        %7012 = vmatprep.mubr.bf16.mxu0 0
        %7013 = vmatmul.mubr.bf16.gmra.mrb[0].mxu0 %v6978
        %v7014 = vpop.f32.mrb[0].mxu0
        %v7015 = vadd.f32 0.0, %v7014
        %v7016 = vpop.f32.mrb[0].mxu0
        %v7017 = vpop.f32.mrb[0].mxu0
        %v7018 = vpop.f32.mrb[0].mxu0
        %7019 = vdwg.mxu0
        %v7021 = vsel %vm457, %v6943, 0
        %7023 = vmatprep.subr.bf16.mxu0 0
        %7024 = vmatpush1.bf16.msra.mxu0 %v6969
        %7025 = vmatprep.subr.bf16.mxu0 0
        %7026 = vmatpush1.bf16.msra.mxu0 %v6970
        %7027 = vmatprep.subr.bf16.mxu0 0
        %7028 = vmatpush1.bf16.msra.mxu0 %v6971
        %7029 = vmatprep.subr.bf16.mxu0 0
        %7030 = vmatpush1.bf16.msra.mxu0 %v6972
        %7031 = vmatprep.subr.bf16.mxu0 0
        %7032 = vmatpush1.bf16.msra.mxu0 0
        %7033 = vmatprep.subr.bf16.mxu0 0
        %7034 = vmatpush1.bf16.msra.mxu0 0
        %7035 = vmatprep.subr.bf16.mxu0 0
        %7036 = vmatpush1.bf16.msra.mxu0 0
        %7037 = vmatprep.subr.bf16.mxu0 0
        %7038 = vmatpush1.bf16.msra.mxu0 0
        %7039 = vmatprep.subr.bf16.mxu0 0
        %7040 = vmatpush1.bf16.msra.mxu0 0
        %7041 = vmatprep.subr.bf16.mxu0 0
        %7042 = vmatpush1.bf16.msra.mxu0 0
        %7043 = vmatprep.subr.bf16.mxu0 0
        %7044 = vmatpush1.bf16.msra.mxu0 0
        %7045 = vmatprep.subr.bf16.mxu0 0
        %7046 = vmatpush1.bf16.msra.mxu0 0
        %7047 = vmatprep.subr.bf16.mxu0 0
        %7048 = vmatpush1.bf16.msra.mxu0 0
        %7049 = vmatprep.subr.bf16.mxu0 0
        %7050 = vmatpush1.bf16.msra.mxu0 0
        %7051 = vmatprep.subr.bf16.mxu0 0
        %7052 = vmatpush1.bf16.msra.mxu0 0
        %7053 = vmatprep.subr.bf16.mxu0 0
        %7054 = vmatpush1.bf16.msra.mxu0 0
        %7055 = vmatprep.mubr.bf16.mxu0 0
        %7056 = vmatmul.mubr.bf16.gmra.mrb[0].mxu0 %v7021
        %v7057 = vpop.f32.mrb[0].mxu0
        %v7058 = vadd.f32 0.0, %v7057
        %v7059 = vpop.f32.mrb[0].mxu0
        %v7060 = vpop.f32.mrb[0].mxu0
        %v7061 = vpop.f32.mrb[0].mxu0
        %7062 = vdwg.mxu0
        %v7063 = vadd.f32 %v6936, %v7015
        %v7064 = vadd.f32 %v6937, %v7058
        %v7065 = vld [vmem:[%s6] sm:$0x1]
        %v7067 = vlaneseq
        %v7068 = vshrl.u32 %v7067, 7
        %v7069 = vsub.s32 0, %v7068
        %v7070 = vrot.slane %v7065, %v7069
        %v7072 = vadd.f32 %v7063, %v7070
        %v7073 = vadd.f32 %v7064, %v7070
        %v7074 = vmax.f32 %v7072, 0.0
        %v7075 = vmax.f32 %v7073, 0.0
        %7076 = vst [vmem:[%s286] sm:$0x3] %v7074
        %7077 = vst [vmem:[%s286 + $0x2] sm:$0x3] %v7075
        %s7078 = sand.u32 %s182, 1
        %s7079 = scalar_lea.sflag [#allocation7], %s7078
        %s7080 = sand.u32 %s182, 1
        %s7081 = smul.addr %s7080, 4
        %s7082 = scalar_lea.vmem [#allocation8], %s7081
        // Predicated region
        $region53: #{tpu_custom_call.1} parent=47 // pred_check
          %p7083 = pneg %p192
        $region54: #{tpu_custom_call.1} parent=47 // pred_check_branch
          %7085 = sbr.rel (%p7083) target = $region56
        $region55: #{tpu_custom_call.1} parent=47 // pred_region
          %s7087 = ssub.s32 64, 64
          %7088 = vsyncadd %s7079, %s7087
          %s7089 = smul.addr %s22, 2
          %s7090 = smul.addr %s7089, 32
          %s7091 = scalar_lea.hbm %s7, %s7090
          %s7092 = sshll.u32 %s7082, 4
          %s7093 = int_to_ptr.vmem [resolvable:$true] %s7092
          %7098 = dma.vmem_to_hbm [thread:$0]  %s7093, 64, %s7091, %s7079, 32, 32, 2
        $region56: #{tpu_custom_call.1} parent=47 // pred_fallthru
          _
      $region48: #{tpu_custom_call.1} parent=5 // pred_fallthru
        _
      %p7099 = scmp.le.s32.totalorder 2, %s17
      // Predicated region
      $region57: #{tpu_custom_call.1} parent=5 // pred_check
        %p7100 = pneg %p7099
      $region58: #{tpu_custom_call.1} parent=5 // pred_check_branch
        %7102 = sbr.rel (%p7100) target = $region60
      $region59: #{tpu_custom_call.1} parent=5 // pred_region
        %s7103 = ssub.s32 %s17, 2
        // Predicated region
        $region61: #{tpu_custom_call.1} parent=59 // pred_check
          %p7104 = pneg %p198
        $region62: #{tpu_custom_call.1} parent=59 // pred_check_branch
          %7106 = sbr.rel (%p7104) target = $region64
        $region63: #{tpu_custom_call.1} parent=59 // pred_region
          %s7107 = sand.u32 %s183, 1
          %s7108 = scalar_lea.sflag [#allocation7], %s7107
          %s7109 = sand.u32 %s183, 1
          %s7110 = smul.addr %s7109, 4
          %s7111 = scalar_lea.vmem [#allocation8], %s7110
          %7112 = dma.done %s7108, 64
        $region64: #{tpu_custom_call.1} parent=59 // pred_fallthru
          _
      $region60: #{tpu_custom_call.1} parent=5 // pred_fallthru
        _
    $region6: #{tpu_custom_call.1} parent=1 // loop_footer
      %s21 = sadd.s32 1, %s17
    $region7: #{tpu_custom_call.1} parent=1 // loop_footer_branch
      %16 = sbr.rel target = $region3
    $region8: #{tpu_custom_call.1} parent=1 // loop_exit
      _
    %7113 = vsyncpa [#allocation6], 1
    %s7114 = scalar_lea.sflag [#allocation6], 1
    %7115 = vsyncpa %s7114, 1
    %7116 = vsyncpa [#allocation7], 1
    %s7117 = scalar_lea.sflag [#allocation7], 1
    %7118 = vsyncpa %s7117, 1

</llo_original>
